<compile_context>
chip_gen: v7x
topology: tpu7x:2x2x1
jax: 0.10.0
libtpu: 0.0.40
codegen_flags: <defaults>
</compile_context>

<pallas_src>
import numpy as np
import jax
import jax.numpy as jnp
from jax import lax
from jax.experimental import pallas as pl
from jax.experimental.pallas import tpu as pltpu

# ----- KNRM hyperparameters (match the PyTorch module defaults) -----
KERNEL_NUM = 21
SIGMA = 0.1
EXACT_SIGMA = 0.001

_start = -1.0 + 1.0 / (KERNEL_NUM - 1)
_step = 2.0 / (KERNEL_NUM - 1)
MUS = [float(m) for m in np.arange(_start, 1.0, _step)] + [1.0]
SIGMAS = [SIGMA] * (KERNEL_NUM - 1) + [EXACT_SIGMA]
INV_2SS = [1.0 / (2.0 * s * s) for s in SIGMAS]
assert len(MUS) == KERNEL_NUM and len(SIGMAS) == KERNEL_NUM

_EPS = 1e-12            # F.normalize default eps
_EPS2 = _EPS * _EPS


def _round_up(x: int, m: int) -> int:
    return (x + m - 1) // m * m


def knrm_kernel(q_ref, d_ref, w_ref, o_ref):
    """One block of BB samples; batch is the minor (lane) axis everywhere.

    q_ref: (1, D, LQ, BB) VMEM     d_ref: (1, D, LD, BB) VMEM
    w_ref: (KERNEL_NUM,)   SMEM     o_ref: (1, 1, BB)      VMEM
    """
    q = q_ref[0]                 # (D, LQ, BB)
    d = d_ref[0]                 # (D, LD, BB)
    D = q.shape[0]
    BB = q.shape[2]

    # One pass over the embedding dim (major axis): accumulate the raw query/doc
    # dot products and both squared L2 norms with plain full-lane VPU mul/adds.
    qv = q[0]                                        # (LQ, BB)
    dv = d[0]                                        # (LD, BB)
    q_sq = qv * qv
    d_sq = dv * dv
    raw = dv[:, None, :] * qv[None, :, :]            # (LD, LQ, BB)
    for dd in range(1, D):
        qv = q[dd]
        dv = d[dd]
        q_sq = q_sq + qv * qv
        d_sq = d_sq + dv * dv
        raw = raw + dv[:, None, :] * qv[None, :, :]

    # Cosine matching matrix: raw / (max(||q||,eps) * max(||d||,eps)), via rsqrt (EUP).
    q_inv = lax.rsqrt(jnp.maximum(q_sq, _EPS2))      # (LQ, BB)
    d_inv = lax.rsqrt(jnp.maximum(d_sq, _EPS2))      # (LD, BB)
    mm = raw * d_inv[:, None, :] * q_inv[None, :, :]  # (LD, LQ, BB)

    # 21 Gaussian kernels: unrolled K loop -> only one (LD, LQ, BB) tensor live
    # at a time; sum over LD is a cheap major-axis add, sum over LQ a one-vreg
    # reduce; the Linear(21 -> 1) is folded into the score accumulation.
    score = jnp.zeros((1, BB), jnp.float32)
    for k in range(KERNEL_NUM):
        diff = mm - MUS[k]
        gk = jnp.exp(diff * diff * (-INV_2SS[k]))        # (LD, LQ, BB)
        soft_tf = jnp.sum(gk, axis=0)                    # (LQ, BB)   sum over doc
        log_tf = jnp.log(1.0 + soft_tf)                  # (LQ, BB)
        feat_k = jnp.sum(log_tf, axis=0, keepdims=True)  # (1, BB)    sum over query
        score = score + feat_k * w_ref[k]                # w_k scalar from SMEM

    o_ref[...] = score[None]                             # (1, 1, BB) lane-dense store


def knrm_forward(query_ids, doc_ids, emb_table, mlp_w, mlp_b, *, block_b=128):
    B, LQ = query_ids.shape
    LD = doc_ids.shape[1]
    D = emb_table.shape[1]

    # Batch block: multiple of 8, capped at block_b; if that would leave a
    # single grid step, halve it so the "parallel" batch axis can shard across
    # both v7x TensorCores.
    BB = min(block_b, _round_up(B, 8))
    if _round_up(B, BB) // BB < 2 and BB > 8:
        BB = max(8, _round_up(_round_up(B, 8) // 2, 8))
    B_pad = _round_up(B, BB)
    G = B_pad // BB

    # Pad the int token IDs (padding_idx=0 -> zero embedding row), NOT the
    # gathered f32 activations.
    if B_pad != B:
        pad = B_pad - B
        query_ids = jnp.pad(query_ids, ((0, pad), (0, 0)))
        doc_ids = jnp.pad(doc_ids, ((0, pad), (0, 0)))

    # TODO(synk): the nn.Embedding gather (frozen pretrained table, padding_idx=0)
    # stays in plain JAX/XLA; a Pallas DMA-gather adds nothing at these sizes.
    q_emb = emb_table[query_ids].astype(jnp.float32)      # (B_pad, LQ, D)
    d_emb = emb_table[doc_ids].astype(jnp.float32)        # (B_pad, LD, D)

    # Lane-dense layout: batch becomes the minor (lane) axis inside each block.
    q_r = q_emb.reshape(G, BB, LQ, D).transpose(0, 3, 2, 1)   # (G, D, LQ, BB)
    d_r = d_emb.reshape(G, BB, LD, D).transpose(0, 3, 2, 1)   # (G, D, LD, BB)

    w1d = mlp_w.reshape(KERNEL_NUM).astype(jnp.float32)

    out = pl.pallas_call(
        knrm_kernel,
        out_shape=jax.ShapeDtypeStruct((G, 1, BB), jnp.float32),
        grid=(G,),
        in_specs=[
            pl.BlockSpec((1, D, LQ, BB), lambda g: (g, 0, 0, 0)),
            pl.BlockSpec((1, D, LD, BB), lambda g: (g, 0, 0, 0)),
            pl.BlockSpec((KERNEL_NUM,), lambda g: (0,),
                         memory_space=pltpu.MemorySpace.SMEM),
        ],
        out_specs=pl.BlockSpec((1, 1, BB), lambda g: (g, 0, 0)),
        compiler_params=pltpu.CompilerParams(
            dimension_semantics=("parallel",)),
    )(q_r, d_r, w1d)

    scores = out.reshape(B_pad, 1)[:B]
    # Linear(21 -> 1) bias folded into the wrapper (drops the SMEM bias operand).
    return scores + mlp_b.reshape(1, 1).astype(jnp.float32)


def knrm_reference(query_ids, doc_ids, emb_table, mlp_w, mlp_b):
    """Pure-JAX reference mirroring the PyTorch forward (all-f32 VPU math)."""
    qe = emb_table[query_ids].astype(jnp.float32)
    de = emb_table[doc_ids].astype(jnp.float32)
    qn = qe / jnp.maximum(jnp.sqrt(jnp.sum(qe * qe, -1, keepdims=True)), _EPS)
    dn = de / jnp.maximum(jnp.sqrt(jnp.sum(de * de, -1, keepdims=True)), _EPS)
    mm = jnp.sum(qn[:, :, None, :] * dn[:, None, :, :], axis=-1)   # (B, LQ, LD)
    feats = []
    for mu, sig in zip(MUS, SIGMAS):
        gk = jnp.exp(-((mm - mu) ** 2) / (2.0 * sig ** 2))
        feats.append(jnp.sum(jnp.log1p(jnp.sum(gk, -1)), -1))
    kernels_out = jnp.stack(feats, axis=1)                          # (B, 21)
    score = jnp.sum(kernels_out * mlp_w.reshape(1, -1), axis=1, keepdims=True)
    return score + mlp_b.reshape(1, 1)


if __name__ == "__main__":
    key = jax.random.PRNGKey(0)
    k_emb, k_q, k_d, k_w, k_b = jax.random.split(key, 5)

    VOCAB, D = 50, 32
    B, LQ, LD = 12, 8, 16   # B=12 exercises blocking (BB=8, grid=2) + ID padding

    # Deterministic synthetic "pretrained" embeddings; row 0 is padding (zeros).
    emb = jax.random.normal(k_emb, (VOCAB, D), jnp.float32)
    emb = emb.at[0].set(0.0)

    q_ids = jax.random.randint(k_q, (B, LQ), 0, VOCAB, jnp.int32)
    d_ids = jax.random.randint(k_d, (B, LD), 0, VOCAB, jnp.int32)

    # Deterministic synthetic Linear(kernel_num, 1) params (torch-style uniform init).
    bound = 1.0 / float(np.sqrt(KERNEL_NUM))
    mlp_w = jax.random.uniform(k_w, (KERNEL_NUM,), jnp.float32, -bound, bound)
    mlp_b = jax.random.uniform(k_b, (1,), jnp.float32, -bound, bound)

    out = jax.block_until_ready(knrm_forward(q_ids, d_ids, emb, mlp_w, mlp_b))
    ref = knrm_reference(q_ids, d_ids, emb, mlp_w, mlp_b)

    assert out.shape == (B, 1), out.shape
    np.testing.assert_allclose(np.asarray(out), np.asarray(ref),
                               rtol=1e-4, atol=1e-4)
    print("KERNEL_OK")
</pallas_src>

<mosaic_0001>
module attributes {stable_mosaic.version = 11 : i64} {
  func.func @knrm_kernel(%arg0: i32, %arg1: memref<1x32x8x8xf32, #tpu.memory_space<vmem>>, %arg2: memref<1x32x16x8xf32, #tpu.memory_space<vmem>>, %arg3: memref<21xf32, #tpu.memory_space<smem>>, %arg4: memref<1x1x8xf32, #tpu.memory_space<vmem>>) attributes {dimension_semantics = [#tpu.dimension_semantics<parallel>], iteration_bounds = array<i64: 2>, scalar_prefetch = 0 : i64, scratch_operands = 0 : i64, tpu.core_type = #tpu.core_type<tc>, window_params = [{transform_indices = @transform_0, window_bounds = array<i64: 1, 32, 8, 8>}, {transform_indices = @transform_1, window_bounds = array<i64: 1, 32, 16, 8>}, {transform_indices = @transform_2, window_bounds = array<i64: 21>}, {transform_indices = @transform_3, window_bounds = array<i64: 1, 1, 8>}]} {
    %c0 = arith.constant 0 : index
    %c0_0 = arith.constant 0 : index
    %c0_1 = arith.constant 0 : index
    %c0_2 = arith.constant 0 : index
    %0 = vector.load %arg1[%c0, %c0_0, %c0_1, %c0_2] : memref<1x32x8x8xf32, #tpu.memory_space<vmem>>, vector<1x32x8x8xf32>
    %1 = vector.shape_cast %0 : vector<1x32x8x8xf32> to vector<32x8x8xf32>
    %c0_3 = arith.constant 0 : index
    %c0_4 = arith.constant 0 : index
    %c0_5 = arith.constant 0 : index
    %c0_6 = arith.constant 0 : index
    %2 = vector.load %arg2[%c0_3, %c0_4, %c0_5, %c0_6] : memref<1x32x16x8xf32, #tpu.memory_space<vmem>>, vector<1x32x16x8xf32>
    %3 = vector.shape_cast %2 : vector<1x32x16x8xf32> to vector<32x16x8xf32>
    %4 = vector.extract_strided_slice %1 {offsets = [0, 0, 0], sizes = [1, 8, 8], strides = [1, 1, 1]} : vector<32x8x8xf32> to vector<1x8x8xf32>
    %5 = vector.shape_cast %4 : vector<1x8x8xf32> to vector<8x8xf32>
    %6 = vector.extract_strided_slice %3 {offsets = [0, 0, 0], sizes = [1, 16, 8], strides = [1, 1, 1]} : vector<32x16x8xf32> to vector<1x16x8xf32>
    %7 = vector.shape_cast %6 : vector<1x16x8xf32> to vector<16x8xf32>
    %8 = arith.mulf %5, %5 : vector<8x8xf32>
    %9 = arith.mulf %7, %7 : vector<16x8xf32>
    %10 = vector.shape_cast %7 : vector<16x8xf32> to vector<16x1x8xf32>
    %11 = vector.shape_cast %5 : vector<8x8xf32> to vector<1x8x8xf32>
    %12 = vector.broadcast %10 : vector<16x1x8xf32> to vector<16x8x8xf32>
    %13 = vector.broadcast %11 : vector<1x8x8xf32> to vector<16x8x8xf32>
    %14 = arith.mulf %12, %13 : vector<16x8x8xf32>
    %15 = vector.extract_strided_slice %1 {offsets = [1, 0, 0], sizes = [1, 8, 8], strides = [1, 1, 1]} : vector<32x8x8xf32> to vector<1x8x8xf32>
    %16 = vector.shape_cast %15 : vector<1x8x8xf32> to vector<8x8xf32>
    %17 = vector.extract_strided_slice %3 {offsets = [1, 0, 0], sizes = [1, 16, 8], strides = [1, 1, 1]} : vector<32x16x8xf32> to vector<1x16x8xf32>
    %18 = vector.shape_cast %17 : vector<1x16x8xf32> to vector<16x8xf32>
    %19 = arith.mulf %16, %16 : vector<8x8xf32>
    %20 = arith.addf %8, %19 : vector<8x8xf32>
    %21 = arith.mulf %18, %18 : vector<16x8xf32>
    %22 = arith.addf %9, %21 : vector<16x8xf32>
    %23 = vector.shape_cast %18 : vector<16x8xf32> to vector<16x1x8xf32>
    %24 = vector.shape_cast %16 : vector<8x8xf32> to vector<1x8x8xf32>
    %25 = vector.broadcast %23 : vector<16x1x8xf32> to vector<16x8x8xf32>
    %26 = vector.broadcast %24 : vector<1x8x8xf32> to vector<16x8x8xf32>
    %27 = arith.mulf %25, %26 : vector<16x8x8xf32>
    %28 = arith.addf %14, %27 : vector<16x8x8xf32>
    %29 = vector.extract_strided_slice %1 {offsets = [2, 0, 0], sizes = [1, 8, 8], strides = [1, 1, 1]} : vector<32x8x8xf32> to vector<1x8x8xf32>
    %30 = vector.shape_cast %29 : vector<1x8x8xf32> to vector<8x8xf32>
    %31 = vector.extract_strided_slice %3 {offsets = [2, 0, 0], sizes = [1, 16, 8], strides = [1, 1, 1]} : vector<32x16x8xf32> to vector<1x16x8xf32>
    %32 = vector.shape_cast %31 : vector<1x16x8xf32> to vector<16x8xf32>
    %33 = arith.mulf %30, %30 : vector<8x8xf32>
    %34 = arith.addf %20, %33 : vector<8x8xf32>
    %35 = arith.mulf %32, %32 : vector<16x8xf32>
    %36 = arith.addf %22, %35 : vector<16x8xf32>
    %37 = vector.shape_cast %32 : vector<16x8xf32> to vector<16x1x8xf32>
    %38 = vector.shape_cast %30 : vector<8x8xf32> to vector<1x8x8xf32>
    %39 = vector.broadcast %37 : vector<16x1x8xf32> to vector<16x8x8xf32>
    %40 = vector.broadcast %38 : vector<1x8x8xf32> to vector<16x8x8xf32>
    %41 = arith.mulf %39, %40 : vector<16x8x8xf32>
    %42 = arith.addf %28, %41 : vector<16x8x8xf32>
    %43 = vector.extract_strided_slice %1 {offsets = [3, 0, 0], sizes = [1, 8, 8], strides = [1, 1, 1]} : vector<32x8x8xf32> to vector<1x8x8xf32>
    %44 = vector.shape_cast %43 : vector<1x8x8xf32> to vector<8x8xf32>
    %45 = vector.extract_strided_slice %3 {offsets = [3, 0, 0], sizes = [1, 16, 8], strides = [1, 1, 1]} : vector<32x16x8xf32> to vector<1x16x8xf32>
    %46 = vector.shape_cast %45 : vector<1x16x8xf32> to vector<16x8xf32>
    %47 = arith.mulf %44, %44 : vector<8x8xf32>
    %48 = arith.addf %34, %47 : vector<8x8xf32>
    %49 = arith.mulf %46, %46 : vector<16x8xf32>
    %50 = arith.addf %36, %49 : vector<16x8xf32>
    %51 = vector.shape_cast %46 : vector<16x8xf32> to vector<16x1x8xf32>
    %52 = vector.shape_cast %44 : vector<8x8xf32> to vector<1x8x8xf32>
    %53 = vector.broadcast %51 : vector<16x1x8xf32> to vector<16x8x8xf32>
    %54 = vector.broadcast %52 : vector<1x8x8xf32> to vector<16x8x8xf32>
    %55 = arith.mulf %53, %54 : vector<16x8x8xf32>
    %56 = arith.addf %42, %55 : vector<16x8x8xf32>
    %57 = vector.extract_strided_slice %1 {offsets = [4, 0, 0], sizes = [1, 8, 8], strides = [1, 1, 1]} : vector<32x8x8xf32> to vector<1x8x8xf32>
    %58 = vector.shape_cast %57 : vector<1x8x8xf32> to vector<8x8xf32>
    %59 = vector.extract_strided_slice %3 {offsets = [4, 0, 0], sizes = [1, 16, 8], strides = [1, 1, 1]} : vector<32x16x8xf32> to vector<1x16x8xf32>
    %60 = vector.shape_cast %59 : vector<1x16x8xf32> to vector<16x8xf32>
    %61 = arith.mulf %58, %58 : vector<8x8xf32>
    %62 = arith.addf %48, %61 : vector<8x8xf32>
    %63 = arith.mulf %60, %60 : vector<16x8xf32>
    %64 = arith.addf %50, %63 : vector<16x8xf32>
    %65 = vector.shape_cast %60 : vector<16x8xf32> to vector<16x1x8xf32>
    %66 = vector.shape_cast %58 : vector<8x8xf32> to vector<1x8x8xf32>
    %67 = vector.broadcast %65 : vector<16x1x8xf32> to vector<16x8x8xf32>
    %68 = vector.broadcast %66 : vector<1x8x8xf32> to vector<16x8x8xf32>
    %69 = arith.mulf %67, %68 : vector<16x8x8xf32>
    %70 = arith.addf %56, %69 : vector<16x8x8xf32>
    %71 = vector.extract_strided_slice %1 {offsets = [5, 0, 0], sizes = [1, 8, 8], strides = [1, 1, 1]} : vector<32x8x8xf32> to vector<1x8x8xf32>
    %72 = vector.shape_cast %71 : vector<1x8x8xf32> to vector<8x8xf32>
    %73 = vector.extract_strided_slice %3 {offsets = [5, 0, 0], sizes = [1, 16, 8], strides = [1, 1, 1]} : vector<32x16x8xf32> to vector<1x16x8xf32>
    %74 = vector.shape_cast %73 : vector<1x16x8xf32> to vector<16x8xf32>
    %75 = arith.mulf %72, %72 : vector<8x8xf32>
    %76 = arith.addf %62, %75 : vector<8x8xf32>
    %77 = arith.mulf %74, %74 : vector<16x8xf32>
    %78 = arith.addf %64, %77 : vector<16x8xf32>
    %79 = vector.shape_cast %74 : vector<16x8xf32> to vector<16x1x8xf32>
    %80 = vector.shape_cast %72 : vector<8x8xf32> to vector<1x8x8xf32>
    %81 = vector.broadcast %79 : vector<16x1x8xf32> to vector<16x8x8xf32>
    %82 = vector.broadcast %80 : vector<1x8x8xf32> to vector<16x8x8xf32>
    %83 = arith.mulf %81, %82 : vector<16x8x8xf32>
    %84 = arith.addf %70, %83 : vector<16x8x8xf32>
    %85 = vector.extract_strided_slice %1 {offsets = [6, 0, 0], sizes = [1, 8, 8], strides = [1, 1, 1]} : vector<32x8x8xf32> to vector<1x8x8xf32>
    %86 = vector.shape_cast %85 : vector<1x8x8xf32> to vector<8x8xf32>
    %87 = vector.extract_strided_slice %3 {offsets = [6, 0, 0], sizes = [1, 16, 8], strides = [1, 1, 1]} : vector<32x16x8xf32> to vector<1x16x8xf32>
    %88 = vector.shape_cast %87 : vector<1x16x8xf32> to vector<16x8xf32>
    %89 = arith.mulf %86, %86 : vector<8x8xf32>
    %90 = arith.addf %76, %89 : vector<8x8xf32>
    %91 = arith.mulf %88, %88 : vector<16x8xf32>
    %92 = arith.addf %78, %91 : vector<16x8xf32>
    %93 = vector.shape_cast %88 : vector<16x8xf32> to vector<16x1x8xf32>
    %94 = vector.shape_cast %86 : vector<8x8xf32> to vector<1x8x8xf32>
    %95 = vector.broadcast %93 : vector<16x1x8xf32> to vector<16x8x8xf32>
    %96 = vector.broadcast %94 : vector<1x8x8xf32> to vector<16x8x8xf32>
    %97 = arith.mulf %95, %96 : vector<16x8x8xf32>
    %98 = arith.addf %84, %97 : vector<16x8x8xf32>
    %99 = vector.extract_strided_slice %1 {offsets = [7, 0, 0], sizes = [1, 8, 8], strides = [1, 1, 1]} : vector<32x8x8xf32> to vector<1x8x8xf32>
    %100 = vector.shape_cast %99 : vector<1x8x8xf32> to vector<8x8xf32>
    %101 = vector.extract_strided_slice %3 {offsets = [7, 0, 0], sizes = [1, 16, 8], strides = [1, 1, 1]} : vector<32x16x8xf32> to vector<1x16x8xf32>
    %102 = vector.shape_cast %101 : vector<1x16x8xf32> to vector<16x8xf32>
    %103 = arith.mulf %100, %100 : vector<8x8xf32>
    %104 = arith.addf %90, %103 : vector<8x8xf32>
    %105 = arith.mulf %102, %102 : vector<16x8xf32>
    %106 = arith.addf %92, %105 : vector<16x8xf32>
    %107 = vector.shape_cast %102 : vector<16x8xf32> to vector<16x1x8xf32>
    %108 = vector.shape_cast %100 : vector<8x8xf32> to vector<1x8x8xf32>
    %109 = vector.broadcast %107 : vector<16x1x8xf32> to vector<16x8x8xf32>
    %110 = vector.broadcast %108 : vector<1x8x8xf32> to vector<16x8x8xf32>
    %111 = arith.mulf %109, %110 : vector<16x8x8xf32>
    %112 = arith.addf %98, %111 : vector<16x8x8xf32>
    %113 = vector.extract_strided_slice %1 {offsets = [8, 0, 0], sizes = [1, 8, 8], strides = [1, 1, 1]} : vector<32x8x8xf32> to vector<1x8x8xf32>
    %114 = vector.shape_cast %113 : vector<1x8x8xf32> to vector<8x8xf32>
    %115 = vector.extract_strided_slice %3 {offsets = [8, 0, 0], sizes = [1, 16, 8], strides = [1, 1, 1]} : vector<32x16x8xf32> to vector<1x16x8xf32>
    %116 = vector.shape_cast %115 : vector<1x16x8xf32> to vector<16x8xf32>
    %117 = arith.mulf %114, %114 : vector<8x8xf32>
    %118 = arith.addf %104, %117 : vector<8x8xf32>
    %119 = arith.mulf %116, %116 : vector<16x8xf32>
    %120 = arith.addf %106, %119 : vector<16x8xf32>
    %121 = vector.shape_cast %116 : vector<16x8xf32> to vector<16x1x8xf32>
    %122 = vector.shape_cast %114 : vector<8x8xf32> to vector<1x8x8xf32>
    %123 = vector.broadcast %121 : vector<16x1x8xf32> to vector<16x8x8xf32>
    %124 = vector.broadcast %122 : vector<1x8x8xf32> to vector<16x8x8xf32>
    %125 = arith.mulf %123, %124 : vector<16x8x8xf32>
    %126 = arith.addf %112, %125 : vector<16x8x8xf32>
    %127 = vector.extract_strided_slice %1 {offsets = [9, 0, 0], sizes = [1, 8, 8], strides = [1, 1, 1]} : vector<32x8x8xf32> to vector<1x8x8xf32>
    %128 = vector.shape_cast %127 : vector<1x8x8xf32> to vector<8x8xf32>
    %129 = vector.extract_strided_slice %3 {offsets = [9, 0, 0], sizes = [1, 16, 8], strides = [1, 1, 1]} : vector<32x16x8xf32> to vector<1x16x8xf32>
    %130 = vector.shape_cast %129 : vector<1x16x8xf32> to vector<16x8xf32>
    %131 = arith.mulf %128, %128 : vector<8x8xf32>
    %132 = arith.addf %118, %131 : vector<8x8xf32>
    %133 = arith.mulf %130, %130 : vector<16x8xf32>
    %134 = arith.addf %120, %133 : vector<16x8xf32>
    %135 = vector.shape_cast %130 : vector<16x8xf32> to vector<16x1x8xf32>
    %136 = vector.shape_cast %128 : vector<8x8xf32> to vector<1x8x8xf32>
    %137 = vector.broadcast %135 : vector<16x1x8xf32> to vector<16x8x8xf32>
    %138 = vector.broadcast %136 : vector<1x8x8xf32> to vector<16x8x8xf32>
    %139 = arith.mulf %137, %138 : vector<16x8x8xf32>
    %140 = arith.addf %126, %139 : vector<16x8x8xf32>
    %141 = vector.extract_strided_slice %1 {offsets = [10, 0, 0], sizes = [1, 8, 8], strides = [1, 1, 1]} : vector<32x8x8xf32> to vector<1x8x8xf32>
    %142 = vector.shape_cast %141 : vector<1x8x8xf32> to vector<8x8xf32>
    %143 = vector.extract_strided_slice %3 {offsets = [10, 0, 0], sizes = [1, 16, 8], strides = [1, 1, 1]} : vector<32x16x8xf32> to vector<1x16x8xf32>
    %144 = vector.shape_cast %143 : vector<1x16x8xf32> to vector<16x8xf32>
    %145 = arith.mulf %142, %142 : vector<8x8xf32>
    %146 = arith.addf %132, %145 : vector<8x8xf32>
    %147 = arith.mulf %144, %144 : vector<16x8xf32>
    %148 = arith.addf %134, %147 : vector<16x8xf32>
    %149 = vector.shape_cast %144 : vector<16x8xf32> to vector<16x1x8xf32>
    %150 = vector.shape_cast %142 : vector<8x8xf32> to vector<1x8x8xf32>
    %151 = vector.broadcast %149 : vector<16x1x8xf32> to vector<16x8x8xf32>
    %152 = vector.broadcast %150 : vector<1x8x8xf32> to vector<16x8x8xf32>
    %153 = arith.mulf %151, %152 : vector<16x8x8xf32>
    %154 = arith.addf %140, %153 : vector<16x8x8xf32>
    %155 = vector.extract_strided_slice %1 {offsets = [11, 0, 0], sizes = [1, 8, 8], strides = [1, 1, 1]} : vector<32x8x8xf32> to vector<1x8x8xf32>
    %156 = vector.shape_cast %155 : vector<1x8x8xf32> to vector<8x8xf32>
    %157 = vector.extract_strided_slice %3 {offsets = [11, 0, 0], sizes = [1, 16, 8], strides = [1, 1, 1]} : vector<32x16x8xf32> to vector<1x16x8xf32>
    %158 = vector.shape_cast %157 : vector<1x16x8xf32> to vector<16x8xf32>
    %159 = arith.mulf %156, %156 : vector<8x8xf32>
    %160 = arith.addf %146, %159 : vector<8x8xf32>
    %161 = arith.mulf %158, %158 : vector<16x8xf32>
    %162 = arith.addf %148, %161 : vector<16x8xf32>
    %163 = vector.shape_cast %158 : vector<16x8xf32> to vector<16x1x8xf32>
    %164 = vector.shape_cast %156 : vector<8x8xf32> to vector<1x8x8xf32>
    %165 = vector.broadcast %163 : vector<16x1x8xf32> to vector<16x8x8xf32>
    %166 = vector.broadcast %164 : vector<1x8x8xf32> to vector<16x8x8xf32>
    %167 = arith.mulf %165, %166 : vector<16x8x8xf32>
    %168 = arith.addf %154, %167 : vector<16x8x8xf32>
    %169 = vector.extract_strided_slice %1 {offsets = [12, 0, 0], sizes = [1, 8, 8], strides = [1, 1, 1]} : vector<32x8x8xf32> to vector<1x8x8xf32>
    %170 = vector.shape_cast %169 : vector<1x8x8xf32> to vector<8x8xf32>
    %171 = vector.extract_strided_slice %3 {offsets = [12, 0, 0], sizes = [1, 16, 8], strides = [1, 1, 1]} : vector<32x16x8xf32> to vector<1x16x8xf32>
    %172 = vector.shape_cast %171 : vector<1x16x8xf32> to vector<16x8xf32>
    %173 = arith.mulf %170, %170 : vector<8x8xf32>
    %174 = arith.addf %160, %173 : vector<8x8xf32>
    %175 = arith.mulf %172, %172 : vector<16x8xf32>
    %176 = arith.addf %162, %175 : vector<16x8xf32>
    %177 = vector.shape_cast %172 : vector<16x8xf32> to vector<16x1x8xf32>
    %178 = vector.shape_cast %170 : vector<8x8xf32> to vector<1x8x8xf32>
    %179 = vector.broadcast %177 : vector<16x1x8xf32> to vector<16x8x8xf32>
    %180 = vector.broadcast %178 : vector<1x8x8xf32> to vector<16x8x8xf32>
    %181 = arith.mulf %179, %180 : vector<16x8x8xf32>
    %182 = arith.addf %168, %181 : vector<16x8x8xf32>
    %183 = vector.extract_strided_slice %1 {offsets = [13, 0, 0], sizes = [1, 8, 8], strides = [1, 1, 1]} : vector<32x8x8xf32> to vector<1x8x8xf32>
    %184 = vector.shape_cast %183 : vector<1x8x8xf32> to vector<8x8xf32>
    %185 = vector.extract_strided_slice %3 {offsets = [13, 0, 0], sizes = [1, 16, 8], strides = [1, 1, 1]} : vector<32x16x8xf32> to vector<1x16x8xf32>
    %186 = vector.shape_cast %185 : vector<1x16x8xf32> to vector<16x8xf32>
    %187 = arith.mulf %184, %184 : vector<8x8xf32>
    %188 = arith.addf %174, %187 : vector<8x8xf32>
    %189 = arith.mulf %186, %186 : vector<16x8xf32>
    %190 = arith.addf %176, %189 : vector<16x8xf32>
    %191 = vector.shape_cast %186 : vector<16x8xf32> to vector<16x1x8xf32>
    %192 = vector.shape_cast %184 : vector<8x8xf32> to vector<1x8x8xf32>
    %193 = vector.broadcast %191 : vector<16x1x8xf32> to vector<16x8x8xf32>
    %194 = vector.broadcast %192 : vector<1x8x8xf32> to vector<16x8x8xf32>
    %195 = arith.mulf %193, %194 : vector<16x8x8xf32>
    %196 = arith.addf %182, %195 : vector<16x8x8xf32>
    %197 = vector.extract_strided_slice %1 {offsets = [14, 0, 0], sizes = [1, 8, 8], strides = [1, 1, 1]} : vector<32x8x8xf32> to vector<1x8x8xf32>
    %198 = vector.shape_cast %197 : vector<1x8x8xf32> to vector<8x8xf32>
    %199 = vector.extract_strided_slice %3 {offsets = [14, 0, 0], sizes = [1, 16, 8], strides = [1, 1, 1]} : vector<32x16x8xf32> to vector<1x16x8xf32>
    %200 = vector.shape_cast %199 : vector<1x16x8xf32> to vector<16x8xf32>
    %201 = arith.mulf %198, %198 : vector<8x8xf32>
    %202 = arith.addf %188, %201 : vector<8x8xf32>
    %203 = arith.mulf %200, %200 : vector<16x8xf32>
    %204 = arith.addf %190, %203 : vector<16x8xf32>
    %205 = vector.shape_cast %200 : vector<16x8xf32> to vector<16x1x8xf32>
    %206 = vector.shape_cast %198 : vector<8x8xf32> to vector<1x8x8xf32>
    %207 = vector.broadcast %205 : vector<16x1x8xf32> to vector<16x8x8xf32>
    %208 = vector.broadcast %206 : vector<1x8x8xf32> to vector<16x8x8xf32>
    %209 = arith.mulf %207, %208 : vector<16x8x8xf32>
    %210 = arith.addf %196, %209 : vector<16x8x8xf32>
    %211 = vector.extract_strided_slice %1 {offsets = [15, 0, 0], sizes = [1, 8, 8], strides = [1, 1, 1]} : vector<32x8x8xf32> to vector<1x8x8xf32>
    %212 = vector.shape_cast %211 : vector<1x8x8xf32> to vector<8x8xf32>
    %213 = vector.extract_strided_slice %3 {offsets = [15, 0, 0], sizes = [1, 16, 8], strides = [1, 1, 1]} : vector<32x16x8xf32> to vector<1x16x8xf32>
    %214 = vector.shape_cast %213 : vector<1x16x8xf32> to vector<16x8xf32>
    %215 = arith.mulf %212, %212 : vector<8x8xf32>
    %216 = arith.addf %202, %215 : vector<8x8xf32>
    %217 = arith.mulf %214, %214 : vector<16x8xf32>
    %218 = arith.addf %204, %217 : vector<16x8xf32>
    %219 = vector.shape_cast %214 : vector<16x8xf32> to vector<16x1x8xf32>
    %220 = vector.shape_cast %212 : vector<8x8xf32> to vector<1x8x8xf32>
    %221 = vector.broadcast %219 : vector<16x1x8xf32> to vector<16x8x8xf32>
    %222 = vector.broadcast %220 : vector<1x8x8xf32> to vector<16x8x8xf32>
    %223 = arith.mulf %221, %222 : vector<16x8x8xf32>
    %224 = arith.addf %210, %223 : vector<16x8x8xf32>
    %225 = vector.extract_strided_slice %1 {offsets = [16, 0, 0], sizes = [1, 8, 8], strides = [1, 1, 1]} : vector<32x8x8xf32> to vector<1x8x8xf32>
    %226 = vector.shape_cast %225 : vector<1x8x8xf32> to vector<8x8xf32>
    %227 = vector.extract_strided_slice %3 {offsets = [16, 0, 0], sizes = [1, 16, 8], strides = [1, 1, 1]} : vector<32x16x8xf32> to vector<1x16x8xf32>
    %228 = vector.shape_cast %227 : vector<1x16x8xf32> to vector<16x8xf32>
    %229 = arith.mulf %226, %226 : vector<8x8xf32>
    %230 = arith.addf %216, %229 : vector<8x8xf32>
    %231 = arith.mulf %228, %228 : vector<16x8xf32>
    %232 = arith.addf %218, %231 : vector<16x8xf32>
    %233 = vector.shape_cast %228 : vector<16x8xf32> to vector<16x1x8xf32>
    %234 = vector.shape_cast %226 : vector<8x8xf32> to vector<1x8x8xf32>
    %235 = vector.broadcast %233 : vector<16x1x8xf32> to vector<16x8x8xf32>
    %236 = vector.broadcast %234 : vector<1x8x8xf32> to vector<16x8x8xf32>
    %237 = arith.mulf %235, %236 : vector<16x8x8xf32>
    %238 = arith.addf %224, %237 : vector<16x8x8xf32>
    %239 = vector.extract_strided_slice %1 {offsets = [17, 0, 0], sizes = [1, 8, 8], strides = [1, 1, 1]} : vector<32x8x8xf32> to vector<1x8x8xf32>
    %240 = vector.shape_cast %239 : vector<1x8x8xf32> to vector<8x8xf32>
    %241 = vector.extract_strided_slice %3 {offsets = [17, 0, 0], sizes = [1, 16, 8], strides = [1, 1, 1]} : vector<32x16x8xf32> to vector<1x16x8xf32>
    %242 = vector.shape_cast %241 : vector<1x16x8xf32> to vector<16x8xf32>
    %243 = arith.mulf %240, %240 : vector<8x8xf32>
    %244 = arith.addf %230, %243 : vector<8x8xf32>
    %245 = arith.mulf %242, %242 : vector<16x8xf32>
    %246 = arith.addf %232, %245 : vector<16x8xf32>
    %247 = vector.shape_cast %242 : vector<16x8xf32> to vector<16x1x8xf32>
    %248 = vector.shape_cast %240 : vector<8x8xf32> to vector<1x8x8xf32>
    %249 = vector.broadcast %247 : vector<16x1x8xf32> to vector<16x8x8xf32>
    %250 = vector.broadcast %248 : vector<1x8x8xf32> to vector<16x8x8xf32>
    %251 = arith.mulf %249, %250 : vector<16x8x8xf32>
    %252 = arith.addf %238, %251 : vector<16x8x8xf32>
    %253 = vector.extract_strided_slice %1 {offsets = [18, 0, 0], sizes = [1, 8, 8], strides = [1, 1, 1]} : vector<32x8x8xf32> to vector<1x8x8xf32>
    %254 = vector.shape_cast %253 : vector<1x8x8xf32> to vector<8x8xf32>
    %255 = vector.extract_strided_slice %3 {offsets = [18, 0, 0], sizes = [1, 16, 8], strides = [1, 1, 1]} : vector<32x16x8xf32> to vector<1x16x8xf32>
    %256 = vector.shape_cast %255 : vector<1x16x8xf32> to vector<16x8xf32>
    %257 = arith.mulf %254, %254 : vector<8x8xf32>
    %258 = arith.addf %244, %257 : vector<8x8xf32>
    %259 = arith.mulf %256, %256 : vector<16x8xf32>
    %260 = arith.addf %246, %259 : vector<16x8xf32>
    %261 = vector.shape_cast %256 : vector<16x8xf32> to vector<16x1x8xf32>
    %262 = vector.shape_cast %254 : vector<8x8xf32> to vector<1x8x8xf32>
    %263 = vector.broadcast %261 : vector<16x1x8xf32> to vector<16x8x8xf32>
    %264 = vector.broadcast %262 : vector<1x8x8xf32> to vector<16x8x8xf32>
    %265 = arith.mulf %263, %264 : vector<16x8x8xf32>
    %266 = arith.addf %252, %265 : vector<16x8x8xf32>
    %267 = vector.extract_strided_slice %1 {offsets = [19, 0, 0], sizes = [1, 8, 8], strides = [1, 1, 1]} : vector<32x8x8xf32> to vector<1x8x8xf32>
    %268 = vector.shape_cast %267 : vector<1x8x8xf32> to vector<8x8xf32>
    %269 = vector.extract_strided_slice %3 {offsets = [19, 0, 0], sizes = [1, 16, 8], strides = [1, 1, 1]} : vector<32x16x8xf32> to vector<1x16x8xf32>
    %270 = vector.shape_cast %269 : vector<1x16x8xf32> to vector<16x8xf32>
    %271 = arith.mulf %268, %268 : vector<8x8xf32>
    %272 = arith.addf %258, %271 : vector<8x8xf32>
    %273 = arith.mulf %270, %270 : vector<16x8xf32>
    %274 = arith.addf %260, %273 : vector<16x8xf32>
    %275 = vector.shape_cast %270 : vector<16x8xf32> to vector<16x1x8xf32>
    %276 = vector.shape_cast %268 : vector<8x8xf32> to vector<1x8x8xf32>
    %277 = vector.broadcast %275 : vector<16x1x8xf32> to vector<16x8x8xf32>
    %278 = vector.broadcast %276 : vector<1x8x8xf32> to vector<16x8x8xf32>
    %279 = arith.mulf %277, %278 : vector<16x8x8xf32>
    %280 = arith.addf %266, %279 : vector<16x8x8xf32>
    %281 = vector.extract_strided_slice %1 {offsets = [20, 0, 0], sizes = [1, 8, 8], strides = [1, 1, 1]} : vector<32x8x8xf32> to vector<1x8x8xf32>
    %282 = vector.shape_cast %281 : vector<1x8x8xf32> to vector<8x8xf32>
    %283 = vector.extract_strided_slice %3 {offsets = [20, 0, 0], sizes = [1, 16, 8], strides = [1, 1, 1]} : vector<32x16x8xf32> to vector<1x16x8xf32>
    %284 = vector.shape_cast %283 : vector<1x16x8xf32> to vector<16x8xf32>
    %285 = arith.mulf %282, %282 : vector<8x8xf32>
    %286 = arith.addf %272, %285 : vector<8x8xf32>
    %287 = arith.mulf %284, %284 : vector<16x8xf32>
    %288 = arith.addf %274, %287 : vector<16x8xf32>
    %289 = vector.shape_cast %284 : vector<16x8xf32> to vector<16x1x8xf32>
    %290 = vector.shape_cast %282 : vector<8x8xf32> to vector<1x8x8xf32>
    %291 = vector.broadcast %289 : vector<16x1x8xf32> to vector<16x8x8xf32>
    %292 = vector.broadcast %290 : vector<1x8x8xf32> to vector<16x8x8xf32>
    %293 = arith.mulf %291, %292 : vector<16x8x8xf32>
    %294 = arith.addf %280, %293 : vector<16x8x8xf32>
    %295 = vector.extract_strided_slice %1 {offsets = [21, 0, 0], sizes = [1, 8, 8], strides = [1, 1, 1]} : vector<32x8x8xf32> to vector<1x8x8xf32>
    %296 = vector.shape_cast %295 : vector<1x8x8xf32> to vector<8x8xf32>
    %297 = vector.extract_strided_slice %3 {offsets = [21, 0, 0], sizes = [1, 16, 8], strides = [1, 1, 1]} : vector<32x16x8xf32> to vector<1x16x8xf32>
    %298 = vector.shape_cast %297 : vector<1x16x8xf32> to vector<16x8xf32>
    %299 = arith.mulf %296, %296 : vector<8x8xf32>
    %300 = arith.addf %286, %299 : vector<8x8xf32>
    %301 = arith.mulf %298, %298 : vector<16x8xf32>
    %302 = arith.addf %288, %301 : vector<16x8xf32>
    %303 = vector.shape_cast %298 : vector<16x8xf32> to vector<16x1x8xf32>
    %304 = vector.shape_cast %296 : vector<8x8xf32> to vector<1x8x8xf32>
    %305 = vector.broadcast %303 : vector<16x1x8xf32> to vector<16x8x8xf32>
    %306 = vector.broadcast %304 : vector<1x8x8xf32> to vector<16x8x8xf32>
    %307 = arith.mulf %305, %306 : vector<16x8x8xf32>
    %308 = arith.addf %294, %307 : vector<16x8x8xf32>
    %309 = vector.extract_strided_slice %1 {offsets = [22, 0, 0], sizes = [1, 8, 8], strides = [1, 1, 1]} : vector<32x8x8xf32> to vector<1x8x8xf32>
    %310 = vector.shape_cast %309 : vector<1x8x8xf32> to vector<8x8xf32>
    %311 = vector.extract_strided_slice %3 {offsets = [22, 0, 0], sizes = [1, 16, 8], strides = [1, 1, 1]} : vector<32x16x8xf32> to vector<1x16x8xf32>
    %312 = vector.shape_cast %311 : vector<1x16x8xf32> to vector<16x8xf32>
    %313 = arith.mulf %310, %310 : vector<8x8xf32>
    %314 = arith.addf %300, %313 : vector<8x8xf32>
    %315 = arith.mulf %312, %312 : vector<16x8xf32>
    %316 = arith.addf %302, %315 : vector<16x8xf32>
    %317 = vector.shape_cast %312 : vector<16x8xf32> to vector<16x1x8xf32>
    %318 = vector.shape_cast %310 : vector<8x8xf32> to vector<1x8x8xf32>
    %319 = vector.broadcast %317 : vector<16x1x8xf32> to vector<16x8x8xf32>
    %320 = vector.broadcast %318 : vector<1x8x8xf32> to vector<16x8x8xf32>
    %321 = arith.mulf %319, %320 : vector<16x8x8xf32>
    %322 = arith.addf %308, %321 : vector<16x8x8xf32>
    %323 = vector.extract_strided_slice %1 {offsets = [23, 0, 0], sizes = [1, 8, 8], strides = [1, 1, 1]} : vector<32x8x8xf32> to vector<1x8x8xf32>
    %324 = vector.shape_cast %323 : vector<1x8x8xf32> to vector<8x8xf32>
    %325 = vector.extract_strided_slice %3 {offsets = [23, 0, 0], sizes = [1, 16, 8], strides = [1, 1, 1]} : vector<32x16x8xf32> to vector<1x16x8xf32>
    %326 = vector.shape_cast %325 : vector<1x16x8xf32> to vector<16x8xf32>
    %327 = arith.mulf %324, %324 : vector<8x8xf32>
    %328 = arith.addf %314, %327 : vector<8x8xf32>
    %329 = arith.mulf %326, %326 : vector<16x8xf32>
    %330 = arith.addf %316, %329 : vector<16x8xf32>
    %331 = vector.shape_cast %326 : vector<16x8xf32> to vector<16x1x8xf32>
    %332 = vector.shape_cast %324 : vector<8x8xf32> to vector<1x8x8xf32>
    %333 = vector.broadcast %331 : vector<16x1x8xf32> to vector<16x8x8xf32>
    %334 = vector.broadcast %332 : vector<1x8x8xf32> to vector<16x8x8xf32>
    %335 = arith.mulf %333, %334 : vector<16x8x8xf32>
    %336 = arith.addf %322, %335 : vector<16x8x8xf32>
    %337 = vector.extract_strided_slice %1 {offsets = [24, 0, 0], sizes = [1, 8, 8], strides = [1, 1, 1]} : vector<32x8x8xf32> to vector<1x8x8xf32>
    %338 = vector.shape_cast %337 : vector<1x8x8xf32> to vector<8x8xf32>
    %339 = vector.extract_strided_slice %3 {offsets = [24, 0, 0], sizes = [1, 16, 8], strides = [1, 1, 1]} : vector<32x16x8xf32> to vector<1x16x8xf32>
    %340 = vector.shape_cast %339 : vector<1x16x8xf32> to vector<16x8xf32>
    %341 = arith.mulf %338, %338 : vector<8x8xf32>
    %342 = arith.addf %328, %341 : vector<8x8xf32>
    %343 = arith.mulf %340, %340 : vector<16x8xf32>
    %344 = arith.addf %330, %343 : vector<16x8xf32>
    %345 = vector.shape_cast %340 : vector<16x8xf32> to vector<16x1x8xf32>
    %346 = vector.shape_cast %338 : vector<8x8xf32> to vector<1x8x8xf32>
    %347 = vector.broadcast %345 : vector<16x1x8xf32> to vector<16x8x8xf32>
    %348 = vector.broadcast %346 : vector<1x8x8xf32> to vector<16x8x8xf32>
    %349 = arith.mulf %347, %348 : vector<16x8x8xf32>
    %350 = arith.addf %336, %349 : vector<16x8x8xf32>
    %351 = vector.extract_strided_slice %1 {offsets = [25, 0, 0], sizes = [1, 8, 8], strides = [1, 1, 1]} : vector<32x8x8xf32> to vector<1x8x8xf32>
    %352 = vector.shape_cast %351 : vector<1x8x8xf32> to vector<8x8xf32>
    %353 = vector.extract_strided_slice %3 {offsets = [25, 0, 0], sizes = [1, 16, 8], strides = [1, 1, 1]} : vector<32x16x8xf32> to vector<1x16x8xf32>
    %354 = vector.shape_cast %353 : vector<1x16x8xf32> to vector<16x8xf32>
    %355 = arith.mulf %352, %352 : vector<8x8xf32>
    %356 = arith.addf %342, %355 : vector<8x8xf32>
    %357 = arith.mulf %354, %354 : vector<16x8xf32>
    %358 = arith.addf %344, %357 : vector<16x8xf32>
    %359 = vector.shape_cast %354 : vector<16x8xf32> to vector<16x1x8xf32>
    %360 = vector.shape_cast %352 : vector<8x8xf32> to vector<1x8x8xf32>
    %361 = vector.broadcast %359 : vector<16x1x8xf32> to vector<16x8x8xf32>
    %362 = vector.broadcast %360 : vector<1x8x8xf32> to vector<16x8x8xf32>
    %363 = arith.mulf %361, %362 : vector<16x8x8xf32>
    %364 = arith.addf %350, %363 : vector<16x8x8xf32>
    %365 = vector.extract_strided_slice %1 {offsets = [26, 0, 0], sizes = [1, 8, 8], strides = [1, 1, 1]} : vector<32x8x8xf32> to vector<1x8x8xf32>
    %366 = vector.shape_cast %365 : vector<1x8x8xf32> to vector<8x8xf32>
    %367 = vector.extract_strided_slice %3 {offsets = [26, 0, 0], sizes = [1, 16, 8], strides = [1, 1, 1]} : vector<32x16x8xf32> to vector<1x16x8xf32>
    %368 = vector.shape_cast %367 : vector<1x16x8xf32> to vector<16x8xf32>
    %369 = arith.mulf %366, %366 : vector<8x8xf32>
    %370 = arith.addf %356, %369 : vector<8x8xf32>
    %371 = arith.mulf %368, %368 : vector<16x8xf32>
    %372 = arith.addf %358, %371 : vector<16x8xf32>
    %373 = vector.shape_cast %368 : vector<16x8xf32> to vector<16x1x8xf32>
    %374 = vector.shape_cast %366 : vector<8x8xf32> to vector<1x8x8xf32>
    %375 = vector.broadcast %373 : vector<16x1x8xf32> to vector<16x8x8xf32>
    %376 = vector.broadcast %374 : vector<1x8x8xf32> to vector<16x8x8xf32>
    %377 = arith.mulf %375, %376 : vector<16x8x8xf32>
    %378 = arith.addf %364, %377 : vector<16x8x8xf32>
    %379 = vector.extract_strided_slice %1 {offsets = [27, 0, 0], sizes = [1, 8, 8], strides = [1, 1, 1]} : vector<32x8x8xf32> to vector<1x8x8xf32>
    %380 = vector.shape_cast %379 : vector<1x8x8xf32> to vector<8x8xf32>
    %381 = vector.extract_strided_slice %3 {offsets = [27, 0, 0], sizes = [1, 16, 8], strides = [1, 1, 1]} : vector<32x16x8xf32> to vector<1x16x8xf32>
    %382 = vector.shape_cast %381 : vector<1x16x8xf32> to vector<16x8xf32>
    %383 = arith.mulf %380, %380 : vector<8x8xf32>
    %384 = arith.addf %370, %383 : vector<8x8xf32>
    %385 = arith.mulf %382, %382 : vector<16x8xf32>
    %386 = arith.addf %372, %385 : vector<16x8xf32>
    %387 = vector.shape_cast %382 : vector<16x8xf32> to vector<16x1x8xf32>
    %388 = vector.shape_cast %380 : vector<8x8xf32> to vector<1x8x8xf32>
    %389 = vector.broadcast %387 : vector<16x1x8xf32> to vector<16x8x8xf32>
    %390 = vector.broadcast %388 : vector<1x8x8xf32> to vector<16x8x8xf32>
    %391 = arith.mulf %389, %390 : vector<16x8x8xf32>
    %392 = arith.addf %378, %391 : vector<16x8x8xf32>
    %393 = vector.extract_strided_slice %1 {offsets = [28, 0, 0], sizes = [1, 8, 8], strides = [1, 1, 1]} : vector<32x8x8xf32> to vector<1x8x8xf32>
    %394 = vector.shape_cast %393 : vector<1x8x8xf32> to vector<8x8xf32>
    %395 = vector.extract_strided_slice %3 {offsets = [28, 0, 0], sizes = [1, 16, 8], strides = [1, 1, 1]} : vector<32x16x8xf32> to vector<1x16x8xf32>
    %396 = vector.shape_cast %395 : vector<1x16x8xf32> to vector<16x8xf32>
    %397 = arith.mulf %394, %394 : vector<8x8xf32>
    %398 = arith.addf %384, %397 : vector<8x8xf32>
    %399 = arith.mulf %396, %396 : vector<16x8xf32>
    %400 = arith.addf %386, %399 : vector<16x8xf32>
    %401 = vector.shape_cast %396 : vector<16x8xf32> to vector<16x1x8xf32>
    %402 = vector.shape_cast %394 : vector<8x8xf32> to vector<1x8x8xf32>
    %403 = vector.broadcast %401 : vector<16x1x8xf32> to vector<16x8x8xf32>
    %404 = vector.broadcast %402 : vector<1x8x8xf32> to vector<16x8x8xf32>
    %405 = arith.mulf %403, %404 : vector<16x8x8xf32>
    %406 = arith.addf %392, %405 : vector<16x8x8xf32>
    %407 = vector.extract_strided_slice %1 {offsets = [29, 0, 0], sizes = [1, 8, 8], strides = [1, 1, 1]} : vector<32x8x8xf32> to vector<1x8x8xf32>
    %408 = vector.shape_cast %407 : vector<1x8x8xf32> to vector<8x8xf32>
    %409 = vector.extract_strided_slice %3 {offsets = [29, 0, 0], sizes = [1, 16, 8], strides = [1, 1, 1]} : vector<32x16x8xf32> to vector<1x16x8xf32>
    %410 = vector.shape_cast %409 : vector<1x16x8xf32> to vector<16x8xf32>
    %411 = arith.mulf %408, %408 : vector<8x8xf32>
    %412 = arith.addf %398, %411 : vector<8x8xf32>
    %413 = arith.mulf %410, %410 : vector<16x8xf32>
    %414 = arith.addf %400, %413 : vector<16x8xf32>
    %415 = vector.shape_cast %410 : vector<16x8xf32> to vector<16x1x8xf32>
    %416 = vector.shape_cast %408 : vector<8x8xf32> to vector<1x8x8xf32>
    %417 = vector.broadcast %415 : vector<16x1x8xf32> to vector<16x8x8xf32>
    %418 = vector.broadcast %416 : vector<1x8x8xf32> to vector<16x8x8xf32>
    %419 = arith.mulf %417, %418 : vector<16x8x8xf32>
    %420 = arith.addf %406, %419 : vector<16x8x8xf32>
    %421 = vector.extract_strided_slice %1 {offsets = [30, 0, 0], sizes = [1, 8, 8], strides = [1, 1, 1]} : vector<32x8x8xf32> to vector<1x8x8xf32>
    %422 = vector.shape_cast %421 : vector<1x8x8xf32> to vector<8x8xf32>
    %423 = vector.extract_strided_slice %3 {offsets = [30, 0, 0], sizes = [1, 16, 8], strides = [1, 1, 1]} : vector<32x16x8xf32> to vector<1x16x8xf32>
    %424 = vector.shape_cast %423 : vector<1x16x8xf32> to vector<16x8xf32>
    %425 = arith.mulf %422, %422 : vector<8x8xf32>
    %426 = arith.addf %412, %425 : vector<8x8xf32>
    %427 = arith.mulf %424, %424 : vector<16x8xf32>
    %428 = arith.addf %414, %427 : vector<16x8xf32>
    %429 = vector.shape_cast %424 : vector<16x8xf32> to vector<16x1x8xf32>
    %430 = vector.shape_cast %422 : vector<8x8xf32> to vector<1x8x8xf32>
    %431 = vector.broadcast %429 : vector<16x1x8xf32> to vector<16x8x8xf32>
    %432 = vector.broadcast %430 : vector<1x8x8xf32> to vector<16x8x8xf32>
    %433 = arith.mulf %431, %432 : vector<16x8x8xf32>
    %434 = arith.addf %420, %433 : vector<16x8x8xf32>
    %435 = vector.extract_strided_slice %1 {offsets = [31, 0, 0], sizes = [1, 8, 8], strides = [1, 1, 1]} : vector<32x8x8xf32> to vector<1x8x8xf32>
    %436 = vector.shape_cast %435 : vector<1x8x8xf32> to vector<8x8xf32>
    %437 = vector.extract_strided_slice %3 {offsets = [31, 0, 0], sizes = [1, 16, 8], strides = [1, 1, 1]} : vector<32x16x8xf32> to vector<1x16x8xf32>
    %438 = vector.shape_cast %437 : vector<1x16x8xf32> to vector<16x8xf32>
    %439 = arith.mulf %436, %436 : vector<8x8xf32>
    %440 = arith.addf %426, %439 : vector<8x8xf32>
    %441 = arith.mulf %438, %438 : vector<16x8xf32>
    %442 = arith.addf %428, %441 : vector<16x8xf32>
    %443 = vector.shape_cast %438 : vector<16x8xf32> to vector<16x1x8xf32>
    %444 = vector.shape_cast %436 : vector<8x8xf32> to vector<1x8x8xf32>
    %445 = vector.broadcast %443 : vector<16x1x8xf32> to vector<16x8x8xf32>
    %446 = vector.broadcast %444 : vector<1x8x8xf32> to vector<16x8x8xf32>
    %447 = arith.mulf %445, %446 : vector<16x8x8xf32>
    %448 = arith.addf %434, %447 : vector<16x8x8xf32>
    %cst = arith.constant 1.000000e-24 : f32
    %449 = vector.broadcast %cst : f32 to vector<8x8xf32>
    %450 = arith.maximumf %440, %449 : vector<8x8xf32>
    %451 = math.rsqrt %450 : vector<8x8xf32>
    %cst_7 = arith.constant 1.000000e-24 : f32
    %452 = vector.broadcast %cst_7 : f32 to vector<16x8xf32>
    %453 = arith.maximumf %442, %452 : vector<16x8xf32>
    %454 = math.rsqrt %453 : vector<16x8xf32>
    %455 = vector.shape_cast %454 : vector<16x8xf32> to vector<16x1x8xf32>
    %456 = vector.broadcast %455 : vector<16x1x8xf32> to vector<16x8x8xf32>
    %457 = arith.mulf %448, %456 : vector<16x8x8xf32>
    %458 = vector.shape_cast %451 : vector<8x8xf32> to vector<1x8x8xf32>
    %459 = vector.broadcast %458 : vector<1x8x8xf32> to vector<16x8x8xf32>
    %460 = arith.mulf %457, %459 : vector<16x8x8xf32>
    %cst_8 = arith.constant 0.000000e+00 : f32
    %461 = vector.broadcast %cst_8 : f32 to vector<1x8xf32>
    %cst_9 = arith.constant -0.949999988 : f32
    %462 = vector.broadcast %cst_9 : f32 to vector<16x8x8xf32>
    %463 = arith.subf %460, %462 : vector<16x8x8xf32>
    %464 = arith.mulf %463, %463 : vector<16x8x8xf32>
    %cst_10 = arith.constant -5.000000e+01 : f32
    %465 = vector.broadcast %cst_10 : f32 to vector<16x8x8xf32>
    %466 = arith.mulf %464, %465 : vector<16x8x8xf32>
    %467 = math.exp %466 : vector<16x8x8xf32>
    %cst_11 = arith.constant dense<0.000000e+00> : vector<8x8xf32>
    %468 = vector.multi_reduction <add>, %467, %cst_11 [0] : vector<16x8x8xf32> to vector<8x8xf32>
    %cst_12 = arith.constant 1.000000e+00 : f32
    %469 = vector.broadcast %cst_12 : f32 to vector<8x8xf32>
    %470 = arith.addf %469, %468 : vector<8x8xf32>
    %471 = math.log %470 : vector<8x8xf32>
    %cst_13 = arith.constant dense<0.000000e+00> : vector<8xf32>
    %472 = vector.multi_reduction <add>, %471, %cst_13 [0] : vector<8x8xf32> to vector<8xf32>
    %473 = vector.shape_cast %472 : vector<8xf32> to vector<1x8xf32>
    %c0_14 = arith.constant 0 : index
    %474 = memref.load %arg3[%c0_14] : memref<21xf32, #tpu.memory_space<smem>>
    %475 = vector.broadcast %474 : f32 to vector<1x8xf32>
    %476 = arith.mulf %473, %475 : vector<1x8xf32>
    %477 = arith.addf %461, %476 : vector<1x8xf32>
    %cst_15 = arith.constant -8.500000e-01 : f32
    %478 = vector.broadcast %cst_15 : f32 to vector<16x8x8xf32>
    %479 = arith.subf %460, %478 : vector<16x8x8xf32>
    %480 = arith.mulf %479, %479 : vector<16x8x8xf32>
    %cst_16 = arith.constant -5.000000e+01 : f32
    %481 = vector.broadcast %cst_16 : f32 to vector<16x8x8xf32>
    %482 = arith.mulf %480, %481 : vector<16x8x8xf32>
    %483 = math.exp %482 : vector<16x8x8xf32>
    %cst_17 = arith.constant dense<0.000000e+00> : vector<8x8xf32>
    %484 = vector.multi_reduction <add>, %483, %cst_17 [0] : vector<16x8x8xf32> to vector<8x8xf32>
    %cst_18 = arith.constant 1.000000e+00 : f32
    %485 = vector.broadcast %cst_18 : f32 to vector<8x8xf32>
    %486 = arith.addf %485, %484 : vector<8x8xf32>
    %487 = math.log %486 : vector<8x8xf32>
    %cst_19 = arith.constant dense<0.000000e+00> : vector<8xf32>
    %488 = vector.multi_reduction <add>, %487, %cst_19 [0] : vector<8x8xf32> to vector<8xf32>
    %489 = vector.shape_cast %488 : vector<8xf32> to vector<1x8xf32>
    %c1 = arith.constant 1 : index
    %490 = memref.load %arg3[%c1] : memref<21xf32, #tpu.memory_space<smem>>
    %491 = vector.broadcast %490 : f32 to vector<1x8xf32>
    %492 = arith.mulf %489, %491 : vector<1x8xf32>
    %493 = arith.addf %477, %492 : vector<1x8xf32>
    %cst_20 = arith.constant -7.500000e-01 : f32
    %494 = vector.broadcast %cst_20 : f32 to vector<16x8x8xf32>
    %495 = arith.subf %460, %494 : vector<16x8x8xf32>
    %496 = arith.mulf %495, %495 : vector<16x8x8xf32>
    %cst_21 = arith.constant -5.000000e+01 : f32
    %497 = vector.broadcast %cst_21 : f32 to vector<16x8x8xf32>
    %498 = arith.mulf %496, %497 : vector<16x8x8xf32>
    %499 = math.exp %498 : vector<16x8x8xf32>
    %cst_22 = arith.constant dense<0.000000e+00> : vector<8x8xf32>
    %500 = vector.multi_reduction <add>, %499, %cst_22 [0] : vector<16x8x8xf32> to vector<8x8xf32>
    %cst_23 = arith.constant 1.000000e+00 : f32
    %501 = vector.broadcast %cst_23 : f32 to vector<8x8xf32>
    %502 = arith.addf %501, %500 : vector<8x8xf32>
    %503 = math.log %502 : vector<8x8xf32>
    %cst_24 = arith.constant dense<0.000000e+00> : vector<8xf32>
    %504 = vector.multi_reduction <add>, %503, %cst_24 [0] : vector<8x8xf32> to vector<8xf32>
    %505 = vector.shape_cast %504 : vector<8xf32> to vector<1x8xf32>
    %c2 = arith.constant 2 : index
    %506 = memref.load %arg3[%c2] : memref<21xf32, #tpu.memory_space<smem>>
    %507 = vector.broadcast %506 : f32 to vector<1x8xf32>
    %508 = arith.mulf %505, %507 : vector<1x8xf32>
    %509 = arith.addf %493, %508 : vector<1x8xf32>
    %cst_25 = arith.constant -6.500000e-01 : f32
    %510 = vector.broadcast %cst_25 : f32 to vector<16x8x8xf32>
    %511 = arith.subf %460, %510 : vector<16x8x8xf32>
    %512 = arith.mulf %511, %511 : vector<16x8x8xf32>
    %cst_26 = arith.constant -5.000000e+01 : f32
    %513 = vector.broadcast %cst_26 : f32 to vector<16x8x8xf32>
    %514 = arith.mulf %512, %513 : vector<16x8x8xf32>
    %515 = math.exp %514 : vector<16x8x8xf32>
    %cst_27 = arith.constant dense<0.000000e+00> : vector<8x8xf32>
    %516 = vector.multi_reduction <add>, %515, %cst_27 [0] : vector<16x8x8xf32> to vector<8x8xf32>
    %cst_28 = arith.constant 1.000000e+00 : f32
    %517 = vector.broadcast %cst_28 : f32 to vector<8x8xf32>
    %518 = arith.addf %517, %516 : vector<8x8xf32>
    %519 = math.log %518 : vector<8x8xf32>
    %cst_29 = arith.constant dense<0.000000e+00> : vector<8xf32>
    %520 = vector.multi_reduction <add>, %519, %cst_29 [0] : vector<8x8xf32> to vector<8xf32>
    %521 = vector.shape_cast %520 : vector<8xf32> to vector<1x8xf32>
    %c3 = arith.constant 3 : index
    %522 = memref.load %arg3[%c3] : memref<21xf32, #tpu.memory_space<smem>>
    %523 = vector.broadcast %522 : f32 to vector<1x8xf32>
    %524 = arith.mulf %521, %523 : vector<1x8xf32>
    %525 = arith.addf %509, %524 : vector<1x8xf32>
    %cst_30 = arith.constant -5.500000e-01 : f32
    %526 = vector.broadcast %cst_30 : f32 to vector<16x8x8xf32>
    %527 = arith.subf %460, %526 : vector<16x8x8xf32>
    %528 = arith.mulf %527, %527 : vector<16x8x8xf32>
    %cst_31 = arith.constant -5.000000e+01 : f32
    %529 = vector.broadcast %cst_31 : f32 to vector<16x8x8xf32>
    %530 = arith.mulf %528, %529 : vector<16x8x8xf32>
    %531 = math.exp %530 : vector<16x8x8xf32>
    %cst_32 = arith.constant dense<0.000000e+00> : vector<8x8xf32>
    %532 = vector.multi_reduction <add>, %531, %cst_32 [0] : vector<16x8x8xf32> to vector<8x8xf32>
    %cst_33 = arith.constant 1.000000e+00 : f32
    %533 = vector.broadcast %cst_33 : f32 to vector<8x8xf32>
    %534 = arith.addf %533, %532 : vector<8x8xf32>
    %535 = math.log %534 : vector<8x8xf32>
    %cst_34 = arith.constant dense<0.000000e+00> : vector<8xf32>
    %536 = vector.multi_reduction <add>, %535, %cst_34 [0] : vector<8x8xf32> to vector<8xf32>
    %537 = vector.shape_cast %536 : vector<8xf32> to vector<1x8xf32>
    %c4 = arith.constant 4 : index
    %538 = memref.load %arg3[%c4] : memref<21xf32, #tpu.memory_space<smem>>
    %539 = vector.broadcast %538 : f32 to vector<1x8xf32>
    %540 = arith.mulf %537, %539 : vector<1x8xf32>
    %541 = arith.addf %525, %540 : vector<1x8xf32>
    %cst_35 = arith.constant -4.500000e-01 : f32
    %542 = vector.broadcast %cst_35 : f32 to vector<16x8x8xf32>
    %543 = arith.subf %460, %542 : vector<16x8x8xf32>
    %544 = arith.mulf %543, %543 : vector<16x8x8xf32>
    %cst_36 = arith.constant -5.000000e+01 : f32
    %545 = vector.broadcast %cst_36 : f32 to vector<16x8x8xf32>
    %546 = arith.mulf %544, %545 : vector<16x8x8xf32>
    %547 = math.exp %546 : vector<16x8x8xf32>
    %cst_37 = arith.constant dense<0.000000e+00> : vector<8x8xf32>
    %548 = vector.multi_reduction <add>, %547, %cst_37 [0] : vector<16x8x8xf32> to vector<8x8xf32>
    %cst_38 = arith.constant 1.000000e+00 : f32
    %549 = vector.broadcast %cst_38 : f32 to vector<8x8xf32>
    %550 = arith.addf %549, %548 : vector<8x8xf32>
    %551 = math.log %550 : vector<8x8xf32>
    %cst_39 = arith.constant dense<0.000000e+00> : vector<8xf32>
    %552 = vector.multi_reduction <add>, %551, %cst_39 [0] : vector<8x8xf32> to vector<8xf32>
    %553 = vector.shape_cast %552 : vector<8xf32> to vector<1x8xf32>
    %c5 = arith.constant 5 : index
    %554 = memref.load %arg3[%c5] : memref<21xf32, #tpu.memory_space<smem>>
    %555 = vector.broadcast %554 : f32 to vector<1x8xf32>
    %556 = arith.mulf %553, %555 : vector<1x8xf32>
    %557 = arith.addf %541, %556 : vector<1x8xf32>
    %cst_40 = arith.constant -3.500000e-01 : f32
    %558 = vector.broadcast %cst_40 : f32 to vector<16x8x8xf32>
    %559 = arith.subf %460, %558 : vector<16x8x8xf32>
    %560 = arith.mulf %559, %559 : vector<16x8x8xf32>
    %cst_41 = arith.constant -5.000000e+01 : f32
    %561 = vector.broadcast %cst_41 : f32 to vector<16x8x8xf32>
    %562 = arith.mulf %560, %561 : vector<16x8x8xf32>
    %563 = math.exp %562 : vector<16x8x8xf32>
    %cst_42 = arith.constant dense<0.000000e+00> : vector<8x8xf32>
    %564 = vector.multi_reduction <add>, %563, %cst_42 [0] : vector<16x8x8xf32> to vector<8x8xf32>
    %cst_43 = arith.constant 1.000000e+00 : f32
    %565 = vector.broadcast %cst_43 : f32 to vector<8x8xf32>
    %566 = arith.addf %565, %564 : vector<8x8xf32>
    %567 = math.log %566 : vector<8x8xf32>
    %cst_44 = arith.constant dense<0.000000e+00> : vector<8xf32>
    %568 = vector.multi_reduction <add>, %567, %cst_44 [0] : vector<8x8xf32> to vector<8xf32>
    %569 = vector.shape_cast %568 : vector<8xf32> to vector<1x8xf32>
    %c6 = arith.constant 6 : index
    %570 = memref.load %arg3[%c6] : memref<21xf32, #tpu.memory_space<smem>>
    %571 = vector.broadcast %570 : f32 to vector<1x8xf32>
    %572 = arith.mulf %569, %571 : vector<1x8xf32>
    %573 = arith.addf %557, %572 : vector<1x8xf32>
    %cst_45 = arith.constant -2.500000e-01 : f32
    %574 = vector.broadcast %cst_45 : f32 to vector<16x8x8xf32>
    %575 = arith.subf %460, %574 : vector<16x8x8xf32>
    %576 = arith.mulf %575, %575 : vector<16x8x8xf32>
    %cst_46 = arith.constant -5.000000e+01 : f32
    %577 = vector.broadcast %cst_46 : f32 to vector<16x8x8xf32>
    %578 = arith.mulf %576, %577 : vector<16x8x8xf32>
    %579 = math.exp %578 : vector<16x8x8xf32>
    %cst_47 = arith.constant dense<0.000000e+00> : vector<8x8xf32>
    %580 = vector.multi_reduction <add>, %579, %cst_47 [0] : vector<16x8x8xf32> to vector<8x8xf32>
    %cst_48 = arith.constant 1.000000e+00 : f32
    %581 = vector.broadcast %cst_48 : f32 to vector<8x8xf32>
    %582 = arith.addf %581, %580 : vector<8x8xf32>
    %583 = math.log %582 : vector<8x8xf32>
    %cst_49 = arith.constant dense<0.000000e+00> : vector<8xf32>
    %584 = vector.multi_reduction <add>, %583, %cst_49 [0] : vector<8x8xf32> to vector<8xf32>
    %585 = vector.shape_cast %584 : vector<8xf32> to vector<1x8xf32>
    %c7 = arith.constant 7 : index
    %586 = memref.load %arg3[%c7] : memref<21xf32, #tpu.memory_space<smem>>
    %587 = vector.broadcast %586 : f32 to vector<1x8xf32>
    %588 = arith.mulf %585, %587 : vector<1x8xf32>
    %589 = arith.addf %573, %588 : vector<1x8xf32>
    %cst_50 = arith.constant -1.500000e-01 : f32
    %590 = vector.broadcast %cst_50 : f32 to vector<16x8x8xf32>
    %591 = arith.subf %460, %590 : vector<16x8x8xf32>
    %592 = arith.mulf %591, %591 : vector<16x8x8xf32>
    %cst_51 = arith.constant -5.000000e+01 : f32
    %593 = vector.broadcast %cst_51 : f32 to vector<16x8x8xf32>
    %594 = arith.mulf %592, %593 : vector<16x8x8xf32>
    %595 = math.exp %594 : vector<16x8x8xf32>
    %cst_52 = arith.constant dense<0.000000e+00> : vector<8x8xf32>
    %596 = vector.multi_reduction <add>, %595, %cst_52 [0] : vector<16x8x8xf32> to vector<8x8xf32>
    %cst_53 = arith.constant 1.000000e+00 : f32
    %597 = vector.broadcast %cst_53 : f32 to vector<8x8xf32>
    %598 = arith.addf %597, %596 : vector<8x8xf32>
    %599 = math.log %598 : vector<8x8xf32>
    %cst_54 = arith.constant dense<0.000000e+00> : vector<8xf32>
    %600 = vector.multi_reduction <add>, %599, %cst_54 [0] : vector<8x8xf32> to vector<8xf32>
    %601 = vector.shape_cast %600 : vector<8xf32> to vector<1x8xf32>
    %c8 = arith.constant 8 : index
    %602 = memref.load %arg3[%c8] : memref<21xf32, #tpu.memory_space<smem>>
    %603 = vector.broadcast %602 : f32 to vector<1x8xf32>
    %604 = arith.mulf %601, %603 : vector<1x8xf32>
    %605 = arith.addf %589, %604 : vector<1x8xf32>
    %cst_55 = arith.constant -5.000000e-02 : f32
    %606 = vector.broadcast %cst_55 : f32 to vector<16x8x8xf32>
    %607 = arith.subf %460, %606 : vector<16x8x8xf32>
    %608 = arith.mulf %607, %607 : vector<16x8x8xf32>
    %cst_56 = arith.constant -5.000000e+01 : f32
    %609 = vector.broadcast %cst_56 : f32 to vector<16x8x8xf32>
    %610 = arith.mulf %608, %609 : vector<16x8x8xf32>
    %611 = math.exp %610 : vector<16x8x8xf32>
    %cst_57 = arith.constant dense<0.000000e+00> : vector<8x8xf32>
    %612 = vector.multi_reduction <add>, %611, %cst_57 [0] : vector<16x8x8xf32> to vector<8x8xf32>
    %cst_58 = arith.constant 1.000000e+00 : f32
    %613 = vector.broadcast %cst_58 : f32 to vector<8x8xf32>
    %614 = arith.addf %613, %612 : vector<8x8xf32>
    %615 = math.log %614 : vector<8x8xf32>
    %cst_59 = arith.constant dense<0.000000e+00> : vector<8xf32>
    %616 = vector.multi_reduction <add>, %615, %cst_59 [0] : vector<8x8xf32> to vector<8xf32>
    %617 = vector.shape_cast %616 : vector<8xf32> to vector<1x8xf32>
    %c9 = arith.constant 9 : index
    %618 = memref.load %arg3[%c9] : memref<21xf32, #tpu.memory_space<smem>>
    %619 = vector.broadcast %618 : f32 to vector<1x8xf32>
    %620 = arith.mulf %617, %619 : vector<1x8xf32>
    %621 = arith.addf %605, %620 : vector<1x8xf32>
    %cst_60 = arith.constant 5.000000e-02 : f32
    %622 = vector.broadcast %cst_60 : f32 to vector<16x8x8xf32>
    %623 = arith.subf %460, %622 : vector<16x8x8xf32>
    %624 = arith.mulf %623, %623 : vector<16x8x8xf32>
    %cst_61 = arith.constant -5.000000e+01 : f32
    %625 = vector.broadcast %cst_61 : f32 to vector<16x8x8xf32>
    %626 = arith.mulf %624, %625 : vector<16x8x8xf32>
    %627 = math.exp %626 : vector<16x8x8xf32>
    %cst_62 = arith.constant dense<0.000000e+00> : vector<8x8xf32>
    %628 = vector.multi_reduction <add>, %627, %cst_62 [0] : vector<16x8x8xf32> to vector<8x8xf32>
    %cst_63 = arith.constant 1.000000e+00 : f32
    %629 = vector.broadcast %cst_63 : f32 to vector<8x8xf32>
    %630 = arith.addf %629, %628 : vector<8x8xf32>
    %631 = math.log %630 : vector<8x8xf32>
    %cst_64 = arith.constant dense<0.000000e+00> : vector<8xf32>
    %632 = vector.multi_reduction <add>, %631, %cst_64 [0] : vector<8x8xf32> to vector<8xf32>
    %633 = vector.shape_cast %632 : vector<8xf32> to vector<1x8xf32>
    %c10 = arith.constant 10 : index
    %634 = memref.load %arg3[%c10] : memref<21xf32, #tpu.memory_space<smem>>
    %635 = vector.broadcast %634 : f32 to vector<1x8xf32>
    %636 = arith.mulf %633, %635 : vector<1x8xf32>
    %637 = arith.addf %621, %636 : vector<1x8xf32>
    %cst_65 = arith.constant 1.500000e-01 : f32
    %638 = vector.broadcast %cst_65 : f32 to vector<16x8x8xf32>
    %639 = arith.subf %460, %638 : vector<16x8x8xf32>
    %640 = arith.mulf %639, %639 : vector<16x8x8xf32>
    %cst_66 = arith.constant -5.000000e+01 : f32
    %641 = vector.broadcast %cst_66 : f32 to vector<16x8x8xf32>
    %642 = arith.mulf %640, %641 : vector<16x8x8xf32>
    %643 = math.exp %642 : vector<16x8x8xf32>
    %cst_67 = arith.constant dense<0.000000e+00> : vector<8x8xf32>
    %644 = vector.multi_reduction <add>, %643, %cst_67 [0] : vector<16x8x8xf32> to vector<8x8xf32>
    %cst_68 = arith.constant 1.000000e+00 : f32
    %645 = vector.broadcast %cst_68 : f32 to vector<8x8xf32>
    %646 = arith.addf %645, %644 : vector<8x8xf32>
    %647 = math.log %646 : vector<8x8xf32>
    %cst_69 = arith.constant dense<0.000000e+00> : vector<8xf32>
    %648 = vector.multi_reduction <add>, %647, %cst_69 [0] : vector<8x8xf32> to vector<8xf32>
    %649 = vector.shape_cast %648 : vector<8xf32> to vector<1x8xf32>
    %c11 = arith.constant 11 : index
    %650 = memref.load %arg3[%c11] : memref<21xf32, #tpu.memory_space<smem>>
    %651 = vector.broadcast %650 : f32 to vector<1x8xf32>
    %652 = arith.mulf %649, %651 : vector<1x8xf32>
    %653 = arith.addf %637, %652 : vector<1x8xf32>
    %cst_70 = arith.constant 2.500000e-01 : f32
    %654 = vector.broadcast %cst_70 : f32 to vector<16x8x8xf32>
    %655 = arith.subf %460, %654 : vector<16x8x8xf32>
    %656 = arith.mulf %655, %655 : vector<16x8x8xf32>
    %cst_71 = arith.constant -5.000000e+01 : f32
    %657 = vector.broadcast %cst_71 : f32 to vector<16x8x8xf32>
    %658 = arith.mulf %656, %657 : vector<16x8x8xf32>
    %659 = math.exp %658 : vector<16x8x8xf32>
    %cst_72 = arith.constant dense<0.000000e+00> : vector<8x8xf32>
    %660 = vector.multi_reduction <add>, %659, %cst_72 [0] : vector<16x8x8xf32> to vector<8x8xf32>
    %cst_73 = arith.constant 1.000000e+00 : f32
    %661 = vector.broadcast %cst_73 : f32 to vector<8x8xf32>
    %662 = arith.addf %661, %660 : vector<8x8xf32>
    %663 = math.log %662 : vector<8x8xf32>
    %cst_74 = arith.constant dense<0.000000e+00> : vector<8xf32>
    %664 = vector.multi_reduction <add>, %663, %cst_74 [0] : vector<8x8xf32> to vector<8xf32>
    %665 = vector.shape_cast %664 : vector<8xf32> to vector<1x8xf32>
    %c12 = arith.constant 12 : index
    %666 = memref.load %arg3[%c12] : memref<21xf32, #tpu.memory_space<smem>>
    %667 = vector.broadcast %666 : f32 to vector<1x8xf32>
    %668 = arith.mulf %665, %667 : vector<1x8xf32>
    %669 = arith.addf %653, %668 : vector<1x8xf32>
    %cst_75 = arith.constant 3.500000e-01 : f32
    %670 = vector.broadcast %cst_75 : f32 to vector<16x8x8xf32>
    %671 = arith.subf %460, %670 : vector<16x8x8xf32>
    %672 = arith.mulf %671, %671 : vector<16x8x8xf32>
    %cst_76 = arith.constant -5.000000e+01 : f32
    %673 = vector.broadcast %cst_76 : f32 to vector<16x8x8xf32>
    %674 = arith.mulf %672, %673 : vector<16x8x8xf32>
    %675 = math.exp %674 : vector<16x8x8xf32>
    %cst_77 = arith.constant dense<0.000000e+00> : vector<8x8xf32>
    %676 = vector.multi_reduction <add>, %675, %cst_77 [0] : vector<16x8x8xf32> to vector<8x8xf32>
    %cst_78 = arith.constant 1.000000e+00 : f32
    %677 = vector.broadcast %cst_78 : f32 to vector<8x8xf32>
    %678 = arith.addf %677, %676 : vector<8x8xf32>
    %679 = math.log %678 : vector<8x8xf32>
    %cst_79 = arith.constant dense<0.000000e+00> : vector<8xf32>
    %680 = vector.multi_reduction <add>, %679, %cst_79 [0] : vector<8x8xf32> to vector<8xf32>
    %681 = vector.shape_cast %680 : vector<8xf32> to vector<1x8xf32>
    %c13 = arith.constant 13 : index
    %682 = memref.load %arg3[%c13] : memref<21xf32, #tpu.memory_space<smem>>
    %683 = vector.broadcast %682 : f32 to vector<1x8xf32>
    %684 = arith.mulf %681, %683 : vector<1x8xf32>
    %685 = arith.addf %669, %684 : vector<1x8xf32>
    %cst_80 = arith.constant 4.500000e-01 : f32
    %686 = vector.broadcast %cst_80 : f32 to vector<16x8x8xf32>
    %687 = arith.subf %460, %686 : vector<16x8x8xf32>
    %688 = arith.mulf %687, %687 : vector<16x8x8xf32>
    %cst_81 = arith.constant -5.000000e+01 : f32
    %689 = vector.broadcast %cst_81 : f32 to vector<16x8x8xf32>
    %690 = arith.mulf %688, %689 : vector<16x8x8xf32>
    %691 = math.exp %690 : vector<16x8x8xf32>
    %cst_82 = arith.constant dense<0.000000e+00> : vector<8x8xf32>
    %692 = vector.multi_reduction <add>, %691, %cst_82 [0] : vector<16x8x8xf32> to vector<8x8xf32>
    %cst_83 = arith.constant 1.000000e+00 : f32
    %693 = vector.broadcast %cst_83 : f32 to vector<8x8xf32>
    %694 = arith.addf %693, %692 : vector<8x8xf32>
    %695 = math.log %694 : vector<8x8xf32>
    %cst_84 = arith.constant dense<0.000000e+00> : vector<8xf32>
    %696 = vector.multi_reduction <add>, %695, %cst_84 [0] : vector<8x8xf32> to vector<8xf32>
    %697 = vector.shape_cast %696 : vector<8xf32> to vector<1x8xf32>
    %c14 = arith.constant 14 : index
    %698 = memref.load %arg3[%c14] : memref<21xf32, #tpu.memory_space<smem>>
    %699 = vector.broadcast %698 : f32 to vector<1x8xf32>
    %700 = arith.mulf %697, %699 : vector<1x8xf32>
    %701 = arith.addf %685, %700 : vector<1x8xf32>
    %cst_85 = arith.constant 5.500000e-01 : f32
    %702 = vector.broadcast %cst_85 : f32 to vector<16x8x8xf32>
    %703 = arith.subf %460, %702 : vector<16x8x8xf32>
    %704 = arith.mulf %703, %703 : vector<16x8x8xf32>
    %cst_86 = arith.constant -5.000000e+01 : f32
    %705 = vector.broadcast %cst_86 : f32 to vector<16x8x8xf32>
    %706 = arith.mulf %704, %705 : vector<16x8x8xf32>
    %707 = math.exp %706 : vector<16x8x8xf32>
    %cst_87 = arith.constant dense<0.000000e+00> : vector<8x8xf32>
    %708 = vector.multi_reduction <add>, %707, %cst_87 [0] : vector<16x8x8xf32> to vector<8x8xf32>
    %cst_88 = arith.constant 1.000000e+00 : f32
    %709 = vector.broadcast %cst_88 : f32 to vector<8x8xf32>
    %710 = arith.addf %709, %708 : vector<8x8xf32>
    %711 = math.log %710 : vector<8x8xf32>
    %cst_89 = arith.constant dense<0.000000e+00> : vector<8xf32>
    %712 = vector.multi_reduction <add>, %711, %cst_89 [0] : vector<8x8xf32> to vector<8xf32>
    %713 = vector.shape_cast %712 : vector<8xf32> to vector<1x8xf32>
    %c15 = arith.constant 15 : index
    %714 = memref.load %arg3[%c15] : memref<21xf32, #tpu.memory_space<smem>>
    %715 = vector.broadcast %714 : f32 to vector<1x8xf32>
    %716 = arith.mulf %713, %715 : vector<1x8xf32>
    %717 = arith.addf %701, %716 : vector<1x8xf32>
    %cst_90 = arith.constant 6.500000e-01 : f32
    %718 = vector.broadcast %cst_90 : f32 to vector<16x8x8xf32>
    %719 = arith.subf %460, %718 : vector<16x8x8xf32>
    %720 = arith.mulf %719, %719 : vector<16x8x8xf32>
    %cst_91 = arith.constant -5.000000e+01 : f32
    %721 = vector.broadcast %cst_91 : f32 to vector<16x8x8xf32>
    %722 = arith.mulf %720, %721 : vector<16x8x8xf32>
    %723 = math.exp %722 : vector<16x8x8xf32>
    %cst_92 = arith.constant dense<0.000000e+00> : vector<8x8xf32>
    %724 = vector.multi_reduction <add>, %723, %cst_92 [0] : vector<16x8x8xf32> to vector<8x8xf32>
    %cst_93 = arith.constant 1.000000e+00 : f32
    %725 = vector.broadcast %cst_93 : f32 to vector<8x8xf32>
    %726 = arith.addf %725, %724 : vector<8x8xf32>
    %727 = math.log %726 : vector<8x8xf32>
    %cst_94 = arith.constant dense<0.000000e+00> : vector<8xf32>
    %728 = vector.multi_reduction <add>, %727, %cst_94 [0] : vector<8x8xf32> to vector<8xf32>
    %729 = vector.shape_cast %728 : vector<8xf32> to vector<1x8xf32>
    %c16 = arith.constant 16 : index
    %730 = memref.load %arg3[%c16] : memref<21xf32, #tpu.memory_space<smem>>
    %731 = vector.broadcast %730 : f32 to vector<1x8xf32>
    %732 = arith.mulf %729, %731 : vector<1x8xf32>
    %733 = arith.addf %717, %732 : vector<1x8xf32>
    %cst_95 = arith.constant 7.500000e-01 : f32
    %734 = vector.broadcast %cst_95 : f32 to vector<16x8x8xf32>
    %735 = arith.subf %460, %734 : vector<16x8x8xf32>
    %736 = arith.mulf %735, %735 : vector<16x8x8xf32>
    %cst_96 = arith.constant -5.000000e+01 : f32
    %737 = vector.broadcast %cst_96 : f32 to vector<16x8x8xf32>
    %738 = arith.mulf %736, %737 : vector<16x8x8xf32>
    %739 = math.exp %738 : vector<16x8x8xf32>
    %cst_97 = arith.constant dense<0.000000e+00> : vector<8x8xf32>
    %740 = vector.multi_reduction <add>, %739, %cst_97 [0] : vector<16x8x8xf32> to vector<8x8xf32>
    %cst_98 = arith.constant 1.000000e+00 : f32
    %741 = vector.broadcast %cst_98 : f32 to vector<8x8xf32>
    %742 = arith.addf %741, %740 : vector<8x8xf32>
    %743 = math.log %742 : vector<8x8xf32>
    %cst_99 = arith.constant dense<0.000000e+00> : vector<8xf32>
    %744 = vector.multi_reduction <add>, %743, %cst_99 [0] : vector<8x8xf32> to vector<8xf32>
    %745 = vector.shape_cast %744 : vector<8xf32> to vector<1x8xf32>
    %c17 = arith.constant 17 : index
    %746 = memref.load %arg3[%c17] : memref<21xf32, #tpu.memory_space<smem>>
    %747 = vector.broadcast %746 : f32 to vector<1x8xf32>
    %748 = arith.mulf %745, %747 : vector<1x8xf32>
    %749 = arith.addf %733, %748 : vector<1x8xf32>
    %cst_100 = arith.constant 8.500000e-01 : f32
    %750 = vector.broadcast %cst_100 : f32 to vector<16x8x8xf32>
    %751 = arith.subf %460, %750 : vector<16x8x8xf32>
    %752 = arith.mulf %751, %751 : vector<16x8x8xf32>
    %cst_101 = arith.constant -5.000000e+01 : f32
    %753 = vector.broadcast %cst_101 : f32 to vector<16x8x8xf32>
    %754 = arith.mulf %752, %753 : vector<16x8x8xf32>
    %755 = math.exp %754 : vector<16x8x8xf32>
    %cst_102 = arith.constant dense<0.000000e+00> : vector<8x8xf32>
    %756 = vector.multi_reduction <add>, %755, %cst_102 [0] : vector<16x8x8xf32> to vector<8x8xf32>
    %cst_103 = arith.constant 1.000000e+00 : f32
    %757 = vector.broadcast %cst_103 : f32 to vector<8x8xf32>
    %758 = arith.addf %757, %756 : vector<8x8xf32>
    %759 = math.log %758 : vector<8x8xf32>
    %cst_104 = arith.constant dense<0.000000e+00> : vector<8xf32>
    %760 = vector.multi_reduction <add>, %759, %cst_104 [0] : vector<8x8xf32> to vector<8xf32>
    %761 = vector.shape_cast %760 : vector<8xf32> to vector<1x8xf32>
    %c18 = arith.constant 18 : index
    %762 = memref.load %arg3[%c18] : memref<21xf32, #tpu.memory_space<smem>>
    %763 = vector.broadcast %762 : f32 to vector<1x8xf32>
    %764 = arith.mulf %761, %763 : vector<1x8xf32>
    %765 = arith.addf %749, %764 : vector<1x8xf32>
    %cst_105 = arith.constant 0.949999988 : f32
    %766 = vector.broadcast %cst_105 : f32 to vector<16x8x8xf32>
    %767 = arith.subf %460, %766 : vector<16x8x8xf32>
    %768 = arith.mulf %767, %767 : vector<16x8x8xf32>
    %cst_106 = arith.constant -5.000000e+01 : f32
    %769 = vector.broadcast %cst_106 : f32 to vector<16x8x8xf32>
    %770 = arith.mulf %768, %769 : vector<16x8x8xf32>
    %771 = math.exp %770 : vector<16x8x8xf32>
    %cst_107 = arith.constant dense<0.000000e+00> : vector<8x8xf32>
    %772 = vector.multi_reduction <add>, %771, %cst_107 [0] : vector<16x8x8xf32> to vector<8x8xf32>
    %cst_108 = arith.constant 1.000000e+00 : f32
    %773 = vector.broadcast %cst_108 : f32 to vector<8x8xf32>
    %774 = arith.addf %773, %772 : vector<8x8xf32>
    %775 = math.log %774 : vector<8x8xf32>
    %cst_109 = arith.constant dense<0.000000e+00> : vector<8xf32>
    %776 = vector.multi_reduction <add>, %775, %cst_109 [0] : vector<8x8xf32> to vector<8xf32>
    %777 = vector.shape_cast %776 : vector<8xf32> to vector<1x8xf32>
    %c19 = arith.constant 19 : index
    %778 = memref.load %arg3[%c19] : memref<21xf32, #tpu.memory_space<smem>>
    %779 = vector.broadcast %778 : f32 to vector<1x8xf32>
    %780 = arith.mulf %777, %779 : vector<1x8xf32>
    %781 = arith.addf %765, %780 : vector<1x8xf32>
    %cst_110 = arith.constant 1.000000e+00 : f32
    %782 = vector.broadcast %cst_110 : f32 to vector<16x8x8xf32>
    %783 = arith.subf %460, %782 : vector<16x8x8xf32>
    %784 = arith.mulf %783, %783 : vector<16x8x8xf32>
    %cst_111 = arith.constant -5.000000e+05 : f32
    %785 = vector.broadcast %cst_111 : f32 to vector<16x8x8xf32>
    %786 = arith.mulf %784, %785 : vector<16x8x8xf32>
    %787 = math.exp %786 : vector<16x8x8xf32>
    %cst_112 = arith.constant dense<0.000000e+00> : vector<8x8xf32>
    %788 = vector.multi_reduction <add>, %787, %cst_112 [0] : vector<16x8x8xf32> to vector<8x8xf32>
    %cst_113 = arith.constant 1.000000e+00 : f32
    %789 = vector.broadcast %cst_113 : f32 to vector<8x8xf32>
    %790 = arith.addf %789, %788 : vector<8x8xf32>
    %791 = math.log %790 : vector<8x8xf32>
    %cst_114 = arith.constant dense<0.000000e+00> : vector<8xf32>
    %792 = vector.multi_reduction <add>, %791, %cst_114 [0] : vector<8x8xf32> to vector<8xf32>
    %793 = vector.shape_cast %792 : vector<8xf32> to vector<1x8xf32>
    %c20 = arith.constant 20 : index
    %794 = memref.load %arg3[%c20] : memref<21xf32, #tpu.memory_space<smem>>
    %795 = vector.broadcast %794 : f32 to vector<1x8xf32>
    %796 = arith.mulf %793, %795 : vector<1x8xf32>
    %797 = arith.addf %781, %796 : vector<1x8xf32>
    %798 = vector.shape_cast %797 : vector<1x8xf32> to vector<1x1x8xf32>
    %c0_115 = arith.constant 0 : index
    %c0_116 = arith.constant 0 : index
    %c0_117 = arith.constant 0 : index
    %799 = vector.load %arg4[%c0_115, %c0_116, %c0_117] : memref<1x1x8xf32, #tpu.memory_space<vmem>>, vector<1x1x8xf32>
    tpu.vector_store %arg4[%c0_115, %c0_116, %c0_117], %798 {strides = array<i32>} : memref<1x1x8xf32, #tpu.memory_space<vmem>>, vector<1x1x8xf32>,
    return
  }
  func.func @transform_0(%arg0: i32) -> (i32, i32, i32, i32) {
    %c0_i32 = arith.constant 0 : i32
    %c0_i32_0 = arith.constant 0 : i32
    %c0_i32_1 = arith.constant 0 : i32
    %c0_i32_2 = arith.constant 0 : i32
    return %arg0, %c0_i32, %c0_i32_0, %c0_i32_1 : i32, i32, i32, i32
  }
  func.func @transform_1(%arg0: i32) -> (i32, i32, i32, i32) {
    %c0_i32 = arith.constant 0 : i32
    %c0_i32_0 = arith.constant 0 : i32
    %c0_i32_1 = arith.constant 0 : i32
    %c0_i32_2 = arith.constant 0 : i32
    return %arg0, %c0_i32, %c0_i32_0, %c0_i32_1 : i32, i32, i32, i32
  }
  func.func @transform_2(%arg0: i32) -> i32 {
    %c0_i32 = arith.constant 0 : i32
    %c0_i32_0 = arith.constant 0 : i32
    return %c0_i32 : i32
  }
  func.func @transform_3(%arg0: i32) -> (i32, i32, i32) {
    %c0_i32 = arith.constant 0 : i32
    %c0_i32_0 = arith.constant 0 : i32
    %c0_i32_1 = arith.constant 0 : i32
    return %arg0, %c0_i32, %c0_i32_0 : i32, i32, i32
  }
}

</mosaic_0001>

<llo_original>
// kernel: tpu_custom_call.1
$region0: #{tpu_custom_call.1}
  #allocation0 [shape = 'u32[]', space=smem, size = 0x4, offset = 0x4, fixed_abs, tag = 'smem constant byte address 0x4 - core index']
  #allocation1 [shape = 'u32[144,128]{1,0:T(1,128)}', space=vmem, size = 0x12000, scoped, tag = 'internal scratch']
  %s0 = inlined_call_operand.vmem [shape: f32[2,32,8,8], index: 0, kind: input, shape index: {}]
  %s1 = inlined_call_operand.vmem [shape: f32[2,32,16,8], index: 1, kind: input, shape index: {}]
  %s2 = inlined_call_operand.vmem [shape: f32[21], index: 2, kind: input, shape index: {}]
  %s3 = inlined_call_operand.hbm [shape: f32[2,1,8], index: 3, kind: output, shape index: {}]
  %s4 = sld [smem:[#allocation0]]
  $region49: #{tpu_custom_call.1} parent=0
    _
  %s6 = ssub.s32 1, %s4
  %s7 = scalar_select 0, %s6, %s4
  $region1: #{tpu_custom_call.1} parent=0
    #allocation2 [shape = 'u8[512]{0}', space=smem, size = 0x200, scoped, tag = 'input window, operand 2, single buffered']
    #allocation3 [shape = 's32[2]{0}', space=sflag, size = 0x8, scoped, tag = 'scoped memory for tpu_custom_call.1']
    #allocation4 [shape = 's32[2]{0}', space=sflag, size = 0x8, scoped, tag = 'scoped memory for tpu_custom_call.1']
    #allocation5 [shape = 'u8[1024]{0}', space=vmem, size = 0x400, scoped, tag = 'output window, operand 0']
    %8 = vsyncpa [#allocation4], 0
    %9 = vsyncpa [#allocation3], 0
    %s10 = scalar_lea.sflag [#allocation3], 1
    %11 = vsyncpa %s10, 0
    loop: start=0, step=1, limit=4
    $region2: #{tpu_custom_call.1} parent=1 // loop_pre_header
      _
    $region3: #{tpu_custom_call.1} parent=1 // loop_header
      %s13 = sphi 0, %s17
      %p14 = scmp.ge.s32.totalorder %s13, 4
      %s23 = sphi 0, %s25
      %s26 = sphi 0, %s23
      %s27 = sphi 0, %s26
      %s43 = sphi 0, %s27
      %s49 = sphi 0, %s51
      %s52 = sphi 0, %s49
      %s53 = sphi 0, %s52
      %s69 = sphi 0, %s53
      %s73 = sphi 0, %s73
      %s75 = sphi 0, %s73
      %s76 = sphi 0, %s75
      %s90 = sphi 0, %s76
      %s96 = sphi 0, %s98
      %s99 = sphi 0, %s96
      %s100 = sphi 0, %s99
      %s116 = sphi 0, %s100
    $region4: #{tpu_custom_call.1} parent=1 // loop_header_branch
      %16 = sbr.rel (%p14) target = $region8
    $region5: #{tpu_custom_call.1} parent=1 // loop_body
      %s18 = ssub.s32 %s13, 1
      %s19 = ssub.s32 %s13, 2
      %s20 = sadd.s32 %s13, 1
      %s21 = ssub.s32 %s13, %s20
      %p22 = scmp.eq.s32.totalorder %s21, 0
      %s24 = sadd.s32 %s23, 1
      %s25 = scalar_select %p22, %s23, %s24
      %p28 = pneg %p22
      %p29 = scmp.eq.s32.totalorder %s13, 1
      %p30 = por %p28, %p29
      %p31 = scmp.ne.s32.totalorder %s23, %s26
      %p32 = scmp.eq.s32.totalorder %s13, 0
      %p33 = por %p31, %p32
      %p34 = scmp.ne.s32.totalorder %s23, %s26
      %p35 = scmp.eq.s32.totalorder %s18, 1
      %p36 = por %p34, %p35
      %p37 = scmp.ne.s32.totalorder %s26, %s27
      %p38 = scmp.eq.s32.totalorder %s18, 0
      %p39 = por %p37, %p38
      %p40 = scmp.ne.s32.totalorder %s26, %s27
      %p41 = scmp.eq.s32.totalorder %s19, 1
      %p42 = por %p40, %p41
      %p44 = scmp.ne.s32.totalorder %s27, %s43
      %p45 = scmp.eq.s32.totalorder %s19, 0
      %p46 = por %p44, %p45
      %s47 = ssub.s32 %s13, %s20
      %p48 = scmp.eq.s32.totalorder %s47, 0
      %s50 = sadd.s32 %s49, 1
      %s51 = scalar_select %p48, %s49, %s50
      %p54 = pneg %p48
      %p55 = scmp.eq.s32.totalorder %s13, 1
      %p56 = por %p54, %p55
      %p57 = scmp.ne.s32.totalorder %s49, %s52
      %p58 = scmp.eq.s32.totalorder %s13, 0
      %p59 = por %p57, %p58
      %p60 = scmp.ne.s32.totalorder %s49, %s52
      %p61 = scmp.eq.s32.totalorder %s18, 1
      %p62 = por %p60, %p61
      %p63 = scmp.ne.s32.totalorder %s52, %s53
      %p64 = scmp.eq.s32.totalorder %s18, 0
      %p65 = por %p63, %p64
      %p66 = scmp.ne.s32.totalorder %s52, %s53
      %p67 = scmp.eq.s32.totalorder %s19, 1
      %p68 = por %p66, %p67
      %p70 = scmp.ne.s32.totalorder %s53, %s69
      %p71 = scmp.eq.s32.totalorder %s19, 0
      %p72 = por %p70, %p71
      %s74 = sadd.s32 %s73, 1
      %p77 = scmp.eq.s32.totalorder %s13, 1
      %p78 = scmp.ne.s32.totalorder %s73, %s75
      %p79 = scmp.eq.s32.totalorder %s13, 0
      %p80 = por %p78, %p79
      %p81 = scmp.ne.s32.totalorder %s73, %s75
      %p82 = scmp.eq.s32.totalorder %s18, 1
      %p83 = por %p81, %p82
      %p84 = scmp.ne.s32.totalorder %s75, %s76
      %p85 = scmp.eq.s32.totalorder %s18, 0
      %p86 = por %p84, %p85
      %p87 = scmp.ne.s32.totalorder %s75, %s76
      %p88 = scmp.eq.s32.totalorder %s19, 1
      %p89 = por %p87, %p88
      %p91 = scmp.ne.s32.totalorder %s76, %s90
      %p92 = scmp.eq.s32.totalorder %s19, 0
      %p93 = por %p91, %p92
      %s94 = ssub.s32 %s13, %s20
      %p95 = scmp.eq.s32.totalorder %s94, 0
      %s97 = sadd.s32 %s96, 1
      %s98 = scalar_select %p95, %s96, %s97
      %p101 = pneg %p95
      %p102 = scmp.eq.s32.totalorder %s13, 1
      %p103 = por %p101, %p102
      %p104 = scmp.ne.s32.totalorder %s96, %s99
      %p105 = scmp.eq.s32.totalorder %s13, 0
      %p106 = por %p104, %p105
      %p107 = scmp.ne.s32.totalorder %s96, %s99
      %p108 = scmp.eq.s32.totalorder %s18, 1
      %p109 = por %p107, %p108
      %p110 = scmp.ne.s32.totalorder %s99, %s100
      %p111 = scmp.eq.s32.totalorder %s18, 0
      %p112 = por %p110, %p111
      %p113 = scmp.ne.s32.totalorder %s99, %s100
      %p114 = scmp.eq.s32.totalorder %s19, 1
      %p115 = por %p113, %p114
      %p117 = scmp.ne.s32.totalorder %s100, %s116
      %p118 = scmp.eq.s32.totalorder %s19, 0
      %p119 = por %p117, %p118
      %p120 = scmp.le.s32.totalorder 1, %s13
      %p121 = scmp.lt.s32.totalorder %s13, 3
      %p122 = pnand %p120, %p121
      %p123 = pneg %p122
      // Predicated region
      $region9: #{tpu_custom_call.1} parent=5 // pred_check
        _
      $region10: #{tpu_custom_call.1} parent=5 // pred_check_branch
        %125 = sbr.rel (%p122) target = $region12
      $region11: #{tpu_custom_call.1} parent=5 // pred_region
        %s126 = ssub.s32 %s13, 1
        // Predicated region
        $region13: #{tpu_custom_call.1} parent=11 // pred_check
          %p127 = pneg %p86
        $region14: #{tpu_custom_call.1} parent=11 // pred_check_branch
          %129 = sbr.rel (%p127) target = $region16
        $region15: #{tpu_custom_call.1} parent=11 // pred_region
          %s131 = ssub.s32 16, 16
          %132 = vsyncadd [#allocation4], %s131
          %s134 = sshll.u32 %s2, 4
          %s135 = int_to_ptr.vmem [resolvable:$true] %s134
          %137 = dma.vmem_to_smem %s135, 16, [#allocation2], [#allocation4]
        $region16: #{tpu_custom_call.1} parent=11 // pred_fallthru
          _
      $region12: #{tpu_custom_call.1} parent=5 // pred_fallthru
        _
      %p138 = scmp.lt.s32.totalorder %s13, 2
      // Predicated region
      $region17: #{tpu_custom_call.1} parent=5 // pred_check
        %p139 = pneg %p138
      $region18: #{tpu_custom_call.1} parent=5 // pred_check_branch
        %141 = sbr.rel (%p139) target = $region20
      $region19: #{tpu_custom_call.1} parent=5 // pred_region
        // Predicated region
        $region21: #{tpu_custom_call.1} parent=19 // pred_check
          %p142 = pneg %p33
        $region22: #{tpu_custom_call.1} parent=19 // pred_check_branch
          %144 = sbr.rel (%p142) target = $region24
        $region23: #{tpu_custom_call.1} parent=19 // pred_region
          %p145 = scmp.lt.s32.totalorder %s13, 1
          %s146 = scalar_select %p145, %s13, 1
          %s147 = smul.addr %s146, 32
          %s148 = smul.addr %s147, 8
          %s149 = scalar_lea.vmem %s0, %s148
        $region24: #{tpu_custom_call.1} parent=19 // pred_fallthru
          _
        // Predicated region
        $region25: #{tpu_custom_call.1} parent=19 // pred_check
          %p150 = pneg %p59
        $region26: #{tpu_custom_call.1} parent=19 // pred_check_branch
          %152 = sbr.rel (%p150) target = $region28
        $region27: #{tpu_custom_call.1} parent=19 // pred_region
          %p153 = scmp.lt.s32.totalorder %s13, 1
          %s154 = scalar_select %p153, %s13, 1
          %s155 = smul.addr %s154, 64
          %s156 = smul.addr %s155, 8
          %s157 = scalar_lea.vmem %s1, %s156
        $region28: #{tpu_custom_call.1} parent=19 // pred_fallthru
          _
      $region20: #{tpu_custom_call.1} parent=5 // pred_fallthru
        _
      %p158 = scmp.le.s32.totalorder 1, %s13
      %p159 = scmp.lt.s32.totalorder %s13, 3
      %p160 = pnand %p158, %p159
      %p161 = pneg %p160
      // Predicated region
      $region29: #{tpu_custom_call.1} parent=5 // pred_check
        _
      $region30: #{tpu_custom_call.1} parent=5 // pred_check_branch
        %163 = sbr.rel (%p160) target = $region32
      $region31: #{tpu_custom_call.1} parent=5 // pred_region
        %s164 = ssub.s32 %s13, 1
        // Predicated region
        $region33: #{tpu_custom_call.1} parent=31 // pred_check
          %p165 = pneg %p86
        $region34: #{tpu_custom_call.1} parent=31 // pred_check_branch
          %167 = sbr.rel (%p165) target = $region36
        $region35: #{tpu_custom_call.1} parent=31 // pred_region
          %168 = dma.done [#allocation4], 16
        $region36: #{tpu_custom_call.1} parent=31 // pred_fallthru
          _
        %169 = sfence
        %p170 = scmp.lt.s32.totalorder %s18, 1
        %s171 = scalar_select %p170, %s18, 1
        %s172 = smul.addr %s171, 32
        %s173 = smul.addr %s172, 8
        %s174 = scalar_lea.vmem %s0, %s173
        %p175 = pneg %p39
        %p176 = pneg %p36
        %p177 = scmp.lt.s32.totalorder %s18, 1
        %s178 = scalar_select %p177, %s18, 1
        %s179 = smul.addr %s178, 64
        %s180 = smul.addr %s179, 8
        %s181 = scalar_lea.vmem %s1, %s180
        %p182 = pneg %p65
        %p183 = pneg %p62
        %p184 = pneg %p86
        %p185 = pneg %p83
        %p186 = pneg %p112
        %p187 = pneg %p109
        %s188 = sand.u32 %s99, 1
        %s189 = scalar_lea.sflag [#allocation3], %s188
        %s190 = sand.u32 %s99, 1
        %s191 = scalar_lea.vmem [#allocation5], %s190
        %p192 = scmp.lt.s32.totalorder %s18, 1
        %s193 = scalar_select %p192, %s18, 1
        %s194 = smul.addr %s193, 32
        %s195 = smul.addr %s194, 8
        %s196 = scalar_lea.vmem %s0, %s195
        %p197 = scmp.lt.s32.totalorder %s18, 1
        %s198 = scalar_select %p197, %s18, 1
        %s199 = smul.addr %s198, 64
        %s200 = smul.addr %s199, 8
        %s201 = scalar_lea.vmem %s1, %s200
        %v202 = vld [vmem:[%s196] sm:$0xff]
        %v203 = vld [vmem:[%s196 + $0x8] sm:$0xff]
        %v204 = vld [vmem:[%s196 + $0x10] sm:$0xff]
        %v205 = vld [vmem:[%s196 + $0x18] sm:$0xff]
        %v206 = vld [vmem:[%s196 + $0x20] sm:$0xff]
        %v207 = vld [vmem:[%s196 + $0x28] sm:$0xff]
        %v208 = vld [vmem:[%s196 + $0x30] sm:$0xff]
        %v209 = vld [vmem:[%s196 + $0x38] sm:$0xff]
        %v210 = vld [vmem:[%s196 + $0x40] sm:$0xff]
        %v211 = vld [vmem:[%s196 + $0x48] sm:$0xff]
        %v212 = vld [vmem:[%s196 + $0x50] sm:$0xff]
        %v213 = vld [vmem:[%s196 + $0x58] sm:$0xff]
        %v214 = vld [vmem:[%s196 + $0x60] sm:$0xff]
        %v215 = vld [vmem:[%s196 + $0x68] sm:$0xff]
        %v216 = vld [vmem:[%s196 + $0x70] sm:$0xff]
        %v217 = vld [vmem:[%s196 + $0x78] sm:$0xff]
        %v218 = vld [vmem:[%s196 + $0x80] sm:$0xff]
        %v219 = vld [vmem:[%s196 + $0x88] sm:$0xff]
        %v220 = vld [vmem:[%s196 + $0x90] sm:$0xff]
        %v221 = vld [vmem:[%s196 + $0x98] sm:$0xff]
        %v222 = vld [vmem:[%s196 + $0xa0] sm:$0xff]
        %v223 = vld [vmem:[%s196 + $0xa8] sm:$0xff]
        %v224 = vld [vmem:[%s196 + $0xb0] sm:$0xff]
        %v225 = vld [vmem:[%s196 + $0xb8] sm:$0xff]
        %v226 = vld [vmem:[%s196 + $0xc0] sm:$0xff]
        %v227 = vld [vmem:[%s196 + $0xc8] sm:$0xff]
        %v228 = vld [vmem:[%s196 + $0xd0] sm:$0xff]
        %v229 = vld [vmem:[%s196 + $0xd8] sm:$0xff]
        %v230 = vld [vmem:[%s196 + $0xe0] sm:$0xff]
        %v231 = vld [vmem:[%s196 + $0xe8] sm:$0xff]
        %v232 = vld [vmem:[%s196 + $0xf0] sm:$0xff]
        %v233 = vld [vmem:[%s196 + $0xf8] sm:$0xff]
        %v234 = vld [vmem:[%s201] sm:$0xff]
        %v235 = vld [vmem:[%s201 + $0x8] sm:$0xff]
        %v236 = vld [vmem:[%s201 + $0x10] sm:$0xff]
        %v237 = vld [vmem:[%s201 + $0x18] sm:$0xff]
        %v238 = vld [vmem:[%s201 + $0x20] sm:$0xff]
        %v239 = vld [vmem:[%s201 + $0x28] sm:$0xff]
        %v240 = vld [vmem:[%s201 + $0x30] sm:$0xff]
        %v241 = vld [vmem:[%s201 + $0x38] sm:$0xff]
        %v242 = vld [vmem:[%s201 + $0x40] sm:$0xff]
        %v243 = vld [vmem:[%s201 + $0x48] sm:$0xff]
        %v244 = vld [vmem:[%s201 + $0x50] sm:$0xff]
        %v245 = vld [vmem:[%s201 + $0x58] sm:$0xff]
        %v246 = vld [vmem:[%s201 + $0x60] sm:$0xff]
        %v247 = vld [vmem:[%s201 + $0x68] sm:$0xff]
        %v248 = vld [vmem:[%s201 + $0x70] sm:$0xff]
        %v249 = vld [vmem:[%s201 + $0x78] sm:$0xff]
        %v250 = vld [vmem:[%s201 + $0x80] sm:$0xff]
        %v251 = vld [vmem:[%s201 + $0x88] sm:$0xff]
        %v252 = vld [vmem:[%s201 + $0x90] sm:$0xff]
        %v253 = vld [vmem:[%s201 + $0x98] sm:$0xff]
        %v254 = vld [vmem:[%s201 + $0xa0] sm:$0xff]
        %v255 = vld [vmem:[%s201 + $0xa8] sm:$0xff]
        %v256 = vld [vmem:[%s201 + $0xb0] sm:$0xff]
        %v257 = vld [vmem:[%s201 + $0xb8] sm:$0xff]
        %v258 = vld [vmem:[%s201 + $0xc0] sm:$0xff]
        %v259 = vld [vmem:[%s201 + $0xc8] sm:$0xff]
        %v260 = vld [vmem:[%s201 + $0xd0] sm:$0xff]
        %v261 = vld [vmem:[%s201 + $0xd8] sm:$0xff]
        %v262 = vld [vmem:[%s201 + $0xe0] sm:$0xff]
        %v263 = vld [vmem:[%s201 + $0xe8] sm:$0xff]
        %v264 = vld [vmem:[%s201 + $0xf0] sm:$0xff]
        %v265 = vld [vmem:[%s201 + $0xf8] sm:$0xff]
        %v266 = vld [vmem:[%s201 + $0x100] sm:$0xff]
        %v267 = vld [vmem:[%s201 + $0x108] sm:$0xff]
        %v268 = vld [vmem:[%s201 + $0x110] sm:$0xff]
        %v269 = vld [vmem:[%s201 + $0x118] sm:$0xff]
        %v270 = vld [vmem:[%s201 + $0x120] sm:$0xff]
        %v271 = vld [vmem:[%s201 + $0x128] sm:$0xff]
        %v272 = vld [vmem:[%s201 + $0x130] sm:$0xff]
        %v273 = vld [vmem:[%s201 + $0x138] sm:$0xff]
        %v274 = vld [vmem:[%s201 + $0x140] sm:$0xff]
        %v275 = vld [vmem:[%s201 + $0x148] sm:$0xff]
        %v276 = vld [vmem:[%s201 + $0x150] sm:$0xff]
        %v277 = vld [vmem:[%s201 + $0x158] sm:$0xff]
        %v278 = vld [vmem:[%s201 + $0x160] sm:$0xff]
        %v279 = vld [vmem:[%s201 + $0x168] sm:$0xff]
        %v280 = vld [vmem:[%s201 + $0x170] sm:$0xff]
        %v281 = vld [vmem:[%s201 + $0x178] sm:$0xff]
        %v282 = vld [vmem:[%s201 + $0x180] sm:$0xff]
        %v283 = vld [vmem:[%s201 + $0x188] sm:$0xff]
        %v284 = vld [vmem:[%s201 + $0x190] sm:$0xff]
        %v285 = vld [vmem:[%s201 + $0x198] sm:$0xff]
        %v286 = vld [vmem:[%s201 + $0x1a0] sm:$0xff]
        %v287 = vld [vmem:[%s201 + $0x1a8] sm:$0xff]
        %v288 = vld [vmem:[%s201 + $0x1b0] sm:$0xff]
        %v289 = vld [vmem:[%s201 + $0x1b8] sm:$0xff]
        %v290 = vld [vmem:[%s201 + $0x1c0] sm:$0xff]
        %v291 = vld [vmem:[%s201 + $0x1c8] sm:$0xff]
        %v292 = vld [vmem:[%s201 + $0x1d0] sm:$0xff]
        %v293 = vld [vmem:[%s201 + $0x1d8] sm:$0xff]
        %v294 = vld [vmem:[%s201 + $0x1e0] sm:$0xff]
        %v295 = vld [vmem:[%s201 + $0x1e8] sm:$0xff]
        %v296 = vld [vmem:[%s201 + $0x1f0] sm:$0xff]
        %v297 = vld [vmem:[%s201 + $0x1f8] sm:$0xff]
        %v298 = vmul.f32 %v202, %v202
        %v299 = vmul.f32 %v234, %v234
        %v300 = vmul.f32 %v235, %v235
        %v303 = vcombine.high %v234, %v234
        %v305 = vunpack.c.l.s4 1966171168
        %v306 = vunpack.c.0.s8 %v305
        %v307 = vlaneseq
        %v308 = vshrl.u32 %v307, 7
        %v309 = vsub.s32 %v306, %v308
        %v310 = vrot.slane %v234, %v309
        %v312 = vunpack.c.l.s4 1966171168
        %v313 = vunpack.c.0.s8 %v312
        %v314 = vlaneseq
        %v315 = vshrl.u32 %v314, 7
        %v316 = vsub.s32 %v313, %v315
        %v317 = vrot.slane %v303, %v316
        %v318 = vcombine.high %v310, %v310
        %v319 = vcombine.high %v317, %v317
        %v321 = vunpack.c.l.s4 1966171168
        %v322 = vunpack.c.0.s8 %v321
        %v323 = vlaneseq
        %v324 = vshrl.u32 %v323, 7
        %v325 = vsub.s32 %v322, %v324
        %v326 = vrot.slane %v310, %v325
        %v328 = vunpack.c.l.s4 1966171168
        %v329 = vunpack.c.0.s8 %v328
        %v330 = vlaneseq
        %v331 = vshrl.u32 %v330, 7
        %v332 = vsub.s32 %v329, %v331
        %v333 = vrot.slane %v317, %v332
        %v335 = vunpack.c.l.s4 1966171168
        %v336 = vunpack.c.0.s8 %v335
        %v337 = vlaneseq
        %v338 = vshrl.u32 %v337, 7
        %v339 = vsub.s32 %v336, %v338
        %v340 = vrot.slane %v318, %v339
        %v342 = vunpack.c.l.s4 1966171168
        %v343 = vunpack.c.0.s8 %v342
        %v344 = vlaneseq
        %v345 = vshrl.u32 %v344, 7
        %v346 = vsub.s32 %v343, %v345
        %v347 = vrot.slane %v319, %v346
        %v348 = vcombine.high %v326, %v326
        %v349 = vcombine.high %v333, %v333
        %v350 = vcombine.high %v340, %v340
        %v351 = vcombine.high %v347, %v347
        %v352 = vcombine.high %v235, %v235
        %v354 = vunpack.c.l.s4 1966171168
        %v355 = vunpack.c.0.s8 %v354
        %v356 = vlaneseq
        %v357 = vshrl.u32 %v356, 7
        %v358 = vsub.s32 %v355, %v357
        %v359 = vrot.slane %v235, %v358
        %v361 = vunpack.c.l.s4 1966171168
        %v362 = vunpack.c.0.s8 %v361
        %v363 = vlaneseq
        %v364 = vshrl.u32 %v363, 7
        %v365 = vsub.s32 %v362, %v364
        %v366 = vrot.slane %v352, %v365
        %v367 = vcombine.high %v359, %v359
        %v368 = vcombine.high %v366, %v366
        %v370 = vunpack.c.l.s4 1966171168
        %v371 = vunpack.c.0.s8 %v370
        %v372 = vlaneseq
        %v373 = vshrl.u32 %v372, 7
        %v374 = vsub.s32 %v371, %v373
        %v375 = vrot.slane %v359, %v374
        %v377 = vunpack.c.l.s4 1966171168
        %v378 = vunpack.c.0.s8 %v377
        %v379 = vlaneseq
        %v380 = vshrl.u32 %v379, 7
        %v381 = vsub.s32 %v378, %v380
        %v382 = vrot.slane %v366, %v381
        %v384 = vunpack.c.l.s4 1966171168
        %v385 = vunpack.c.0.s8 %v384
        %v386 = vlaneseq
        %v387 = vshrl.u32 %v386, 7
        %v388 = vsub.s32 %v385, %v387
        %v389 = vrot.slane %v367, %v388
        %v391 = vunpack.c.l.s4 1966171168
        %v392 = vunpack.c.0.s8 %v391
        %v393 = vlaneseq
        %v394 = vshrl.u32 %v393, 7
        %v395 = vsub.s32 %v392, %v394
        %v396 = vrot.slane %v368, %v395
        %v397 = vcombine.high %v375, %v375
        %v398 = vcombine.high %v382, %v382
        %v399 = vcombine.high %v389, %v389
        %v400 = vcombine.high %v396, %v396
        %v401 = vlaneseq
        %v402 = vshrl.u32 %v401, 7
        %v403 = vsub.s32 0, %v402
        %v404 = vrot.slane %v326, %v403
        %v405 = vlaneseq
        %v406 = vshrl.u32 %v405, 7
        %v407 = vsub.s32 0, %v406
        %v408 = vrot.slane %v340, %v407
        %v409 = vlaneseq
        %v410 = vshrl.u32 %v409, 7
        %v411 = vsub.s32 0, %v410
        %v412 = vrot.slane %v348, %v411
        %v413 = vlaneseq
        %v414 = vshrl.u32 %v413, 7
        %v415 = vsub.s32 0, %v414
        %v416 = vrot.slane %v350, %v415
        %v417 = vlaneseq
        %v418 = vshrl.u32 %v417, 7
        %v419 = vsub.s32 0, %v418
        %v420 = vrot.slane %v333, %v419
        %v421 = vlaneseq
        %v422 = vshrl.u32 %v421, 7
        %v423 = vsub.s32 0, %v422
        %v424 = vrot.slane %v347, %v423
        %v425 = vlaneseq
        %v426 = vshrl.u32 %v425, 7
        %v427 = vsub.s32 0, %v426
        %v428 = vrot.slane %v349, %v427
        %v429 = vlaneseq
        %v430 = vshrl.u32 %v429, 7
        %v431 = vsub.s32 0, %v430
        %v432 = vrot.slane %v351, %v431
        %v433 = vlaneseq
        %v434 = vshrl.u32 %v433, 7
        %v435 = vsub.s32 0, %v434
        %v436 = vrot.slane %v375, %v435
        %v437 = vlaneseq
        %v438 = vshrl.u32 %v437, 7
        %v439 = vsub.s32 0, %v438
        %v440 = vrot.slane %v389, %v439
        %v441 = vlaneseq
        %v442 = vshrl.u32 %v441, 7
        %v443 = vsub.s32 0, %v442
        %v444 = vrot.slane %v397, %v443
        %v445 = vlaneseq
        %v446 = vshrl.u32 %v445, 7
        %v447 = vsub.s32 0, %v446
        %v448 = vrot.slane %v399, %v447
        %v449 = vlaneseq
        %v450 = vshrl.u32 %v449, 7
        %v451 = vsub.s32 0, %v450
        %v452 = vrot.slane %v382, %v451
        %v453 = vlaneseq
        %v454 = vshrl.u32 %v453, 7
        %v455 = vsub.s32 0, %v454
        %v456 = vrot.slane %v396, %v455
        %v457 = vlaneseq
        %v458 = vshrl.u32 %v457, 7
        %v459 = vsub.s32 0, %v458
        %v460 = vrot.slane %v398, %v459
        %v461 = vlaneseq
        %v462 = vshrl.u32 %v461, 7
        %v463 = vsub.s32 0, %v462
        %v464 = vrot.slane %v400, %v463
        %v481 = vmul.f32 %v404, %v202
        %v482 = vmul.f32 %v408, %v202
        %v483 = vmul.f32 %v412, %v202
        %v484 = vmul.f32 %v416, %v202
        %v485 = vmul.f32 %v420, %v202
        %v486 = vmul.f32 %v424, %v202
        %v487 = vmul.f32 %v428, %v202
        %v488 = vmul.f32 %v432, %v202
        %v489 = vmul.f32 %v436, %v202
        %v490 = vmul.f32 %v440, %v202
        %v491 = vmul.f32 %v444, %v202
        %v492 = vmul.f32 %v448, %v202
        %v493 = vmul.f32 %v452, %v202
        %v494 = vmul.f32 %v456, %v202
        %v495 = vmul.f32 %v460, %v202
        %v496 = vmul.f32 %v464, %v202
        %v497 = vmul.f32 %v203, %v203
        %v498 = vadd.f32 %v298, %v497
        %v499 = vmul.f32 %v236, %v236
        %v500 = vmul.f32 %v237, %v237
        %v501 = vadd.f32 %v299, %v499
        %v502 = vadd.f32 %v300, %v500
        %v505 = vcombine.high %v236, %v236
        %v507 = vunpack.c.l.s4 1966171168
        %v508 = vunpack.c.0.s8 %v507
        %v509 = vlaneseq
        %v510 = vshrl.u32 %v509, 7
        %v511 = vsub.s32 %v508, %v510
        %v512 = vrot.slane %v236, %v511
        %v514 = vunpack.c.l.s4 1966171168
        %v515 = vunpack.c.0.s8 %v514
        %v516 = vlaneseq
        %v517 = vshrl.u32 %v516, 7
        %v518 = vsub.s32 %v515, %v517
        %v519 = vrot.slane %v505, %v518
        %v520 = vcombine.high %v512, %v512
        %v521 = vcombine.high %v519, %v519
        %v523 = vunpack.c.l.s4 1966171168
        %v524 = vunpack.c.0.s8 %v523
        %v525 = vlaneseq
        %v526 = vshrl.u32 %v525, 7
        %v527 = vsub.s32 %v524, %v526
        %v528 = vrot.slane %v512, %v527
        %v530 = vunpack.c.l.s4 1966171168
        %v531 = vunpack.c.0.s8 %v530
        %v532 = vlaneseq
        %v533 = vshrl.u32 %v532, 7
        %v534 = vsub.s32 %v531, %v533
        %v535 = vrot.slane %v519, %v534
        %v537 = vunpack.c.l.s4 1966171168
        %v538 = vunpack.c.0.s8 %v537
        %v539 = vlaneseq
        %v540 = vshrl.u32 %v539, 7
        %v541 = vsub.s32 %v538, %v540
        %v542 = vrot.slane %v520, %v541
        %v544 = vunpack.c.l.s4 1966171168
        %v545 = vunpack.c.0.s8 %v544
        %v546 = vlaneseq
        %v547 = vshrl.u32 %v546, 7
        %v548 = vsub.s32 %v545, %v547
        %v549 = vrot.slane %v521, %v548
        %v550 = vcombine.high %v528, %v528
        %v551 = vcombine.high %v535, %v535
        %v552 = vcombine.high %v542, %v542
        %v553 = vcombine.high %v549, %v549
        %v554 = vcombine.high %v237, %v237
        %v556 = vunpack.c.l.s4 1966171168
        %v557 = vunpack.c.0.s8 %v556
        %v558 = vlaneseq
        %v559 = vshrl.u32 %v558, 7
        %v560 = vsub.s32 %v557, %v559
        %v561 = vrot.slane %v237, %v560
        %v563 = vunpack.c.l.s4 1966171168
        %v564 = vunpack.c.0.s8 %v563
        %v565 = vlaneseq
        %v566 = vshrl.u32 %v565, 7
        %v567 = vsub.s32 %v564, %v566
        %v568 = vrot.slane %v554, %v567
        %v569 = vcombine.high %v561, %v561
        %v570 = vcombine.high %v568, %v568
        %v572 = vunpack.c.l.s4 1966171168
        %v573 = vunpack.c.0.s8 %v572
        %v574 = vlaneseq
        %v575 = vshrl.u32 %v574, 7
        %v576 = vsub.s32 %v573, %v575
        %v577 = vrot.slane %v561, %v576
        %v579 = vunpack.c.l.s4 1966171168
        %v580 = vunpack.c.0.s8 %v579
        %v581 = vlaneseq
        %v582 = vshrl.u32 %v581, 7
        %v583 = vsub.s32 %v580, %v582
        %v584 = vrot.slane %v568, %v583
        %v586 = vunpack.c.l.s4 1966171168
        %v587 = vunpack.c.0.s8 %v586
        %v588 = vlaneseq
        %v589 = vshrl.u32 %v588, 7
        %v590 = vsub.s32 %v587, %v589
        %v591 = vrot.slane %v569, %v590
        %v593 = vunpack.c.l.s4 1966171168
        %v594 = vunpack.c.0.s8 %v593
        %v595 = vlaneseq
        %v596 = vshrl.u32 %v595, 7
        %v597 = vsub.s32 %v594, %v596
        %v598 = vrot.slane %v570, %v597
        %v599 = vcombine.high %v577, %v577
        %v600 = vcombine.high %v584, %v584
        %v601 = vcombine.high %v591, %v591
        %v602 = vcombine.high %v598, %v598
        %v603 = vlaneseq
        %v604 = vshrl.u32 %v603, 7
        %v605 = vsub.s32 0, %v604
        %v606 = vrot.slane %v528, %v605
        %v607 = vlaneseq
        %v608 = vshrl.u32 %v607, 7
        %v609 = vsub.s32 0, %v608
        %v610 = vrot.slane %v542, %v609
        %v611 = vlaneseq
        %v612 = vshrl.u32 %v611, 7
        %v613 = vsub.s32 0, %v612
        %v614 = vrot.slane %v550, %v613
        %v615 = vlaneseq
        %v616 = vshrl.u32 %v615, 7
        %v617 = vsub.s32 0, %v616
        %v618 = vrot.slane %v552, %v617
        %v619 = vlaneseq
        %v620 = vshrl.u32 %v619, 7
        %v621 = vsub.s32 0, %v620
        %v622 = vrot.slane %v535, %v621
        %v623 = vlaneseq
        %v624 = vshrl.u32 %v623, 7
        %v625 = vsub.s32 0, %v624
        %v626 = vrot.slane %v549, %v625
        %v627 = vlaneseq
        %v628 = vshrl.u32 %v627, 7
        %v629 = vsub.s32 0, %v628
        %v630 = vrot.slane %v551, %v629
        %v631 = vlaneseq
        %v632 = vshrl.u32 %v631, 7
        %v633 = vsub.s32 0, %v632
        %v634 = vrot.slane %v553, %v633
        %v635 = vlaneseq
        %v636 = vshrl.u32 %v635, 7
        %v637 = vsub.s32 0, %v636
        %v638 = vrot.slane %v577, %v637
        %v639 = vlaneseq
        %v640 = vshrl.u32 %v639, 7
        %v641 = vsub.s32 0, %v640
        %v642 = vrot.slane %v591, %v641
        %v643 = vlaneseq
        %v644 = vshrl.u32 %v643, 7
        %v645 = vsub.s32 0, %v644
        %v646 = vrot.slane %v599, %v645
        %v647 = vlaneseq
        %v648 = vshrl.u32 %v647, 7
        %v649 = vsub.s32 0, %v648
        %v650 = vrot.slane %v601, %v649
        %v651 = vlaneseq
        %v652 = vshrl.u32 %v651, 7
        %v653 = vsub.s32 0, %v652
        %v654 = vrot.slane %v584, %v653
        %v655 = vlaneseq
        %v656 = vshrl.u32 %v655, 7
        %v657 = vsub.s32 0, %v656
        %v658 = vrot.slane %v598, %v657
        %v659 = vlaneseq
        %v660 = vshrl.u32 %v659, 7
        %v661 = vsub.s32 0, %v660
        %v662 = vrot.slane %v600, %v661
        %v663 = vlaneseq
        %v664 = vshrl.u32 %v663, 7
        %v665 = vsub.s32 0, %v664
        %v666 = vrot.slane %v602, %v665
        %v683 = vmul.f32 %v606, %v203
        %v684 = vmul.f32 %v610, %v203
        %v685 = vmul.f32 %v614, %v203
        %v686 = vmul.f32 %v618, %v203
        %v687 = vmul.f32 %v622, %v203
        %v688 = vmul.f32 %v626, %v203
        %v689 = vmul.f32 %v630, %v203
        %v690 = vmul.f32 %v634, %v203
        %v691 = vmul.f32 %v638, %v203
        %v692 = vmul.f32 %v642, %v203
        %v693 = vmul.f32 %v646, %v203
        %v694 = vmul.f32 %v650, %v203
        %v695 = vmul.f32 %v654, %v203
        %v696 = vmul.f32 %v658, %v203
        %v697 = vmul.f32 %v662, %v203
        %v698 = vmul.f32 %v666, %v203
        %v699 = vadd.f32 %v481, %v683
        %v700 = vadd.f32 %v482, %v684
        %v701 = vadd.f32 %v483, %v685
        %v702 = vadd.f32 %v484, %v686
        %v703 = vadd.f32 %v485, %v687
        %v704 = vadd.f32 %v486, %v688
        %v705 = vadd.f32 %v487, %v689
        %v706 = vadd.f32 %v488, %v690
        %v707 = vadd.f32 %v489, %v691
        %v708 = vadd.f32 %v490, %v692
        %v709 = vadd.f32 %v491, %v693
        %v710 = vadd.f32 %v492, %v694
        %v711 = vadd.f32 %v493, %v695
        %v712 = vadd.f32 %v494, %v696
        %v713 = vadd.f32 %v495, %v697
        %v714 = vadd.f32 %v496, %v698
        %v715 = vmul.f32 %v204, %v204
        %v716 = vadd.f32 %v498, %v715
        %v717 = vmul.f32 %v238, %v238
        %v718 = vmul.f32 %v239, %v239
        %v719 = vadd.f32 %v501, %v717
        %v720 = vadd.f32 %v502, %v718
        %v723 = vcombine.high %v238, %v238
        %v725 = vunpack.c.l.s4 1966171168
        %v726 = vunpack.c.0.s8 %v725
        %v727 = vlaneseq
        %v728 = vshrl.u32 %v727, 7
        %v729 = vsub.s32 %v726, %v728
        %v730 = vrot.slane %v238, %v729
        %v732 = vunpack.c.l.s4 1966171168
        %v733 = vunpack.c.0.s8 %v732
        %v734 = vlaneseq
        %v735 = vshrl.u32 %v734, 7
        %v736 = vsub.s32 %v733, %v735
        %v737 = vrot.slane %v723, %v736
        %v738 = vcombine.high %v730, %v730
        %v739 = vcombine.high %v737, %v737
        %v741 = vunpack.c.l.s4 1966171168
        %v742 = vunpack.c.0.s8 %v741
        %v743 = vlaneseq
        %v744 = vshrl.u32 %v743, 7
        %v745 = vsub.s32 %v742, %v744
        %v746 = vrot.slane %v730, %v745
        %v748 = vunpack.c.l.s4 1966171168
        %v749 = vunpack.c.0.s8 %v748
        %v750 = vlaneseq
        %v751 = vshrl.u32 %v750, 7
        %v752 = vsub.s32 %v749, %v751
        %v753 = vrot.slane %v737, %v752
        %v755 = vunpack.c.l.s4 1966171168
        %v756 = vunpack.c.0.s8 %v755
        %v757 = vlaneseq
        %v758 = vshrl.u32 %v757, 7
        %v759 = vsub.s32 %v756, %v758
        %v760 = vrot.slane %v738, %v759
        %v762 = vunpack.c.l.s4 1966171168
        %v763 = vunpack.c.0.s8 %v762
        %v764 = vlaneseq
        %v765 = vshrl.u32 %v764, 7
        %v766 = vsub.s32 %v763, %v765
        %v767 = vrot.slane %v739, %v766
        %v768 = vcombine.high %v746, %v746
        %v769 = vcombine.high %v753, %v753
        %v770 = vcombine.high %v760, %v760
        %v771 = vcombine.high %v767, %v767
        %v772 = vcombine.high %v239, %v239
        %v774 = vunpack.c.l.s4 1966171168
        %v775 = vunpack.c.0.s8 %v774
        %v776 = vlaneseq
        %v777 = vshrl.u32 %v776, 7
        %v778 = vsub.s32 %v775, %v777
        %v779 = vrot.slane %v239, %v778
        %v781 = vunpack.c.l.s4 1966171168
        %v782 = vunpack.c.0.s8 %v781
        %v783 = vlaneseq
        %v784 = vshrl.u32 %v783, 7
        %v785 = vsub.s32 %v782, %v784
        %v786 = vrot.slane %v772, %v785
        %v787 = vcombine.high %v779, %v779
        %v788 = vcombine.high %v786, %v786
        %v790 = vunpack.c.l.s4 1966171168
        %v791 = vunpack.c.0.s8 %v790
        %v792 = vlaneseq
        %v793 = vshrl.u32 %v792, 7
        %v794 = vsub.s32 %v791, %v793
        %v795 = vrot.slane %v779, %v794
        %v797 = vunpack.c.l.s4 1966171168
        %v798 = vunpack.c.0.s8 %v797
        %v799 = vlaneseq
        %v800 = vshrl.u32 %v799, 7
        %v801 = vsub.s32 %v798, %v800
        %v802 = vrot.slane %v786, %v801
        %v804 = vunpack.c.l.s4 1966171168
        %v805 = vunpack.c.0.s8 %v804
        %v806 = vlaneseq
        %v807 = vshrl.u32 %v806, 7
        %v808 = vsub.s32 %v805, %v807
        %v809 = vrot.slane %v787, %v808
        %v811 = vunpack.c.l.s4 1966171168
        %v812 = vunpack.c.0.s8 %v811
        %v813 = vlaneseq
        %v814 = vshrl.u32 %v813, 7
        %v815 = vsub.s32 %v812, %v814
        %v816 = vrot.slane %v788, %v815
        %v817 = vcombine.high %v795, %v795
        %v818 = vcombine.high %v802, %v802
        %v819 = vcombine.high %v809, %v809
        %v820 = vcombine.high %v816, %v816
        %v821 = vlaneseq
        %v822 = vshrl.u32 %v821, 7
        %v823 = vsub.s32 0, %v822
        %v824 = vrot.slane %v746, %v823
        %v825 = vlaneseq
        %v826 = vshrl.u32 %v825, 7
        %v827 = vsub.s32 0, %v826
        %v828 = vrot.slane %v760, %v827
        %v829 = vlaneseq
        %v830 = vshrl.u32 %v829, 7
        %v831 = vsub.s32 0, %v830
        %v832 = vrot.slane %v768, %v831
        %v833 = vlaneseq
        %v834 = vshrl.u32 %v833, 7
        %v835 = vsub.s32 0, %v834
        %v836 = vrot.slane %v770, %v835
        %v837 = vlaneseq
        %v838 = vshrl.u32 %v837, 7
        %v839 = vsub.s32 0, %v838
        %v840 = vrot.slane %v753, %v839
        %v841 = vlaneseq
        %v842 = vshrl.u32 %v841, 7
        %v843 = vsub.s32 0, %v842
        %v844 = vrot.slane %v767, %v843
        %v845 = vlaneseq
        %v846 = vshrl.u32 %v845, 7
        %v847 = vsub.s32 0, %v846
        %v848 = vrot.slane %v769, %v847
        %v849 = vlaneseq
        %v850 = vshrl.u32 %v849, 7
        %v851 = vsub.s32 0, %v850
        %v852 = vrot.slane %v771, %v851
        %v853 = vlaneseq
        %v854 = vshrl.u32 %v853, 7
        %v855 = vsub.s32 0, %v854
        %v856 = vrot.slane %v795, %v855
        %v857 = vlaneseq
        %v858 = vshrl.u32 %v857, 7
        %v859 = vsub.s32 0, %v858
        %v860 = vrot.slane %v809, %v859
        %v861 = vlaneseq
        %v862 = vshrl.u32 %v861, 7
        %v863 = vsub.s32 0, %v862
        %v864 = vrot.slane %v817, %v863
        %v865 = vlaneseq
        %v866 = vshrl.u32 %v865, 7
        %v867 = vsub.s32 0, %v866
        %v868 = vrot.slane %v819, %v867
        %v869 = vlaneseq
        %v870 = vshrl.u32 %v869, 7
        %v871 = vsub.s32 0, %v870
        %v872 = vrot.slane %v802, %v871
        %v873 = vlaneseq
        %v874 = vshrl.u32 %v873, 7
        %v875 = vsub.s32 0, %v874
        %v876 = vrot.slane %v816, %v875
        %v877 = vlaneseq
        %v878 = vshrl.u32 %v877, 7
        %v879 = vsub.s32 0, %v878
        %v880 = vrot.slane %v818, %v879
        %v881 = vlaneseq
        %v882 = vshrl.u32 %v881, 7
        %v883 = vsub.s32 0, %v882
        %v884 = vrot.slane %v820, %v883
        %v901 = vmul.f32 %v824, %v204
        %v902 = vmul.f32 %v828, %v204
        %v903 = vmul.f32 %v832, %v204
        %v904 = vmul.f32 %v836, %v204
        %v905 = vmul.f32 %v840, %v204
        %v906 = vmul.f32 %v844, %v204
        %v907 = vmul.f32 %v848, %v204
        %v908 = vmul.f32 %v852, %v204
        %v909 = vmul.f32 %v856, %v204
        %v910 = vmul.f32 %v860, %v204
        %v911 = vmul.f32 %v864, %v204
        %v912 = vmul.f32 %v868, %v204
        %v913 = vmul.f32 %v872, %v204
        %v914 = vmul.f32 %v876, %v204
        %v915 = vmul.f32 %v880, %v204
        %v916 = vmul.f32 %v884, %v204
        %v917 = vadd.f32 %v699, %v901
        %v918 = vadd.f32 %v700, %v902
        %v919 = vadd.f32 %v701, %v903
        %v920 = vadd.f32 %v702, %v904
        %v921 = vadd.f32 %v703, %v905
        %v922 = vadd.f32 %v704, %v906
        %v923 = vadd.f32 %v705, %v907
        %v924 = vadd.f32 %v706, %v908
        %v925 = vadd.f32 %v707, %v909
        %v926 = vadd.f32 %v708, %v910
        %v927 = vadd.f32 %v709, %v911
        %v928 = vadd.f32 %v710, %v912
        %v929 = vadd.f32 %v711, %v913
        %v930 = vadd.f32 %v712, %v914
        %v931 = vadd.f32 %v713, %v915
        %v932 = vadd.f32 %v714, %v916
        %v933 = vmul.f32 %v205, %v205
        %v934 = vadd.f32 %v716, %v933
        %v935 = vmul.f32 %v240, %v240
        %v936 = vmul.f32 %v241, %v241
        %v937 = vadd.f32 %v719, %v935
        %v938 = vadd.f32 %v720, %v936
        %v941 = vcombine.high %v240, %v240
        %v943 = vunpack.c.l.s4 1966171168
        %v944 = vunpack.c.0.s8 %v943
        %v945 = vlaneseq
        %v946 = vshrl.u32 %v945, 7
        %v947 = vsub.s32 %v944, %v946
        %v948 = vrot.slane %v240, %v947
        %v950 = vunpack.c.l.s4 1966171168
        %v951 = vunpack.c.0.s8 %v950
        %v952 = vlaneseq
        %v953 = vshrl.u32 %v952, 7
        %v954 = vsub.s32 %v951, %v953
        %v955 = vrot.slane %v941, %v954
        %v956 = vcombine.high %v948, %v948
        %v957 = vcombine.high %v955, %v955
        %v959 = vunpack.c.l.s4 1966171168
        %v960 = vunpack.c.0.s8 %v959
        %v961 = vlaneseq
        %v962 = vshrl.u32 %v961, 7
        %v963 = vsub.s32 %v960, %v962
        %v964 = vrot.slane %v948, %v963
        %v966 = vunpack.c.l.s4 1966171168
        %v967 = vunpack.c.0.s8 %v966
        %v968 = vlaneseq
        %v969 = vshrl.u32 %v968, 7
        %v970 = vsub.s32 %v967, %v969
        %v971 = vrot.slane %v955, %v970
        %v973 = vunpack.c.l.s4 1966171168
        %v974 = vunpack.c.0.s8 %v973
        %v975 = vlaneseq
        %v976 = vshrl.u32 %v975, 7
        %v977 = vsub.s32 %v974, %v976
        %v978 = vrot.slane %v956, %v977
        %v980 = vunpack.c.l.s4 1966171168
        %v981 = vunpack.c.0.s8 %v980
        %v982 = vlaneseq
        %v983 = vshrl.u32 %v982, 7
        %v984 = vsub.s32 %v981, %v983
        %v985 = vrot.slane %v957, %v984
        %v986 = vcombine.high %v964, %v964
        %v987 = vcombine.high %v971, %v971
        %v988 = vcombine.high %v978, %v978
        %v989 = vcombine.high %v985, %v985
        %v990 = vcombine.high %v241, %v241
        %v992 = vunpack.c.l.s4 1966171168
        %v993 = vunpack.c.0.s8 %v992
        %v994 = vlaneseq
        %v995 = vshrl.u32 %v994, 7
        %v996 = vsub.s32 %v993, %v995
        %v997 = vrot.slane %v241, %v996
        %v999 = vunpack.c.l.s4 1966171168
        %v1000 = vunpack.c.0.s8 %v999
        %v1001 = vlaneseq
        %v1002 = vshrl.u32 %v1001, 7
        %v1003 = vsub.s32 %v1000, %v1002
        %v1004 = vrot.slane %v990, %v1003
        %v1005 = vcombine.high %v997, %v997
        %v1006 = vcombine.high %v1004, %v1004
        %v1008 = vunpack.c.l.s4 1966171168
        %v1009 = vunpack.c.0.s8 %v1008
        %v1010 = vlaneseq
        %v1011 = vshrl.u32 %v1010, 7
        %v1012 = vsub.s32 %v1009, %v1011
        %v1013 = vrot.slane %v997, %v1012
        %v1015 = vunpack.c.l.s4 1966171168
        %v1016 = vunpack.c.0.s8 %v1015
        %v1017 = vlaneseq
        %v1018 = vshrl.u32 %v1017, 7
        %v1019 = vsub.s32 %v1016, %v1018
        %v1020 = vrot.slane %v1004, %v1019
        %v1022 = vunpack.c.l.s4 1966171168
        %v1023 = vunpack.c.0.s8 %v1022
        %v1024 = vlaneseq
        %v1025 = vshrl.u32 %v1024, 7
        %v1026 = vsub.s32 %v1023, %v1025
        %v1027 = vrot.slane %v1005, %v1026
        %v1029 = vunpack.c.l.s4 1966171168
        %v1030 = vunpack.c.0.s8 %v1029
        %v1031 = vlaneseq
        %v1032 = vshrl.u32 %v1031, 7
        %v1033 = vsub.s32 %v1030, %v1032
        %v1034 = vrot.slane %v1006, %v1033
        %v1035 = vcombine.high %v1013, %v1013
        %v1036 = vcombine.high %v1020, %v1020
        %v1037 = vcombine.high %v1027, %v1027
        %v1038 = vcombine.high %v1034, %v1034
        %v1039 = vlaneseq
        %v1040 = vshrl.u32 %v1039, 7
        %v1041 = vsub.s32 0, %v1040
        %v1042 = vrot.slane %v964, %v1041
        %v1043 = vlaneseq
        %v1044 = vshrl.u32 %v1043, 7
        %v1045 = vsub.s32 0, %v1044
        %v1046 = vrot.slane %v978, %v1045
        %v1047 = vlaneseq
        %v1048 = vshrl.u32 %v1047, 7
        %v1049 = vsub.s32 0, %v1048
        %v1050 = vrot.slane %v986, %v1049
        %v1051 = vlaneseq
        %v1052 = vshrl.u32 %v1051, 7
        %v1053 = vsub.s32 0, %v1052
        %v1054 = vrot.slane %v988, %v1053
        %v1055 = vlaneseq
        %v1056 = vshrl.u32 %v1055, 7
        %v1057 = vsub.s32 0, %v1056
        %v1058 = vrot.slane %v971, %v1057
        %v1059 = vlaneseq
        %v1060 = vshrl.u32 %v1059, 7
        %v1061 = vsub.s32 0, %v1060
        %v1062 = vrot.slane %v985, %v1061
        %v1063 = vlaneseq
        %v1064 = vshrl.u32 %v1063, 7
        %v1065 = vsub.s32 0, %v1064
        %v1066 = vrot.slane %v987, %v1065
        %v1067 = vlaneseq
        %v1068 = vshrl.u32 %v1067, 7
        %v1069 = vsub.s32 0, %v1068
        %v1070 = vrot.slane %v989, %v1069
        %v1071 = vlaneseq
        %v1072 = vshrl.u32 %v1071, 7
        %v1073 = vsub.s32 0, %v1072
        %v1074 = vrot.slane %v1013, %v1073
        %v1075 = vlaneseq
        %v1076 = vshrl.u32 %v1075, 7
        %v1077 = vsub.s32 0, %v1076
        %v1078 = vrot.slane %v1027, %v1077
        %v1079 = vlaneseq
        %v1080 = vshrl.u32 %v1079, 7
        %v1081 = vsub.s32 0, %v1080
        %v1082 = vrot.slane %v1035, %v1081
        %v1083 = vlaneseq
        %v1084 = vshrl.u32 %v1083, 7
        %v1085 = vsub.s32 0, %v1084
        %v1086 = vrot.slane %v1037, %v1085
        %v1087 = vlaneseq
        %v1088 = vshrl.u32 %v1087, 7
        %v1089 = vsub.s32 0, %v1088
        %v1090 = vrot.slane %v1020, %v1089
        %v1091 = vlaneseq
        %v1092 = vshrl.u32 %v1091, 7
        %v1093 = vsub.s32 0, %v1092
        %v1094 = vrot.slane %v1034, %v1093
        %v1095 = vlaneseq
        %v1096 = vshrl.u32 %v1095, 7
        %v1097 = vsub.s32 0, %v1096
        %v1098 = vrot.slane %v1036, %v1097
        %v1099 = vlaneseq
        %v1100 = vshrl.u32 %v1099, 7
        %v1101 = vsub.s32 0, %v1100
        %v1102 = vrot.slane %v1038, %v1101
        %v1119 = vmul.f32 %v1042, %v205
        %v1120 = vmul.f32 %v1046, %v205
        %v1121 = vmul.f32 %v1050, %v205
        %v1122 = vmul.f32 %v1054, %v205
        %v1123 = vmul.f32 %v1058, %v205
        %v1124 = vmul.f32 %v1062, %v205
        %v1125 = vmul.f32 %v1066, %v205
        %v1126 = vmul.f32 %v1070, %v205
        %v1127 = vmul.f32 %v1074, %v205
        %v1128 = vmul.f32 %v1078, %v205
        %v1129 = vmul.f32 %v1082, %v205
        %v1130 = vmul.f32 %v1086, %v205
        %v1131 = vmul.f32 %v1090, %v205
        %v1132 = vmul.f32 %v1094, %v205
        %v1133 = vmul.f32 %v1098, %v205
        %v1134 = vmul.f32 %v1102, %v205
        %v1135 = vadd.f32 %v917, %v1119
        %v1136 = vadd.f32 %v918, %v1120
        %v1137 = vadd.f32 %v919, %v1121
        %v1138 = vadd.f32 %v920, %v1122
        %v1139 = vadd.f32 %v921, %v1123
        %v1140 = vadd.f32 %v922, %v1124
        %v1141 = vadd.f32 %v923, %v1125
        %v1142 = vadd.f32 %v924, %v1126
        %v1143 = vadd.f32 %v925, %v1127
        %v1144 = vadd.f32 %v926, %v1128
        %v1145 = vadd.f32 %v927, %v1129
        %v1146 = vadd.f32 %v928, %v1130
        %v1147 = vadd.f32 %v929, %v1131
        %v1148 = vadd.f32 %v930, %v1132
        %v1149 = vadd.f32 %v931, %v1133
        %v1150 = vadd.f32 %v932, %v1134
        %v1151 = vmul.f32 %v206, %v206
        %v1152 = vadd.f32 %v934, %v1151
        %v1153 = vmul.f32 %v242, %v242
        %v1154 = vmul.f32 %v243, %v243
        %v1155 = vadd.f32 %v937, %v1153
        %v1156 = vadd.f32 %v938, %v1154
        %v1159 = vcombine.high %v242, %v242
        %v1161 = vunpack.c.l.s4 1966171168
        %v1162 = vunpack.c.0.s8 %v1161
        %v1163 = vlaneseq
        %v1164 = vshrl.u32 %v1163, 7
        %v1165 = vsub.s32 %v1162, %v1164
        %v1166 = vrot.slane %v242, %v1165
        %v1168 = vunpack.c.l.s4 1966171168
        %v1169 = vunpack.c.0.s8 %v1168
        %v1170 = vlaneseq
        %v1171 = vshrl.u32 %v1170, 7
        %v1172 = vsub.s32 %v1169, %v1171
        %v1173 = vrot.slane %v1159, %v1172
        %v1174 = vcombine.high %v1166, %v1166
        %v1175 = vcombine.high %v1173, %v1173
        %v1177 = vunpack.c.l.s4 1966171168
        %v1178 = vunpack.c.0.s8 %v1177
        %v1179 = vlaneseq
        %v1180 = vshrl.u32 %v1179, 7
        %v1181 = vsub.s32 %v1178, %v1180
        %v1182 = vrot.slane %v1166, %v1181
        %v1184 = vunpack.c.l.s4 1966171168
        %v1185 = vunpack.c.0.s8 %v1184
        %v1186 = vlaneseq
        %v1187 = vshrl.u32 %v1186, 7
        %v1188 = vsub.s32 %v1185, %v1187
        %v1189 = vrot.slane %v1173, %v1188
        %v1191 = vunpack.c.l.s4 1966171168
        %v1192 = vunpack.c.0.s8 %v1191
        %v1193 = vlaneseq
        %v1194 = vshrl.u32 %v1193, 7
        %v1195 = vsub.s32 %v1192, %v1194
        %v1196 = vrot.slane %v1174, %v1195
        %v1198 = vunpack.c.l.s4 1966171168
        %v1199 = vunpack.c.0.s8 %v1198
        %v1200 = vlaneseq
        %v1201 = vshrl.u32 %v1200, 7
        %v1202 = vsub.s32 %v1199, %v1201
        %v1203 = vrot.slane %v1175, %v1202
        %v1204 = vcombine.high %v1182, %v1182
        %v1205 = vcombine.high %v1189, %v1189
        %v1206 = vcombine.high %v1196, %v1196
        %v1207 = vcombine.high %v1203, %v1203
        %v1208 = vcombine.high %v243, %v243
        %v1210 = vunpack.c.l.s4 1966171168
        %v1211 = vunpack.c.0.s8 %v1210
        %v1212 = vlaneseq
        %v1213 = vshrl.u32 %v1212, 7
        %v1214 = vsub.s32 %v1211, %v1213
        %v1215 = vrot.slane %v243, %v1214
        %v1217 = vunpack.c.l.s4 1966171168
        %v1218 = vunpack.c.0.s8 %v1217
        %v1219 = vlaneseq
        %v1220 = vshrl.u32 %v1219, 7
        %v1221 = vsub.s32 %v1218, %v1220
        %v1222 = vrot.slane %v1208, %v1221
        %v1223 = vcombine.high %v1215, %v1215
        %v1224 = vcombine.high %v1222, %v1222
        %v1226 = vunpack.c.l.s4 1966171168
        %v1227 = vunpack.c.0.s8 %v1226
        %v1228 = vlaneseq
        %v1229 = vshrl.u32 %v1228, 7
        %v1230 = vsub.s32 %v1227, %v1229
        %v1231 = vrot.slane %v1215, %v1230
        %v1233 = vunpack.c.l.s4 1966171168
        %v1234 = vunpack.c.0.s8 %v1233
        %v1235 = vlaneseq
        %v1236 = vshrl.u32 %v1235, 7
        %v1237 = vsub.s32 %v1234, %v1236
        %v1238 = vrot.slane %v1222, %v1237
        %v1240 = vunpack.c.l.s4 1966171168
        %v1241 = vunpack.c.0.s8 %v1240
        %v1242 = vlaneseq
        %v1243 = vshrl.u32 %v1242, 7
        %v1244 = vsub.s32 %v1241, %v1243
        %v1245 = vrot.slane %v1223, %v1244
        %v1247 = vunpack.c.l.s4 1966171168
        %v1248 = vunpack.c.0.s8 %v1247
        %v1249 = vlaneseq
        %v1250 = vshrl.u32 %v1249, 7
        %v1251 = vsub.s32 %v1248, %v1250
        %v1252 = vrot.slane %v1224, %v1251
        %v1253 = vcombine.high %v1231, %v1231
        %v1254 = vcombine.high %v1238, %v1238
        %v1255 = vcombine.high %v1245, %v1245
        %v1256 = vcombine.high %v1252, %v1252
        %v1257 = vlaneseq
        %v1258 = vshrl.u32 %v1257, 7
        %v1259 = vsub.s32 0, %v1258
        %v1260 = vrot.slane %v1182, %v1259
        %v1261 = vlaneseq
        %v1262 = vshrl.u32 %v1261, 7
        %v1263 = vsub.s32 0, %v1262
        %v1264 = vrot.slane %v1196, %v1263
        %v1265 = vlaneseq
        %v1266 = vshrl.u32 %v1265, 7
        %v1267 = vsub.s32 0, %v1266
        %v1268 = vrot.slane %v1204, %v1267
        %v1269 = vlaneseq
        %v1270 = vshrl.u32 %v1269, 7
        %v1271 = vsub.s32 0, %v1270
        %v1272 = vrot.slane %v1206, %v1271
        %v1273 = vlaneseq
        %v1274 = vshrl.u32 %v1273, 7
        %v1275 = vsub.s32 0, %v1274
        %v1276 = vrot.slane %v1189, %v1275
        %v1277 = vlaneseq
        %v1278 = vshrl.u32 %v1277, 7
        %v1279 = vsub.s32 0, %v1278
        %v1280 = vrot.slane %v1203, %v1279
        %v1281 = vlaneseq
        %v1282 = vshrl.u32 %v1281, 7
        %v1283 = vsub.s32 0, %v1282
        %v1284 = vrot.slane %v1205, %v1283
        %v1285 = vlaneseq
        %v1286 = vshrl.u32 %v1285, 7
        %v1287 = vsub.s32 0, %v1286
        %v1288 = vrot.slane %v1207, %v1287
        %v1289 = vlaneseq
        %v1290 = vshrl.u32 %v1289, 7
        %v1291 = vsub.s32 0, %v1290
        %v1292 = vrot.slane %v1231, %v1291
        %v1293 = vlaneseq
        %v1294 = vshrl.u32 %v1293, 7
        %v1295 = vsub.s32 0, %v1294
        %v1296 = vrot.slane %v1245, %v1295
        %v1297 = vlaneseq
        %v1298 = vshrl.u32 %v1297, 7
        %v1299 = vsub.s32 0, %v1298
        %v1300 = vrot.slane %v1253, %v1299
        %v1301 = vlaneseq
        %v1302 = vshrl.u32 %v1301, 7
        %v1303 = vsub.s32 0, %v1302
        %v1304 = vrot.slane %v1255, %v1303
        %v1305 = vlaneseq
        %v1306 = vshrl.u32 %v1305, 7
        %v1307 = vsub.s32 0, %v1306
        %v1308 = vrot.slane %v1238, %v1307
        %v1309 = vlaneseq
        %v1310 = vshrl.u32 %v1309, 7
        %v1311 = vsub.s32 0, %v1310
        %v1312 = vrot.slane %v1252, %v1311
        %v1313 = vlaneseq
        %v1314 = vshrl.u32 %v1313, 7
        %v1315 = vsub.s32 0, %v1314
        %v1316 = vrot.slane %v1254, %v1315
        %v1317 = vlaneseq
        %v1318 = vshrl.u32 %v1317, 7
        %v1319 = vsub.s32 0, %v1318
        %v1320 = vrot.slane %v1256, %v1319
        %v1337 = vmul.f32 %v1260, %v206
        %v1338 = vmul.f32 %v1264, %v206
        %v1339 = vmul.f32 %v1268, %v206
        %v1340 = vmul.f32 %v1272, %v206
        %v1341 = vmul.f32 %v1276, %v206
        %v1342 = vmul.f32 %v1280, %v206
        %v1343 = vmul.f32 %v1284, %v206
        %v1344 = vmul.f32 %v1288, %v206
        %v1345 = vmul.f32 %v1292, %v206
        %v1346 = vmul.f32 %v1296, %v206
        %v1347 = vmul.f32 %v1300, %v206
        %v1348 = vmul.f32 %v1304, %v206
        %v1349 = vmul.f32 %v1308, %v206
        %v1350 = vmul.f32 %v1312, %v206
        %v1351 = vmul.f32 %v1316, %v206
        %v1352 = vmul.f32 %v1320, %v206
        %v1353 = vadd.f32 %v1135, %v1337
        %v1354 = vadd.f32 %v1136, %v1338
        %v1355 = vadd.f32 %v1137, %v1339
        %v1356 = vadd.f32 %v1138, %v1340
        %v1357 = vadd.f32 %v1139, %v1341
        %v1358 = vadd.f32 %v1140, %v1342
        %v1359 = vadd.f32 %v1141, %v1343
        %v1360 = vadd.f32 %v1142, %v1344
        %v1361 = vadd.f32 %v1143, %v1345
        %v1362 = vadd.f32 %v1144, %v1346
        %v1363 = vadd.f32 %v1145, %v1347
        %v1364 = vadd.f32 %v1146, %v1348
        %v1365 = vadd.f32 %v1147, %v1349
        %v1366 = vadd.f32 %v1148, %v1350
        %v1367 = vadd.f32 %v1149, %v1351
        %v1368 = vadd.f32 %v1150, %v1352
        %v1369 = vmul.f32 %v207, %v207
        %v1370 = vadd.f32 %v1152, %v1369
        %v1371 = vmul.f32 %v244, %v244
        %v1372 = vmul.f32 %v245, %v245
        %v1373 = vadd.f32 %v1155, %v1371
        %v1374 = vadd.f32 %v1156, %v1372
        %v1377 = vcombine.high %v244, %v244
        %v1379 = vunpack.c.l.s4 1966171168
        %v1380 = vunpack.c.0.s8 %v1379
        %v1381 = vlaneseq
        %v1382 = vshrl.u32 %v1381, 7
        %v1383 = vsub.s32 %v1380, %v1382
        %v1384 = vrot.slane %v244, %v1383
        %v1386 = vunpack.c.l.s4 1966171168
        %v1387 = vunpack.c.0.s8 %v1386
        %v1388 = vlaneseq
        %v1389 = vshrl.u32 %v1388, 7
        %v1390 = vsub.s32 %v1387, %v1389
        %v1391 = vrot.slane %v1377, %v1390
        %v1392 = vcombine.high %v1384, %v1384
        %v1393 = vcombine.high %v1391, %v1391
        %v1395 = vunpack.c.l.s4 1966171168
        %v1396 = vunpack.c.0.s8 %v1395
        %v1397 = vlaneseq
        %v1398 = vshrl.u32 %v1397, 7
        %v1399 = vsub.s32 %v1396, %v1398
        %v1400 = vrot.slane %v1384, %v1399
        %v1402 = vunpack.c.l.s4 1966171168
        %v1403 = vunpack.c.0.s8 %v1402
        %v1404 = vlaneseq
        %v1405 = vshrl.u32 %v1404, 7
        %v1406 = vsub.s32 %v1403, %v1405
        %v1407 = vrot.slane %v1391, %v1406
        %v1409 = vunpack.c.l.s4 1966171168
        %v1410 = vunpack.c.0.s8 %v1409
        %v1411 = vlaneseq
        %v1412 = vshrl.u32 %v1411, 7
        %v1413 = vsub.s32 %v1410, %v1412
        %v1414 = vrot.slane %v1392, %v1413
        %v1416 = vunpack.c.l.s4 1966171168
        %v1417 = vunpack.c.0.s8 %v1416
        %v1418 = vlaneseq
        %v1419 = vshrl.u32 %v1418, 7
        %v1420 = vsub.s32 %v1417, %v1419
        %v1421 = vrot.slane %v1393, %v1420
        %v1422 = vcombine.high %v1400, %v1400
        %v1423 = vcombine.high %v1407, %v1407
        %v1424 = vcombine.high %v1414, %v1414
        %v1425 = vcombine.high %v1421, %v1421
        %v1426 = vcombine.high %v245, %v245
        %v1428 = vunpack.c.l.s4 1966171168
        %v1429 = vunpack.c.0.s8 %v1428
        %v1430 = vlaneseq
        %v1431 = vshrl.u32 %v1430, 7
        %v1432 = vsub.s32 %v1429, %v1431
        %v1433 = vrot.slane %v245, %v1432
        %v1435 = vunpack.c.l.s4 1966171168
        %v1436 = vunpack.c.0.s8 %v1435
        %v1437 = vlaneseq
        %v1438 = vshrl.u32 %v1437, 7
        %v1439 = vsub.s32 %v1436, %v1438
        %v1440 = vrot.slane %v1426, %v1439
        %v1441 = vcombine.high %v1433, %v1433
        %v1442 = vcombine.high %v1440, %v1440
        %v1444 = vunpack.c.l.s4 1966171168
        %v1445 = vunpack.c.0.s8 %v1444
        %v1446 = vlaneseq
        %v1447 = vshrl.u32 %v1446, 7
        %v1448 = vsub.s32 %v1445, %v1447
        %v1449 = vrot.slane %v1433, %v1448
        %v1451 = vunpack.c.l.s4 1966171168
        %v1452 = vunpack.c.0.s8 %v1451
        %v1453 = vlaneseq
        %v1454 = vshrl.u32 %v1453, 7
        %v1455 = vsub.s32 %v1452, %v1454
        %v1456 = vrot.slane %v1440, %v1455
        %v1458 = vunpack.c.l.s4 1966171168
        %v1459 = vunpack.c.0.s8 %v1458
        %v1460 = vlaneseq
        %v1461 = vshrl.u32 %v1460, 7
        %v1462 = vsub.s32 %v1459, %v1461
        %v1463 = vrot.slane %v1441, %v1462
        %v1465 = vunpack.c.l.s4 1966171168
        %v1466 = vunpack.c.0.s8 %v1465
        %v1467 = vlaneseq
        %v1468 = vshrl.u32 %v1467, 7
        %v1469 = vsub.s32 %v1466, %v1468
        %v1470 = vrot.slane %v1442, %v1469
        %v1471 = vcombine.high %v1449, %v1449
        %v1472 = vcombine.high %v1456, %v1456
        %v1473 = vcombine.high %v1463, %v1463
        %v1474 = vcombine.high %v1470, %v1470
        %v1475 = vlaneseq
        %v1476 = vshrl.u32 %v1475, 7
        %v1477 = vsub.s32 0, %v1476
        %v1478 = vrot.slane %v1400, %v1477
        %v1479 = vlaneseq
        %v1480 = vshrl.u32 %v1479, 7
        %v1481 = vsub.s32 0, %v1480
        %v1482 = vrot.slane %v1414, %v1481
        %v1483 = vlaneseq
        %v1484 = vshrl.u32 %v1483, 7
        %v1485 = vsub.s32 0, %v1484
        %v1486 = vrot.slane %v1422, %v1485
        %v1487 = vlaneseq
        %v1488 = vshrl.u32 %v1487, 7
        %v1489 = vsub.s32 0, %v1488
        %v1490 = vrot.slane %v1424, %v1489
        %v1491 = vlaneseq
        %v1492 = vshrl.u32 %v1491, 7
        %v1493 = vsub.s32 0, %v1492
        %v1494 = vrot.slane %v1407, %v1493
        %v1495 = vlaneseq
        %v1496 = vshrl.u32 %v1495, 7
        %v1497 = vsub.s32 0, %v1496
        %v1498 = vrot.slane %v1421, %v1497
        %v1499 = vlaneseq
        %v1500 = vshrl.u32 %v1499, 7
        %v1501 = vsub.s32 0, %v1500
        %v1502 = vrot.slane %v1423, %v1501
        %v1503 = vlaneseq
        %v1504 = vshrl.u32 %v1503, 7
        %v1505 = vsub.s32 0, %v1504
        %v1506 = vrot.slane %v1425, %v1505
        %v1507 = vlaneseq
        %v1508 = vshrl.u32 %v1507, 7
        %v1509 = vsub.s32 0, %v1508
        %v1510 = vrot.slane %v1449, %v1509
        %v1511 = vlaneseq
        %v1512 = vshrl.u32 %v1511, 7
        %v1513 = vsub.s32 0, %v1512
        %v1514 = vrot.slane %v1463, %v1513
        %v1515 = vlaneseq
        %v1516 = vshrl.u32 %v1515, 7
        %v1517 = vsub.s32 0, %v1516
        %v1518 = vrot.slane %v1471, %v1517
        %v1519 = vlaneseq
        %v1520 = vshrl.u32 %v1519, 7
        %v1521 = vsub.s32 0, %v1520
        %v1522 = vrot.slane %v1473, %v1521
        %v1523 = vlaneseq
        %v1524 = vshrl.u32 %v1523, 7
        %v1525 = vsub.s32 0, %v1524
        %v1526 = vrot.slane %v1456, %v1525
        %v1527 = vlaneseq
        %v1528 = vshrl.u32 %v1527, 7
        %v1529 = vsub.s32 0, %v1528
        %v1530 = vrot.slane %v1470, %v1529
        %v1531 = vlaneseq
        %v1532 = vshrl.u32 %v1531, 7
        %v1533 = vsub.s32 0, %v1532
        %v1534 = vrot.slane %v1472, %v1533
        %v1535 = vlaneseq
        %v1536 = vshrl.u32 %v1535, 7
        %v1537 = vsub.s32 0, %v1536
        %v1538 = vrot.slane %v1474, %v1537
        %v1555 = vmul.f32 %v1478, %v207
        %v1556 = vmul.f32 %v1482, %v207
        %v1557 = vmul.f32 %v1486, %v207
        %v1558 = vmul.f32 %v1490, %v207
        %v1559 = vmul.f32 %v1494, %v207
        %v1560 = vmul.f32 %v1498, %v207
        %v1561 = vmul.f32 %v1502, %v207
        %v1562 = vmul.f32 %v1506, %v207
        %v1563 = vmul.f32 %v1510, %v207
        %v1564 = vmul.f32 %v1514, %v207
        %v1565 = vmul.f32 %v1518, %v207
        %v1566 = vmul.f32 %v1522, %v207
        %v1567 = vmul.f32 %v1526, %v207
        %v1568 = vmul.f32 %v1530, %v207
        %v1569 = vmul.f32 %v1534, %v207
        %v1570 = vmul.f32 %v1538, %v207
        %v1571 = vadd.f32 %v1353, %v1555
        %v1572 = vadd.f32 %v1354, %v1556
        %v1573 = vadd.f32 %v1355, %v1557
        %v1574 = vadd.f32 %v1356, %v1558
        %v1575 = vadd.f32 %v1357, %v1559
        %v1576 = vadd.f32 %v1358, %v1560
        %v1577 = vadd.f32 %v1359, %v1561
        %v1578 = vadd.f32 %v1360, %v1562
        %v1579 = vadd.f32 %v1361, %v1563
        %v1580 = vadd.f32 %v1362, %v1564
        %v1581 = vadd.f32 %v1363, %v1565
        %v1582 = vadd.f32 %v1364, %v1566
        %v1583 = vadd.f32 %v1365, %v1567
        %v1584 = vadd.f32 %v1366, %v1568
        %v1585 = vadd.f32 %v1367, %v1569
        %v1586 = vadd.f32 %v1368, %v1570
        %v1587 = vmul.f32 %v208, %v208
        %v1588 = vadd.f32 %v1370, %v1587
        %v1589 = vmul.f32 %v246, %v246
        %v1590 = vmul.f32 %v247, %v247
        %v1591 = vadd.f32 %v1373, %v1589
        %v1592 = vadd.f32 %v1374, %v1590
        %v1595 = vcombine.high %v246, %v246
        %v1597 = vunpack.c.l.s4 1966171168
        %v1598 = vunpack.c.0.s8 %v1597
        %v1599 = vlaneseq
        %v1600 = vshrl.u32 %v1599, 7
        %v1601 = vsub.s32 %v1598, %v1600
        %v1602 = vrot.slane %v246, %v1601
        %v1604 = vunpack.c.l.s4 1966171168
        %v1605 = vunpack.c.0.s8 %v1604
        %v1606 = vlaneseq
        %v1607 = vshrl.u32 %v1606, 7
        %v1608 = vsub.s32 %v1605, %v1607
        %v1609 = vrot.slane %v1595, %v1608
        %v1610 = vcombine.high %v1602, %v1602
        %v1611 = vcombine.high %v1609, %v1609
        %v1613 = vunpack.c.l.s4 1966171168
        %v1614 = vunpack.c.0.s8 %v1613
        %v1615 = vlaneseq
        %v1616 = vshrl.u32 %v1615, 7
        %v1617 = vsub.s32 %v1614, %v1616
        %v1618 = vrot.slane %v1602, %v1617
        %v1620 = vunpack.c.l.s4 1966171168
        %v1621 = vunpack.c.0.s8 %v1620
        %v1622 = vlaneseq
        %v1623 = vshrl.u32 %v1622, 7
        %v1624 = vsub.s32 %v1621, %v1623
        %v1625 = vrot.slane %v1609, %v1624
        %v1627 = vunpack.c.l.s4 1966171168
        %v1628 = vunpack.c.0.s8 %v1627
        %v1629 = vlaneseq
        %v1630 = vshrl.u32 %v1629, 7
        %v1631 = vsub.s32 %v1628, %v1630
        %v1632 = vrot.slane %v1610, %v1631
        %v1634 = vunpack.c.l.s4 1966171168
        %v1635 = vunpack.c.0.s8 %v1634
        %v1636 = vlaneseq
        %v1637 = vshrl.u32 %v1636, 7
        %v1638 = vsub.s32 %v1635, %v1637
        %v1639 = vrot.slane %v1611, %v1638
        %v1640 = vcombine.high %v1618, %v1618
        %v1641 = vcombine.high %v1625, %v1625
        %v1642 = vcombine.high %v1632, %v1632
        %v1643 = vcombine.high %v1639, %v1639
        %v1644 = vcombine.high %v247, %v247
        %v1646 = vunpack.c.l.s4 1966171168
        %v1647 = vunpack.c.0.s8 %v1646
        %v1648 = vlaneseq
        %v1649 = vshrl.u32 %v1648, 7
        %v1650 = vsub.s32 %v1647, %v1649
        %v1651 = vrot.slane %v247, %v1650
        %v1653 = vunpack.c.l.s4 1966171168
        %v1654 = vunpack.c.0.s8 %v1653
        %v1655 = vlaneseq
        %v1656 = vshrl.u32 %v1655, 7
        %v1657 = vsub.s32 %v1654, %v1656
        %v1658 = vrot.slane %v1644, %v1657
        %v1659 = vcombine.high %v1651, %v1651
        %v1660 = vcombine.high %v1658, %v1658
        %v1662 = vunpack.c.l.s4 1966171168
        %v1663 = vunpack.c.0.s8 %v1662
        %v1664 = vlaneseq
        %v1665 = vshrl.u32 %v1664, 7
        %v1666 = vsub.s32 %v1663, %v1665
        %v1667 = vrot.slane %v1651, %v1666
        %v1669 = vunpack.c.l.s4 1966171168
        %v1670 = vunpack.c.0.s8 %v1669
        %v1671 = vlaneseq
        %v1672 = vshrl.u32 %v1671, 7
        %v1673 = vsub.s32 %v1670, %v1672
        %v1674 = vrot.slane %v1658, %v1673
        %v1676 = vunpack.c.l.s4 1966171168
        %v1677 = vunpack.c.0.s8 %v1676
        %v1678 = vlaneseq
        %v1679 = vshrl.u32 %v1678, 7
        %v1680 = vsub.s32 %v1677, %v1679
        %v1681 = vrot.slane %v1659, %v1680
        %v1683 = vunpack.c.l.s4 1966171168
        %v1684 = vunpack.c.0.s8 %v1683
        %v1685 = vlaneseq
        %v1686 = vshrl.u32 %v1685, 7
        %v1687 = vsub.s32 %v1684, %v1686
        %v1688 = vrot.slane %v1660, %v1687
        %v1689 = vcombine.high %v1667, %v1667
        %v1690 = vcombine.high %v1674, %v1674
        %v1691 = vcombine.high %v1681, %v1681
        %v1692 = vcombine.high %v1688, %v1688
        %v1693 = vlaneseq
        %v1694 = vshrl.u32 %v1693, 7
        %v1695 = vsub.s32 0, %v1694
        %v1696 = vrot.slane %v1618, %v1695
        %v1697 = vlaneseq
        %v1698 = vshrl.u32 %v1697, 7
        %v1699 = vsub.s32 0, %v1698
        %v1700 = vrot.slane %v1632, %v1699
        %v1701 = vlaneseq
        %v1702 = vshrl.u32 %v1701, 7
        %v1703 = vsub.s32 0, %v1702
        %v1704 = vrot.slane %v1640, %v1703
        %v1705 = vlaneseq
        %v1706 = vshrl.u32 %v1705, 7
        %v1707 = vsub.s32 0, %v1706
        %v1708 = vrot.slane %v1642, %v1707
        %v1709 = vlaneseq
        %v1710 = vshrl.u32 %v1709, 7
        %v1711 = vsub.s32 0, %v1710
        %v1712 = vrot.slane %v1625, %v1711
        %v1713 = vlaneseq
        %v1714 = vshrl.u32 %v1713, 7
        %v1715 = vsub.s32 0, %v1714
        %v1716 = vrot.slane %v1639, %v1715
        %v1717 = vlaneseq
        %v1718 = vshrl.u32 %v1717, 7
        %v1719 = vsub.s32 0, %v1718
        %v1720 = vrot.slane %v1641, %v1719
        %v1721 = vlaneseq
        %v1722 = vshrl.u32 %v1721, 7
        %v1723 = vsub.s32 0, %v1722
        %v1724 = vrot.slane %v1643, %v1723
        %v1725 = vlaneseq
        %v1726 = vshrl.u32 %v1725, 7
        %v1727 = vsub.s32 0, %v1726
        %v1728 = vrot.slane %v1667, %v1727
        %v1729 = vlaneseq
        %v1730 = vshrl.u32 %v1729, 7
        %v1731 = vsub.s32 0, %v1730
        %v1732 = vrot.slane %v1681, %v1731
        %v1733 = vlaneseq
        %v1734 = vshrl.u32 %v1733, 7
        %v1735 = vsub.s32 0, %v1734
        %v1736 = vrot.slane %v1689, %v1735
        %v1737 = vlaneseq
        %v1738 = vshrl.u32 %v1737, 7
        %v1739 = vsub.s32 0, %v1738
        %v1740 = vrot.slane %v1691, %v1739
        %v1741 = vlaneseq
        %v1742 = vshrl.u32 %v1741, 7
        %v1743 = vsub.s32 0, %v1742
        %v1744 = vrot.slane %v1674, %v1743
        %v1745 = vlaneseq
        %v1746 = vshrl.u32 %v1745, 7
        %v1747 = vsub.s32 0, %v1746
        %v1748 = vrot.slane %v1688, %v1747
        %v1749 = vlaneseq
        %v1750 = vshrl.u32 %v1749, 7
        %v1751 = vsub.s32 0, %v1750
        %v1752 = vrot.slane %v1690, %v1751
        %v1753 = vlaneseq
        %v1754 = vshrl.u32 %v1753, 7
        %v1755 = vsub.s32 0, %v1754
        %v1756 = vrot.slane %v1692, %v1755
        %v1773 = vmul.f32 %v1696, %v208
        %v1774 = vmul.f32 %v1700, %v208
        %v1775 = vmul.f32 %v1704, %v208
        %v1776 = vmul.f32 %v1708, %v208
        %v1777 = vmul.f32 %v1712, %v208
        %v1778 = vmul.f32 %v1716, %v208
        %v1779 = vmul.f32 %v1720, %v208
        %v1780 = vmul.f32 %v1724, %v208
        %v1781 = vmul.f32 %v1728, %v208
        %v1782 = vmul.f32 %v1732, %v208
        %v1783 = vmul.f32 %v1736, %v208
        %v1784 = vmul.f32 %v1740, %v208
        %v1785 = vmul.f32 %v1744, %v208
        %v1786 = vmul.f32 %v1748, %v208
        %v1787 = vmul.f32 %v1752, %v208
        %v1788 = vmul.f32 %v1756, %v208
        %v1789 = vadd.f32 %v1571, %v1773
        %v1790 = vadd.f32 %v1572, %v1774
        %v1791 = vadd.f32 %v1573, %v1775
        %v1792 = vadd.f32 %v1574, %v1776
        %v1793 = vadd.f32 %v1575, %v1777
        %v1794 = vadd.f32 %v1576, %v1778
        %v1795 = vadd.f32 %v1577, %v1779
        %v1796 = vadd.f32 %v1578, %v1780
        %v1797 = vadd.f32 %v1579, %v1781
        %v1798 = vadd.f32 %v1580, %v1782
        %v1799 = vadd.f32 %v1581, %v1783
        %v1800 = vadd.f32 %v1582, %v1784
        %v1801 = vadd.f32 %v1583, %v1785
        %v1802 = vadd.f32 %v1584, %v1786
        %v1803 = vadd.f32 %v1585, %v1787
        %v1804 = vadd.f32 %v1586, %v1788
        %v1805 = vmul.f32 %v209, %v209
        %v1806 = vadd.f32 %v1588, %v1805
        %v1807 = vmul.f32 %v248, %v248
        %v1808 = vmul.f32 %v249, %v249
        %v1809 = vadd.f32 %v1591, %v1807
        %v1810 = vadd.f32 %v1592, %v1808
        %v1813 = vcombine.high %v248, %v248
        %v1815 = vunpack.c.l.s4 1966171168
        %v1816 = vunpack.c.0.s8 %v1815
        %v1817 = vlaneseq
        %v1818 = vshrl.u32 %v1817, 7
        %v1819 = vsub.s32 %v1816, %v1818
        %v1820 = vrot.slane %v248, %v1819
        %v1822 = vunpack.c.l.s4 1966171168
        %v1823 = vunpack.c.0.s8 %v1822
        %v1824 = vlaneseq
        %v1825 = vshrl.u32 %v1824, 7
        %v1826 = vsub.s32 %v1823, %v1825
        %v1827 = vrot.slane %v1813, %v1826
        %v1828 = vcombine.high %v1820, %v1820
        %v1829 = vcombine.high %v1827, %v1827
        %v1831 = vunpack.c.l.s4 1966171168
        %v1832 = vunpack.c.0.s8 %v1831
        %v1833 = vlaneseq
        %v1834 = vshrl.u32 %v1833, 7
        %v1835 = vsub.s32 %v1832, %v1834
        %v1836 = vrot.slane %v1820, %v1835
        %v1838 = vunpack.c.l.s4 1966171168
        %v1839 = vunpack.c.0.s8 %v1838
        %v1840 = vlaneseq
        %v1841 = vshrl.u32 %v1840, 7
        %v1842 = vsub.s32 %v1839, %v1841
        %v1843 = vrot.slane %v1827, %v1842
        %v1845 = vunpack.c.l.s4 1966171168
        %v1846 = vunpack.c.0.s8 %v1845
        %v1847 = vlaneseq
        %v1848 = vshrl.u32 %v1847, 7
        %v1849 = vsub.s32 %v1846, %v1848
        %v1850 = vrot.slane %v1828, %v1849
        %v1852 = vunpack.c.l.s4 1966171168
        %v1853 = vunpack.c.0.s8 %v1852
        %v1854 = vlaneseq
        %v1855 = vshrl.u32 %v1854, 7
        %v1856 = vsub.s32 %v1853, %v1855
        %v1857 = vrot.slane %v1829, %v1856
        %v1858 = vcombine.high %v1836, %v1836
        %v1859 = vcombine.high %v1843, %v1843
        %v1860 = vcombine.high %v1850, %v1850
        %v1861 = vcombine.high %v1857, %v1857
        %v1862 = vcombine.high %v249, %v249
        %v1864 = vunpack.c.l.s4 1966171168
        %v1865 = vunpack.c.0.s8 %v1864
        %v1866 = vlaneseq
        %v1867 = vshrl.u32 %v1866, 7
        %v1868 = vsub.s32 %v1865, %v1867
        %v1869 = vrot.slane %v249, %v1868
        %v1871 = vunpack.c.l.s4 1966171168
        %v1872 = vunpack.c.0.s8 %v1871
        %v1873 = vlaneseq
        %v1874 = vshrl.u32 %v1873, 7
        %v1875 = vsub.s32 %v1872, %v1874
        %v1876 = vrot.slane %v1862, %v1875
        %v1877 = vcombine.high %v1869, %v1869
        %v1878 = vcombine.high %v1876, %v1876
        %v1880 = vunpack.c.l.s4 1966171168
        %v1881 = vunpack.c.0.s8 %v1880
        %v1882 = vlaneseq
        %v1883 = vshrl.u32 %v1882, 7
        %v1884 = vsub.s32 %v1881, %v1883
        %v1885 = vrot.slane %v1869, %v1884
        %v1887 = vunpack.c.l.s4 1966171168
        %v1888 = vunpack.c.0.s8 %v1887
        %v1889 = vlaneseq
        %v1890 = vshrl.u32 %v1889, 7
        %v1891 = vsub.s32 %v1888, %v1890
        %v1892 = vrot.slane %v1876, %v1891
        %v1894 = vunpack.c.l.s4 1966171168
        %v1895 = vunpack.c.0.s8 %v1894
        %v1896 = vlaneseq
        %v1897 = vshrl.u32 %v1896, 7
        %v1898 = vsub.s32 %v1895, %v1897
        %v1899 = vrot.slane %v1877, %v1898
        %v1901 = vunpack.c.l.s4 1966171168
        %v1902 = vunpack.c.0.s8 %v1901
        %v1903 = vlaneseq
        %v1904 = vshrl.u32 %v1903, 7
        %v1905 = vsub.s32 %v1902, %v1904
        %v1906 = vrot.slane %v1878, %v1905
        %v1907 = vcombine.high %v1885, %v1885
        %v1908 = vcombine.high %v1892, %v1892
        %v1909 = vcombine.high %v1899, %v1899
        %v1910 = vcombine.high %v1906, %v1906
        %v1911 = vlaneseq
        %v1912 = vshrl.u32 %v1911, 7
        %v1913 = vsub.s32 0, %v1912
        %v1914 = vrot.slane %v1836, %v1913
        %v1915 = vlaneseq
        %v1916 = vshrl.u32 %v1915, 7
        %v1917 = vsub.s32 0, %v1916
        %v1918 = vrot.slane %v1850, %v1917
        %v1919 = vlaneseq
        %v1920 = vshrl.u32 %v1919, 7
        %v1921 = vsub.s32 0, %v1920
        %v1922 = vrot.slane %v1858, %v1921
        %v1923 = vlaneseq
        %v1924 = vshrl.u32 %v1923, 7
        %v1925 = vsub.s32 0, %v1924
        %v1926 = vrot.slane %v1860, %v1925
        %v1927 = vlaneseq
        %v1928 = vshrl.u32 %v1927, 7
        %v1929 = vsub.s32 0, %v1928
        %v1930 = vrot.slane %v1843, %v1929
        %v1931 = vlaneseq
        %v1932 = vshrl.u32 %v1931, 7
        %v1933 = vsub.s32 0, %v1932
        %v1934 = vrot.slane %v1857, %v1933
        %v1935 = vlaneseq
        %v1936 = vshrl.u32 %v1935, 7
        %v1937 = vsub.s32 0, %v1936
        %v1938 = vrot.slane %v1859, %v1937
        %v1939 = vlaneseq
        %v1940 = vshrl.u32 %v1939, 7
        %v1941 = vsub.s32 0, %v1940
        %v1942 = vrot.slane %v1861, %v1941
        %v1943 = vlaneseq
        %v1944 = vshrl.u32 %v1943, 7
        %v1945 = vsub.s32 0, %v1944
        %v1946 = vrot.slane %v1885, %v1945
        %v1947 = vlaneseq
        %v1948 = vshrl.u32 %v1947, 7
        %v1949 = vsub.s32 0, %v1948
        %v1950 = vrot.slane %v1899, %v1949
        %v1951 = vlaneseq
        %v1952 = vshrl.u32 %v1951, 7
        %v1953 = vsub.s32 0, %v1952
        %v1954 = vrot.slane %v1907, %v1953
        %v1955 = vlaneseq
        %v1956 = vshrl.u32 %v1955, 7
        %v1957 = vsub.s32 0, %v1956
        %v1958 = vrot.slane %v1909, %v1957
        %v1959 = vlaneseq
        %v1960 = vshrl.u32 %v1959, 7
        %v1961 = vsub.s32 0, %v1960
        %v1962 = vrot.slane %v1892, %v1961
        %v1963 = vlaneseq
        %v1964 = vshrl.u32 %v1963, 7
        %v1965 = vsub.s32 0, %v1964
        %v1966 = vrot.slane %v1906, %v1965
        %v1967 = vlaneseq
        %v1968 = vshrl.u32 %v1967, 7
        %v1969 = vsub.s32 0, %v1968
        %v1970 = vrot.slane %v1908, %v1969
        %v1971 = vlaneseq
        %v1972 = vshrl.u32 %v1971, 7
        %v1973 = vsub.s32 0, %v1972
        %v1974 = vrot.slane %v1910, %v1973
        %v1991 = vmul.f32 %v1914, %v209
        %v1992 = vmul.f32 %v1918, %v209
        %v1993 = vmul.f32 %v1922, %v209
        %v1994 = vmul.f32 %v1926, %v209
        %v1995 = vmul.f32 %v1930, %v209
        %v1996 = vmul.f32 %v1934, %v209
        %v1997 = vmul.f32 %v1938, %v209
        %v1998 = vmul.f32 %v1942, %v209
        %v1999 = vmul.f32 %v1946, %v209
        %v2000 = vmul.f32 %v1950, %v209
        %v2001 = vmul.f32 %v1954, %v209
        %v2002 = vmul.f32 %v1958, %v209
        %v2003 = vmul.f32 %v1962, %v209
        %v2004 = vmul.f32 %v1966, %v209
        %v2005 = vmul.f32 %v1970, %v209
        %v2006 = vmul.f32 %v1974, %v209
        %v2007 = vadd.f32 %v1789, %v1991
        %v2008 = vadd.f32 %v1790, %v1992
        %v2009 = vadd.f32 %v1791, %v1993
        %v2010 = vadd.f32 %v1792, %v1994
        %v2011 = vadd.f32 %v1793, %v1995
        %v2012 = vadd.f32 %v1794, %v1996
        %v2013 = vadd.f32 %v1795, %v1997
        %v2014 = vadd.f32 %v1796, %v1998
        %v2015 = vadd.f32 %v1797, %v1999
        %v2016 = vadd.f32 %v1798, %v2000
        %v2017 = vadd.f32 %v1799, %v2001
        %v2018 = vadd.f32 %v1800, %v2002
        %v2019 = vadd.f32 %v1801, %v2003
        %v2020 = vadd.f32 %v1802, %v2004
        %v2021 = vadd.f32 %v1803, %v2005
        %v2022 = vadd.f32 %v1804, %v2006
        %v2023 = vmul.f32 %v210, %v210
        %v2024 = vadd.f32 %v1806, %v2023
        %v2025 = vmul.f32 %v250, %v250
        %v2026 = vmul.f32 %v251, %v251
        %v2027 = vadd.f32 %v1809, %v2025
        %v2028 = vadd.f32 %v1810, %v2026
        %v2031 = vcombine.high %v250, %v250
        %v2033 = vunpack.c.l.s4 1966171168
        %v2034 = vunpack.c.0.s8 %v2033
        %v2035 = vlaneseq
        %v2036 = vshrl.u32 %v2035, 7
        %v2037 = vsub.s32 %v2034, %v2036
        %v2038 = vrot.slane %v250, %v2037
        %v2040 = vunpack.c.l.s4 1966171168
        %v2041 = vunpack.c.0.s8 %v2040
        %v2042 = vlaneseq
        %v2043 = vshrl.u32 %v2042, 7
        %v2044 = vsub.s32 %v2041, %v2043
        %v2045 = vrot.slane %v2031, %v2044
        %v2046 = vcombine.high %v2038, %v2038
        %v2047 = vcombine.high %v2045, %v2045
        %v2049 = vunpack.c.l.s4 1966171168
        %v2050 = vunpack.c.0.s8 %v2049
        %v2051 = vlaneseq
        %v2052 = vshrl.u32 %v2051, 7
        %v2053 = vsub.s32 %v2050, %v2052
        %v2054 = vrot.slane %v2038, %v2053
        %v2056 = vunpack.c.l.s4 1966171168
        %v2057 = vunpack.c.0.s8 %v2056
        %v2058 = vlaneseq
        %v2059 = vshrl.u32 %v2058, 7
        %v2060 = vsub.s32 %v2057, %v2059
        %v2061 = vrot.slane %v2045, %v2060
        %v2063 = vunpack.c.l.s4 1966171168
        %v2064 = vunpack.c.0.s8 %v2063
        %v2065 = vlaneseq
        %v2066 = vshrl.u32 %v2065, 7
        %v2067 = vsub.s32 %v2064, %v2066
        %v2068 = vrot.slane %v2046, %v2067
        %v2070 = vunpack.c.l.s4 1966171168
        %v2071 = vunpack.c.0.s8 %v2070
        %v2072 = vlaneseq
        %v2073 = vshrl.u32 %v2072, 7
        %v2074 = vsub.s32 %v2071, %v2073
        %v2075 = vrot.slane %v2047, %v2074
        %v2076 = vcombine.high %v2054, %v2054
        %v2077 = vcombine.high %v2061, %v2061
        %v2078 = vcombine.high %v2068, %v2068
        %v2079 = vcombine.high %v2075, %v2075
        %v2080 = vcombine.high %v251, %v251
        %v2082 = vunpack.c.l.s4 1966171168
        %v2083 = vunpack.c.0.s8 %v2082
        %v2084 = vlaneseq
        %v2085 = vshrl.u32 %v2084, 7
        %v2086 = vsub.s32 %v2083, %v2085
        %v2087 = vrot.slane %v251, %v2086
        %v2089 = vunpack.c.l.s4 1966171168
        %v2090 = vunpack.c.0.s8 %v2089
        %v2091 = vlaneseq
        %v2092 = vshrl.u32 %v2091, 7
        %v2093 = vsub.s32 %v2090, %v2092
        %v2094 = vrot.slane %v2080, %v2093
        %v2095 = vcombine.high %v2087, %v2087
        %v2096 = vcombine.high %v2094, %v2094
        %v2098 = vunpack.c.l.s4 1966171168
        %v2099 = vunpack.c.0.s8 %v2098
        %v2100 = vlaneseq
        %v2101 = vshrl.u32 %v2100, 7
        %v2102 = vsub.s32 %v2099, %v2101
        %v2103 = vrot.slane %v2087, %v2102
        %v2105 = vunpack.c.l.s4 1966171168
        %v2106 = vunpack.c.0.s8 %v2105
        %v2107 = vlaneseq
        %v2108 = vshrl.u32 %v2107, 7
        %v2109 = vsub.s32 %v2106, %v2108
        %v2110 = vrot.slane %v2094, %v2109
        %v2112 = vunpack.c.l.s4 1966171168
        %v2113 = vunpack.c.0.s8 %v2112
        %v2114 = vlaneseq
        %v2115 = vshrl.u32 %v2114, 7
        %v2116 = vsub.s32 %v2113, %v2115
        %v2117 = vrot.slane %v2095, %v2116
        %v2119 = vunpack.c.l.s4 1966171168
        %v2120 = vunpack.c.0.s8 %v2119
        %v2121 = vlaneseq
        %v2122 = vshrl.u32 %v2121, 7
        %v2123 = vsub.s32 %v2120, %v2122
        %v2124 = vrot.slane %v2096, %v2123
        %v2125 = vcombine.high %v2103, %v2103
        %v2126 = vcombine.high %v2110, %v2110
        %v2127 = vcombine.high %v2117, %v2117
        %v2128 = vcombine.high %v2124, %v2124
        %v2129 = vlaneseq
        %v2130 = vshrl.u32 %v2129, 7
        %v2131 = vsub.s32 0, %v2130
        %v2132 = vrot.slane %v2054, %v2131
        %v2133 = vlaneseq
        %v2134 = vshrl.u32 %v2133, 7
        %v2135 = vsub.s32 0, %v2134
        %v2136 = vrot.slane %v2068, %v2135
        %v2137 = vlaneseq
        %v2138 = vshrl.u32 %v2137, 7
        %v2139 = vsub.s32 0, %v2138
        %v2140 = vrot.slane %v2076, %v2139
        %v2141 = vlaneseq
        %v2142 = vshrl.u32 %v2141, 7
        %v2143 = vsub.s32 0, %v2142
        %v2144 = vrot.slane %v2078, %v2143
        %v2145 = vlaneseq
        %v2146 = vshrl.u32 %v2145, 7
        %v2147 = vsub.s32 0, %v2146
        %v2148 = vrot.slane %v2061, %v2147
        %v2149 = vlaneseq
        %v2150 = vshrl.u32 %v2149, 7
        %v2151 = vsub.s32 0, %v2150
        %v2152 = vrot.slane %v2075, %v2151
        %v2153 = vlaneseq
        %v2154 = vshrl.u32 %v2153, 7
        %v2155 = vsub.s32 0, %v2154
        %v2156 = vrot.slane %v2077, %v2155
        %v2157 = vlaneseq
        %v2158 = vshrl.u32 %v2157, 7
        %v2159 = vsub.s32 0, %v2158
        %v2160 = vrot.slane %v2079, %v2159
        %v2161 = vlaneseq
        %v2162 = vshrl.u32 %v2161, 7
        %v2163 = vsub.s32 0, %v2162
        %v2164 = vrot.slane %v2103, %v2163
        %v2165 = vlaneseq
        %v2166 = vshrl.u32 %v2165, 7
        %v2167 = vsub.s32 0, %v2166
        %v2168 = vrot.slane %v2117, %v2167
        %v2169 = vlaneseq
        %v2170 = vshrl.u32 %v2169, 7
        %v2171 = vsub.s32 0, %v2170
        %v2172 = vrot.slane %v2125, %v2171
        %v2173 = vlaneseq
        %v2174 = vshrl.u32 %v2173, 7
        %v2175 = vsub.s32 0, %v2174
        %v2176 = vrot.slane %v2127, %v2175
        %v2177 = vlaneseq
        %v2178 = vshrl.u32 %v2177, 7
        %v2179 = vsub.s32 0, %v2178
        %v2180 = vrot.slane %v2110, %v2179
        %v2181 = vlaneseq
        %v2182 = vshrl.u32 %v2181, 7
        %v2183 = vsub.s32 0, %v2182
        %v2184 = vrot.slane %v2124, %v2183
        %v2185 = vlaneseq
        %v2186 = vshrl.u32 %v2185, 7
        %v2187 = vsub.s32 0, %v2186
        %v2188 = vrot.slane %v2126, %v2187
        %v2189 = vlaneseq
        %v2190 = vshrl.u32 %v2189, 7
        %v2191 = vsub.s32 0, %v2190
        %v2192 = vrot.slane %v2128, %v2191
        %v2209 = vmul.f32 %v2132, %v210
        %v2210 = vmul.f32 %v2136, %v210
        %v2211 = vmul.f32 %v2140, %v210
        %v2212 = vmul.f32 %v2144, %v210
        %v2213 = vmul.f32 %v2148, %v210
        %v2214 = vmul.f32 %v2152, %v210
        %v2215 = vmul.f32 %v2156, %v210
        %v2216 = vmul.f32 %v2160, %v210
        %v2217 = vmul.f32 %v2164, %v210
        %v2218 = vmul.f32 %v2168, %v210
        %v2219 = vmul.f32 %v2172, %v210
        %v2220 = vmul.f32 %v2176, %v210
        %v2221 = vmul.f32 %v2180, %v210
        %v2222 = vmul.f32 %v2184, %v210
        %v2223 = vmul.f32 %v2188, %v210
        %v2224 = vmul.f32 %v2192, %v210
        %v2225 = vadd.f32 %v2007, %v2209
        %v2226 = vadd.f32 %v2008, %v2210
        %v2227 = vadd.f32 %v2009, %v2211
        %v2228 = vadd.f32 %v2010, %v2212
        %v2229 = vadd.f32 %v2011, %v2213
        %v2230 = vadd.f32 %v2012, %v2214
        %v2231 = vadd.f32 %v2013, %v2215
        %v2232 = vadd.f32 %v2014, %v2216
        %v2233 = vadd.f32 %v2015, %v2217
        %v2234 = vadd.f32 %v2016, %v2218
        %v2235 = vadd.f32 %v2017, %v2219
        %v2236 = vadd.f32 %v2018, %v2220
        %v2237 = vadd.f32 %v2019, %v2221
        %v2238 = vadd.f32 %v2020, %v2222
        %v2239 = vadd.f32 %v2021, %v2223
        %v2240 = vadd.f32 %v2022, %v2224
        %v2241 = vmul.f32 %v211, %v211
        %v2242 = vadd.f32 %v2024, %v2241
        %v2243 = vmul.f32 %v252, %v252
        %v2244 = vmul.f32 %v253, %v253
        %v2245 = vadd.f32 %v2027, %v2243
        %v2246 = vadd.f32 %v2028, %v2244
        %v2249 = vcombine.high %v252, %v252
        %v2251 = vunpack.c.l.s4 1966171168
        %v2252 = vunpack.c.0.s8 %v2251
        %v2253 = vlaneseq
        %v2254 = vshrl.u32 %v2253, 7
        %v2255 = vsub.s32 %v2252, %v2254
        %v2256 = vrot.slane %v252, %v2255
        %v2258 = vunpack.c.l.s4 1966171168
        %v2259 = vunpack.c.0.s8 %v2258
        %v2260 = vlaneseq
        %v2261 = vshrl.u32 %v2260, 7
        %v2262 = vsub.s32 %v2259, %v2261
        %v2263 = vrot.slane %v2249, %v2262
        %v2264 = vcombine.high %v2256, %v2256
        %v2265 = vcombine.high %v2263, %v2263
        %v2267 = vunpack.c.l.s4 1966171168
        %v2268 = vunpack.c.0.s8 %v2267
        %v2269 = vlaneseq
        %v2270 = vshrl.u32 %v2269, 7
        %v2271 = vsub.s32 %v2268, %v2270
        %v2272 = vrot.slane %v2256, %v2271
        %v2274 = vunpack.c.l.s4 1966171168
        %v2275 = vunpack.c.0.s8 %v2274
        %v2276 = vlaneseq
        %v2277 = vshrl.u32 %v2276, 7
        %v2278 = vsub.s32 %v2275, %v2277
        %v2279 = vrot.slane %v2263, %v2278
        %v2281 = vunpack.c.l.s4 1966171168
        %v2282 = vunpack.c.0.s8 %v2281
        %v2283 = vlaneseq
        %v2284 = vshrl.u32 %v2283, 7
        %v2285 = vsub.s32 %v2282, %v2284
        %v2286 = vrot.slane %v2264, %v2285
        %v2288 = vunpack.c.l.s4 1966171168
        %v2289 = vunpack.c.0.s8 %v2288
        %v2290 = vlaneseq
        %v2291 = vshrl.u32 %v2290, 7
        %v2292 = vsub.s32 %v2289, %v2291
        %v2293 = vrot.slane %v2265, %v2292
        %v2294 = vcombine.high %v2272, %v2272
        %v2295 = vcombine.high %v2279, %v2279
        %v2296 = vcombine.high %v2286, %v2286
        %v2297 = vcombine.high %v2293, %v2293
        %v2298 = vcombine.high %v253, %v253
        %v2300 = vunpack.c.l.s4 1966171168
        %v2301 = vunpack.c.0.s8 %v2300
        %v2302 = vlaneseq
        %v2303 = vshrl.u32 %v2302, 7
        %v2304 = vsub.s32 %v2301, %v2303
        %v2305 = vrot.slane %v253, %v2304
        %v2307 = vunpack.c.l.s4 1966171168
        %v2308 = vunpack.c.0.s8 %v2307
        %v2309 = vlaneseq
        %v2310 = vshrl.u32 %v2309, 7
        %v2311 = vsub.s32 %v2308, %v2310
        %v2312 = vrot.slane %v2298, %v2311
        %v2313 = vcombine.high %v2305, %v2305
        %v2314 = vcombine.high %v2312, %v2312
        %v2316 = vunpack.c.l.s4 1966171168
        %v2317 = vunpack.c.0.s8 %v2316
        %v2318 = vlaneseq
        %v2319 = vshrl.u32 %v2318, 7
        %v2320 = vsub.s32 %v2317, %v2319
        %v2321 = vrot.slane %v2305, %v2320
        %v2323 = vunpack.c.l.s4 1966171168
        %v2324 = vunpack.c.0.s8 %v2323
        %v2325 = vlaneseq
        %v2326 = vshrl.u32 %v2325, 7
        %v2327 = vsub.s32 %v2324, %v2326
        %v2328 = vrot.slane %v2312, %v2327
        %v2330 = vunpack.c.l.s4 1966171168
        %v2331 = vunpack.c.0.s8 %v2330
        %v2332 = vlaneseq
        %v2333 = vshrl.u32 %v2332, 7
        %v2334 = vsub.s32 %v2331, %v2333
        %v2335 = vrot.slane %v2313, %v2334
        %v2337 = vunpack.c.l.s4 1966171168
        %v2338 = vunpack.c.0.s8 %v2337
        %v2339 = vlaneseq
        %v2340 = vshrl.u32 %v2339, 7
        %v2341 = vsub.s32 %v2338, %v2340
        %v2342 = vrot.slane %v2314, %v2341
        %v2343 = vcombine.high %v2321, %v2321
        %v2344 = vcombine.high %v2328, %v2328
        %v2345 = vcombine.high %v2335, %v2335
        %v2346 = vcombine.high %v2342, %v2342
        %v2347 = vlaneseq
        %v2348 = vshrl.u32 %v2347, 7
        %v2349 = vsub.s32 0, %v2348
        %v2350 = vrot.slane %v2272, %v2349
        %v2351 = vlaneseq
        %v2352 = vshrl.u32 %v2351, 7
        %v2353 = vsub.s32 0, %v2352
        %v2354 = vrot.slane %v2286, %v2353
        %v2355 = vlaneseq
        %v2356 = vshrl.u32 %v2355, 7
        %v2357 = vsub.s32 0, %v2356
        %v2358 = vrot.slane %v2294, %v2357
        %v2359 = vlaneseq
        %v2360 = vshrl.u32 %v2359, 7
        %v2361 = vsub.s32 0, %v2360
        %v2362 = vrot.slane %v2296, %v2361
        %v2363 = vlaneseq
        %v2364 = vshrl.u32 %v2363, 7
        %v2365 = vsub.s32 0, %v2364
        %v2366 = vrot.slane %v2279, %v2365
        %v2367 = vlaneseq
        %v2368 = vshrl.u32 %v2367, 7
        %v2369 = vsub.s32 0, %v2368
        %v2370 = vrot.slane %v2293, %v2369
        %v2371 = vlaneseq
        %v2372 = vshrl.u32 %v2371, 7
        %v2373 = vsub.s32 0, %v2372
        %v2374 = vrot.slane %v2295, %v2373
        %v2375 = vlaneseq
        %v2376 = vshrl.u32 %v2375, 7
        %v2377 = vsub.s32 0, %v2376
        %v2378 = vrot.slane %v2297, %v2377
        %v2379 = vlaneseq
        %v2380 = vshrl.u32 %v2379, 7
        %v2381 = vsub.s32 0, %v2380
        %v2382 = vrot.slane %v2321, %v2381
        %v2383 = vlaneseq
        %v2384 = vshrl.u32 %v2383, 7
        %v2385 = vsub.s32 0, %v2384
        %v2386 = vrot.slane %v2335, %v2385
        %v2387 = vlaneseq
        %v2388 = vshrl.u32 %v2387, 7
        %v2389 = vsub.s32 0, %v2388
        %v2390 = vrot.slane %v2343, %v2389
        %v2391 = vlaneseq
        %v2392 = vshrl.u32 %v2391, 7
        %v2393 = vsub.s32 0, %v2392
        %v2394 = vrot.slane %v2345, %v2393
        %v2395 = vlaneseq
        %v2396 = vshrl.u32 %v2395, 7
        %v2397 = vsub.s32 0, %v2396
        %v2398 = vrot.slane %v2328, %v2397
        %v2399 = vlaneseq
        %v2400 = vshrl.u32 %v2399, 7
        %v2401 = vsub.s32 0, %v2400
        %v2402 = vrot.slane %v2342, %v2401
        %v2403 = vlaneseq
        %v2404 = vshrl.u32 %v2403, 7
        %v2405 = vsub.s32 0, %v2404
        %v2406 = vrot.slane %v2344, %v2405
        %v2407 = vlaneseq
        %v2408 = vshrl.u32 %v2407, 7
        %v2409 = vsub.s32 0, %v2408
        %v2410 = vrot.slane %v2346, %v2409
        %v2427 = vmul.f32 %v2350, %v211
        %v2428 = vmul.f32 %v2354, %v211
        %v2429 = vmul.f32 %v2358, %v211
        %v2430 = vmul.f32 %v2362, %v211
        %v2431 = vmul.f32 %v2366, %v211
        %v2432 = vmul.f32 %v2370, %v211
        %v2433 = vmul.f32 %v2374, %v211
        %v2434 = vmul.f32 %v2378, %v211
        %v2435 = vmul.f32 %v2382, %v211
        %v2436 = vmul.f32 %v2386, %v211
        %v2437 = vmul.f32 %v2390, %v211
        %v2438 = vmul.f32 %v2394, %v211
        %v2439 = vmul.f32 %v2398, %v211
        %v2440 = vmul.f32 %v2402, %v211
        %v2441 = vmul.f32 %v2406, %v211
        %v2442 = vmul.f32 %v2410, %v211
        %v2443 = vadd.f32 %v2225, %v2427
        %v2444 = vadd.f32 %v2226, %v2428
        %v2445 = vadd.f32 %v2227, %v2429
        %v2446 = vadd.f32 %v2228, %v2430
        %v2447 = vadd.f32 %v2229, %v2431
        %v2448 = vadd.f32 %v2230, %v2432
        %v2449 = vadd.f32 %v2231, %v2433
        %v2450 = vadd.f32 %v2232, %v2434
        %v2451 = vadd.f32 %v2233, %v2435
        %v2452 = vadd.f32 %v2234, %v2436
        %v2453 = vadd.f32 %v2235, %v2437
        %v2454 = vadd.f32 %v2236, %v2438
        %v2455 = vadd.f32 %v2237, %v2439
        %v2456 = vadd.f32 %v2238, %v2440
        %v2457 = vadd.f32 %v2239, %v2441
        %v2458 = vadd.f32 %v2240, %v2442
        %v2459 = vmul.f32 %v212, %v212
        %v2460 = vadd.f32 %v2242, %v2459
        %v2461 = vmul.f32 %v254, %v254
        %v2462 = vmul.f32 %v255, %v255
        %v2463 = vadd.f32 %v2245, %v2461
        %v2464 = vadd.f32 %v2246, %v2462
        %v2467 = vcombine.high %v254, %v254
        %v2469 = vunpack.c.l.s4 1966171168
        %v2470 = vunpack.c.0.s8 %v2469
        %v2471 = vlaneseq
        %v2472 = vshrl.u32 %v2471, 7
        %v2473 = vsub.s32 %v2470, %v2472
        %v2474 = vrot.slane %v254, %v2473
        %v2476 = vunpack.c.l.s4 1966171168
        %v2477 = vunpack.c.0.s8 %v2476
        %v2478 = vlaneseq
        %v2479 = vshrl.u32 %v2478, 7
        %v2480 = vsub.s32 %v2477, %v2479
        %v2481 = vrot.slane %v2467, %v2480
        %v2482 = vcombine.high %v2474, %v2474
        %v2483 = vcombine.high %v2481, %v2481
        %v2485 = vunpack.c.l.s4 1966171168
        %v2486 = vunpack.c.0.s8 %v2485
        %v2487 = vlaneseq
        %v2488 = vshrl.u32 %v2487, 7
        %v2489 = vsub.s32 %v2486, %v2488
        %v2490 = vrot.slane %v2474, %v2489
        %v2492 = vunpack.c.l.s4 1966171168
        %v2493 = vunpack.c.0.s8 %v2492
        %v2494 = vlaneseq
        %v2495 = vshrl.u32 %v2494, 7
        %v2496 = vsub.s32 %v2493, %v2495
        %v2497 = vrot.slane %v2481, %v2496
        %v2499 = vunpack.c.l.s4 1966171168
        %v2500 = vunpack.c.0.s8 %v2499
        %v2501 = vlaneseq
        %v2502 = vshrl.u32 %v2501, 7
        %v2503 = vsub.s32 %v2500, %v2502
        %v2504 = vrot.slane %v2482, %v2503
        %v2506 = vunpack.c.l.s4 1966171168
        %v2507 = vunpack.c.0.s8 %v2506
        %v2508 = vlaneseq
        %v2509 = vshrl.u32 %v2508, 7
        %v2510 = vsub.s32 %v2507, %v2509
        %v2511 = vrot.slane %v2483, %v2510
        %v2512 = vcombine.high %v2490, %v2490
        %v2513 = vcombine.high %v2497, %v2497
        %v2514 = vcombine.high %v2504, %v2504
        %v2515 = vcombine.high %v2511, %v2511
        %v2516 = vcombine.high %v255, %v255
        %v2518 = vunpack.c.l.s4 1966171168
        %v2519 = vunpack.c.0.s8 %v2518
        %v2520 = vlaneseq
        %v2521 = vshrl.u32 %v2520, 7
        %v2522 = vsub.s32 %v2519, %v2521
        %v2523 = vrot.slane %v255, %v2522
        %v2525 = vunpack.c.l.s4 1966171168
        %v2526 = vunpack.c.0.s8 %v2525
        %v2527 = vlaneseq
        %v2528 = vshrl.u32 %v2527, 7
        %v2529 = vsub.s32 %v2526, %v2528
        %v2530 = vrot.slane %v2516, %v2529
        %v2531 = vcombine.high %v2523, %v2523
        %v2532 = vcombine.high %v2530, %v2530
        %v2534 = vunpack.c.l.s4 1966171168
        %v2535 = vunpack.c.0.s8 %v2534
        %v2536 = vlaneseq
        %v2537 = vshrl.u32 %v2536, 7
        %v2538 = vsub.s32 %v2535, %v2537
        %v2539 = vrot.slane %v2523, %v2538
        %v2541 = vunpack.c.l.s4 1966171168
        %v2542 = vunpack.c.0.s8 %v2541
        %v2543 = vlaneseq
        %v2544 = vshrl.u32 %v2543, 7
        %v2545 = vsub.s32 %v2542, %v2544
        %v2546 = vrot.slane %v2530, %v2545
        %v2548 = vunpack.c.l.s4 1966171168
        %v2549 = vunpack.c.0.s8 %v2548
        %v2550 = vlaneseq
        %v2551 = vshrl.u32 %v2550, 7
        %v2552 = vsub.s32 %v2549, %v2551
        %v2553 = vrot.slane %v2531, %v2552
        %v2555 = vunpack.c.l.s4 1966171168
        %v2556 = vunpack.c.0.s8 %v2555
        %v2557 = vlaneseq
        %v2558 = vshrl.u32 %v2557, 7
        %v2559 = vsub.s32 %v2556, %v2558
        %v2560 = vrot.slane %v2532, %v2559
        %v2561 = vcombine.high %v2539, %v2539
        %v2562 = vcombine.high %v2546, %v2546
        %v2563 = vcombine.high %v2553, %v2553
        %v2564 = vcombine.high %v2560, %v2560
        %v2565 = vlaneseq
        %v2566 = vshrl.u32 %v2565, 7
        %v2567 = vsub.s32 0, %v2566
        %v2568 = vrot.slane %v2490, %v2567
        %v2569 = vlaneseq
        %v2570 = vshrl.u32 %v2569, 7
        %v2571 = vsub.s32 0, %v2570
        %v2572 = vrot.slane %v2504, %v2571
        %v2573 = vlaneseq
        %v2574 = vshrl.u32 %v2573, 7
        %v2575 = vsub.s32 0, %v2574
        %v2576 = vrot.slane %v2512, %v2575
        %v2577 = vlaneseq
        %v2578 = vshrl.u32 %v2577, 7
        %v2579 = vsub.s32 0, %v2578
        %v2580 = vrot.slane %v2514, %v2579
        %v2581 = vlaneseq
        %v2582 = vshrl.u32 %v2581, 7
        %v2583 = vsub.s32 0, %v2582
        %v2584 = vrot.slane %v2497, %v2583
        %v2585 = vlaneseq
        %v2586 = vshrl.u32 %v2585, 7
        %v2587 = vsub.s32 0, %v2586
        %v2588 = vrot.slane %v2511, %v2587
        %v2589 = vlaneseq
        %v2590 = vshrl.u32 %v2589, 7
        %v2591 = vsub.s32 0, %v2590
        %v2592 = vrot.slane %v2513, %v2591
        %v2593 = vlaneseq
        %v2594 = vshrl.u32 %v2593, 7
        %v2595 = vsub.s32 0, %v2594
        %v2596 = vrot.slane %v2515, %v2595
        %v2597 = vlaneseq
        %v2598 = vshrl.u32 %v2597, 7
        %v2599 = vsub.s32 0, %v2598
        %v2600 = vrot.slane %v2539, %v2599
        %v2601 = vlaneseq
        %v2602 = vshrl.u32 %v2601, 7
        %v2603 = vsub.s32 0, %v2602
        %v2604 = vrot.slane %v2553, %v2603
        %v2605 = vlaneseq
        %v2606 = vshrl.u32 %v2605, 7
        %v2607 = vsub.s32 0, %v2606
        %v2608 = vrot.slane %v2561, %v2607
        %v2609 = vlaneseq
        %v2610 = vshrl.u32 %v2609, 7
        %v2611 = vsub.s32 0, %v2610
        %v2612 = vrot.slane %v2563, %v2611
        %v2613 = vlaneseq
        %v2614 = vshrl.u32 %v2613, 7
        %v2615 = vsub.s32 0, %v2614
        %v2616 = vrot.slane %v2546, %v2615
        %v2617 = vlaneseq
        %v2618 = vshrl.u32 %v2617, 7
        %v2619 = vsub.s32 0, %v2618
        %v2620 = vrot.slane %v2560, %v2619
        %v2621 = vlaneseq
        %v2622 = vshrl.u32 %v2621, 7
        %v2623 = vsub.s32 0, %v2622
        %v2624 = vrot.slane %v2562, %v2623
        %v2625 = vlaneseq
        %v2626 = vshrl.u32 %v2625, 7
        %v2627 = vsub.s32 0, %v2626
        %v2628 = vrot.slane %v2564, %v2627
        %v2645 = vmul.f32 %v2568, %v212
        %v2646 = vmul.f32 %v2572, %v212
        %v2647 = vmul.f32 %v2576, %v212
        %v2648 = vmul.f32 %v2580, %v212
        %v2649 = vmul.f32 %v2584, %v212
        %v2650 = vmul.f32 %v2588, %v212
        %v2651 = vmul.f32 %v2592, %v212
        %v2652 = vmul.f32 %v2596, %v212
        %v2653 = vmul.f32 %v2600, %v212
        %v2654 = vmul.f32 %v2604, %v212
        %v2655 = vmul.f32 %v2608, %v212
        %v2656 = vmul.f32 %v2612, %v212
        %v2657 = vmul.f32 %v2616, %v212
        %v2658 = vmul.f32 %v2620, %v212
        %v2659 = vmul.f32 %v2624, %v212
        %v2660 = vmul.f32 %v2628, %v212
        %v2661 = vadd.f32 %v2443, %v2645
        %v2662 = vadd.f32 %v2444, %v2646
        %v2663 = vadd.f32 %v2445, %v2647
        %v2664 = vadd.f32 %v2446, %v2648
        %v2665 = vadd.f32 %v2447, %v2649
        %v2666 = vadd.f32 %v2448, %v2650
        %v2667 = vadd.f32 %v2449, %v2651
        %v2668 = vadd.f32 %v2450, %v2652
        %v2669 = vadd.f32 %v2451, %v2653
        %v2670 = vadd.f32 %v2452, %v2654
        %v2671 = vadd.f32 %v2453, %v2655
        %v2672 = vadd.f32 %v2454, %v2656
        %v2673 = vadd.f32 %v2455, %v2657
        %v2674 = vadd.f32 %v2456, %v2658
        %v2675 = vadd.f32 %v2457, %v2659
        %v2676 = vadd.f32 %v2458, %v2660
        %v2677 = vmul.f32 %v213, %v213
        %v2678 = vadd.f32 %v2460, %v2677
        %v2679 = vmul.f32 %v256, %v256
        %v2680 = vmul.f32 %v257, %v257
        %v2681 = vadd.f32 %v2463, %v2679
        %v2682 = vadd.f32 %v2464, %v2680
        %v2685 = vcombine.high %v256, %v256
        %v2687 = vunpack.c.l.s4 1966171168
        %v2688 = vunpack.c.0.s8 %v2687
        %v2689 = vlaneseq
        %v2690 = vshrl.u32 %v2689, 7
        %v2691 = vsub.s32 %v2688, %v2690
        %v2692 = vrot.slane %v256, %v2691
        %v2694 = vunpack.c.l.s4 1966171168
        %v2695 = vunpack.c.0.s8 %v2694
        %v2696 = vlaneseq
        %v2697 = vshrl.u32 %v2696, 7
        %v2698 = vsub.s32 %v2695, %v2697
        %v2699 = vrot.slane %v2685, %v2698
        %v2700 = vcombine.high %v2692, %v2692
        %v2701 = vcombine.high %v2699, %v2699
        %v2703 = vunpack.c.l.s4 1966171168
        %v2704 = vunpack.c.0.s8 %v2703
        %v2705 = vlaneseq
        %v2706 = vshrl.u32 %v2705, 7
        %v2707 = vsub.s32 %v2704, %v2706
        %v2708 = vrot.slane %v2692, %v2707
        %v2710 = vunpack.c.l.s4 1966171168
        %v2711 = vunpack.c.0.s8 %v2710
        %v2712 = vlaneseq
        %v2713 = vshrl.u32 %v2712, 7
        %v2714 = vsub.s32 %v2711, %v2713
        %v2715 = vrot.slane %v2699, %v2714
        %v2717 = vunpack.c.l.s4 1966171168
        %v2718 = vunpack.c.0.s8 %v2717
        %v2719 = vlaneseq
        %v2720 = vshrl.u32 %v2719, 7
        %v2721 = vsub.s32 %v2718, %v2720
        %v2722 = vrot.slane %v2700, %v2721
        %v2724 = vunpack.c.l.s4 1966171168
        %v2725 = vunpack.c.0.s8 %v2724
        %v2726 = vlaneseq
        %v2727 = vshrl.u32 %v2726, 7
        %v2728 = vsub.s32 %v2725, %v2727
        %v2729 = vrot.slane %v2701, %v2728
        %v2730 = vcombine.high %v2708, %v2708
        %v2731 = vcombine.high %v2715, %v2715
        %v2732 = vcombine.high %v2722, %v2722
        %v2733 = vcombine.high %v2729, %v2729
        %v2734 = vcombine.high %v257, %v257
        %v2736 = vunpack.c.l.s4 1966171168
        %v2737 = vunpack.c.0.s8 %v2736
        %v2738 = vlaneseq
        %v2739 = vshrl.u32 %v2738, 7
        %v2740 = vsub.s32 %v2737, %v2739
        %v2741 = vrot.slane %v257, %v2740
        %v2743 = vunpack.c.l.s4 1966171168
        %v2744 = vunpack.c.0.s8 %v2743
        %v2745 = vlaneseq
        %v2746 = vshrl.u32 %v2745, 7
        %v2747 = vsub.s32 %v2744, %v2746
        %v2748 = vrot.slane %v2734, %v2747
        %v2749 = vcombine.high %v2741, %v2741
        %v2750 = vcombine.high %v2748, %v2748
        %v2752 = vunpack.c.l.s4 1966171168
        %v2753 = vunpack.c.0.s8 %v2752
        %v2754 = vlaneseq
        %v2755 = vshrl.u32 %v2754, 7
        %v2756 = vsub.s32 %v2753, %v2755
        %v2757 = vrot.slane %v2741, %v2756
        %v2759 = vunpack.c.l.s4 1966171168
        %v2760 = vunpack.c.0.s8 %v2759
        %v2761 = vlaneseq
        %v2762 = vshrl.u32 %v2761, 7
        %v2763 = vsub.s32 %v2760, %v2762
        %v2764 = vrot.slane %v2748, %v2763
        %v2766 = vunpack.c.l.s4 1966171168
        %v2767 = vunpack.c.0.s8 %v2766
        %v2768 = vlaneseq
        %v2769 = vshrl.u32 %v2768, 7
        %v2770 = vsub.s32 %v2767, %v2769
        %v2771 = vrot.slane %v2749, %v2770
        %v2773 = vunpack.c.l.s4 1966171168
        %v2774 = vunpack.c.0.s8 %v2773
        %v2775 = vlaneseq
        %v2776 = vshrl.u32 %v2775, 7
        %v2777 = vsub.s32 %v2774, %v2776
        %v2778 = vrot.slane %v2750, %v2777
        %v2779 = vcombine.high %v2757, %v2757
        %v2780 = vcombine.high %v2764, %v2764
        %v2781 = vcombine.high %v2771, %v2771
        %v2782 = vcombine.high %v2778, %v2778
        %v2783 = vlaneseq
        %v2784 = vshrl.u32 %v2783, 7
        %v2785 = vsub.s32 0, %v2784
        %v2786 = vrot.slane %v2708, %v2785
        %v2787 = vlaneseq
        %v2788 = vshrl.u32 %v2787, 7
        %v2789 = vsub.s32 0, %v2788
        %v2790 = vrot.slane %v2722, %v2789
        %v2791 = vlaneseq
        %v2792 = vshrl.u32 %v2791, 7
        %v2793 = vsub.s32 0, %v2792
        %v2794 = vrot.slane %v2730, %v2793
        %v2795 = vlaneseq
        %v2796 = vshrl.u32 %v2795, 7
        %v2797 = vsub.s32 0, %v2796
        %v2798 = vrot.slane %v2732, %v2797
        %v2799 = vlaneseq
        %v2800 = vshrl.u32 %v2799, 7
        %v2801 = vsub.s32 0, %v2800
        %v2802 = vrot.slane %v2715, %v2801
        %v2803 = vlaneseq
        %v2804 = vshrl.u32 %v2803, 7
        %v2805 = vsub.s32 0, %v2804
        %v2806 = vrot.slane %v2729, %v2805
        %v2807 = vlaneseq
        %v2808 = vshrl.u32 %v2807, 7
        %v2809 = vsub.s32 0, %v2808
        %v2810 = vrot.slane %v2731, %v2809
        %v2811 = vlaneseq
        %v2812 = vshrl.u32 %v2811, 7
        %v2813 = vsub.s32 0, %v2812
        %v2814 = vrot.slane %v2733, %v2813
        %v2815 = vlaneseq
        %v2816 = vshrl.u32 %v2815, 7
        %v2817 = vsub.s32 0, %v2816
        %v2818 = vrot.slane %v2757, %v2817
        %v2819 = vlaneseq
        %v2820 = vshrl.u32 %v2819, 7
        %v2821 = vsub.s32 0, %v2820
        %v2822 = vrot.slane %v2771, %v2821
        %v2823 = vlaneseq
        %v2824 = vshrl.u32 %v2823, 7
        %v2825 = vsub.s32 0, %v2824
        %v2826 = vrot.slane %v2779, %v2825
        %v2827 = vlaneseq
        %v2828 = vshrl.u32 %v2827, 7
        %v2829 = vsub.s32 0, %v2828
        %v2830 = vrot.slane %v2781, %v2829
        %v2831 = vlaneseq
        %v2832 = vshrl.u32 %v2831, 7
        %v2833 = vsub.s32 0, %v2832
        %v2834 = vrot.slane %v2764, %v2833
        %v2835 = vlaneseq
        %v2836 = vshrl.u32 %v2835, 7
        %v2837 = vsub.s32 0, %v2836
        %v2838 = vrot.slane %v2778, %v2837
        %v2839 = vlaneseq
        %v2840 = vshrl.u32 %v2839, 7
        %v2841 = vsub.s32 0, %v2840
        %v2842 = vrot.slane %v2780, %v2841
        %v2843 = vlaneseq
        %v2844 = vshrl.u32 %v2843, 7
        %v2845 = vsub.s32 0, %v2844
        %v2846 = vrot.slane %v2782, %v2845
        %v2863 = vmul.f32 %v2786, %v213
        %v2864 = vmul.f32 %v2790, %v213
        %v2865 = vmul.f32 %v2794, %v213
        %v2866 = vmul.f32 %v2798, %v213
        %v2867 = vmul.f32 %v2802, %v213
        %v2868 = vmul.f32 %v2806, %v213
        %v2869 = vmul.f32 %v2810, %v213
        %v2870 = vmul.f32 %v2814, %v213
        %v2871 = vmul.f32 %v2818, %v213
        %v2872 = vmul.f32 %v2822, %v213
        %v2873 = vmul.f32 %v2826, %v213
        %v2874 = vmul.f32 %v2830, %v213
        %v2875 = vmul.f32 %v2834, %v213
        %v2876 = vmul.f32 %v2838, %v213
        %v2877 = vmul.f32 %v2842, %v213
        %v2878 = vmul.f32 %v2846, %v213
        %v2879 = vadd.f32 %v2661, %v2863
        %v2880 = vadd.f32 %v2662, %v2864
        %v2881 = vadd.f32 %v2663, %v2865
        %v2882 = vadd.f32 %v2664, %v2866
        %v2883 = vadd.f32 %v2665, %v2867
        %v2884 = vadd.f32 %v2666, %v2868
        %v2885 = vadd.f32 %v2667, %v2869
        %v2886 = vadd.f32 %v2668, %v2870
        %v2887 = vadd.f32 %v2669, %v2871
        %v2888 = vadd.f32 %v2670, %v2872
        %v2889 = vadd.f32 %v2671, %v2873
        %v2890 = vadd.f32 %v2672, %v2874
        %v2891 = vadd.f32 %v2673, %v2875
        %v2892 = vadd.f32 %v2674, %v2876
        %v2893 = vadd.f32 %v2675, %v2877
        %v2894 = vadd.f32 %v2676, %v2878
        %v2895 = vmul.f32 %v214, %v214
        %v2896 = vadd.f32 %v2678, %v2895
        %v2897 = vmul.f32 %v258, %v258
        %v2898 = vmul.f32 %v259, %v259
        %v2899 = vadd.f32 %v2681, %v2897
        %v2900 = vadd.f32 %v2682, %v2898
        %v2903 = vcombine.high %v258, %v258
        %v2905 = vunpack.c.l.s4 1966171168
        %v2906 = vunpack.c.0.s8 %v2905
        %v2907 = vlaneseq
        %v2908 = vshrl.u32 %v2907, 7
        %v2909 = vsub.s32 %v2906, %v2908
        %v2910 = vrot.slane %v258, %v2909
        %v2912 = vunpack.c.l.s4 1966171168
        %v2913 = vunpack.c.0.s8 %v2912
        %v2914 = vlaneseq
        %v2915 = vshrl.u32 %v2914, 7
        %v2916 = vsub.s32 %v2913, %v2915
        %v2917 = vrot.slane %v2903, %v2916
        %v2918 = vcombine.high %v2910, %v2910
        %v2919 = vcombine.high %v2917, %v2917
        %v2921 = vunpack.c.l.s4 1966171168
        %v2922 = vunpack.c.0.s8 %v2921
        %v2923 = vlaneseq
        %v2924 = vshrl.u32 %v2923, 7
        %v2925 = vsub.s32 %v2922, %v2924
        %v2926 = vrot.slane %v2910, %v2925
        %v2928 = vunpack.c.l.s4 1966171168
        %v2929 = vunpack.c.0.s8 %v2928
        %v2930 = vlaneseq
        %v2931 = vshrl.u32 %v2930, 7
        %v2932 = vsub.s32 %v2929, %v2931
        %v2933 = vrot.slane %v2917, %v2932
        %v2935 = vunpack.c.l.s4 1966171168
        %v2936 = vunpack.c.0.s8 %v2935
        %v2937 = vlaneseq
        %v2938 = vshrl.u32 %v2937, 7
        %v2939 = vsub.s32 %v2936, %v2938
        %v2940 = vrot.slane %v2918, %v2939
        %v2942 = vunpack.c.l.s4 1966171168
        %v2943 = vunpack.c.0.s8 %v2942
        %v2944 = vlaneseq
        %v2945 = vshrl.u32 %v2944, 7
        %v2946 = vsub.s32 %v2943, %v2945
        %v2947 = vrot.slane %v2919, %v2946
        %v2948 = vcombine.high %v2926, %v2926
        %v2949 = vcombine.high %v2933, %v2933
        %v2950 = vcombine.high %v2940, %v2940
        %v2951 = vcombine.high %v2947, %v2947
        %v2952 = vcombine.high %v259, %v259
        %v2954 = vunpack.c.l.s4 1966171168
        %v2955 = vunpack.c.0.s8 %v2954
        %v2956 = vlaneseq
        %v2957 = vshrl.u32 %v2956, 7
        %v2958 = vsub.s32 %v2955, %v2957
        %v2959 = vrot.slane %v259, %v2958
        %v2961 = vunpack.c.l.s4 1966171168
        %v2962 = vunpack.c.0.s8 %v2961
        %v2963 = vlaneseq
        %v2964 = vshrl.u32 %v2963, 7
        %v2965 = vsub.s32 %v2962, %v2964
        %v2966 = vrot.slane %v2952, %v2965
        %v2967 = vcombine.high %v2959, %v2959
        %v2968 = vcombine.high %v2966, %v2966
        %v2970 = vunpack.c.l.s4 1966171168
        %v2971 = vunpack.c.0.s8 %v2970
        %v2972 = vlaneseq
        %v2973 = vshrl.u32 %v2972, 7
        %v2974 = vsub.s32 %v2971, %v2973
        %v2975 = vrot.slane %v2959, %v2974
        %v2977 = vunpack.c.l.s4 1966171168
        %v2978 = vunpack.c.0.s8 %v2977
        %v2979 = vlaneseq
        %v2980 = vshrl.u32 %v2979, 7
        %v2981 = vsub.s32 %v2978, %v2980
        %v2982 = vrot.slane %v2966, %v2981
        %v2984 = vunpack.c.l.s4 1966171168
        %v2985 = vunpack.c.0.s8 %v2984
        %v2986 = vlaneseq
        %v2987 = vshrl.u32 %v2986, 7
        %v2988 = vsub.s32 %v2985, %v2987
        %v2989 = vrot.slane %v2967, %v2988
        %v2991 = vunpack.c.l.s4 1966171168
        %v2992 = vunpack.c.0.s8 %v2991
        %v2993 = vlaneseq
        %v2994 = vshrl.u32 %v2993, 7
        %v2995 = vsub.s32 %v2992, %v2994
        %v2996 = vrot.slane %v2968, %v2995
        %v2997 = vcombine.high %v2975, %v2975
        %v2998 = vcombine.high %v2982, %v2982
        %v2999 = vcombine.high %v2989, %v2989
        %v3000 = vcombine.high %v2996, %v2996
        %v3001 = vlaneseq
        %v3002 = vshrl.u32 %v3001, 7
        %v3003 = vsub.s32 0, %v3002
        %v3004 = vrot.slane %v2926, %v3003
        %v3005 = vlaneseq
        %v3006 = vshrl.u32 %v3005, 7
        %v3007 = vsub.s32 0, %v3006
        %v3008 = vrot.slane %v2940, %v3007
        %v3009 = vlaneseq
        %v3010 = vshrl.u32 %v3009, 7
        %v3011 = vsub.s32 0, %v3010
        %v3012 = vrot.slane %v2948, %v3011
        %v3013 = vlaneseq
        %v3014 = vshrl.u32 %v3013, 7
        %v3015 = vsub.s32 0, %v3014
        %v3016 = vrot.slane %v2950, %v3015
        %v3017 = vlaneseq
        %v3018 = vshrl.u32 %v3017, 7
        %v3019 = vsub.s32 0, %v3018
        %v3020 = vrot.slane %v2933, %v3019
        %v3021 = vlaneseq
        %v3022 = vshrl.u32 %v3021, 7
        %v3023 = vsub.s32 0, %v3022
        %v3024 = vrot.slane %v2947, %v3023
        %v3025 = vlaneseq
        %v3026 = vshrl.u32 %v3025, 7
        %v3027 = vsub.s32 0, %v3026
        %v3028 = vrot.slane %v2949, %v3027
        %v3029 = vlaneseq
        %v3030 = vshrl.u32 %v3029, 7
        %v3031 = vsub.s32 0, %v3030
        %v3032 = vrot.slane %v2951, %v3031
        %v3033 = vlaneseq
        %v3034 = vshrl.u32 %v3033, 7
        %v3035 = vsub.s32 0, %v3034
        %v3036 = vrot.slane %v2975, %v3035
        %v3037 = vlaneseq
        %v3038 = vshrl.u32 %v3037, 7
        %v3039 = vsub.s32 0, %v3038
        %v3040 = vrot.slane %v2989, %v3039
        %v3041 = vlaneseq
        %v3042 = vshrl.u32 %v3041, 7
        %v3043 = vsub.s32 0, %v3042
        %v3044 = vrot.slane %v2997, %v3043
        %v3045 = vlaneseq
        %v3046 = vshrl.u32 %v3045, 7
        %v3047 = vsub.s32 0, %v3046
        %v3048 = vrot.slane %v2999, %v3047
        %v3049 = vlaneseq
        %v3050 = vshrl.u32 %v3049, 7
        %v3051 = vsub.s32 0, %v3050
        %v3052 = vrot.slane %v2982, %v3051
        %v3053 = vlaneseq
        %v3054 = vshrl.u32 %v3053, 7
        %v3055 = vsub.s32 0, %v3054
        %v3056 = vrot.slane %v2996, %v3055
        %v3057 = vlaneseq
        %v3058 = vshrl.u32 %v3057, 7
        %v3059 = vsub.s32 0, %v3058
        %v3060 = vrot.slane %v2998, %v3059
        %v3061 = vlaneseq
        %v3062 = vshrl.u32 %v3061, 7
        %v3063 = vsub.s32 0, %v3062
        %v3064 = vrot.slane %v3000, %v3063
        %v3081 = vmul.f32 %v3004, %v214
        %v3082 = vmul.f32 %v3008, %v214
        %v3083 = vmul.f32 %v3012, %v214
        %v3084 = vmul.f32 %v3016, %v214
        %v3085 = vmul.f32 %v3020, %v214
        %v3086 = vmul.f32 %v3024, %v214
        %v3087 = vmul.f32 %v3028, %v214
        %v3088 = vmul.f32 %v3032, %v214
        %v3089 = vmul.f32 %v3036, %v214
        %v3090 = vmul.f32 %v3040, %v214
        %v3091 = vmul.f32 %v3044, %v214
        %v3092 = vmul.f32 %v3048, %v214
        %v3093 = vmul.f32 %v3052, %v214
        %v3094 = vmul.f32 %v3056, %v214
        %v3095 = vmul.f32 %v3060, %v214
        %v3096 = vmul.f32 %v3064, %v214
        %v3097 = vadd.f32 %v2879, %v3081
        %v3098 = vadd.f32 %v2880, %v3082
        %v3099 = vadd.f32 %v2881, %v3083
        %v3100 = vadd.f32 %v2882, %v3084
        %v3101 = vadd.f32 %v2883, %v3085
        %v3102 = vadd.f32 %v2884, %v3086
        %v3103 = vadd.f32 %v2885, %v3087
        %v3104 = vadd.f32 %v2886, %v3088
        %v3105 = vadd.f32 %v2887, %v3089
        %v3106 = vadd.f32 %v2888, %v3090
        %v3107 = vadd.f32 %v2889, %v3091
        %v3108 = vadd.f32 %v2890, %v3092
        %v3109 = vadd.f32 %v2891, %v3093
        %v3110 = vadd.f32 %v2892, %v3094
        %v3111 = vadd.f32 %v2893, %v3095
        %v3112 = vadd.f32 %v2894, %v3096
        %v3113 = vmul.f32 %v215, %v215
        %v3114 = vadd.f32 %v2896, %v3113
        %v3115 = vmul.f32 %v260, %v260
        %v3116 = vmul.f32 %v261, %v261
        %v3117 = vadd.f32 %v2899, %v3115
        %v3118 = vadd.f32 %v2900, %v3116
        %v3121 = vcombine.high %v260, %v260
        %v3123 = vunpack.c.l.s4 1966171168
        %v3124 = vunpack.c.0.s8 %v3123
        %v3125 = vlaneseq
        %v3126 = vshrl.u32 %v3125, 7
        %v3127 = vsub.s32 %v3124, %v3126
        %v3128 = vrot.slane %v260, %v3127
        %v3130 = vunpack.c.l.s4 1966171168
        %v3131 = vunpack.c.0.s8 %v3130
        %v3132 = vlaneseq
        %v3133 = vshrl.u32 %v3132, 7
        %v3134 = vsub.s32 %v3131, %v3133
        %v3135 = vrot.slane %v3121, %v3134
        %v3136 = vcombine.high %v3128, %v3128
        %v3137 = vcombine.high %v3135, %v3135
        %v3139 = vunpack.c.l.s4 1966171168
        %v3140 = vunpack.c.0.s8 %v3139
        %v3141 = vlaneseq
        %v3142 = vshrl.u32 %v3141, 7
        %v3143 = vsub.s32 %v3140, %v3142
        %v3144 = vrot.slane %v3128, %v3143
        %v3146 = vunpack.c.l.s4 1966171168
        %v3147 = vunpack.c.0.s8 %v3146
        %v3148 = vlaneseq
        %v3149 = vshrl.u32 %v3148, 7
        %v3150 = vsub.s32 %v3147, %v3149
        %v3151 = vrot.slane %v3135, %v3150
        %v3153 = vunpack.c.l.s4 1966171168
        %v3154 = vunpack.c.0.s8 %v3153
        %v3155 = vlaneseq
        %v3156 = vshrl.u32 %v3155, 7
        %v3157 = vsub.s32 %v3154, %v3156
        %v3158 = vrot.slane %v3136, %v3157
        %v3160 = vunpack.c.l.s4 1966171168
        %v3161 = vunpack.c.0.s8 %v3160
        %v3162 = vlaneseq
        %v3163 = vshrl.u32 %v3162, 7
        %v3164 = vsub.s32 %v3161, %v3163
        %v3165 = vrot.slane %v3137, %v3164
        %v3166 = vcombine.high %v3144, %v3144
        %v3167 = vcombine.high %v3151, %v3151
        %v3168 = vcombine.high %v3158, %v3158
        %v3169 = vcombine.high %v3165, %v3165
        %v3170 = vcombine.high %v261, %v261
        %v3172 = vunpack.c.l.s4 1966171168
        %v3173 = vunpack.c.0.s8 %v3172
        %v3174 = vlaneseq
        %v3175 = vshrl.u32 %v3174, 7
        %v3176 = vsub.s32 %v3173, %v3175
        %v3177 = vrot.slane %v261, %v3176
        %v3179 = vunpack.c.l.s4 1966171168
        %v3180 = vunpack.c.0.s8 %v3179
        %v3181 = vlaneseq
        %v3182 = vshrl.u32 %v3181, 7
        %v3183 = vsub.s32 %v3180, %v3182
        %v3184 = vrot.slane %v3170, %v3183
        %v3185 = vcombine.high %v3177, %v3177
        %v3186 = vcombine.high %v3184, %v3184
        %v3188 = vunpack.c.l.s4 1966171168
        %v3189 = vunpack.c.0.s8 %v3188
        %v3190 = vlaneseq
        %v3191 = vshrl.u32 %v3190, 7
        %v3192 = vsub.s32 %v3189, %v3191
        %v3193 = vrot.slane %v3177, %v3192
        %v3195 = vunpack.c.l.s4 1966171168
        %v3196 = vunpack.c.0.s8 %v3195
        %v3197 = vlaneseq
        %v3198 = vshrl.u32 %v3197, 7
        %v3199 = vsub.s32 %v3196, %v3198
        %v3200 = vrot.slane %v3184, %v3199
        %v3202 = vunpack.c.l.s4 1966171168
        %v3203 = vunpack.c.0.s8 %v3202
        %v3204 = vlaneseq
        %v3205 = vshrl.u32 %v3204, 7
        %v3206 = vsub.s32 %v3203, %v3205
        %v3207 = vrot.slane %v3185, %v3206
        %v3209 = vunpack.c.l.s4 1966171168
        %v3210 = vunpack.c.0.s8 %v3209
        %v3211 = vlaneseq
        %v3212 = vshrl.u32 %v3211, 7
        %v3213 = vsub.s32 %v3210, %v3212
        %v3214 = vrot.slane %v3186, %v3213
        %v3215 = vcombine.high %v3193, %v3193
        %v3216 = vcombine.high %v3200, %v3200
        %v3217 = vcombine.high %v3207, %v3207
        %v3218 = vcombine.high %v3214, %v3214
        %v3219 = vlaneseq
        %v3220 = vshrl.u32 %v3219, 7
        %v3221 = vsub.s32 0, %v3220
        %v3222 = vrot.slane %v3144, %v3221
        %v3223 = vlaneseq
        %v3224 = vshrl.u32 %v3223, 7
        %v3225 = vsub.s32 0, %v3224
        %v3226 = vrot.slane %v3158, %v3225
        %v3227 = vlaneseq
        %v3228 = vshrl.u32 %v3227, 7
        %v3229 = vsub.s32 0, %v3228
        %v3230 = vrot.slane %v3166, %v3229
        %v3231 = vlaneseq
        %v3232 = vshrl.u32 %v3231, 7
        %v3233 = vsub.s32 0, %v3232
        %v3234 = vrot.slane %v3168, %v3233
        %v3235 = vlaneseq
        %v3236 = vshrl.u32 %v3235, 7
        %v3237 = vsub.s32 0, %v3236
        %v3238 = vrot.slane %v3151, %v3237
        %v3239 = vlaneseq
        %v3240 = vshrl.u32 %v3239, 7
        %v3241 = vsub.s32 0, %v3240
        %v3242 = vrot.slane %v3165, %v3241
        %v3243 = vlaneseq
        %v3244 = vshrl.u32 %v3243, 7
        %v3245 = vsub.s32 0, %v3244
        %v3246 = vrot.slane %v3167, %v3245
        %v3247 = vlaneseq
        %v3248 = vshrl.u32 %v3247, 7
        %v3249 = vsub.s32 0, %v3248
        %v3250 = vrot.slane %v3169, %v3249
        %v3251 = vlaneseq
        %v3252 = vshrl.u32 %v3251, 7
        %v3253 = vsub.s32 0, %v3252
        %v3254 = vrot.slane %v3193, %v3253
        %v3255 = vlaneseq
        %v3256 = vshrl.u32 %v3255, 7
        %v3257 = vsub.s32 0, %v3256
        %v3258 = vrot.slane %v3207, %v3257
        %v3259 = vlaneseq
        %v3260 = vshrl.u32 %v3259, 7
        %v3261 = vsub.s32 0, %v3260
        %v3262 = vrot.slane %v3215, %v3261
        %v3263 = vlaneseq
        %v3264 = vshrl.u32 %v3263, 7
        %v3265 = vsub.s32 0, %v3264
        %v3266 = vrot.slane %v3217, %v3265
        %v3267 = vlaneseq
        %v3268 = vshrl.u32 %v3267, 7
        %v3269 = vsub.s32 0, %v3268
        %v3270 = vrot.slane %v3200, %v3269
        %v3271 = vlaneseq
        %v3272 = vshrl.u32 %v3271, 7
        %v3273 = vsub.s32 0, %v3272
        %v3274 = vrot.slane %v3214, %v3273
        %v3275 = vlaneseq
        %v3276 = vshrl.u32 %v3275, 7
        %v3277 = vsub.s32 0, %v3276
        %v3278 = vrot.slane %v3216, %v3277
        %v3279 = vlaneseq
        %v3280 = vshrl.u32 %v3279, 7
        %v3281 = vsub.s32 0, %v3280
        %v3282 = vrot.slane %v3218, %v3281
        %v3299 = vmul.f32 %v3222, %v215
        %v3300 = vmul.f32 %v3226, %v215
        %v3301 = vmul.f32 %v3230, %v215
        %v3302 = vmul.f32 %v3234, %v215
        %v3303 = vmul.f32 %v3238, %v215
        %v3304 = vmul.f32 %v3242, %v215
        %v3305 = vmul.f32 %v3246, %v215
        %v3306 = vmul.f32 %v3250, %v215
        %v3307 = vmul.f32 %v3254, %v215
        %v3308 = vmul.f32 %v3258, %v215
        %v3309 = vmul.f32 %v3262, %v215
        %v3310 = vmul.f32 %v3266, %v215
        %v3311 = vmul.f32 %v3270, %v215
        %v3312 = vmul.f32 %v3274, %v215
        %v3313 = vmul.f32 %v3278, %v215
        %v3314 = vmul.f32 %v3282, %v215
        %v3315 = vadd.f32 %v3097, %v3299
        %v3316 = vadd.f32 %v3098, %v3300
        %v3317 = vadd.f32 %v3099, %v3301
        %v3318 = vadd.f32 %v3100, %v3302
        %v3319 = vadd.f32 %v3101, %v3303
        %v3320 = vadd.f32 %v3102, %v3304
        %v3321 = vadd.f32 %v3103, %v3305
        %v3322 = vadd.f32 %v3104, %v3306
        %v3323 = vadd.f32 %v3105, %v3307
        %v3324 = vadd.f32 %v3106, %v3308
        %v3325 = vadd.f32 %v3107, %v3309
        %v3326 = vadd.f32 %v3108, %v3310
        %v3327 = vadd.f32 %v3109, %v3311
        %v3328 = vadd.f32 %v3110, %v3312
        %v3329 = vadd.f32 %v3111, %v3313
        %v3330 = vadd.f32 %v3112, %v3314
        %v3331 = vmul.f32 %v216, %v216
        %v3332 = vadd.f32 %v3114, %v3331
        %v3333 = vmul.f32 %v262, %v262
        %v3334 = vmul.f32 %v263, %v263
        %v3335 = vadd.f32 %v3117, %v3333
        %v3336 = vadd.f32 %v3118, %v3334
        %v3339 = vcombine.high %v262, %v262
        %v3341 = vunpack.c.l.s4 1966171168
        %v3342 = vunpack.c.0.s8 %v3341
        %v3343 = vlaneseq
        %v3344 = vshrl.u32 %v3343, 7
        %v3345 = vsub.s32 %v3342, %v3344
        %v3346 = vrot.slane %v262, %v3345
        %v3348 = vunpack.c.l.s4 1966171168
        %v3349 = vunpack.c.0.s8 %v3348
        %v3350 = vlaneseq
        %v3351 = vshrl.u32 %v3350, 7
        %v3352 = vsub.s32 %v3349, %v3351
        %v3353 = vrot.slane %v3339, %v3352
        %v3354 = vcombine.high %v3346, %v3346
        %v3355 = vcombine.high %v3353, %v3353
        %v3357 = vunpack.c.l.s4 1966171168
        %v3358 = vunpack.c.0.s8 %v3357
        %v3359 = vlaneseq
        %v3360 = vshrl.u32 %v3359, 7
        %v3361 = vsub.s32 %v3358, %v3360
        %v3362 = vrot.slane %v3346, %v3361
        %v3364 = vunpack.c.l.s4 1966171168
        %v3365 = vunpack.c.0.s8 %v3364
        %v3366 = vlaneseq
        %v3367 = vshrl.u32 %v3366, 7
        %v3368 = vsub.s32 %v3365, %v3367
        %v3369 = vrot.slane %v3353, %v3368
        %v3371 = vunpack.c.l.s4 1966171168
        %v3372 = vunpack.c.0.s8 %v3371
        %v3373 = vlaneseq
        %v3374 = vshrl.u32 %v3373, 7
        %v3375 = vsub.s32 %v3372, %v3374
        %v3376 = vrot.slane %v3354, %v3375
        %v3378 = vunpack.c.l.s4 1966171168
        %v3379 = vunpack.c.0.s8 %v3378
        %v3380 = vlaneseq
        %v3381 = vshrl.u32 %v3380, 7
        %v3382 = vsub.s32 %v3379, %v3381
        %v3383 = vrot.slane %v3355, %v3382
        %v3384 = vcombine.high %v3362, %v3362
        %v3385 = vcombine.high %v3369, %v3369
        %v3386 = vcombine.high %v3376, %v3376
        %v3387 = vcombine.high %v3383, %v3383
        %v3388 = vcombine.high %v263, %v263
        %v3390 = vunpack.c.l.s4 1966171168
        %v3391 = vunpack.c.0.s8 %v3390
        %v3392 = vlaneseq
        %v3393 = vshrl.u32 %v3392, 7
        %v3394 = vsub.s32 %v3391, %v3393
        %v3395 = vrot.slane %v263, %v3394
        %v3397 = vunpack.c.l.s4 1966171168
        %v3398 = vunpack.c.0.s8 %v3397
        %v3399 = vlaneseq
        %v3400 = vshrl.u32 %v3399, 7
        %v3401 = vsub.s32 %v3398, %v3400
        %v3402 = vrot.slane %v3388, %v3401
        %v3403 = vcombine.high %v3395, %v3395
        %v3404 = vcombine.high %v3402, %v3402
        %v3406 = vunpack.c.l.s4 1966171168
        %v3407 = vunpack.c.0.s8 %v3406
        %v3408 = vlaneseq
        %v3409 = vshrl.u32 %v3408, 7
        %v3410 = vsub.s32 %v3407, %v3409
        %v3411 = vrot.slane %v3395, %v3410
        %v3413 = vunpack.c.l.s4 1966171168
        %v3414 = vunpack.c.0.s8 %v3413
        %v3415 = vlaneseq
        %v3416 = vshrl.u32 %v3415, 7
        %v3417 = vsub.s32 %v3414, %v3416
        %v3418 = vrot.slane %v3402, %v3417
        %v3420 = vunpack.c.l.s4 1966171168
        %v3421 = vunpack.c.0.s8 %v3420
        %v3422 = vlaneseq
        %v3423 = vshrl.u32 %v3422, 7
        %v3424 = vsub.s32 %v3421, %v3423
        %v3425 = vrot.slane %v3403, %v3424
        %v3427 = vunpack.c.l.s4 1966171168
        %v3428 = vunpack.c.0.s8 %v3427
        %v3429 = vlaneseq
        %v3430 = vshrl.u32 %v3429, 7
        %v3431 = vsub.s32 %v3428, %v3430
        %v3432 = vrot.slane %v3404, %v3431
        %v3433 = vcombine.high %v3411, %v3411
        %v3434 = vcombine.high %v3418, %v3418
        %v3435 = vcombine.high %v3425, %v3425
        %v3436 = vcombine.high %v3432, %v3432
        %v3437 = vlaneseq
        %v3438 = vshrl.u32 %v3437, 7
        %v3439 = vsub.s32 0, %v3438
        %v3440 = vrot.slane %v3362, %v3439
        %v3441 = vlaneseq
        %v3442 = vshrl.u32 %v3441, 7
        %v3443 = vsub.s32 0, %v3442
        %v3444 = vrot.slane %v3376, %v3443
        %v3445 = vlaneseq
        %v3446 = vshrl.u32 %v3445, 7
        %v3447 = vsub.s32 0, %v3446
        %v3448 = vrot.slane %v3384, %v3447
        %v3449 = vlaneseq
        %v3450 = vshrl.u32 %v3449, 7
        %v3451 = vsub.s32 0, %v3450
        %v3452 = vrot.slane %v3386, %v3451
        %v3453 = vlaneseq
        %v3454 = vshrl.u32 %v3453, 7
        %v3455 = vsub.s32 0, %v3454
        %v3456 = vrot.slane %v3369, %v3455
        %v3457 = vlaneseq
        %v3458 = vshrl.u32 %v3457, 7
        %v3459 = vsub.s32 0, %v3458
        %v3460 = vrot.slane %v3383, %v3459
        %v3461 = vlaneseq
        %v3462 = vshrl.u32 %v3461, 7
        %v3463 = vsub.s32 0, %v3462
        %v3464 = vrot.slane %v3385, %v3463
        %v3465 = vlaneseq
        %v3466 = vshrl.u32 %v3465, 7
        %v3467 = vsub.s32 0, %v3466
        %v3468 = vrot.slane %v3387, %v3467
        %v3469 = vlaneseq
        %v3470 = vshrl.u32 %v3469, 7
        %v3471 = vsub.s32 0, %v3470
        %v3472 = vrot.slane %v3411, %v3471
        %v3473 = vlaneseq
        %v3474 = vshrl.u32 %v3473, 7
        %v3475 = vsub.s32 0, %v3474
        %v3476 = vrot.slane %v3425, %v3475
        %v3477 = vlaneseq
        %v3478 = vshrl.u32 %v3477, 7
        %v3479 = vsub.s32 0, %v3478
        %v3480 = vrot.slane %v3433, %v3479
        %v3481 = vlaneseq
        %v3482 = vshrl.u32 %v3481, 7
        %v3483 = vsub.s32 0, %v3482
        %v3484 = vrot.slane %v3435, %v3483
        %v3485 = vlaneseq
        %v3486 = vshrl.u32 %v3485, 7
        %v3487 = vsub.s32 0, %v3486
        %v3488 = vrot.slane %v3418, %v3487
        %v3489 = vlaneseq
        %v3490 = vshrl.u32 %v3489, 7
        %v3491 = vsub.s32 0, %v3490
        %v3492 = vrot.slane %v3432, %v3491
        %v3493 = vlaneseq
        %v3494 = vshrl.u32 %v3493, 7
        %v3495 = vsub.s32 0, %v3494
        %v3496 = vrot.slane %v3434, %v3495
        %v3497 = vlaneseq
        %v3498 = vshrl.u32 %v3497, 7
        %v3499 = vsub.s32 0, %v3498
        %v3500 = vrot.slane %v3436, %v3499
        %v3517 = vmul.f32 %v3440, %v216
        %v3518 = vmul.f32 %v3444, %v216
        %v3519 = vmul.f32 %v3448, %v216
        %v3520 = vmul.f32 %v3452, %v216
        %v3521 = vmul.f32 %v3456, %v216
        %v3522 = vmul.f32 %v3460, %v216
        %v3523 = vmul.f32 %v3464, %v216
        %v3524 = vmul.f32 %v3468, %v216
        %v3525 = vmul.f32 %v3472, %v216
        %v3526 = vmul.f32 %v3476, %v216
        %v3527 = vmul.f32 %v3480, %v216
        %v3528 = vmul.f32 %v3484, %v216
        %v3529 = vmul.f32 %v3488, %v216
        %v3530 = vmul.f32 %v3492, %v216
        %v3531 = vmul.f32 %v3496, %v216
        %v3532 = vmul.f32 %v3500, %v216
        %v3533 = vadd.f32 %v3315, %v3517
        %v3534 = vadd.f32 %v3316, %v3518
        %v3535 = vadd.f32 %v3317, %v3519
        %v3536 = vadd.f32 %v3318, %v3520
        %v3537 = vadd.f32 %v3319, %v3521
        %v3538 = vadd.f32 %v3320, %v3522
        %v3539 = vadd.f32 %v3321, %v3523
        %v3540 = vadd.f32 %v3322, %v3524
        %v3541 = vadd.f32 %v3323, %v3525
        %v3542 = vadd.f32 %v3324, %v3526
        %v3543 = vadd.f32 %v3325, %v3527
        %v3544 = vadd.f32 %v3326, %v3528
        %v3545 = vadd.f32 %v3327, %v3529
        %v3546 = vadd.f32 %v3328, %v3530
        %v3547 = vadd.f32 %v3329, %v3531
        %v3548 = vadd.f32 %v3330, %v3532
        %v3549 = vmul.f32 %v217, %v217
        %v3550 = vadd.f32 %v3332, %v3549
        %v3551 = vmul.f32 %v264, %v264
        %v3552 = vmul.f32 %v265, %v265
        %v3553 = vadd.f32 %v3335, %v3551
        %v3554 = vadd.f32 %v3336, %v3552
        %v3557 = vcombine.high %v264, %v264
        %v3559 = vunpack.c.l.s4 1966171168
        %v3560 = vunpack.c.0.s8 %v3559
        %v3561 = vlaneseq
        %v3562 = vshrl.u32 %v3561, 7
        %v3563 = vsub.s32 %v3560, %v3562
        %v3564 = vrot.slane %v264, %v3563
        %v3566 = vunpack.c.l.s4 1966171168
        %v3567 = vunpack.c.0.s8 %v3566
        %v3568 = vlaneseq
        %v3569 = vshrl.u32 %v3568, 7
        %v3570 = vsub.s32 %v3567, %v3569
        %v3571 = vrot.slane %v3557, %v3570
        %v3572 = vcombine.high %v3564, %v3564
        %v3573 = vcombine.high %v3571, %v3571
        %v3575 = vunpack.c.l.s4 1966171168
        %v3576 = vunpack.c.0.s8 %v3575
        %v3577 = vlaneseq
        %v3578 = vshrl.u32 %v3577, 7
        %v3579 = vsub.s32 %v3576, %v3578
        %v3580 = vrot.slane %v3564, %v3579
        %v3582 = vunpack.c.l.s4 1966171168
        %v3583 = vunpack.c.0.s8 %v3582
        %v3584 = vlaneseq
        %v3585 = vshrl.u32 %v3584, 7
        %v3586 = vsub.s32 %v3583, %v3585
        %v3587 = vrot.slane %v3571, %v3586
        %v3589 = vunpack.c.l.s4 1966171168
        %v3590 = vunpack.c.0.s8 %v3589
        %v3591 = vlaneseq
        %v3592 = vshrl.u32 %v3591, 7
        %v3593 = vsub.s32 %v3590, %v3592
        %v3594 = vrot.slane %v3572, %v3593
        %v3596 = vunpack.c.l.s4 1966171168
        %v3597 = vunpack.c.0.s8 %v3596
        %v3598 = vlaneseq
        %v3599 = vshrl.u32 %v3598, 7
        %v3600 = vsub.s32 %v3597, %v3599
        %v3601 = vrot.slane %v3573, %v3600
        %v3602 = vcombine.high %v3580, %v3580
        %v3603 = vcombine.high %v3587, %v3587
        %v3604 = vcombine.high %v3594, %v3594
        %v3605 = vcombine.high %v3601, %v3601
        %v3606 = vcombine.high %v265, %v265
        %v3608 = vunpack.c.l.s4 1966171168
        %v3609 = vunpack.c.0.s8 %v3608
        %v3610 = vlaneseq
        %v3611 = vshrl.u32 %v3610, 7
        %v3612 = vsub.s32 %v3609, %v3611
        %v3613 = vrot.slane %v265, %v3612
        %v3615 = vunpack.c.l.s4 1966171168
        %v3616 = vunpack.c.0.s8 %v3615
        %v3617 = vlaneseq
        %v3618 = vshrl.u32 %v3617, 7
        %v3619 = vsub.s32 %v3616, %v3618
        %v3620 = vrot.slane %v3606, %v3619
        %v3621 = vcombine.high %v3613, %v3613
        %v3622 = vcombine.high %v3620, %v3620
        %v3624 = vunpack.c.l.s4 1966171168
        %v3625 = vunpack.c.0.s8 %v3624
        %v3626 = vlaneseq
        %v3627 = vshrl.u32 %v3626, 7
        %v3628 = vsub.s32 %v3625, %v3627
        %v3629 = vrot.slane %v3613, %v3628
        %v3631 = vunpack.c.l.s4 1966171168
        %v3632 = vunpack.c.0.s8 %v3631
        %v3633 = vlaneseq
        %v3634 = vshrl.u32 %v3633, 7
        %v3635 = vsub.s32 %v3632, %v3634
        %v3636 = vrot.slane %v3620, %v3635
        %v3638 = vunpack.c.l.s4 1966171168
        %v3639 = vunpack.c.0.s8 %v3638
        %v3640 = vlaneseq
        %v3641 = vshrl.u32 %v3640, 7
        %v3642 = vsub.s32 %v3639, %v3641
        %v3643 = vrot.slane %v3621, %v3642
        %v3645 = vunpack.c.l.s4 1966171168
        %v3646 = vunpack.c.0.s8 %v3645
        %v3647 = vlaneseq
        %v3648 = vshrl.u32 %v3647, 7
        %v3649 = vsub.s32 %v3646, %v3648
        %v3650 = vrot.slane %v3622, %v3649
        %v3651 = vcombine.high %v3629, %v3629
        %v3652 = vcombine.high %v3636, %v3636
        %v3653 = vcombine.high %v3643, %v3643
        %v3654 = vcombine.high %v3650, %v3650
        %v3655 = vlaneseq
        %v3656 = vshrl.u32 %v3655, 7
        %v3657 = vsub.s32 0, %v3656
        %v3658 = vrot.slane %v3580, %v3657
        %v3659 = vlaneseq
        %v3660 = vshrl.u32 %v3659, 7
        %v3661 = vsub.s32 0, %v3660
        %v3662 = vrot.slane %v3594, %v3661
        %v3663 = vlaneseq
        %v3664 = vshrl.u32 %v3663, 7
        %v3665 = vsub.s32 0, %v3664
        %v3666 = vrot.slane %v3602, %v3665
        %v3667 = vlaneseq
        %v3668 = vshrl.u32 %v3667, 7
        %v3669 = vsub.s32 0, %v3668
        %v3670 = vrot.slane %v3604, %v3669
        %v3671 = vlaneseq
        %v3672 = vshrl.u32 %v3671, 7
        %v3673 = vsub.s32 0, %v3672
        %v3674 = vrot.slane %v3587, %v3673
        %v3675 = vlaneseq
        %v3676 = vshrl.u32 %v3675, 7
        %v3677 = vsub.s32 0, %v3676
        %v3678 = vrot.slane %v3601, %v3677
        %v3679 = vlaneseq
        %v3680 = vshrl.u32 %v3679, 7
        %v3681 = vsub.s32 0, %v3680
        %v3682 = vrot.slane %v3603, %v3681
        %v3683 = vlaneseq
        %v3684 = vshrl.u32 %v3683, 7
        %v3685 = vsub.s32 0, %v3684
        %v3686 = vrot.slane %v3605, %v3685
        %v3687 = vlaneseq
        %v3688 = vshrl.u32 %v3687, 7
        %v3689 = vsub.s32 0, %v3688
        %v3690 = vrot.slane %v3629, %v3689
        %v3691 = vlaneseq
        %v3692 = vshrl.u32 %v3691, 7
        %v3693 = vsub.s32 0, %v3692
        %v3694 = vrot.slane %v3643, %v3693
        %v3695 = vlaneseq
        %v3696 = vshrl.u32 %v3695, 7
        %v3697 = vsub.s32 0, %v3696
        %v3698 = vrot.slane %v3651, %v3697
        %v3699 = vlaneseq
        %v3700 = vshrl.u32 %v3699, 7
        %v3701 = vsub.s32 0, %v3700
        %v3702 = vrot.slane %v3653, %v3701
        %v3703 = vlaneseq
        %v3704 = vshrl.u32 %v3703, 7
        %v3705 = vsub.s32 0, %v3704
        %v3706 = vrot.slane %v3636, %v3705
        %v3707 = vlaneseq
        %v3708 = vshrl.u32 %v3707, 7
        %v3709 = vsub.s32 0, %v3708
        %v3710 = vrot.slane %v3650, %v3709
        %v3711 = vlaneseq
        %v3712 = vshrl.u32 %v3711, 7
        %v3713 = vsub.s32 0, %v3712
        %v3714 = vrot.slane %v3652, %v3713
        %v3715 = vlaneseq
        %v3716 = vshrl.u32 %v3715, 7
        %v3717 = vsub.s32 0, %v3716
        %v3718 = vrot.slane %v3654, %v3717
        %v3735 = vmul.f32 %v3658, %v217
        %v3736 = vmul.f32 %v3662, %v217
        %v3737 = vmul.f32 %v3666, %v217
        %v3738 = vmul.f32 %v3670, %v217
        %v3739 = vmul.f32 %v3674, %v217
        %v3740 = vmul.f32 %v3678, %v217
        %v3741 = vmul.f32 %v3682, %v217
        %v3742 = vmul.f32 %v3686, %v217
        %v3743 = vmul.f32 %v3690, %v217
        %v3744 = vmul.f32 %v3694, %v217
        %v3745 = vmul.f32 %v3698, %v217
        %v3746 = vmul.f32 %v3702, %v217
        %v3747 = vmul.f32 %v3706, %v217
        %v3748 = vmul.f32 %v3710, %v217
        %v3749 = vmul.f32 %v3714, %v217
        %v3750 = vmul.f32 %v3718, %v217
        %v3751 = vadd.f32 %v3533, %v3735
        %v3752 = vadd.f32 %v3534, %v3736
        %v3753 = vadd.f32 %v3535, %v3737
        %v3754 = vadd.f32 %v3536, %v3738
        %v3755 = vadd.f32 %v3537, %v3739
        %v3756 = vadd.f32 %v3538, %v3740
        %v3757 = vadd.f32 %v3539, %v3741
        %v3758 = vadd.f32 %v3540, %v3742
        %v3759 = vadd.f32 %v3541, %v3743
        %v3760 = vadd.f32 %v3542, %v3744
        %v3761 = vadd.f32 %v3543, %v3745
        %v3762 = vadd.f32 %v3544, %v3746
        %v3763 = vadd.f32 %v3545, %v3747
        %v3764 = vadd.f32 %v3546, %v3748
        %v3765 = vadd.f32 %v3547, %v3749
        %v3766 = vadd.f32 %v3548, %v3750
        %v3767 = vmul.f32 %v218, %v218
        %v3768 = vadd.f32 %v3550, %v3767
        %v3769 = vmul.f32 %v266, %v266
        %v3770 = vmul.f32 %v267, %v267
        %v3771 = vadd.f32 %v3553, %v3769
        %v3772 = vadd.f32 %v3554, %v3770
        %v3775 = vcombine.high %v266, %v266
        %v3777 = vunpack.c.l.s4 1966171168
        %v3778 = vunpack.c.0.s8 %v3777
        %v3779 = vlaneseq
        %v3780 = vshrl.u32 %v3779, 7
        %v3781 = vsub.s32 %v3778, %v3780
        %v3782 = vrot.slane %v266, %v3781
        %v3784 = vunpack.c.l.s4 1966171168
        %v3785 = vunpack.c.0.s8 %v3784
        %v3786 = vlaneseq
        %v3787 = vshrl.u32 %v3786, 7
        %v3788 = vsub.s32 %v3785, %v3787
        %v3789 = vrot.slane %v3775, %v3788
        %v3790 = vcombine.high %v3782, %v3782
        %v3791 = vcombine.high %v3789, %v3789
        %v3793 = vunpack.c.l.s4 1966171168
        %v3794 = vunpack.c.0.s8 %v3793
        %v3795 = vlaneseq
        %v3796 = vshrl.u32 %v3795, 7
        %v3797 = vsub.s32 %v3794, %v3796
        %v3798 = vrot.slane %v3782, %v3797
        %v3800 = vunpack.c.l.s4 1966171168
        %v3801 = vunpack.c.0.s8 %v3800
        %v3802 = vlaneseq
        %v3803 = vshrl.u32 %v3802, 7
        %v3804 = vsub.s32 %v3801, %v3803
        %v3805 = vrot.slane %v3789, %v3804
        %v3807 = vunpack.c.l.s4 1966171168
        %v3808 = vunpack.c.0.s8 %v3807
        %v3809 = vlaneseq
        %v3810 = vshrl.u32 %v3809, 7
        %v3811 = vsub.s32 %v3808, %v3810
        %v3812 = vrot.slane %v3790, %v3811
        %v3814 = vunpack.c.l.s4 1966171168
        %v3815 = vunpack.c.0.s8 %v3814
        %v3816 = vlaneseq
        %v3817 = vshrl.u32 %v3816, 7
        %v3818 = vsub.s32 %v3815, %v3817
        %v3819 = vrot.slane %v3791, %v3818
        %v3820 = vcombine.high %v3798, %v3798
        %v3821 = vcombine.high %v3805, %v3805
        %v3822 = vcombine.high %v3812, %v3812
        %v3823 = vcombine.high %v3819, %v3819
        %v3824 = vcombine.high %v267, %v267
        %v3826 = vunpack.c.l.s4 1966171168
        %v3827 = vunpack.c.0.s8 %v3826
        %v3828 = vlaneseq
        %v3829 = vshrl.u32 %v3828, 7
        %v3830 = vsub.s32 %v3827, %v3829
        %v3831 = vrot.slane %v267, %v3830
        %v3833 = vunpack.c.l.s4 1966171168
        %v3834 = vunpack.c.0.s8 %v3833
        %v3835 = vlaneseq
        %v3836 = vshrl.u32 %v3835, 7
        %v3837 = vsub.s32 %v3834, %v3836
        %v3838 = vrot.slane %v3824, %v3837
        %v3839 = vcombine.high %v3831, %v3831
        %v3840 = vcombine.high %v3838, %v3838
        %v3842 = vunpack.c.l.s4 1966171168
        %v3843 = vunpack.c.0.s8 %v3842
        %v3844 = vlaneseq
        %v3845 = vshrl.u32 %v3844, 7
        %v3846 = vsub.s32 %v3843, %v3845
        %v3847 = vrot.slane %v3831, %v3846
        %v3849 = vunpack.c.l.s4 1966171168
        %v3850 = vunpack.c.0.s8 %v3849
        %v3851 = vlaneseq
        %v3852 = vshrl.u32 %v3851, 7
        %v3853 = vsub.s32 %v3850, %v3852
        %v3854 = vrot.slane %v3838, %v3853
        %v3856 = vunpack.c.l.s4 1966171168
        %v3857 = vunpack.c.0.s8 %v3856
        %v3858 = vlaneseq
        %v3859 = vshrl.u32 %v3858, 7
        %v3860 = vsub.s32 %v3857, %v3859
        %v3861 = vrot.slane %v3839, %v3860
        %v3863 = vunpack.c.l.s4 1966171168
        %v3864 = vunpack.c.0.s8 %v3863
        %v3865 = vlaneseq
        %v3866 = vshrl.u32 %v3865, 7
        %v3867 = vsub.s32 %v3864, %v3866
        %v3868 = vrot.slane %v3840, %v3867
        %v3869 = vcombine.high %v3847, %v3847
        %v3870 = vcombine.high %v3854, %v3854
        %v3871 = vcombine.high %v3861, %v3861
        %v3872 = vcombine.high %v3868, %v3868
        %v3873 = vlaneseq
        %v3874 = vshrl.u32 %v3873, 7
        %v3875 = vsub.s32 0, %v3874
        %v3876 = vrot.slane %v3798, %v3875
        %v3877 = vlaneseq
        %v3878 = vshrl.u32 %v3877, 7
        %v3879 = vsub.s32 0, %v3878
        %v3880 = vrot.slane %v3812, %v3879
        %v3881 = vlaneseq
        %v3882 = vshrl.u32 %v3881, 7
        %v3883 = vsub.s32 0, %v3882
        %v3884 = vrot.slane %v3820, %v3883
        %v3885 = vlaneseq
        %v3886 = vshrl.u32 %v3885, 7
        %v3887 = vsub.s32 0, %v3886
        %v3888 = vrot.slane %v3822, %v3887
        %v3889 = vlaneseq
        %v3890 = vshrl.u32 %v3889, 7
        %v3891 = vsub.s32 0, %v3890
        %v3892 = vrot.slane %v3805, %v3891
        %v3893 = vlaneseq
        %v3894 = vshrl.u32 %v3893, 7
        %v3895 = vsub.s32 0, %v3894
        %v3896 = vrot.slane %v3819, %v3895
        %v3897 = vlaneseq
        %v3898 = vshrl.u32 %v3897, 7
        %v3899 = vsub.s32 0, %v3898
        %v3900 = vrot.slane %v3821, %v3899
        %v3901 = vlaneseq
        %v3902 = vshrl.u32 %v3901, 7
        %v3903 = vsub.s32 0, %v3902
        %v3904 = vrot.slane %v3823, %v3903
        %v3905 = vlaneseq
        %v3906 = vshrl.u32 %v3905, 7
        %v3907 = vsub.s32 0, %v3906
        %v3908 = vrot.slane %v3847, %v3907
        %v3909 = vlaneseq
        %v3910 = vshrl.u32 %v3909, 7
        %v3911 = vsub.s32 0, %v3910
        %v3912 = vrot.slane %v3861, %v3911
        %v3913 = vlaneseq
        %v3914 = vshrl.u32 %v3913, 7
        %v3915 = vsub.s32 0, %v3914
        %v3916 = vrot.slane %v3869, %v3915
        %v3917 = vlaneseq
        %v3918 = vshrl.u32 %v3917, 7
        %v3919 = vsub.s32 0, %v3918
        %v3920 = vrot.slane %v3871, %v3919
        %v3921 = vlaneseq
        %v3922 = vshrl.u32 %v3921, 7
        %v3923 = vsub.s32 0, %v3922
        %v3924 = vrot.slane %v3854, %v3923
        %v3925 = vlaneseq
        %v3926 = vshrl.u32 %v3925, 7
        %v3927 = vsub.s32 0, %v3926
        %v3928 = vrot.slane %v3868, %v3927
        %v3929 = vlaneseq
        %v3930 = vshrl.u32 %v3929, 7
        %v3931 = vsub.s32 0, %v3930
        %v3932 = vrot.slane %v3870, %v3931
        %v3933 = vlaneseq
        %v3934 = vshrl.u32 %v3933, 7
        %v3935 = vsub.s32 0, %v3934
        %v3936 = vrot.slane %v3872, %v3935
        %v3953 = vmul.f32 %v3876, %v218
        %v3954 = vmul.f32 %v3880, %v218
        %v3955 = vmul.f32 %v3884, %v218
        %v3956 = vmul.f32 %v3888, %v218
        %v3957 = vmul.f32 %v3892, %v218
        %v3958 = vmul.f32 %v3896, %v218
        %v3959 = vmul.f32 %v3900, %v218
        %v3960 = vmul.f32 %v3904, %v218
        %v3961 = vmul.f32 %v3908, %v218
        %v3962 = vmul.f32 %v3912, %v218
        %v3963 = vmul.f32 %v3916, %v218
        %v3964 = vmul.f32 %v3920, %v218
        %v3965 = vmul.f32 %v3924, %v218
        %v3966 = vmul.f32 %v3928, %v218
        %v3967 = vmul.f32 %v3932, %v218
        %v3968 = vmul.f32 %v3936, %v218
        %v3969 = vadd.f32 %v3751, %v3953
        %v3970 = vadd.f32 %v3752, %v3954
        %v3971 = vadd.f32 %v3753, %v3955
        %v3972 = vadd.f32 %v3754, %v3956
        %v3973 = vadd.f32 %v3755, %v3957
        %v3974 = vadd.f32 %v3756, %v3958
        %v3975 = vadd.f32 %v3757, %v3959
        %v3976 = vadd.f32 %v3758, %v3960
        %v3977 = vadd.f32 %v3759, %v3961
        %v3978 = vadd.f32 %v3760, %v3962
        %v3979 = vadd.f32 %v3761, %v3963
        %v3980 = vadd.f32 %v3762, %v3964
        %v3981 = vadd.f32 %v3763, %v3965
        %v3982 = vadd.f32 %v3764, %v3966
        %v3983 = vadd.f32 %v3765, %v3967
        %v3984 = vadd.f32 %v3766, %v3968
        %v3985 = vmul.f32 %v219, %v219
        %v3986 = vadd.f32 %v3768, %v3985
        %v3987 = vmul.f32 %v268, %v268
        %v3988 = vmul.f32 %v269, %v269
        %v3989 = vadd.f32 %v3771, %v3987
        %v3990 = vadd.f32 %v3772, %v3988
        %v3993 = vcombine.high %v268, %v268
        %v3995 = vunpack.c.l.s4 1966171168
        %v3996 = vunpack.c.0.s8 %v3995
        %v3997 = vlaneseq
        %v3998 = vshrl.u32 %v3997, 7
        %v3999 = vsub.s32 %v3996, %v3998
        %v4000 = vrot.slane %v268, %v3999
        %v4002 = vunpack.c.l.s4 1966171168
        %v4003 = vunpack.c.0.s8 %v4002
        %v4004 = vlaneseq
        %v4005 = vshrl.u32 %v4004, 7
        %v4006 = vsub.s32 %v4003, %v4005
        %v4007 = vrot.slane %v3993, %v4006
        %v4008 = vcombine.high %v4000, %v4000
        %v4009 = vcombine.high %v4007, %v4007
        %v4011 = vunpack.c.l.s4 1966171168
        %v4012 = vunpack.c.0.s8 %v4011
        %v4013 = vlaneseq
        %v4014 = vshrl.u32 %v4013, 7
        %v4015 = vsub.s32 %v4012, %v4014
        %v4016 = vrot.slane %v4000, %v4015
        %v4018 = vunpack.c.l.s4 1966171168
        %v4019 = vunpack.c.0.s8 %v4018
        %v4020 = vlaneseq
        %v4021 = vshrl.u32 %v4020, 7
        %v4022 = vsub.s32 %v4019, %v4021
        %v4023 = vrot.slane %v4007, %v4022
        %v4025 = vunpack.c.l.s4 1966171168
        %v4026 = vunpack.c.0.s8 %v4025
        %v4027 = vlaneseq
        %v4028 = vshrl.u32 %v4027, 7
        %v4029 = vsub.s32 %v4026, %v4028
        %v4030 = vrot.slane %v4008, %v4029
        %v4032 = vunpack.c.l.s4 1966171168
        %v4033 = vunpack.c.0.s8 %v4032
        %v4034 = vlaneseq
        %v4035 = vshrl.u32 %v4034, 7
        %v4036 = vsub.s32 %v4033, %v4035
        %v4037 = vrot.slane %v4009, %v4036
        %v4038 = vcombine.high %v4016, %v4016
        %v4039 = vcombine.high %v4023, %v4023
        %v4040 = vcombine.high %v4030, %v4030
        %v4041 = vcombine.high %v4037, %v4037
        %v4042 = vcombine.high %v269, %v269
        %v4044 = vunpack.c.l.s4 1966171168
        %v4045 = vunpack.c.0.s8 %v4044
        %v4046 = vlaneseq
        %v4047 = vshrl.u32 %v4046, 7
        %v4048 = vsub.s32 %v4045, %v4047
        %v4049 = vrot.slane %v269, %v4048
        %v4051 = vunpack.c.l.s4 1966171168
        %v4052 = vunpack.c.0.s8 %v4051
        %v4053 = vlaneseq
        %v4054 = vshrl.u32 %v4053, 7
        %v4055 = vsub.s32 %v4052, %v4054
        %v4056 = vrot.slane %v4042, %v4055
        %v4057 = vcombine.high %v4049, %v4049
        %v4058 = vcombine.high %v4056, %v4056
        %v4060 = vunpack.c.l.s4 1966171168
        %v4061 = vunpack.c.0.s8 %v4060
        %v4062 = vlaneseq
        %v4063 = vshrl.u32 %v4062, 7
        %v4064 = vsub.s32 %v4061, %v4063
        %v4065 = vrot.slane %v4049, %v4064
        %v4067 = vunpack.c.l.s4 1966171168
        %v4068 = vunpack.c.0.s8 %v4067
        %v4069 = vlaneseq
        %v4070 = vshrl.u32 %v4069, 7
        %v4071 = vsub.s32 %v4068, %v4070
        %v4072 = vrot.slane %v4056, %v4071
        %v4074 = vunpack.c.l.s4 1966171168
        %v4075 = vunpack.c.0.s8 %v4074
        %v4076 = vlaneseq
        %v4077 = vshrl.u32 %v4076, 7
        %v4078 = vsub.s32 %v4075, %v4077
        %v4079 = vrot.slane %v4057, %v4078
        %v4081 = vunpack.c.l.s4 1966171168
        %v4082 = vunpack.c.0.s8 %v4081
        %v4083 = vlaneseq
        %v4084 = vshrl.u32 %v4083, 7
        %v4085 = vsub.s32 %v4082, %v4084
        %v4086 = vrot.slane %v4058, %v4085
        %v4087 = vcombine.high %v4065, %v4065
        %v4088 = vcombine.high %v4072, %v4072
        %v4089 = vcombine.high %v4079, %v4079
        %v4090 = vcombine.high %v4086, %v4086
        %v4091 = vlaneseq
        %v4092 = vshrl.u32 %v4091, 7
        %v4093 = vsub.s32 0, %v4092
        %v4094 = vrot.slane %v4016, %v4093
        %v4095 = vlaneseq
        %v4096 = vshrl.u32 %v4095, 7
        %v4097 = vsub.s32 0, %v4096
        %v4098 = vrot.slane %v4030, %v4097
        %v4099 = vlaneseq
        %v4100 = vshrl.u32 %v4099, 7
        %v4101 = vsub.s32 0, %v4100
        %v4102 = vrot.slane %v4038, %v4101
        %v4103 = vlaneseq
        %v4104 = vshrl.u32 %v4103, 7
        %v4105 = vsub.s32 0, %v4104
        %v4106 = vrot.slane %v4040, %v4105
        %v4107 = vlaneseq
        %v4108 = vshrl.u32 %v4107, 7
        %v4109 = vsub.s32 0, %v4108
        %v4110 = vrot.slane %v4023, %v4109
        %v4111 = vlaneseq
        %v4112 = vshrl.u32 %v4111, 7
        %v4113 = vsub.s32 0, %v4112
        %v4114 = vrot.slane %v4037, %v4113
        %v4115 = vlaneseq
        %v4116 = vshrl.u32 %v4115, 7
        %v4117 = vsub.s32 0, %v4116
        %v4118 = vrot.slane %v4039, %v4117
        %v4119 = vlaneseq
        %v4120 = vshrl.u32 %v4119, 7
        %v4121 = vsub.s32 0, %v4120
        %v4122 = vrot.slane %v4041, %v4121
        %v4123 = vlaneseq
        %v4124 = vshrl.u32 %v4123, 7
        %v4125 = vsub.s32 0, %v4124
        %v4126 = vrot.slane %v4065, %v4125
        %v4127 = vlaneseq
        %v4128 = vshrl.u32 %v4127, 7
        %v4129 = vsub.s32 0, %v4128
        %v4130 = vrot.slane %v4079, %v4129
        %v4131 = vlaneseq
        %v4132 = vshrl.u32 %v4131, 7
        %v4133 = vsub.s32 0, %v4132
        %v4134 = vrot.slane %v4087, %v4133
        %v4135 = vlaneseq
        %v4136 = vshrl.u32 %v4135, 7
        %v4137 = vsub.s32 0, %v4136
        %v4138 = vrot.slane %v4089, %v4137
        %v4139 = vlaneseq
        %v4140 = vshrl.u32 %v4139, 7
        %v4141 = vsub.s32 0, %v4140
        %v4142 = vrot.slane %v4072, %v4141
        %v4143 = vlaneseq
        %v4144 = vshrl.u32 %v4143, 7
        %v4145 = vsub.s32 0, %v4144
        %v4146 = vrot.slane %v4086, %v4145
        %v4147 = vlaneseq
        %v4148 = vshrl.u32 %v4147, 7
        %v4149 = vsub.s32 0, %v4148
        %v4150 = vrot.slane %v4088, %v4149
        %v4151 = vlaneseq
        %v4152 = vshrl.u32 %v4151, 7
        %v4153 = vsub.s32 0, %v4152
        %v4154 = vrot.slane %v4090, %v4153
        %v4171 = vmul.f32 %v4094, %v219
        %v4172 = vmul.f32 %v4098, %v219
        %v4173 = vmul.f32 %v4102, %v219
        %v4174 = vmul.f32 %v4106, %v219
        %v4175 = vmul.f32 %v4110, %v219
        %v4176 = vmul.f32 %v4114, %v219
        %v4177 = vmul.f32 %v4118, %v219
        %v4178 = vmul.f32 %v4122, %v219
        %v4179 = vmul.f32 %v4126, %v219
        %v4180 = vmul.f32 %v4130, %v219
        %v4181 = vmul.f32 %v4134, %v219
        %v4182 = vmul.f32 %v4138, %v219
        %v4183 = vmul.f32 %v4142, %v219
        %v4184 = vmul.f32 %v4146, %v219
        %v4185 = vmul.f32 %v4150, %v219
        %v4186 = vmul.f32 %v4154, %v219
        %v4187 = vadd.f32 %v3969, %v4171
        %v4188 = vadd.f32 %v3970, %v4172
        %v4189 = vadd.f32 %v3971, %v4173
        %v4190 = vadd.f32 %v3972, %v4174
        %v4191 = vadd.f32 %v3973, %v4175
        %v4192 = vadd.f32 %v3974, %v4176
        %v4193 = vadd.f32 %v3975, %v4177
        %v4194 = vadd.f32 %v3976, %v4178
        %v4195 = vadd.f32 %v3977, %v4179
        %v4196 = vadd.f32 %v3978, %v4180
        %v4197 = vadd.f32 %v3979, %v4181
        %v4198 = vadd.f32 %v3980, %v4182
        %v4199 = vadd.f32 %v3981, %v4183
        %v4200 = vadd.f32 %v3982, %v4184
        %v4201 = vadd.f32 %v3983, %v4185
        %v4202 = vadd.f32 %v3984, %v4186
        %v4203 = vmul.f32 %v220, %v220
        %v4204 = vadd.f32 %v3986, %v4203
        %v4205 = vmul.f32 %v270, %v270
        %v4206 = vmul.f32 %v271, %v271
        %v4207 = vadd.f32 %v3989, %v4205
        %v4208 = vadd.f32 %v3990, %v4206
        %v4211 = vcombine.high %v270, %v270
        %v4213 = vunpack.c.l.s4 1966171168
        %v4214 = vunpack.c.0.s8 %v4213
        %v4215 = vlaneseq
        %v4216 = vshrl.u32 %v4215, 7
        %v4217 = vsub.s32 %v4214, %v4216
        %v4218 = vrot.slane %v270, %v4217
        %v4220 = vunpack.c.l.s4 1966171168
        %v4221 = vunpack.c.0.s8 %v4220
        %v4222 = vlaneseq
        %v4223 = vshrl.u32 %v4222, 7
        %v4224 = vsub.s32 %v4221, %v4223
        %v4225 = vrot.slane %v4211, %v4224
        %v4226 = vcombine.high %v4218, %v4218
        %v4227 = vcombine.high %v4225, %v4225
        %v4229 = vunpack.c.l.s4 1966171168
        %v4230 = vunpack.c.0.s8 %v4229
        %v4231 = vlaneseq
        %v4232 = vshrl.u32 %v4231, 7
        %v4233 = vsub.s32 %v4230, %v4232
        %v4234 = vrot.slane %v4218, %v4233
        %v4236 = vunpack.c.l.s4 1966171168
        %v4237 = vunpack.c.0.s8 %v4236
        %v4238 = vlaneseq
        %v4239 = vshrl.u32 %v4238, 7
        %v4240 = vsub.s32 %v4237, %v4239
        %v4241 = vrot.slane %v4225, %v4240
        %v4243 = vunpack.c.l.s4 1966171168
        %v4244 = vunpack.c.0.s8 %v4243
        %v4245 = vlaneseq
        %v4246 = vshrl.u32 %v4245, 7
        %v4247 = vsub.s32 %v4244, %v4246
        %v4248 = vrot.slane %v4226, %v4247
        %v4250 = vunpack.c.l.s4 1966171168
        %v4251 = vunpack.c.0.s8 %v4250
        %v4252 = vlaneseq
        %v4253 = vshrl.u32 %v4252, 7
        %v4254 = vsub.s32 %v4251, %v4253
        %v4255 = vrot.slane %v4227, %v4254
        %v4256 = vcombine.high %v4234, %v4234
        %v4257 = vcombine.high %v4241, %v4241
        %v4258 = vcombine.high %v4248, %v4248
        %v4259 = vcombine.high %v4255, %v4255
        %v4260 = vcombine.high %v271, %v271
        %v4262 = vunpack.c.l.s4 1966171168
        %v4263 = vunpack.c.0.s8 %v4262
        %v4264 = vlaneseq
        %v4265 = vshrl.u32 %v4264, 7
        %v4266 = vsub.s32 %v4263, %v4265
        %v4267 = vrot.slane %v271, %v4266
        %v4269 = vunpack.c.l.s4 1966171168
        %v4270 = vunpack.c.0.s8 %v4269
        %v4271 = vlaneseq
        %v4272 = vshrl.u32 %v4271, 7
        %v4273 = vsub.s32 %v4270, %v4272
        %v4274 = vrot.slane %v4260, %v4273
        %v4275 = vcombine.high %v4267, %v4267
        %v4276 = vcombine.high %v4274, %v4274
        %v4278 = vunpack.c.l.s4 1966171168
        %v4279 = vunpack.c.0.s8 %v4278
        %v4280 = vlaneseq
        %v4281 = vshrl.u32 %v4280, 7
        %v4282 = vsub.s32 %v4279, %v4281
        %v4283 = vrot.slane %v4267, %v4282
        %v4285 = vunpack.c.l.s4 1966171168
        %v4286 = vunpack.c.0.s8 %v4285
        %v4287 = vlaneseq
        %v4288 = vshrl.u32 %v4287, 7
        %v4289 = vsub.s32 %v4286, %v4288
        %v4290 = vrot.slane %v4274, %v4289
        %v4292 = vunpack.c.l.s4 1966171168
        %v4293 = vunpack.c.0.s8 %v4292
        %v4294 = vlaneseq
        %v4295 = vshrl.u32 %v4294, 7
        %v4296 = vsub.s32 %v4293, %v4295
        %v4297 = vrot.slane %v4275, %v4296
        %v4299 = vunpack.c.l.s4 1966171168
        %v4300 = vunpack.c.0.s8 %v4299
        %v4301 = vlaneseq
        %v4302 = vshrl.u32 %v4301, 7
        %v4303 = vsub.s32 %v4300, %v4302
        %v4304 = vrot.slane %v4276, %v4303
        %v4305 = vcombine.high %v4283, %v4283
        %v4306 = vcombine.high %v4290, %v4290
        %v4307 = vcombine.high %v4297, %v4297
        %v4308 = vcombine.high %v4304, %v4304
        %v4309 = vlaneseq
        %v4310 = vshrl.u32 %v4309, 7
        %v4311 = vsub.s32 0, %v4310
        %v4312 = vrot.slane %v4234, %v4311
        %v4313 = vlaneseq
        %v4314 = vshrl.u32 %v4313, 7
        %v4315 = vsub.s32 0, %v4314
        %v4316 = vrot.slane %v4248, %v4315
        %v4317 = vlaneseq
        %v4318 = vshrl.u32 %v4317, 7
        %v4319 = vsub.s32 0, %v4318
        %v4320 = vrot.slane %v4256, %v4319
        %v4321 = vlaneseq
        %v4322 = vshrl.u32 %v4321, 7
        %v4323 = vsub.s32 0, %v4322
        %v4324 = vrot.slane %v4258, %v4323
        %v4325 = vlaneseq
        %v4326 = vshrl.u32 %v4325, 7
        %v4327 = vsub.s32 0, %v4326
        %v4328 = vrot.slane %v4241, %v4327
        %v4329 = vlaneseq
        %v4330 = vshrl.u32 %v4329, 7
        %v4331 = vsub.s32 0, %v4330
        %v4332 = vrot.slane %v4255, %v4331
        %v4333 = vlaneseq
        %v4334 = vshrl.u32 %v4333, 7
        %v4335 = vsub.s32 0, %v4334
        %v4336 = vrot.slane %v4257, %v4335
        %v4337 = vlaneseq
        %v4338 = vshrl.u32 %v4337, 7
        %v4339 = vsub.s32 0, %v4338
        %v4340 = vrot.slane %v4259, %v4339
        %v4341 = vlaneseq
        %v4342 = vshrl.u32 %v4341, 7
        %v4343 = vsub.s32 0, %v4342
        %v4344 = vrot.slane %v4283, %v4343
        %v4345 = vlaneseq
        %v4346 = vshrl.u32 %v4345, 7
        %v4347 = vsub.s32 0, %v4346
        %v4348 = vrot.slane %v4297, %v4347
        %v4349 = vlaneseq
        %v4350 = vshrl.u32 %v4349, 7
        %v4351 = vsub.s32 0, %v4350
        %v4352 = vrot.slane %v4305, %v4351
        %v4353 = vlaneseq
        %v4354 = vshrl.u32 %v4353, 7
        %v4355 = vsub.s32 0, %v4354
        %v4356 = vrot.slane %v4307, %v4355
        %v4357 = vlaneseq
        %v4358 = vshrl.u32 %v4357, 7
        %v4359 = vsub.s32 0, %v4358
        %v4360 = vrot.slane %v4290, %v4359
        %v4361 = vlaneseq
        %v4362 = vshrl.u32 %v4361, 7
        %v4363 = vsub.s32 0, %v4362
        %v4364 = vrot.slane %v4304, %v4363
        %v4365 = vlaneseq
        %v4366 = vshrl.u32 %v4365, 7
        %v4367 = vsub.s32 0, %v4366
        %v4368 = vrot.slane %v4306, %v4367
        %v4369 = vlaneseq
        %v4370 = vshrl.u32 %v4369, 7
        %v4371 = vsub.s32 0, %v4370
        %v4372 = vrot.slane %v4308, %v4371
        %v4389 = vmul.f32 %v4312, %v220
        %v4390 = vmul.f32 %v4316, %v220
        %v4391 = vmul.f32 %v4320, %v220
        %v4392 = vmul.f32 %v4324, %v220
        %v4393 = vmul.f32 %v4328, %v220
        %v4394 = vmul.f32 %v4332, %v220
        %v4395 = vmul.f32 %v4336, %v220
        %v4396 = vmul.f32 %v4340, %v220
        %v4397 = vmul.f32 %v4344, %v220
        %v4398 = vmul.f32 %v4348, %v220
        %v4399 = vmul.f32 %v4352, %v220
        %v4400 = vmul.f32 %v4356, %v220
        %v4401 = vmul.f32 %v4360, %v220
        %v4402 = vmul.f32 %v4364, %v220
        %v4403 = vmul.f32 %v4368, %v220
        %v4404 = vmul.f32 %v4372, %v220
        %v4405 = vadd.f32 %v4187, %v4389
        %v4406 = vadd.f32 %v4188, %v4390
        %v4407 = vadd.f32 %v4189, %v4391
        %v4408 = vadd.f32 %v4190, %v4392
        %v4409 = vadd.f32 %v4191, %v4393
        %v4410 = vadd.f32 %v4192, %v4394
        %v4411 = vadd.f32 %v4193, %v4395
        %v4412 = vadd.f32 %v4194, %v4396
        %v4413 = vadd.f32 %v4195, %v4397
        %v4414 = vadd.f32 %v4196, %v4398
        %v4415 = vadd.f32 %v4197, %v4399
        %v4416 = vadd.f32 %v4198, %v4400
        %v4417 = vadd.f32 %v4199, %v4401
        %v4418 = vadd.f32 %v4200, %v4402
        %v4419 = vadd.f32 %v4201, %v4403
        %v4420 = vadd.f32 %v4202, %v4404
        %v4421 = vmul.f32 %v221, %v221
        %v4422 = vadd.f32 %v4204, %v4421
        %v4423 = vmul.f32 %v272, %v272
        %v4424 = vmul.f32 %v273, %v273
        %v4425 = vadd.f32 %v4207, %v4423
        %v4426 = vadd.f32 %v4208, %v4424
        %v4429 = vcombine.high %v272, %v272
        %v4431 = vunpack.c.l.s4 1966171168
        %v4432 = vunpack.c.0.s8 %v4431
        %v4433 = vlaneseq
        %v4434 = vshrl.u32 %v4433, 7
        %v4435 = vsub.s32 %v4432, %v4434
        %v4436 = vrot.slane %v272, %v4435
        %v4438 = vunpack.c.l.s4 1966171168
        %v4439 = vunpack.c.0.s8 %v4438
        %v4440 = vlaneseq
        %v4441 = vshrl.u32 %v4440, 7
        %v4442 = vsub.s32 %v4439, %v4441
        %v4443 = vrot.slane %v4429, %v4442
        %v4444 = vcombine.high %v4436, %v4436
        %v4445 = vcombine.high %v4443, %v4443
        %v4447 = vunpack.c.l.s4 1966171168
        %v4448 = vunpack.c.0.s8 %v4447
        %v4449 = vlaneseq
        %v4450 = vshrl.u32 %v4449, 7
        %v4451 = vsub.s32 %v4448, %v4450
        %v4452 = vrot.slane %v4436, %v4451
        %v4454 = vunpack.c.l.s4 1966171168
        %v4455 = vunpack.c.0.s8 %v4454
        %v4456 = vlaneseq
        %v4457 = vshrl.u32 %v4456, 7
        %v4458 = vsub.s32 %v4455, %v4457
        %v4459 = vrot.slane %v4443, %v4458
        %v4461 = vunpack.c.l.s4 1966171168
        %v4462 = vunpack.c.0.s8 %v4461
        %v4463 = vlaneseq
        %v4464 = vshrl.u32 %v4463, 7
        %v4465 = vsub.s32 %v4462, %v4464
        %v4466 = vrot.slane %v4444, %v4465
        %v4468 = vunpack.c.l.s4 1966171168
        %v4469 = vunpack.c.0.s8 %v4468
        %v4470 = vlaneseq
        %v4471 = vshrl.u32 %v4470, 7
        %v4472 = vsub.s32 %v4469, %v4471
        %v4473 = vrot.slane %v4445, %v4472
        %v4474 = vcombine.high %v4452, %v4452
        %v4475 = vcombine.high %v4459, %v4459
        %v4476 = vcombine.high %v4466, %v4466
        %v4477 = vcombine.high %v4473, %v4473
        %v4478 = vcombine.high %v273, %v273
        %v4480 = vunpack.c.l.s4 1966171168
        %v4481 = vunpack.c.0.s8 %v4480
        %v4482 = vlaneseq
        %v4483 = vshrl.u32 %v4482, 7
        %v4484 = vsub.s32 %v4481, %v4483
        %v4485 = vrot.slane %v273, %v4484
        %v4487 = vunpack.c.l.s4 1966171168
        %v4488 = vunpack.c.0.s8 %v4487
        %v4489 = vlaneseq
        %v4490 = vshrl.u32 %v4489, 7
        %v4491 = vsub.s32 %v4488, %v4490
        %v4492 = vrot.slane %v4478, %v4491
        %v4493 = vcombine.high %v4485, %v4485
        %v4494 = vcombine.high %v4492, %v4492
        %v4496 = vunpack.c.l.s4 1966171168
        %v4497 = vunpack.c.0.s8 %v4496
        %v4498 = vlaneseq
        %v4499 = vshrl.u32 %v4498, 7
        %v4500 = vsub.s32 %v4497, %v4499
        %v4501 = vrot.slane %v4485, %v4500
        %v4503 = vunpack.c.l.s4 1966171168
        %v4504 = vunpack.c.0.s8 %v4503
        %v4505 = vlaneseq
        %v4506 = vshrl.u32 %v4505, 7
        %v4507 = vsub.s32 %v4504, %v4506
        %v4508 = vrot.slane %v4492, %v4507
        %v4510 = vunpack.c.l.s4 1966171168
        %v4511 = vunpack.c.0.s8 %v4510
        %v4512 = vlaneseq
        %v4513 = vshrl.u32 %v4512, 7
        %v4514 = vsub.s32 %v4511, %v4513
        %v4515 = vrot.slane %v4493, %v4514
        %v4517 = vunpack.c.l.s4 1966171168
        %v4518 = vunpack.c.0.s8 %v4517
        %v4519 = vlaneseq
        %v4520 = vshrl.u32 %v4519, 7
        %v4521 = vsub.s32 %v4518, %v4520
        %v4522 = vrot.slane %v4494, %v4521
        %v4523 = vcombine.high %v4501, %v4501
        %v4524 = vcombine.high %v4508, %v4508
        %v4525 = vcombine.high %v4515, %v4515
        %v4526 = vcombine.high %v4522, %v4522
        %v4527 = vlaneseq
        %v4528 = vshrl.u32 %v4527, 7
        %v4529 = vsub.s32 0, %v4528
        %v4530 = vrot.slane %v4452, %v4529
        %v4531 = vlaneseq
        %v4532 = vshrl.u32 %v4531, 7
        %v4533 = vsub.s32 0, %v4532
        %v4534 = vrot.slane %v4466, %v4533
        %v4535 = vlaneseq
        %v4536 = vshrl.u32 %v4535, 7
        %v4537 = vsub.s32 0, %v4536
        %v4538 = vrot.slane %v4474, %v4537
        %v4539 = vlaneseq
        %v4540 = vshrl.u32 %v4539, 7
        %v4541 = vsub.s32 0, %v4540
        %v4542 = vrot.slane %v4476, %v4541
        %v4543 = vlaneseq
        %v4544 = vshrl.u32 %v4543, 7
        %v4545 = vsub.s32 0, %v4544
        %v4546 = vrot.slane %v4459, %v4545
        %v4547 = vlaneseq
        %v4548 = vshrl.u32 %v4547, 7
        %v4549 = vsub.s32 0, %v4548
        %v4550 = vrot.slane %v4473, %v4549
        %v4551 = vlaneseq
        %v4552 = vshrl.u32 %v4551, 7
        %v4553 = vsub.s32 0, %v4552
        %v4554 = vrot.slane %v4475, %v4553
        %v4555 = vlaneseq
        %v4556 = vshrl.u32 %v4555, 7
        %v4557 = vsub.s32 0, %v4556
        %v4558 = vrot.slane %v4477, %v4557
        %v4559 = vlaneseq
        %v4560 = vshrl.u32 %v4559, 7
        %v4561 = vsub.s32 0, %v4560
        %v4562 = vrot.slane %v4501, %v4561
        %v4563 = vlaneseq
        %v4564 = vshrl.u32 %v4563, 7
        %v4565 = vsub.s32 0, %v4564
        %v4566 = vrot.slane %v4515, %v4565
        %v4567 = vlaneseq
        %v4568 = vshrl.u32 %v4567, 7
        %v4569 = vsub.s32 0, %v4568
        %v4570 = vrot.slane %v4523, %v4569
        %v4571 = vlaneseq
        %v4572 = vshrl.u32 %v4571, 7
        %v4573 = vsub.s32 0, %v4572
        %v4574 = vrot.slane %v4525, %v4573
        %v4575 = vlaneseq
        %v4576 = vshrl.u32 %v4575, 7
        %v4577 = vsub.s32 0, %v4576
        %v4578 = vrot.slane %v4508, %v4577
        %v4579 = vlaneseq
        %v4580 = vshrl.u32 %v4579, 7
        %v4581 = vsub.s32 0, %v4580
        %v4582 = vrot.slane %v4522, %v4581
        %v4583 = vlaneseq
        %v4584 = vshrl.u32 %v4583, 7
        %v4585 = vsub.s32 0, %v4584
        %v4586 = vrot.slane %v4524, %v4585
        %v4587 = vlaneseq
        %v4588 = vshrl.u32 %v4587, 7
        %v4589 = vsub.s32 0, %v4588
        %v4590 = vrot.slane %v4526, %v4589
        %v4607 = vmul.f32 %v4530, %v221
        %v4608 = vmul.f32 %v4534, %v221
        %v4609 = vmul.f32 %v4538, %v221
        %v4610 = vmul.f32 %v4542, %v221
        %v4611 = vmul.f32 %v4546, %v221
        %v4612 = vmul.f32 %v4550, %v221
        %v4613 = vmul.f32 %v4554, %v221
        %v4614 = vmul.f32 %v4558, %v221
        %v4615 = vmul.f32 %v4562, %v221
        %v4616 = vmul.f32 %v4566, %v221
        %v4617 = vmul.f32 %v4570, %v221
        %v4618 = vmul.f32 %v4574, %v221
        %v4619 = vmul.f32 %v4578, %v221
        %v4620 = vmul.f32 %v4582, %v221
        %v4621 = vmul.f32 %v4586, %v221
        %v4622 = vmul.f32 %v4590, %v221
        %v4623 = vadd.f32 %v4405, %v4607
        %v4624 = vadd.f32 %v4406, %v4608
        %v4625 = vadd.f32 %v4407, %v4609
        %v4626 = vadd.f32 %v4408, %v4610
        %v4627 = vadd.f32 %v4409, %v4611
        %v4628 = vadd.f32 %v4410, %v4612
        %v4629 = vadd.f32 %v4411, %v4613
        %v4630 = vadd.f32 %v4412, %v4614
        %v4631 = vadd.f32 %v4413, %v4615
        %v4632 = vadd.f32 %v4414, %v4616
        %v4633 = vadd.f32 %v4415, %v4617
        %v4634 = vadd.f32 %v4416, %v4618
        %v4635 = vadd.f32 %v4417, %v4619
        %v4636 = vadd.f32 %v4418, %v4620
        %v4637 = vadd.f32 %v4419, %v4621
        %v4638 = vadd.f32 %v4420, %v4622
        %v4639 = vmul.f32 %v222, %v222
        %v4640 = vadd.f32 %v4422, %v4639
        %v4641 = vmul.f32 %v274, %v274
        %v4642 = vmul.f32 %v275, %v275
        %v4643 = vadd.f32 %v4425, %v4641
        %v4644 = vadd.f32 %v4426, %v4642
        %v4647 = vcombine.high %v274, %v274
        %v4649 = vunpack.c.l.s4 1966171168
        %v4650 = vunpack.c.0.s8 %v4649
        %v4651 = vlaneseq
        %v4652 = vshrl.u32 %v4651, 7
        %v4653 = vsub.s32 %v4650, %v4652
        %v4654 = vrot.slane %v274, %v4653
        %v4656 = vunpack.c.l.s4 1966171168
        %v4657 = vunpack.c.0.s8 %v4656
        %v4658 = vlaneseq
        %v4659 = vshrl.u32 %v4658, 7
        %v4660 = vsub.s32 %v4657, %v4659
        %v4661 = vrot.slane %v4647, %v4660
        %v4662 = vcombine.high %v4654, %v4654
        %v4663 = vcombine.high %v4661, %v4661
        %v4665 = vunpack.c.l.s4 1966171168
        %v4666 = vunpack.c.0.s8 %v4665
        %v4667 = vlaneseq
        %v4668 = vshrl.u32 %v4667, 7
        %v4669 = vsub.s32 %v4666, %v4668
        %v4670 = vrot.slane %v4654, %v4669
        %v4672 = vunpack.c.l.s4 1966171168
        %v4673 = vunpack.c.0.s8 %v4672
        %v4674 = vlaneseq
        %v4675 = vshrl.u32 %v4674, 7
        %v4676 = vsub.s32 %v4673, %v4675
        %v4677 = vrot.slane %v4661, %v4676
        %v4679 = vunpack.c.l.s4 1966171168
        %v4680 = vunpack.c.0.s8 %v4679
        %v4681 = vlaneseq
        %v4682 = vshrl.u32 %v4681, 7
        %v4683 = vsub.s32 %v4680, %v4682
        %v4684 = vrot.slane %v4662, %v4683
        %v4686 = vunpack.c.l.s4 1966171168
        %v4687 = vunpack.c.0.s8 %v4686
        %v4688 = vlaneseq
        %v4689 = vshrl.u32 %v4688, 7
        %v4690 = vsub.s32 %v4687, %v4689
        %v4691 = vrot.slane %v4663, %v4690
        %v4692 = vcombine.high %v4670, %v4670
        %v4693 = vcombine.high %v4677, %v4677
        %v4694 = vcombine.high %v4684, %v4684
        %v4695 = vcombine.high %v4691, %v4691
        %v4696 = vcombine.high %v275, %v275
        %v4698 = vunpack.c.l.s4 1966171168
        %v4699 = vunpack.c.0.s8 %v4698
        %v4700 = vlaneseq
        %v4701 = vshrl.u32 %v4700, 7
        %v4702 = vsub.s32 %v4699, %v4701
        %v4703 = vrot.slane %v275, %v4702
        %v4705 = vunpack.c.l.s4 1966171168
        %v4706 = vunpack.c.0.s8 %v4705
        %v4707 = vlaneseq
        %v4708 = vshrl.u32 %v4707, 7
        %v4709 = vsub.s32 %v4706, %v4708
        %v4710 = vrot.slane %v4696, %v4709
        %v4711 = vcombine.high %v4703, %v4703
        %v4712 = vcombine.high %v4710, %v4710
        %v4714 = vunpack.c.l.s4 1966171168
        %v4715 = vunpack.c.0.s8 %v4714
        %v4716 = vlaneseq
        %v4717 = vshrl.u32 %v4716, 7
        %v4718 = vsub.s32 %v4715, %v4717
        %v4719 = vrot.slane %v4703, %v4718
        %v4721 = vunpack.c.l.s4 1966171168
        %v4722 = vunpack.c.0.s8 %v4721
        %v4723 = vlaneseq
        %v4724 = vshrl.u32 %v4723, 7
        %v4725 = vsub.s32 %v4722, %v4724
        %v4726 = vrot.slane %v4710, %v4725
        %v4728 = vunpack.c.l.s4 1966171168
        %v4729 = vunpack.c.0.s8 %v4728
        %v4730 = vlaneseq
        %v4731 = vshrl.u32 %v4730, 7
        %v4732 = vsub.s32 %v4729, %v4731
        %v4733 = vrot.slane %v4711, %v4732
        %v4735 = vunpack.c.l.s4 1966171168
        %v4736 = vunpack.c.0.s8 %v4735
        %v4737 = vlaneseq
        %v4738 = vshrl.u32 %v4737, 7
        %v4739 = vsub.s32 %v4736, %v4738
        %v4740 = vrot.slane %v4712, %v4739
        %v4741 = vcombine.high %v4719, %v4719
        %v4742 = vcombine.high %v4726, %v4726
        %v4743 = vcombine.high %v4733, %v4733
        %v4744 = vcombine.high %v4740, %v4740
        %v4745 = vlaneseq
        %v4746 = vshrl.u32 %v4745, 7
        %v4747 = vsub.s32 0, %v4746
        %v4748 = vrot.slane %v4670, %v4747
        %v4749 = vlaneseq
        %v4750 = vshrl.u32 %v4749, 7
        %v4751 = vsub.s32 0, %v4750
        %v4752 = vrot.slane %v4684, %v4751
        %v4753 = vlaneseq
        %v4754 = vshrl.u32 %v4753, 7
        %v4755 = vsub.s32 0, %v4754
        %v4756 = vrot.slane %v4692, %v4755
        %v4757 = vlaneseq
        %v4758 = vshrl.u32 %v4757, 7
        %v4759 = vsub.s32 0, %v4758
        %v4760 = vrot.slane %v4694, %v4759
        %v4761 = vlaneseq
        %v4762 = vshrl.u32 %v4761, 7
        %v4763 = vsub.s32 0, %v4762
        %v4764 = vrot.slane %v4677, %v4763
        %v4765 = vlaneseq
        %v4766 = vshrl.u32 %v4765, 7
        %v4767 = vsub.s32 0, %v4766
        %v4768 = vrot.slane %v4691, %v4767
        %v4769 = vlaneseq
        %v4770 = vshrl.u32 %v4769, 7
        %v4771 = vsub.s32 0, %v4770
        %v4772 = vrot.slane %v4693, %v4771
        %v4773 = vlaneseq
        %v4774 = vshrl.u32 %v4773, 7
        %v4775 = vsub.s32 0, %v4774
        %v4776 = vrot.slane %v4695, %v4775
        %v4777 = vlaneseq
        %v4778 = vshrl.u32 %v4777, 7
        %v4779 = vsub.s32 0, %v4778
        %v4780 = vrot.slane %v4719, %v4779
        %v4781 = vlaneseq
        %v4782 = vshrl.u32 %v4781, 7
        %v4783 = vsub.s32 0, %v4782
        %v4784 = vrot.slane %v4733, %v4783
        %v4785 = vlaneseq
        %v4786 = vshrl.u32 %v4785, 7
        %v4787 = vsub.s32 0, %v4786
        %v4788 = vrot.slane %v4741, %v4787
        %v4789 = vlaneseq
        %v4790 = vshrl.u32 %v4789, 7
        %v4791 = vsub.s32 0, %v4790
        %v4792 = vrot.slane %v4743, %v4791
        %v4793 = vlaneseq
        %v4794 = vshrl.u32 %v4793, 7
        %v4795 = vsub.s32 0, %v4794
        %v4796 = vrot.slane %v4726, %v4795
        %v4797 = vlaneseq
        %v4798 = vshrl.u32 %v4797, 7
        %v4799 = vsub.s32 0, %v4798
        %v4800 = vrot.slane %v4740, %v4799
        %v4801 = vlaneseq
        %v4802 = vshrl.u32 %v4801, 7
        %v4803 = vsub.s32 0, %v4802
        %v4804 = vrot.slane %v4742, %v4803
        %v4805 = vlaneseq
        %v4806 = vshrl.u32 %v4805, 7
        %v4807 = vsub.s32 0, %v4806
        %v4808 = vrot.slane %v4744, %v4807
        %v4825 = vmul.f32 %v4748, %v222
        %v4826 = vmul.f32 %v4752, %v222
        %v4827 = vmul.f32 %v4756, %v222
        %v4828 = vmul.f32 %v4760, %v222
        %v4829 = vmul.f32 %v4764, %v222
        %v4830 = vmul.f32 %v4768, %v222
        %v4831 = vmul.f32 %v4772, %v222
        %v4832 = vmul.f32 %v4776, %v222
        %v4833 = vmul.f32 %v4780, %v222
        %v4834 = vmul.f32 %v4784, %v222
        %v4835 = vmul.f32 %v4788, %v222
        %v4836 = vmul.f32 %v4792, %v222
        %v4837 = vmul.f32 %v4796, %v222
        %v4838 = vmul.f32 %v4800, %v222
        %v4839 = vmul.f32 %v4804, %v222
        %v4840 = vmul.f32 %v4808, %v222
        %v4841 = vadd.f32 %v4623, %v4825
        %v4842 = vadd.f32 %v4624, %v4826
        %v4843 = vadd.f32 %v4625, %v4827
        %v4844 = vadd.f32 %v4626, %v4828
        %v4845 = vadd.f32 %v4627, %v4829
        %v4846 = vadd.f32 %v4628, %v4830
        %v4847 = vadd.f32 %v4629, %v4831
        %v4848 = vadd.f32 %v4630, %v4832
        %v4849 = vadd.f32 %v4631, %v4833
        %v4850 = vadd.f32 %v4632, %v4834
        %v4851 = vadd.f32 %v4633, %v4835
        %v4852 = vadd.f32 %v4634, %v4836
        %v4853 = vadd.f32 %v4635, %v4837
        %v4854 = vadd.f32 %v4636, %v4838
        %v4855 = vadd.f32 %v4637, %v4839
        %v4856 = vadd.f32 %v4638, %v4840
        %v4857 = vmul.f32 %v223, %v223
        %v4858 = vadd.f32 %v4640, %v4857
        %v4859 = vmul.f32 %v276, %v276
        %v4860 = vmul.f32 %v277, %v277
        %v4861 = vadd.f32 %v4643, %v4859
        %v4862 = vadd.f32 %v4644, %v4860
        %v4865 = vcombine.high %v276, %v276
        %v4867 = vunpack.c.l.s4 1966171168
        %v4868 = vunpack.c.0.s8 %v4867
        %v4869 = vlaneseq
        %v4870 = vshrl.u32 %v4869, 7
        %v4871 = vsub.s32 %v4868, %v4870
        %v4872 = vrot.slane %v276, %v4871
        %v4874 = vunpack.c.l.s4 1966171168
        %v4875 = vunpack.c.0.s8 %v4874
        %v4876 = vlaneseq
        %v4877 = vshrl.u32 %v4876, 7
        %v4878 = vsub.s32 %v4875, %v4877
        %v4879 = vrot.slane %v4865, %v4878
        %v4880 = vcombine.high %v4872, %v4872
        %v4881 = vcombine.high %v4879, %v4879
        %v4883 = vunpack.c.l.s4 1966171168
        %v4884 = vunpack.c.0.s8 %v4883
        %v4885 = vlaneseq
        %v4886 = vshrl.u32 %v4885, 7
        %v4887 = vsub.s32 %v4884, %v4886
        %v4888 = vrot.slane %v4872, %v4887
        %v4890 = vunpack.c.l.s4 1966171168
        %v4891 = vunpack.c.0.s8 %v4890
        %v4892 = vlaneseq
        %v4893 = vshrl.u32 %v4892, 7
        %v4894 = vsub.s32 %v4891, %v4893
        %v4895 = vrot.slane %v4879, %v4894
        %v4897 = vunpack.c.l.s4 1966171168
        %v4898 = vunpack.c.0.s8 %v4897
        %v4899 = vlaneseq
        %v4900 = vshrl.u32 %v4899, 7
        %v4901 = vsub.s32 %v4898, %v4900
        %v4902 = vrot.slane %v4880, %v4901
        %v4904 = vunpack.c.l.s4 1966171168
        %v4905 = vunpack.c.0.s8 %v4904
        %v4906 = vlaneseq
        %v4907 = vshrl.u32 %v4906, 7
        %v4908 = vsub.s32 %v4905, %v4907
        %v4909 = vrot.slane %v4881, %v4908
        %v4910 = vcombine.high %v4888, %v4888
        %v4911 = vcombine.high %v4895, %v4895
        %v4912 = vcombine.high %v4902, %v4902
        %v4913 = vcombine.high %v4909, %v4909
        %v4914 = vcombine.high %v277, %v277
        %v4916 = vunpack.c.l.s4 1966171168
        %v4917 = vunpack.c.0.s8 %v4916
        %v4918 = vlaneseq
        %v4919 = vshrl.u32 %v4918, 7
        %v4920 = vsub.s32 %v4917, %v4919
        %v4921 = vrot.slane %v277, %v4920
        %v4923 = vunpack.c.l.s4 1966171168
        %v4924 = vunpack.c.0.s8 %v4923
        %v4925 = vlaneseq
        %v4926 = vshrl.u32 %v4925, 7
        %v4927 = vsub.s32 %v4924, %v4926
        %v4928 = vrot.slane %v4914, %v4927
        %v4929 = vcombine.high %v4921, %v4921
        %v4930 = vcombine.high %v4928, %v4928
        %v4932 = vunpack.c.l.s4 1966171168
        %v4933 = vunpack.c.0.s8 %v4932
        %v4934 = vlaneseq
        %v4935 = vshrl.u32 %v4934, 7
        %v4936 = vsub.s32 %v4933, %v4935
        %v4937 = vrot.slane %v4921, %v4936
        %v4939 = vunpack.c.l.s4 1966171168
        %v4940 = vunpack.c.0.s8 %v4939
        %v4941 = vlaneseq
        %v4942 = vshrl.u32 %v4941, 7
        %v4943 = vsub.s32 %v4940, %v4942
        %v4944 = vrot.slane %v4928, %v4943
        %v4946 = vunpack.c.l.s4 1966171168
        %v4947 = vunpack.c.0.s8 %v4946
        %v4948 = vlaneseq
        %v4949 = vshrl.u32 %v4948, 7
        %v4950 = vsub.s32 %v4947, %v4949
        %v4951 = vrot.slane %v4929, %v4950
        %v4953 = vunpack.c.l.s4 1966171168
        %v4954 = vunpack.c.0.s8 %v4953
        %v4955 = vlaneseq
        %v4956 = vshrl.u32 %v4955, 7
        %v4957 = vsub.s32 %v4954, %v4956
        %v4958 = vrot.slane %v4930, %v4957
        %v4959 = vcombine.high %v4937, %v4937
        %v4960 = vcombine.high %v4944, %v4944
        %v4961 = vcombine.high %v4951, %v4951
        %v4962 = vcombine.high %v4958, %v4958
        %v4963 = vlaneseq
        %v4964 = vshrl.u32 %v4963, 7
        %v4965 = vsub.s32 0, %v4964
        %v4966 = vrot.slane %v4888, %v4965
        %v4967 = vlaneseq
        %v4968 = vshrl.u32 %v4967, 7
        %v4969 = vsub.s32 0, %v4968
        %v4970 = vrot.slane %v4902, %v4969
        %v4971 = vlaneseq
        %v4972 = vshrl.u32 %v4971, 7
        %v4973 = vsub.s32 0, %v4972
        %v4974 = vrot.slane %v4910, %v4973
        %v4975 = vlaneseq
        %v4976 = vshrl.u32 %v4975, 7
        %v4977 = vsub.s32 0, %v4976
        %v4978 = vrot.slane %v4912, %v4977
        %v4979 = vlaneseq
        %v4980 = vshrl.u32 %v4979, 7
        %v4981 = vsub.s32 0, %v4980
        %v4982 = vrot.slane %v4895, %v4981
        %v4983 = vlaneseq
        %v4984 = vshrl.u32 %v4983, 7
        %v4985 = vsub.s32 0, %v4984
        %v4986 = vrot.slane %v4909, %v4985
        %v4987 = vlaneseq
        %v4988 = vshrl.u32 %v4987, 7
        %v4989 = vsub.s32 0, %v4988
        %v4990 = vrot.slane %v4911, %v4989
        %v4991 = vlaneseq
        %v4992 = vshrl.u32 %v4991, 7
        %v4993 = vsub.s32 0, %v4992
        %v4994 = vrot.slane %v4913, %v4993
        %v4995 = vlaneseq
        %v4996 = vshrl.u32 %v4995, 7
        %v4997 = vsub.s32 0, %v4996
        %v4998 = vrot.slane %v4937, %v4997
        %v4999 = vlaneseq
        %v5000 = vshrl.u32 %v4999, 7
        %v5001 = vsub.s32 0, %v5000
        %v5002 = vrot.slane %v4951, %v5001
        %v5003 = vlaneseq
        %v5004 = vshrl.u32 %v5003, 7
        %v5005 = vsub.s32 0, %v5004
        %v5006 = vrot.slane %v4959, %v5005
        %v5007 = vlaneseq
        %v5008 = vshrl.u32 %v5007, 7
        %v5009 = vsub.s32 0, %v5008
        %v5010 = vrot.slane %v4961, %v5009
        %v5011 = vlaneseq
        %v5012 = vshrl.u32 %v5011, 7
        %v5013 = vsub.s32 0, %v5012
        %v5014 = vrot.slane %v4944, %v5013
        %v5015 = vlaneseq
        %v5016 = vshrl.u32 %v5015, 7
        %v5017 = vsub.s32 0, %v5016
        %v5018 = vrot.slane %v4958, %v5017
        %v5019 = vlaneseq
        %v5020 = vshrl.u32 %v5019, 7
        %v5021 = vsub.s32 0, %v5020
        %v5022 = vrot.slane %v4960, %v5021
        %v5023 = vlaneseq
        %v5024 = vshrl.u32 %v5023, 7
        %v5025 = vsub.s32 0, %v5024
        %v5026 = vrot.slane %v4962, %v5025
        %v5043 = vmul.f32 %v4966, %v223
        %v5044 = vmul.f32 %v4970, %v223
        %v5045 = vmul.f32 %v4974, %v223
        %v5046 = vmul.f32 %v4978, %v223
        %v5047 = vmul.f32 %v4982, %v223
        %v5048 = vmul.f32 %v4986, %v223
        %v5049 = vmul.f32 %v4990, %v223
        %v5050 = vmul.f32 %v4994, %v223
        %v5051 = vmul.f32 %v4998, %v223
        %v5052 = vmul.f32 %v5002, %v223
        %v5053 = vmul.f32 %v5006, %v223
        %v5054 = vmul.f32 %v5010, %v223
        %v5055 = vmul.f32 %v5014, %v223
        %v5056 = vmul.f32 %v5018, %v223
        %v5057 = vmul.f32 %v5022, %v223
        %v5058 = vmul.f32 %v5026, %v223
        %v5059 = vadd.f32 %v4841, %v5043
        %v5060 = vadd.f32 %v4842, %v5044
        %v5061 = vadd.f32 %v4843, %v5045
        %v5062 = vadd.f32 %v4844, %v5046
        %v5063 = vadd.f32 %v4845, %v5047
        %v5064 = vadd.f32 %v4846, %v5048
        %v5065 = vadd.f32 %v4847, %v5049
        %v5066 = vadd.f32 %v4848, %v5050
        %v5067 = vadd.f32 %v4849, %v5051
        %v5068 = vadd.f32 %v4850, %v5052
        %v5069 = vadd.f32 %v4851, %v5053
        %v5070 = vadd.f32 %v4852, %v5054
        %v5071 = vadd.f32 %v4853, %v5055
        %v5072 = vadd.f32 %v4854, %v5056
        %v5073 = vadd.f32 %v4855, %v5057
        %v5074 = vadd.f32 %v4856, %v5058
        %v5075 = vmul.f32 %v224, %v224
        %v5076 = vadd.f32 %v4858, %v5075
        %v5077 = vmul.f32 %v278, %v278
        %v5078 = vmul.f32 %v279, %v279
        %v5079 = vadd.f32 %v4861, %v5077
        %v5080 = vadd.f32 %v4862, %v5078
        %v5083 = vcombine.high %v278, %v278
        %v5085 = vunpack.c.l.s4 1966171168
        %v5086 = vunpack.c.0.s8 %v5085
        %v5087 = vlaneseq
        %v5088 = vshrl.u32 %v5087, 7
        %v5089 = vsub.s32 %v5086, %v5088
        %v5090 = vrot.slane %v278, %v5089
        %v5092 = vunpack.c.l.s4 1966171168
        %v5093 = vunpack.c.0.s8 %v5092
        %v5094 = vlaneseq
        %v5095 = vshrl.u32 %v5094, 7
        %v5096 = vsub.s32 %v5093, %v5095
        %v5097 = vrot.slane %v5083, %v5096
        %v5098 = vcombine.high %v5090, %v5090
        %v5099 = vcombine.high %v5097, %v5097
        %v5101 = vunpack.c.l.s4 1966171168
        %v5102 = vunpack.c.0.s8 %v5101
        %v5103 = vlaneseq
        %v5104 = vshrl.u32 %v5103, 7
        %v5105 = vsub.s32 %v5102, %v5104
        %v5106 = vrot.slane %v5090, %v5105
        %v5108 = vunpack.c.l.s4 1966171168
        %v5109 = vunpack.c.0.s8 %v5108
        %v5110 = vlaneseq
        %v5111 = vshrl.u32 %v5110, 7
        %v5112 = vsub.s32 %v5109, %v5111
        %v5113 = vrot.slane %v5097, %v5112
        %v5115 = vunpack.c.l.s4 1966171168
        %v5116 = vunpack.c.0.s8 %v5115
        %v5117 = vlaneseq
        %v5118 = vshrl.u32 %v5117, 7
        %v5119 = vsub.s32 %v5116, %v5118
        %v5120 = vrot.slane %v5098, %v5119
        %v5122 = vunpack.c.l.s4 1966171168
        %v5123 = vunpack.c.0.s8 %v5122
        %v5124 = vlaneseq
        %v5125 = vshrl.u32 %v5124, 7
        %v5126 = vsub.s32 %v5123, %v5125
        %v5127 = vrot.slane %v5099, %v5126
        %v5128 = vcombine.high %v5106, %v5106
        %v5129 = vcombine.high %v5113, %v5113
        %v5130 = vcombine.high %v5120, %v5120
        %v5131 = vcombine.high %v5127, %v5127
        %v5132 = vcombine.high %v279, %v279
        %v5134 = vunpack.c.l.s4 1966171168
        %v5135 = vunpack.c.0.s8 %v5134
        %v5136 = vlaneseq
        %v5137 = vshrl.u32 %v5136, 7
        %v5138 = vsub.s32 %v5135, %v5137
        %v5139 = vrot.slane %v279, %v5138
        %v5141 = vunpack.c.l.s4 1966171168
        %v5142 = vunpack.c.0.s8 %v5141
        %v5143 = vlaneseq
        %v5144 = vshrl.u32 %v5143, 7
        %v5145 = vsub.s32 %v5142, %v5144
        %v5146 = vrot.slane %v5132, %v5145
        %v5147 = vcombine.high %v5139, %v5139
        %v5148 = vcombine.high %v5146, %v5146
        %v5150 = vunpack.c.l.s4 1966171168
        %v5151 = vunpack.c.0.s8 %v5150
        %v5152 = vlaneseq
        %v5153 = vshrl.u32 %v5152, 7
        %v5154 = vsub.s32 %v5151, %v5153
        %v5155 = vrot.slane %v5139, %v5154
        %v5157 = vunpack.c.l.s4 1966171168
        %v5158 = vunpack.c.0.s8 %v5157
        %v5159 = vlaneseq
        %v5160 = vshrl.u32 %v5159, 7
        %v5161 = vsub.s32 %v5158, %v5160
        %v5162 = vrot.slane %v5146, %v5161
        %v5164 = vunpack.c.l.s4 1966171168
        %v5165 = vunpack.c.0.s8 %v5164
        %v5166 = vlaneseq
        %v5167 = vshrl.u32 %v5166, 7
        %v5168 = vsub.s32 %v5165, %v5167
        %v5169 = vrot.slane %v5147, %v5168
        %v5171 = vunpack.c.l.s4 1966171168
        %v5172 = vunpack.c.0.s8 %v5171
        %v5173 = vlaneseq
        %v5174 = vshrl.u32 %v5173, 7
        %v5175 = vsub.s32 %v5172, %v5174
        %v5176 = vrot.slane %v5148, %v5175
        %v5177 = vcombine.high %v5155, %v5155
        %v5178 = vcombine.high %v5162, %v5162
        %v5179 = vcombine.high %v5169, %v5169
        %v5180 = vcombine.high %v5176, %v5176
        %v5181 = vlaneseq
        %v5182 = vshrl.u32 %v5181, 7
        %v5183 = vsub.s32 0, %v5182
        %v5184 = vrot.slane %v5106, %v5183
        %v5185 = vlaneseq
        %v5186 = vshrl.u32 %v5185, 7
        %v5187 = vsub.s32 0, %v5186
        %v5188 = vrot.slane %v5120, %v5187
        %v5189 = vlaneseq
        %v5190 = vshrl.u32 %v5189, 7
        %v5191 = vsub.s32 0, %v5190
        %v5192 = vrot.slane %v5128, %v5191
        %v5193 = vlaneseq
        %v5194 = vshrl.u32 %v5193, 7
        %v5195 = vsub.s32 0, %v5194
        %v5196 = vrot.slane %v5130, %v5195
        %v5197 = vlaneseq
        %v5198 = vshrl.u32 %v5197, 7
        %v5199 = vsub.s32 0, %v5198
        %v5200 = vrot.slane %v5113, %v5199
        %v5201 = vlaneseq
        %v5202 = vshrl.u32 %v5201, 7
        %v5203 = vsub.s32 0, %v5202
        %v5204 = vrot.slane %v5127, %v5203
        %v5205 = vlaneseq
        %v5206 = vshrl.u32 %v5205, 7
        %v5207 = vsub.s32 0, %v5206
        %v5208 = vrot.slane %v5129, %v5207
        %v5209 = vlaneseq
        %v5210 = vshrl.u32 %v5209, 7
        %v5211 = vsub.s32 0, %v5210
        %v5212 = vrot.slane %v5131, %v5211
        %v5213 = vlaneseq
        %v5214 = vshrl.u32 %v5213, 7
        %v5215 = vsub.s32 0, %v5214
        %v5216 = vrot.slane %v5155, %v5215
        %v5217 = vlaneseq
        %v5218 = vshrl.u32 %v5217, 7
        %v5219 = vsub.s32 0, %v5218
        %v5220 = vrot.slane %v5169, %v5219
        %v5221 = vlaneseq
        %v5222 = vshrl.u32 %v5221, 7
        %v5223 = vsub.s32 0, %v5222
        %v5224 = vrot.slane %v5177, %v5223
        %v5225 = vlaneseq
        %v5226 = vshrl.u32 %v5225, 7
        %v5227 = vsub.s32 0, %v5226
        %v5228 = vrot.slane %v5179, %v5227
        %v5229 = vlaneseq
        %v5230 = vshrl.u32 %v5229, 7
        %v5231 = vsub.s32 0, %v5230
        %v5232 = vrot.slane %v5162, %v5231
        %v5233 = vlaneseq
        %v5234 = vshrl.u32 %v5233, 7
        %v5235 = vsub.s32 0, %v5234
        %v5236 = vrot.slane %v5176, %v5235
        %v5237 = vlaneseq
        %v5238 = vshrl.u32 %v5237, 7
        %v5239 = vsub.s32 0, %v5238
        %v5240 = vrot.slane %v5178, %v5239
        %v5241 = vlaneseq
        %v5242 = vshrl.u32 %v5241, 7
        %v5243 = vsub.s32 0, %v5242
        %v5244 = vrot.slane %v5180, %v5243
        %v5261 = vmul.f32 %v5184, %v224
        %v5262 = vmul.f32 %v5188, %v224
        %v5263 = vmul.f32 %v5192, %v224
        %v5264 = vmul.f32 %v5196, %v224
        %v5265 = vmul.f32 %v5200, %v224
        %v5266 = vmul.f32 %v5204, %v224
        %v5267 = vmul.f32 %v5208, %v224
        %v5268 = vmul.f32 %v5212, %v224
        %v5269 = vmul.f32 %v5216, %v224
        %v5270 = vmul.f32 %v5220, %v224
        %v5271 = vmul.f32 %v5224, %v224
        %v5272 = vmul.f32 %v5228, %v224
        %v5273 = vmul.f32 %v5232, %v224
        %v5274 = vmul.f32 %v5236, %v224
        %v5275 = vmul.f32 %v5240, %v224
        %v5276 = vmul.f32 %v5244, %v224
        %v5277 = vadd.f32 %v5059, %v5261
        %v5278 = vadd.f32 %v5060, %v5262
        %v5279 = vadd.f32 %v5061, %v5263
        %v5280 = vadd.f32 %v5062, %v5264
        %v5281 = vadd.f32 %v5063, %v5265
        %v5282 = vadd.f32 %v5064, %v5266
        %v5283 = vadd.f32 %v5065, %v5267
        %v5284 = vadd.f32 %v5066, %v5268
        %v5285 = vadd.f32 %v5067, %v5269
        %v5286 = vadd.f32 %v5068, %v5270
        %v5287 = vadd.f32 %v5069, %v5271
        %v5288 = vadd.f32 %v5070, %v5272
        %v5289 = vadd.f32 %v5071, %v5273
        %v5290 = vadd.f32 %v5072, %v5274
        %v5291 = vadd.f32 %v5073, %v5275
        %v5292 = vadd.f32 %v5074, %v5276
        %v5293 = vmul.f32 %v225, %v225
        %v5294 = vadd.f32 %v5076, %v5293
        %v5295 = vmul.f32 %v280, %v280
        %v5296 = vmul.f32 %v281, %v281
        %v5297 = vadd.f32 %v5079, %v5295
        %v5298 = vadd.f32 %v5080, %v5296
        %v5301 = vcombine.high %v280, %v280
        %v5303 = vunpack.c.l.s4 1966171168
        %v5304 = vunpack.c.0.s8 %v5303
        %v5305 = vlaneseq
        %v5306 = vshrl.u32 %v5305, 7
        %v5307 = vsub.s32 %v5304, %v5306
        %v5308 = vrot.slane %v280, %v5307
        %v5310 = vunpack.c.l.s4 1966171168
        %v5311 = vunpack.c.0.s8 %v5310
        %v5312 = vlaneseq
        %v5313 = vshrl.u32 %v5312, 7
        %v5314 = vsub.s32 %v5311, %v5313
        %v5315 = vrot.slane %v5301, %v5314
        %v5316 = vcombine.high %v5308, %v5308
        %v5317 = vcombine.high %v5315, %v5315
        %v5319 = vunpack.c.l.s4 1966171168
        %v5320 = vunpack.c.0.s8 %v5319
        %v5321 = vlaneseq
        %v5322 = vshrl.u32 %v5321, 7
        %v5323 = vsub.s32 %v5320, %v5322
        %v5324 = vrot.slane %v5308, %v5323
        %v5326 = vunpack.c.l.s4 1966171168
        %v5327 = vunpack.c.0.s8 %v5326
        %v5328 = vlaneseq
        %v5329 = vshrl.u32 %v5328, 7
        %v5330 = vsub.s32 %v5327, %v5329
        %v5331 = vrot.slane %v5315, %v5330
        %v5333 = vunpack.c.l.s4 1966171168
        %v5334 = vunpack.c.0.s8 %v5333
        %v5335 = vlaneseq
        %v5336 = vshrl.u32 %v5335, 7
        %v5337 = vsub.s32 %v5334, %v5336
        %v5338 = vrot.slane %v5316, %v5337
        %v5340 = vunpack.c.l.s4 1966171168
        %v5341 = vunpack.c.0.s8 %v5340
        %v5342 = vlaneseq
        %v5343 = vshrl.u32 %v5342, 7
        %v5344 = vsub.s32 %v5341, %v5343
        %v5345 = vrot.slane %v5317, %v5344
        %v5346 = vcombine.high %v5324, %v5324
        %v5347 = vcombine.high %v5331, %v5331
        %v5348 = vcombine.high %v5338, %v5338
        %v5349 = vcombine.high %v5345, %v5345
        %v5350 = vcombine.high %v281, %v281
        %v5352 = vunpack.c.l.s4 1966171168
        %v5353 = vunpack.c.0.s8 %v5352
        %v5354 = vlaneseq
        %v5355 = vshrl.u32 %v5354, 7
        %v5356 = vsub.s32 %v5353, %v5355
        %v5357 = vrot.slane %v281, %v5356
        %v5359 = vunpack.c.l.s4 1966171168
        %v5360 = vunpack.c.0.s8 %v5359
        %v5361 = vlaneseq
        %v5362 = vshrl.u32 %v5361, 7
        %v5363 = vsub.s32 %v5360, %v5362
        %v5364 = vrot.slane %v5350, %v5363
        %v5365 = vcombine.high %v5357, %v5357
        %v5366 = vcombine.high %v5364, %v5364
        %v5368 = vunpack.c.l.s4 1966171168
        %v5369 = vunpack.c.0.s8 %v5368
        %v5370 = vlaneseq
        %v5371 = vshrl.u32 %v5370, 7
        %v5372 = vsub.s32 %v5369, %v5371
        %v5373 = vrot.slane %v5357, %v5372
        %v5375 = vunpack.c.l.s4 1966171168
        %v5376 = vunpack.c.0.s8 %v5375
        %v5377 = vlaneseq
        %v5378 = vshrl.u32 %v5377, 7
        %v5379 = vsub.s32 %v5376, %v5378
        %v5380 = vrot.slane %v5364, %v5379
        %v5382 = vunpack.c.l.s4 1966171168
        %v5383 = vunpack.c.0.s8 %v5382
        %v5384 = vlaneseq
        %v5385 = vshrl.u32 %v5384, 7
        %v5386 = vsub.s32 %v5383, %v5385
        %v5387 = vrot.slane %v5365, %v5386
        %v5389 = vunpack.c.l.s4 1966171168
        %v5390 = vunpack.c.0.s8 %v5389
        %v5391 = vlaneseq
        %v5392 = vshrl.u32 %v5391, 7
        %v5393 = vsub.s32 %v5390, %v5392
        %v5394 = vrot.slane %v5366, %v5393
        %v5395 = vcombine.high %v5373, %v5373
        %v5396 = vcombine.high %v5380, %v5380
        %v5397 = vcombine.high %v5387, %v5387
        %v5398 = vcombine.high %v5394, %v5394
        %v5399 = vlaneseq
        %v5400 = vshrl.u32 %v5399, 7
        %v5401 = vsub.s32 0, %v5400
        %v5402 = vrot.slane %v5324, %v5401
        %v5403 = vlaneseq
        %v5404 = vshrl.u32 %v5403, 7
        %v5405 = vsub.s32 0, %v5404
        %v5406 = vrot.slane %v5338, %v5405
        %v5407 = vlaneseq
        %v5408 = vshrl.u32 %v5407, 7
        %v5409 = vsub.s32 0, %v5408
        %v5410 = vrot.slane %v5346, %v5409
        %v5411 = vlaneseq
        %v5412 = vshrl.u32 %v5411, 7
        %v5413 = vsub.s32 0, %v5412
        %v5414 = vrot.slane %v5348, %v5413
        %v5415 = vlaneseq
        %v5416 = vshrl.u32 %v5415, 7
        %v5417 = vsub.s32 0, %v5416
        %v5418 = vrot.slane %v5331, %v5417
        %v5419 = vlaneseq
        %v5420 = vshrl.u32 %v5419, 7
        %v5421 = vsub.s32 0, %v5420
        %v5422 = vrot.slane %v5345, %v5421
        %v5423 = vlaneseq
        %v5424 = vshrl.u32 %v5423, 7
        %v5425 = vsub.s32 0, %v5424
        %v5426 = vrot.slane %v5347, %v5425
        %v5427 = vlaneseq
        %v5428 = vshrl.u32 %v5427, 7
        %v5429 = vsub.s32 0, %v5428
        %v5430 = vrot.slane %v5349, %v5429
        %v5431 = vlaneseq
        %v5432 = vshrl.u32 %v5431, 7
        %v5433 = vsub.s32 0, %v5432
        %v5434 = vrot.slane %v5373, %v5433
        %v5435 = vlaneseq
        %v5436 = vshrl.u32 %v5435, 7
        %v5437 = vsub.s32 0, %v5436
        %v5438 = vrot.slane %v5387, %v5437
        %v5439 = vlaneseq
        %v5440 = vshrl.u32 %v5439, 7
        %v5441 = vsub.s32 0, %v5440
        %v5442 = vrot.slane %v5395, %v5441
        %v5443 = vlaneseq
        %v5444 = vshrl.u32 %v5443, 7
        %v5445 = vsub.s32 0, %v5444
        %v5446 = vrot.slane %v5397, %v5445
        %v5447 = vlaneseq
        %v5448 = vshrl.u32 %v5447, 7
        %v5449 = vsub.s32 0, %v5448
        %v5450 = vrot.slane %v5380, %v5449
        %v5451 = vlaneseq
        %v5452 = vshrl.u32 %v5451, 7
        %v5453 = vsub.s32 0, %v5452
        %v5454 = vrot.slane %v5394, %v5453
        %v5455 = vlaneseq
        %v5456 = vshrl.u32 %v5455, 7
        %v5457 = vsub.s32 0, %v5456
        %v5458 = vrot.slane %v5396, %v5457
        %v5459 = vlaneseq
        %v5460 = vshrl.u32 %v5459, 7
        %v5461 = vsub.s32 0, %v5460
        %v5462 = vrot.slane %v5398, %v5461
        %v5479 = vmul.f32 %v5402, %v225
        %v5480 = vmul.f32 %v5406, %v225
        %v5481 = vmul.f32 %v5410, %v225
        %v5482 = vmul.f32 %v5414, %v225
        %v5483 = vmul.f32 %v5418, %v225
        %v5484 = vmul.f32 %v5422, %v225
        %v5485 = vmul.f32 %v5426, %v225
        %v5486 = vmul.f32 %v5430, %v225
        %v5487 = vmul.f32 %v5434, %v225
        %v5488 = vmul.f32 %v5438, %v225
        %v5489 = vmul.f32 %v5442, %v225
        %v5490 = vmul.f32 %v5446, %v225
        %v5491 = vmul.f32 %v5450, %v225
        %v5492 = vmul.f32 %v5454, %v225
        %v5493 = vmul.f32 %v5458, %v225
        %v5494 = vmul.f32 %v5462, %v225
        %v5495 = vadd.f32 %v5277, %v5479
        %v5496 = vadd.f32 %v5278, %v5480
        %v5497 = vadd.f32 %v5279, %v5481
        %v5498 = vadd.f32 %v5280, %v5482
        %v5499 = vadd.f32 %v5281, %v5483
        %v5500 = vadd.f32 %v5282, %v5484
        %v5501 = vadd.f32 %v5283, %v5485
        %v5502 = vadd.f32 %v5284, %v5486
        %v5503 = vadd.f32 %v5285, %v5487
        %v5504 = vadd.f32 %v5286, %v5488
        %v5505 = vadd.f32 %v5287, %v5489
        %v5506 = vadd.f32 %v5288, %v5490
        %v5507 = vadd.f32 %v5289, %v5491
        %v5508 = vadd.f32 %v5290, %v5492
        %v5509 = vadd.f32 %v5291, %v5493
        %v5510 = vadd.f32 %v5292, %v5494
        %v5511 = vmul.f32 %v226, %v226
        %v5512 = vadd.f32 %v5294, %v5511
        %v5513 = vmul.f32 %v282, %v282
        %v5514 = vmul.f32 %v283, %v283
        %v5515 = vadd.f32 %v5297, %v5513
        %v5516 = vadd.f32 %v5298, %v5514
        %v5519 = vcombine.high %v282, %v282
        %v5521 = vunpack.c.l.s4 1966171168
        %v5522 = vunpack.c.0.s8 %v5521
        %v5523 = vlaneseq
        %v5524 = vshrl.u32 %v5523, 7
        %v5525 = vsub.s32 %v5522, %v5524
        %v5526 = vrot.slane %v282, %v5525
        %v5528 = vunpack.c.l.s4 1966171168
        %v5529 = vunpack.c.0.s8 %v5528
        %v5530 = vlaneseq
        %v5531 = vshrl.u32 %v5530, 7
        %v5532 = vsub.s32 %v5529, %v5531
        %v5533 = vrot.slane %v5519, %v5532
        %v5534 = vcombine.high %v5526, %v5526
        %v5535 = vcombine.high %v5533, %v5533
        %v5537 = vunpack.c.l.s4 1966171168
        %v5538 = vunpack.c.0.s8 %v5537
        %v5539 = vlaneseq
        %v5540 = vshrl.u32 %v5539, 7
        %v5541 = vsub.s32 %v5538, %v5540
        %v5542 = vrot.slane %v5526, %v5541
        %v5544 = vunpack.c.l.s4 1966171168
        %v5545 = vunpack.c.0.s8 %v5544
        %v5546 = vlaneseq
        %v5547 = vshrl.u32 %v5546, 7
        %v5548 = vsub.s32 %v5545, %v5547
        %v5549 = vrot.slane %v5533, %v5548
        %v5551 = vunpack.c.l.s4 1966171168
        %v5552 = vunpack.c.0.s8 %v5551
        %v5553 = vlaneseq
        %v5554 = vshrl.u32 %v5553, 7
        %v5555 = vsub.s32 %v5552, %v5554
        %v5556 = vrot.slane %v5534, %v5555
        %v5558 = vunpack.c.l.s4 1966171168
        %v5559 = vunpack.c.0.s8 %v5558
        %v5560 = vlaneseq
        %v5561 = vshrl.u32 %v5560, 7
        %v5562 = vsub.s32 %v5559, %v5561
        %v5563 = vrot.slane %v5535, %v5562
        %v5564 = vcombine.high %v5542, %v5542
        %v5565 = vcombine.high %v5549, %v5549
        %v5566 = vcombine.high %v5556, %v5556
        %v5567 = vcombine.high %v5563, %v5563
        %v5568 = vcombine.high %v283, %v283
        %v5570 = vunpack.c.l.s4 1966171168
        %v5571 = vunpack.c.0.s8 %v5570
        %v5572 = vlaneseq
        %v5573 = vshrl.u32 %v5572, 7
        %v5574 = vsub.s32 %v5571, %v5573
        %v5575 = vrot.slane %v283, %v5574
        %v5577 = vunpack.c.l.s4 1966171168
        %v5578 = vunpack.c.0.s8 %v5577
        %v5579 = vlaneseq
        %v5580 = vshrl.u32 %v5579, 7
        %v5581 = vsub.s32 %v5578, %v5580
        %v5582 = vrot.slane %v5568, %v5581
        %v5583 = vcombine.high %v5575, %v5575
        %v5584 = vcombine.high %v5582, %v5582
        %v5586 = vunpack.c.l.s4 1966171168
        %v5587 = vunpack.c.0.s8 %v5586
        %v5588 = vlaneseq
        %v5589 = vshrl.u32 %v5588, 7
        %v5590 = vsub.s32 %v5587, %v5589
        %v5591 = vrot.slane %v5575, %v5590
        %v5593 = vunpack.c.l.s4 1966171168
        %v5594 = vunpack.c.0.s8 %v5593
        %v5595 = vlaneseq
        %v5596 = vshrl.u32 %v5595, 7
        %v5597 = vsub.s32 %v5594, %v5596
        %v5598 = vrot.slane %v5582, %v5597
        %v5600 = vunpack.c.l.s4 1966171168
        %v5601 = vunpack.c.0.s8 %v5600
        %v5602 = vlaneseq
        %v5603 = vshrl.u32 %v5602, 7
        %v5604 = vsub.s32 %v5601, %v5603
        %v5605 = vrot.slane %v5583, %v5604
        %v5607 = vunpack.c.l.s4 1966171168
        %v5608 = vunpack.c.0.s8 %v5607
        %v5609 = vlaneseq
        %v5610 = vshrl.u32 %v5609, 7
        %v5611 = vsub.s32 %v5608, %v5610
        %v5612 = vrot.slane %v5584, %v5611
        %v5613 = vcombine.high %v5591, %v5591
        %v5614 = vcombine.high %v5598, %v5598
        %v5615 = vcombine.high %v5605, %v5605
        %v5616 = vcombine.high %v5612, %v5612
        %v5617 = vlaneseq
        %v5618 = vshrl.u32 %v5617, 7
        %v5619 = vsub.s32 0, %v5618
        %v5620 = vrot.slane %v5542, %v5619
        %v5621 = vlaneseq
        %v5622 = vshrl.u32 %v5621, 7
        %v5623 = vsub.s32 0, %v5622
        %v5624 = vrot.slane %v5556, %v5623
        %v5625 = vlaneseq
        %v5626 = vshrl.u32 %v5625, 7
        %v5627 = vsub.s32 0, %v5626
        %v5628 = vrot.slane %v5564, %v5627
        %v5629 = vlaneseq
        %v5630 = vshrl.u32 %v5629, 7
        %v5631 = vsub.s32 0, %v5630
        %v5632 = vrot.slane %v5566, %v5631
        %v5633 = vlaneseq
        %v5634 = vshrl.u32 %v5633, 7
        %v5635 = vsub.s32 0, %v5634
        %v5636 = vrot.slane %v5549, %v5635
        %v5637 = vlaneseq
        %v5638 = vshrl.u32 %v5637, 7
        %v5639 = vsub.s32 0, %v5638
        %v5640 = vrot.slane %v5563, %v5639
        %v5641 = vlaneseq
        %v5642 = vshrl.u32 %v5641, 7
        %v5643 = vsub.s32 0, %v5642
        %v5644 = vrot.slane %v5565, %v5643
        %v5645 = vlaneseq
        %v5646 = vshrl.u32 %v5645, 7
        %v5647 = vsub.s32 0, %v5646
        %v5648 = vrot.slane %v5567, %v5647
        %v5649 = vlaneseq
        %v5650 = vshrl.u32 %v5649, 7
        %v5651 = vsub.s32 0, %v5650
        %v5652 = vrot.slane %v5591, %v5651
        %v5653 = vlaneseq
        %v5654 = vshrl.u32 %v5653, 7
        %v5655 = vsub.s32 0, %v5654
        %v5656 = vrot.slane %v5605, %v5655
        %v5657 = vlaneseq
        %v5658 = vshrl.u32 %v5657, 7
        %v5659 = vsub.s32 0, %v5658
        %v5660 = vrot.slane %v5613, %v5659
        %v5661 = vlaneseq
        %v5662 = vshrl.u32 %v5661, 7
        %v5663 = vsub.s32 0, %v5662
        %v5664 = vrot.slane %v5615, %v5663
        %v5665 = vlaneseq
        %v5666 = vshrl.u32 %v5665, 7
        %v5667 = vsub.s32 0, %v5666
        %v5668 = vrot.slane %v5598, %v5667
        %v5669 = vlaneseq
        %v5670 = vshrl.u32 %v5669, 7
        %v5671 = vsub.s32 0, %v5670
        %v5672 = vrot.slane %v5612, %v5671
        %v5673 = vlaneseq
        %v5674 = vshrl.u32 %v5673, 7
        %v5675 = vsub.s32 0, %v5674
        %v5676 = vrot.slane %v5614, %v5675
        %v5677 = vlaneseq
        %v5678 = vshrl.u32 %v5677, 7
        %v5679 = vsub.s32 0, %v5678
        %v5680 = vrot.slane %v5616, %v5679
        %v5697 = vmul.f32 %v5620, %v226
        %v5698 = vmul.f32 %v5624, %v226
        %v5699 = vmul.f32 %v5628, %v226
        %v5700 = vmul.f32 %v5632, %v226
        %v5701 = vmul.f32 %v5636, %v226
        %v5702 = vmul.f32 %v5640, %v226
        %v5703 = vmul.f32 %v5644, %v226
        %v5704 = vmul.f32 %v5648, %v226
        %v5705 = vmul.f32 %v5652, %v226
        %v5706 = vmul.f32 %v5656, %v226
        %v5707 = vmul.f32 %v5660, %v226
        %v5708 = vmul.f32 %v5664, %v226
        %v5709 = vmul.f32 %v5668, %v226
        %v5710 = vmul.f32 %v5672, %v226
        %v5711 = vmul.f32 %v5676, %v226
        %v5712 = vmul.f32 %v5680, %v226
        %v5713 = vadd.f32 %v5495, %v5697
        %v5714 = vadd.f32 %v5496, %v5698
        %v5715 = vadd.f32 %v5497, %v5699
        %v5716 = vadd.f32 %v5498, %v5700
        %v5717 = vadd.f32 %v5499, %v5701
        %v5718 = vadd.f32 %v5500, %v5702
        %v5719 = vadd.f32 %v5501, %v5703
        %v5720 = vadd.f32 %v5502, %v5704
        %v5721 = vadd.f32 %v5503, %v5705
        %v5722 = vadd.f32 %v5504, %v5706
        %v5723 = vadd.f32 %v5505, %v5707
        %v5724 = vadd.f32 %v5506, %v5708
        %v5725 = vadd.f32 %v5507, %v5709
        %v5726 = vadd.f32 %v5508, %v5710
        %v5727 = vadd.f32 %v5509, %v5711
        %v5728 = vadd.f32 %v5510, %v5712
        %v5729 = vmul.f32 %v227, %v227
        %v5730 = vadd.f32 %v5512, %v5729
        %v5731 = vmul.f32 %v284, %v284
        %v5732 = vmul.f32 %v285, %v285
        %v5733 = vadd.f32 %v5515, %v5731
        %v5734 = vadd.f32 %v5516, %v5732
        %v5737 = vcombine.high %v284, %v284
        %v5739 = vunpack.c.l.s4 1966171168
        %v5740 = vunpack.c.0.s8 %v5739
        %v5741 = vlaneseq
        %v5742 = vshrl.u32 %v5741, 7
        %v5743 = vsub.s32 %v5740, %v5742
        %v5744 = vrot.slane %v284, %v5743
        %v5746 = vunpack.c.l.s4 1966171168
        %v5747 = vunpack.c.0.s8 %v5746
        %v5748 = vlaneseq
        %v5749 = vshrl.u32 %v5748, 7
        %v5750 = vsub.s32 %v5747, %v5749
        %v5751 = vrot.slane %v5737, %v5750
        %v5752 = vcombine.high %v5744, %v5744
        %v5753 = vcombine.high %v5751, %v5751
        %v5755 = vunpack.c.l.s4 1966171168
        %v5756 = vunpack.c.0.s8 %v5755
        %v5757 = vlaneseq
        %v5758 = vshrl.u32 %v5757, 7
        %v5759 = vsub.s32 %v5756, %v5758
        %v5760 = vrot.slane %v5744, %v5759
        %v5762 = vunpack.c.l.s4 1966171168
        %v5763 = vunpack.c.0.s8 %v5762
        %v5764 = vlaneseq
        %v5765 = vshrl.u32 %v5764, 7
        %v5766 = vsub.s32 %v5763, %v5765
        %v5767 = vrot.slane %v5751, %v5766
        %v5769 = vunpack.c.l.s4 1966171168
        %v5770 = vunpack.c.0.s8 %v5769
        %v5771 = vlaneseq
        %v5772 = vshrl.u32 %v5771, 7
        %v5773 = vsub.s32 %v5770, %v5772
        %v5774 = vrot.slane %v5752, %v5773
        %v5776 = vunpack.c.l.s4 1966171168
        %v5777 = vunpack.c.0.s8 %v5776
        %v5778 = vlaneseq
        %v5779 = vshrl.u32 %v5778, 7
        %v5780 = vsub.s32 %v5777, %v5779
        %v5781 = vrot.slane %v5753, %v5780
        %v5782 = vcombine.high %v5760, %v5760
        %v5783 = vcombine.high %v5767, %v5767
        %v5784 = vcombine.high %v5774, %v5774
        %v5785 = vcombine.high %v5781, %v5781
        %v5786 = vcombine.high %v285, %v285
        %v5788 = vunpack.c.l.s4 1966171168
        %v5789 = vunpack.c.0.s8 %v5788
        %v5790 = vlaneseq
        %v5791 = vshrl.u32 %v5790, 7
        %v5792 = vsub.s32 %v5789, %v5791
        %v5793 = vrot.slane %v285, %v5792
        %v5795 = vunpack.c.l.s4 1966171168
        %v5796 = vunpack.c.0.s8 %v5795
        %v5797 = vlaneseq
        %v5798 = vshrl.u32 %v5797, 7
        %v5799 = vsub.s32 %v5796, %v5798
        %v5800 = vrot.slane %v5786, %v5799
        %v5801 = vcombine.high %v5793, %v5793
        %v5802 = vcombine.high %v5800, %v5800
        %v5804 = vunpack.c.l.s4 1966171168
        %v5805 = vunpack.c.0.s8 %v5804
        %v5806 = vlaneseq
        %v5807 = vshrl.u32 %v5806, 7
        %v5808 = vsub.s32 %v5805, %v5807
        %v5809 = vrot.slane %v5793, %v5808
        %v5811 = vunpack.c.l.s4 1966171168
        %v5812 = vunpack.c.0.s8 %v5811
        %v5813 = vlaneseq
        %v5814 = vshrl.u32 %v5813, 7
        %v5815 = vsub.s32 %v5812, %v5814
        %v5816 = vrot.slane %v5800, %v5815
        %v5818 = vunpack.c.l.s4 1966171168
        %v5819 = vunpack.c.0.s8 %v5818
        %v5820 = vlaneseq
        %v5821 = vshrl.u32 %v5820, 7
        %v5822 = vsub.s32 %v5819, %v5821
        %v5823 = vrot.slane %v5801, %v5822
        %v5825 = vunpack.c.l.s4 1966171168
        %v5826 = vunpack.c.0.s8 %v5825
        %v5827 = vlaneseq
        %v5828 = vshrl.u32 %v5827, 7
        %v5829 = vsub.s32 %v5826, %v5828
        %v5830 = vrot.slane %v5802, %v5829
        %v5831 = vcombine.high %v5809, %v5809
        %v5832 = vcombine.high %v5816, %v5816
        %v5833 = vcombine.high %v5823, %v5823
        %v5834 = vcombine.high %v5830, %v5830
        %v5835 = vlaneseq
        %v5836 = vshrl.u32 %v5835, 7
        %v5837 = vsub.s32 0, %v5836
        %v5838 = vrot.slane %v5760, %v5837
        %v5839 = vlaneseq
        %v5840 = vshrl.u32 %v5839, 7
        %v5841 = vsub.s32 0, %v5840
        %v5842 = vrot.slane %v5774, %v5841
        %v5843 = vlaneseq
        %v5844 = vshrl.u32 %v5843, 7
        %v5845 = vsub.s32 0, %v5844
        %v5846 = vrot.slane %v5782, %v5845
        %v5847 = vlaneseq
        %v5848 = vshrl.u32 %v5847, 7
        %v5849 = vsub.s32 0, %v5848
        %v5850 = vrot.slane %v5784, %v5849
        %v5851 = vlaneseq
        %v5852 = vshrl.u32 %v5851, 7
        %v5853 = vsub.s32 0, %v5852
        %v5854 = vrot.slane %v5767, %v5853
        %v5855 = vlaneseq
        %v5856 = vshrl.u32 %v5855, 7
        %v5857 = vsub.s32 0, %v5856
        %v5858 = vrot.slane %v5781, %v5857
        %v5859 = vlaneseq
        %v5860 = vshrl.u32 %v5859, 7
        %v5861 = vsub.s32 0, %v5860
        %v5862 = vrot.slane %v5783, %v5861
        %v5863 = vlaneseq
        %v5864 = vshrl.u32 %v5863, 7
        %v5865 = vsub.s32 0, %v5864
        %v5866 = vrot.slane %v5785, %v5865
        %v5867 = vlaneseq
        %v5868 = vshrl.u32 %v5867, 7
        %v5869 = vsub.s32 0, %v5868
        %v5870 = vrot.slane %v5809, %v5869
        %v5871 = vlaneseq
        %v5872 = vshrl.u32 %v5871, 7
        %v5873 = vsub.s32 0, %v5872
        %v5874 = vrot.slane %v5823, %v5873
        %v5875 = vlaneseq
        %v5876 = vshrl.u32 %v5875, 7
        %v5877 = vsub.s32 0, %v5876
        %v5878 = vrot.slane %v5831, %v5877
        %v5879 = vlaneseq
        %v5880 = vshrl.u32 %v5879, 7
        %v5881 = vsub.s32 0, %v5880
        %v5882 = vrot.slane %v5833, %v5881
        %v5883 = vlaneseq
        %v5884 = vshrl.u32 %v5883, 7
        %v5885 = vsub.s32 0, %v5884
        %v5886 = vrot.slane %v5816, %v5885
        %v5887 = vlaneseq
        %v5888 = vshrl.u32 %v5887, 7
        %v5889 = vsub.s32 0, %v5888
        %v5890 = vrot.slane %v5830, %v5889
        %v5891 = vlaneseq
        %v5892 = vshrl.u32 %v5891, 7
        %v5893 = vsub.s32 0, %v5892
        %v5894 = vrot.slane %v5832, %v5893
        %v5895 = vlaneseq
        %v5896 = vshrl.u32 %v5895, 7
        %v5897 = vsub.s32 0, %v5896
        %v5898 = vrot.slane %v5834, %v5897
        %v5915 = vmul.f32 %v5838, %v227
        %v5916 = vmul.f32 %v5842, %v227
        %v5917 = vmul.f32 %v5846, %v227
        %v5918 = vmul.f32 %v5850, %v227
        %v5919 = vmul.f32 %v5854, %v227
        %v5920 = vmul.f32 %v5858, %v227
        %v5921 = vmul.f32 %v5862, %v227
        %v5922 = vmul.f32 %v5866, %v227
        %v5923 = vmul.f32 %v5870, %v227
        %v5924 = vmul.f32 %v5874, %v227
        %v5925 = vmul.f32 %v5878, %v227
        %v5926 = vmul.f32 %v5882, %v227
        %v5927 = vmul.f32 %v5886, %v227
        %v5928 = vmul.f32 %v5890, %v227
        %v5929 = vmul.f32 %v5894, %v227
        %v5930 = vmul.f32 %v5898, %v227
        %v5931 = vadd.f32 %v5713, %v5915
        %v5932 = vadd.f32 %v5714, %v5916
        %v5933 = vadd.f32 %v5715, %v5917
        %v5934 = vadd.f32 %v5716, %v5918
        %v5935 = vadd.f32 %v5717, %v5919
        %v5936 = vadd.f32 %v5718, %v5920
        %v5937 = vadd.f32 %v5719, %v5921
        %v5938 = vadd.f32 %v5720, %v5922
        %v5939 = vadd.f32 %v5721, %v5923
        %v5940 = vadd.f32 %v5722, %v5924
        %v5941 = vadd.f32 %v5723, %v5925
        %v5942 = vadd.f32 %v5724, %v5926
        %v5943 = vadd.f32 %v5725, %v5927
        %v5944 = vadd.f32 %v5726, %v5928
        %v5945 = vadd.f32 %v5727, %v5929
        %v5946 = vadd.f32 %v5728, %v5930
        %v5947 = vmul.f32 %v228, %v228
        %v5948 = vadd.f32 %v5730, %v5947
        %v5949 = vmul.f32 %v286, %v286
        %v5950 = vmul.f32 %v287, %v287
        %v5951 = vadd.f32 %v5733, %v5949
        %v5952 = vadd.f32 %v5734, %v5950
        %v5955 = vcombine.high %v286, %v286
        %v5957 = vunpack.c.l.s4 1966171168
        %v5958 = vunpack.c.0.s8 %v5957
        %v5959 = vlaneseq
        %v5960 = vshrl.u32 %v5959, 7
        %v5961 = vsub.s32 %v5958, %v5960
        %v5962 = vrot.slane %v286, %v5961
        %v5964 = vunpack.c.l.s4 1966171168
        %v5965 = vunpack.c.0.s8 %v5964
        %v5966 = vlaneseq
        %v5967 = vshrl.u32 %v5966, 7
        %v5968 = vsub.s32 %v5965, %v5967
        %v5969 = vrot.slane %v5955, %v5968
        %v5970 = vcombine.high %v5962, %v5962
        %v5971 = vcombine.high %v5969, %v5969
        %v5973 = vunpack.c.l.s4 1966171168
        %v5974 = vunpack.c.0.s8 %v5973
        %v5975 = vlaneseq
        %v5976 = vshrl.u32 %v5975, 7
        %v5977 = vsub.s32 %v5974, %v5976
        %v5978 = vrot.slane %v5962, %v5977
        %v5980 = vunpack.c.l.s4 1966171168
        %v5981 = vunpack.c.0.s8 %v5980
        %v5982 = vlaneseq
        %v5983 = vshrl.u32 %v5982, 7
        %v5984 = vsub.s32 %v5981, %v5983
        %v5985 = vrot.slane %v5969, %v5984
        %v5987 = vunpack.c.l.s4 1966171168
        %v5988 = vunpack.c.0.s8 %v5987
        %v5989 = vlaneseq
        %v5990 = vshrl.u32 %v5989, 7
        %v5991 = vsub.s32 %v5988, %v5990
        %v5992 = vrot.slane %v5970, %v5991
        %v5994 = vunpack.c.l.s4 1966171168
        %v5995 = vunpack.c.0.s8 %v5994
        %v5996 = vlaneseq
        %v5997 = vshrl.u32 %v5996, 7
        %v5998 = vsub.s32 %v5995, %v5997
        %v5999 = vrot.slane %v5971, %v5998
        %v6000 = vcombine.high %v5978, %v5978
        %v6001 = vcombine.high %v5985, %v5985
        %v6002 = vcombine.high %v5992, %v5992
        %v6003 = vcombine.high %v5999, %v5999
        %v6004 = vcombine.high %v287, %v287
        %v6006 = vunpack.c.l.s4 1966171168
        %v6007 = vunpack.c.0.s8 %v6006
        %v6008 = vlaneseq
        %v6009 = vshrl.u32 %v6008, 7
        %v6010 = vsub.s32 %v6007, %v6009
        %v6011 = vrot.slane %v287, %v6010
        %v6013 = vunpack.c.l.s4 1966171168
        %v6014 = vunpack.c.0.s8 %v6013
        %v6015 = vlaneseq
        %v6016 = vshrl.u32 %v6015, 7
        %v6017 = vsub.s32 %v6014, %v6016
        %v6018 = vrot.slane %v6004, %v6017
        %v6019 = vcombine.high %v6011, %v6011
        %v6020 = vcombine.high %v6018, %v6018
        %v6022 = vunpack.c.l.s4 1966171168
        %v6023 = vunpack.c.0.s8 %v6022
        %v6024 = vlaneseq
        %v6025 = vshrl.u32 %v6024, 7
        %v6026 = vsub.s32 %v6023, %v6025
        %v6027 = vrot.slane %v6011, %v6026
        %v6029 = vunpack.c.l.s4 1966171168
        %v6030 = vunpack.c.0.s8 %v6029
        %v6031 = vlaneseq
        %v6032 = vshrl.u32 %v6031, 7
        %v6033 = vsub.s32 %v6030, %v6032
        %v6034 = vrot.slane %v6018, %v6033
        %v6036 = vunpack.c.l.s4 1966171168
        %v6037 = vunpack.c.0.s8 %v6036
        %v6038 = vlaneseq
        %v6039 = vshrl.u32 %v6038, 7
        %v6040 = vsub.s32 %v6037, %v6039
        %v6041 = vrot.slane %v6019, %v6040
        %v6043 = vunpack.c.l.s4 1966171168
        %v6044 = vunpack.c.0.s8 %v6043
        %v6045 = vlaneseq
        %v6046 = vshrl.u32 %v6045, 7
        %v6047 = vsub.s32 %v6044, %v6046
        %v6048 = vrot.slane %v6020, %v6047
        %v6049 = vcombine.high %v6027, %v6027
        %v6050 = vcombine.high %v6034, %v6034
        %v6051 = vcombine.high %v6041, %v6041
        %v6052 = vcombine.high %v6048, %v6048
        %v6053 = vlaneseq
        %v6054 = vshrl.u32 %v6053, 7
        %v6055 = vsub.s32 0, %v6054
        %v6056 = vrot.slane %v5978, %v6055
        %v6057 = vlaneseq
        %v6058 = vshrl.u32 %v6057, 7
        %v6059 = vsub.s32 0, %v6058
        %v6060 = vrot.slane %v5992, %v6059
        %v6061 = vlaneseq
        %v6062 = vshrl.u32 %v6061, 7
        %v6063 = vsub.s32 0, %v6062
        %v6064 = vrot.slane %v6000, %v6063
        %v6065 = vlaneseq
        %v6066 = vshrl.u32 %v6065, 7
        %v6067 = vsub.s32 0, %v6066
        %v6068 = vrot.slane %v6002, %v6067
        %v6069 = vlaneseq
        %v6070 = vshrl.u32 %v6069, 7
        %v6071 = vsub.s32 0, %v6070
        %v6072 = vrot.slane %v5985, %v6071
        %v6073 = vlaneseq
        %v6074 = vshrl.u32 %v6073, 7
        %v6075 = vsub.s32 0, %v6074
        %v6076 = vrot.slane %v5999, %v6075
        %v6077 = vlaneseq
        %v6078 = vshrl.u32 %v6077, 7
        %v6079 = vsub.s32 0, %v6078
        %v6080 = vrot.slane %v6001, %v6079
        %v6081 = vlaneseq
        %v6082 = vshrl.u32 %v6081, 7
        %v6083 = vsub.s32 0, %v6082
        %v6084 = vrot.slane %v6003, %v6083
        %v6085 = vlaneseq
        %v6086 = vshrl.u32 %v6085, 7
        %v6087 = vsub.s32 0, %v6086
        %v6088 = vrot.slane %v6027, %v6087
        %v6089 = vlaneseq
        %v6090 = vshrl.u32 %v6089, 7
        %v6091 = vsub.s32 0, %v6090
        %v6092 = vrot.slane %v6041, %v6091
        %v6093 = vlaneseq
        %v6094 = vshrl.u32 %v6093, 7
        %v6095 = vsub.s32 0, %v6094
        %v6096 = vrot.slane %v6049, %v6095
        %v6097 = vlaneseq
        %v6098 = vshrl.u32 %v6097, 7
        %v6099 = vsub.s32 0, %v6098
        %v6100 = vrot.slane %v6051, %v6099
        %v6101 = vlaneseq
        %v6102 = vshrl.u32 %v6101, 7
        %v6103 = vsub.s32 0, %v6102
        %v6104 = vrot.slane %v6034, %v6103
        %v6105 = vlaneseq
        %v6106 = vshrl.u32 %v6105, 7
        %v6107 = vsub.s32 0, %v6106
        %v6108 = vrot.slane %v6048, %v6107
        %v6109 = vlaneseq
        %v6110 = vshrl.u32 %v6109, 7
        %v6111 = vsub.s32 0, %v6110
        %v6112 = vrot.slane %v6050, %v6111
        %v6113 = vlaneseq
        %v6114 = vshrl.u32 %v6113, 7
        %v6115 = vsub.s32 0, %v6114
        %v6116 = vrot.slane %v6052, %v6115
        %v6133 = vmul.f32 %v6056, %v228
        %v6134 = vmul.f32 %v6060, %v228
        %v6135 = vmul.f32 %v6064, %v228
        %v6136 = vmul.f32 %v6068, %v228
        %v6137 = vmul.f32 %v6072, %v228
        %v6138 = vmul.f32 %v6076, %v228
        %v6139 = vmul.f32 %v6080, %v228
        %v6140 = vmul.f32 %v6084, %v228
        %v6141 = vmul.f32 %v6088, %v228
        %v6142 = vmul.f32 %v6092, %v228
        %v6143 = vmul.f32 %v6096, %v228
        %v6144 = vmul.f32 %v6100, %v228
        %v6145 = vmul.f32 %v6104, %v228
        %v6146 = vmul.f32 %v6108, %v228
        %v6147 = vmul.f32 %v6112, %v228
        %v6148 = vmul.f32 %v6116, %v228
        %v6149 = vadd.f32 %v5931, %v6133
        %v6150 = vadd.f32 %v5932, %v6134
        %v6151 = vadd.f32 %v5933, %v6135
        %v6152 = vadd.f32 %v5934, %v6136
        %v6153 = vadd.f32 %v5935, %v6137
        %v6154 = vadd.f32 %v5936, %v6138
        %v6155 = vadd.f32 %v5937, %v6139
        %v6156 = vadd.f32 %v5938, %v6140
        %v6157 = vadd.f32 %v5939, %v6141
        %v6158 = vadd.f32 %v5940, %v6142
        %v6159 = vadd.f32 %v5941, %v6143
        %v6160 = vadd.f32 %v5942, %v6144
        %v6161 = vadd.f32 %v5943, %v6145
        %v6162 = vadd.f32 %v5944, %v6146
        %v6163 = vadd.f32 %v5945, %v6147
        %v6164 = vadd.f32 %v5946, %v6148
        %v6165 = vmul.f32 %v229, %v229
        %v6166 = vadd.f32 %v5948, %v6165
        %v6167 = vmul.f32 %v288, %v288
        %v6168 = vmul.f32 %v289, %v289
        %v6169 = vadd.f32 %v5951, %v6167
        %v6170 = vadd.f32 %v5952, %v6168
        %v6173 = vcombine.high %v288, %v288
        %v6175 = vunpack.c.l.s4 1966171168
        %v6176 = vunpack.c.0.s8 %v6175
        %v6177 = vlaneseq
        %v6178 = vshrl.u32 %v6177, 7
        %v6179 = vsub.s32 %v6176, %v6178
        %v6180 = vrot.slane %v288, %v6179
        %v6182 = vunpack.c.l.s4 1966171168
        %v6183 = vunpack.c.0.s8 %v6182
        %v6184 = vlaneseq
        %v6185 = vshrl.u32 %v6184, 7
        %v6186 = vsub.s32 %v6183, %v6185
        %v6187 = vrot.slane %v6173, %v6186
        %v6188 = vcombine.high %v6180, %v6180
        %v6189 = vcombine.high %v6187, %v6187
        %v6191 = vunpack.c.l.s4 1966171168
        %v6192 = vunpack.c.0.s8 %v6191
        %v6193 = vlaneseq
        %v6194 = vshrl.u32 %v6193, 7
        %v6195 = vsub.s32 %v6192, %v6194
        %v6196 = vrot.slane %v6180, %v6195
        %v6198 = vunpack.c.l.s4 1966171168
        %v6199 = vunpack.c.0.s8 %v6198
        %v6200 = vlaneseq
        %v6201 = vshrl.u32 %v6200, 7
        %v6202 = vsub.s32 %v6199, %v6201
        %v6203 = vrot.slane %v6187, %v6202
        %v6205 = vunpack.c.l.s4 1966171168
        %v6206 = vunpack.c.0.s8 %v6205
        %v6207 = vlaneseq
        %v6208 = vshrl.u32 %v6207, 7
        %v6209 = vsub.s32 %v6206, %v6208
        %v6210 = vrot.slane %v6188, %v6209
        %v6212 = vunpack.c.l.s4 1966171168
        %v6213 = vunpack.c.0.s8 %v6212
        %v6214 = vlaneseq
        %v6215 = vshrl.u32 %v6214, 7
        %v6216 = vsub.s32 %v6213, %v6215
        %v6217 = vrot.slane %v6189, %v6216
        %v6218 = vcombine.high %v6196, %v6196
        %v6219 = vcombine.high %v6203, %v6203
        %v6220 = vcombine.high %v6210, %v6210
        %v6221 = vcombine.high %v6217, %v6217
        %v6222 = vcombine.high %v289, %v289
        %v6224 = vunpack.c.l.s4 1966171168
        %v6225 = vunpack.c.0.s8 %v6224
        %v6226 = vlaneseq
        %v6227 = vshrl.u32 %v6226, 7
        %v6228 = vsub.s32 %v6225, %v6227
        %v6229 = vrot.slane %v289, %v6228
        %v6231 = vunpack.c.l.s4 1966171168
        %v6232 = vunpack.c.0.s8 %v6231
        %v6233 = vlaneseq
        %v6234 = vshrl.u32 %v6233, 7
        %v6235 = vsub.s32 %v6232, %v6234
        %v6236 = vrot.slane %v6222, %v6235
        %v6237 = vcombine.high %v6229, %v6229
        %v6238 = vcombine.high %v6236, %v6236
        %v6240 = vunpack.c.l.s4 1966171168
        %v6241 = vunpack.c.0.s8 %v6240
        %v6242 = vlaneseq
        %v6243 = vshrl.u32 %v6242, 7
        %v6244 = vsub.s32 %v6241, %v6243
        %v6245 = vrot.slane %v6229, %v6244
        %v6247 = vunpack.c.l.s4 1966171168
        %v6248 = vunpack.c.0.s8 %v6247
        %v6249 = vlaneseq
        %v6250 = vshrl.u32 %v6249, 7
        %v6251 = vsub.s32 %v6248, %v6250
        %v6252 = vrot.slane %v6236, %v6251
        %v6254 = vunpack.c.l.s4 1966171168
        %v6255 = vunpack.c.0.s8 %v6254
        %v6256 = vlaneseq
        %v6257 = vshrl.u32 %v6256, 7
        %v6258 = vsub.s32 %v6255, %v6257
        %v6259 = vrot.slane %v6237, %v6258
        %v6261 = vunpack.c.l.s4 1966171168
        %v6262 = vunpack.c.0.s8 %v6261
        %v6263 = vlaneseq
        %v6264 = vshrl.u32 %v6263, 7
        %v6265 = vsub.s32 %v6262, %v6264
        %v6266 = vrot.slane %v6238, %v6265
        %v6267 = vcombine.high %v6245, %v6245
        %v6268 = vcombine.high %v6252, %v6252
        %v6269 = vcombine.high %v6259, %v6259
        %v6270 = vcombine.high %v6266, %v6266
        %v6271 = vlaneseq
        %v6272 = vshrl.u32 %v6271, 7
        %v6273 = vsub.s32 0, %v6272
        %v6274 = vrot.slane %v6196, %v6273
        %v6275 = vlaneseq
        %v6276 = vshrl.u32 %v6275, 7
        %v6277 = vsub.s32 0, %v6276
        %v6278 = vrot.slane %v6210, %v6277
        %v6279 = vlaneseq
        %v6280 = vshrl.u32 %v6279, 7
        %v6281 = vsub.s32 0, %v6280
        %v6282 = vrot.slane %v6218, %v6281
        %v6283 = vlaneseq
        %v6284 = vshrl.u32 %v6283, 7
        %v6285 = vsub.s32 0, %v6284
        %v6286 = vrot.slane %v6220, %v6285
        %v6287 = vlaneseq
        %v6288 = vshrl.u32 %v6287, 7
        %v6289 = vsub.s32 0, %v6288
        %v6290 = vrot.slane %v6203, %v6289
        %v6291 = vlaneseq
        %v6292 = vshrl.u32 %v6291, 7
        %v6293 = vsub.s32 0, %v6292
        %v6294 = vrot.slane %v6217, %v6293
        %v6295 = vlaneseq
        %v6296 = vshrl.u32 %v6295, 7
        %v6297 = vsub.s32 0, %v6296
        %v6298 = vrot.slane %v6219, %v6297
        %v6299 = vlaneseq
        %v6300 = vshrl.u32 %v6299, 7
        %v6301 = vsub.s32 0, %v6300
        %v6302 = vrot.slane %v6221, %v6301
        %v6303 = vlaneseq
        %v6304 = vshrl.u32 %v6303, 7
        %v6305 = vsub.s32 0, %v6304
        %v6306 = vrot.slane %v6245, %v6305
        %v6307 = vlaneseq
        %v6308 = vshrl.u32 %v6307, 7
        %v6309 = vsub.s32 0, %v6308
        %v6310 = vrot.slane %v6259, %v6309
        %v6311 = vlaneseq
        %v6312 = vshrl.u32 %v6311, 7
        %v6313 = vsub.s32 0, %v6312
        %v6314 = vrot.slane %v6267, %v6313
        %v6315 = vlaneseq
        %v6316 = vshrl.u32 %v6315, 7
        %v6317 = vsub.s32 0, %v6316
        %v6318 = vrot.slane %v6269, %v6317
        %v6319 = vlaneseq
        %v6320 = vshrl.u32 %v6319, 7
        %v6321 = vsub.s32 0, %v6320
        %v6322 = vrot.slane %v6252, %v6321
        %v6323 = vlaneseq
        %v6324 = vshrl.u32 %v6323, 7
        %v6325 = vsub.s32 0, %v6324
        %v6326 = vrot.slane %v6266, %v6325
        %v6327 = vlaneseq
        %v6328 = vshrl.u32 %v6327, 7
        %v6329 = vsub.s32 0, %v6328
        %v6330 = vrot.slane %v6268, %v6329
        %v6331 = vlaneseq
        %v6332 = vshrl.u32 %v6331, 7
        %v6333 = vsub.s32 0, %v6332
        %v6334 = vrot.slane %v6270, %v6333
        %v6351 = vmul.f32 %v6274, %v229
        %v6352 = vmul.f32 %v6278, %v229
        %v6353 = vmul.f32 %v6282, %v229
        %v6354 = vmul.f32 %v6286, %v229
        %v6355 = vmul.f32 %v6290, %v229
        %v6356 = vmul.f32 %v6294, %v229
        %v6357 = vmul.f32 %v6298, %v229
        %v6358 = vmul.f32 %v6302, %v229
        %v6359 = vmul.f32 %v6306, %v229
        %v6360 = vmul.f32 %v6310, %v229
        %v6361 = vmul.f32 %v6314, %v229
        %v6362 = vmul.f32 %v6318, %v229
        %v6363 = vmul.f32 %v6322, %v229
        %v6364 = vmul.f32 %v6326, %v229
        %v6365 = vmul.f32 %v6330, %v229
        %v6366 = vmul.f32 %v6334, %v229
        %v6367 = vadd.f32 %v6149, %v6351
        %v6368 = vadd.f32 %v6150, %v6352
        %v6369 = vadd.f32 %v6151, %v6353
        %v6370 = vadd.f32 %v6152, %v6354
        %v6371 = vadd.f32 %v6153, %v6355
        %v6372 = vadd.f32 %v6154, %v6356
        %v6373 = vadd.f32 %v6155, %v6357
        %v6374 = vadd.f32 %v6156, %v6358
        %v6375 = vadd.f32 %v6157, %v6359
        %v6376 = vadd.f32 %v6158, %v6360
        %v6377 = vadd.f32 %v6159, %v6361
        %v6378 = vadd.f32 %v6160, %v6362
        %v6379 = vadd.f32 %v6161, %v6363
        %v6380 = vadd.f32 %v6162, %v6364
        %v6381 = vadd.f32 %v6163, %v6365
        %v6382 = vadd.f32 %v6164, %v6366
        %v6383 = vmul.f32 %v230, %v230
        %v6384 = vadd.f32 %v6166, %v6383
        %v6385 = vmul.f32 %v290, %v290
        %v6386 = vmul.f32 %v291, %v291
        %v6387 = vadd.f32 %v6169, %v6385
        %v6388 = vadd.f32 %v6170, %v6386
        %v6391 = vcombine.high %v290, %v290
        %v6393 = vunpack.c.l.s4 1966171168
        %v6394 = vunpack.c.0.s8 %v6393
        %v6395 = vlaneseq
        %v6396 = vshrl.u32 %v6395, 7
        %v6397 = vsub.s32 %v6394, %v6396
        %v6398 = vrot.slane %v290, %v6397
        %v6400 = vunpack.c.l.s4 1966171168
        %v6401 = vunpack.c.0.s8 %v6400
        %v6402 = vlaneseq
        %v6403 = vshrl.u32 %v6402, 7
        %v6404 = vsub.s32 %v6401, %v6403
        %v6405 = vrot.slane %v6391, %v6404
        %v6406 = vcombine.high %v6398, %v6398
        %v6407 = vcombine.high %v6405, %v6405
        %v6409 = vunpack.c.l.s4 1966171168
        %v6410 = vunpack.c.0.s8 %v6409
        %v6411 = vlaneseq
        %v6412 = vshrl.u32 %v6411, 7
        %v6413 = vsub.s32 %v6410, %v6412
        %v6414 = vrot.slane %v6398, %v6413
        %v6416 = vunpack.c.l.s4 1966171168
        %v6417 = vunpack.c.0.s8 %v6416
        %v6418 = vlaneseq
        %v6419 = vshrl.u32 %v6418, 7
        %v6420 = vsub.s32 %v6417, %v6419
        %v6421 = vrot.slane %v6405, %v6420
        %v6423 = vunpack.c.l.s4 1966171168
        %v6424 = vunpack.c.0.s8 %v6423
        %v6425 = vlaneseq
        %v6426 = vshrl.u32 %v6425, 7
        %v6427 = vsub.s32 %v6424, %v6426
        %v6428 = vrot.slane %v6406, %v6427
        %v6430 = vunpack.c.l.s4 1966171168
        %v6431 = vunpack.c.0.s8 %v6430
        %v6432 = vlaneseq
        %v6433 = vshrl.u32 %v6432, 7
        %v6434 = vsub.s32 %v6431, %v6433
        %v6435 = vrot.slane %v6407, %v6434
        %v6436 = vcombine.high %v6414, %v6414
        %v6437 = vcombine.high %v6421, %v6421
        %v6438 = vcombine.high %v6428, %v6428
        %v6439 = vcombine.high %v6435, %v6435
        %v6440 = vcombine.high %v291, %v291
        %v6442 = vunpack.c.l.s4 1966171168
        %v6443 = vunpack.c.0.s8 %v6442
        %v6444 = vlaneseq
        %v6445 = vshrl.u32 %v6444, 7
        %v6446 = vsub.s32 %v6443, %v6445
        %v6447 = vrot.slane %v291, %v6446
        %v6449 = vunpack.c.l.s4 1966171168
        %v6450 = vunpack.c.0.s8 %v6449
        %v6451 = vlaneseq
        %v6452 = vshrl.u32 %v6451, 7
        %v6453 = vsub.s32 %v6450, %v6452
        %v6454 = vrot.slane %v6440, %v6453
        %v6455 = vcombine.high %v6447, %v6447
        %v6456 = vcombine.high %v6454, %v6454
        %v6458 = vunpack.c.l.s4 1966171168
        %v6459 = vunpack.c.0.s8 %v6458
        %v6460 = vlaneseq
        %v6461 = vshrl.u32 %v6460, 7
        %v6462 = vsub.s32 %v6459, %v6461
        %v6463 = vrot.slane %v6447, %v6462
        %v6465 = vunpack.c.l.s4 1966171168
        %v6466 = vunpack.c.0.s8 %v6465
        %v6467 = vlaneseq
        %v6468 = vshrl.u32 %v6467, 7
        %v6469 = vsub.s32 %v6466, %v6468
        %v6470 = vrot.slane %v6454, %v6469
        %v6472 = vunpack.c.l.s4 1966171168
        %v6473 = vunpack.c.0.s8 %v6472
        %v6474 = vlaneseq
        %v6475 = vshrl.u32 %v6474, 7
        %v6476 = vsub.s32 %v6473, %v6475
        %v6477 = vrot.slane %v6455, %v6476
        %v6479 = vunpack.c.l.s4 1966171168
        %v6480 = vunpack.c.0.s8 %v6479
        %v6481 = vlaneseq
        %v6482 = vshrl.u32 %v6481, 7
        %v6483 = vsub.s32 %v6480, %v6482
        %v6484 = vrot.slane %v6456, %v6483
        %v6485 = vcombine.high %v6463, %v6463
        %v6486 = vcombine.high %v6470, %v6470
        %v6487 = vcombine.high %v6477, %v6477
        %v6488 = vcombine.high %v6484, %v6484
        %v6489 = vlaneseq
        %v6490 = vshrl.u32 %v6489, 7
        %v6491 = vsub.s32 0, %v6490
        %v6492 = vrot.slane %v6414, %v6491
        %v6493 = vlaneseq
        %v6494 = vshrl.u32 %v6493, 7
        %v6495 = vsub.s32 0, %v6494
        %v6496 = vrot.slane %v6428, %v6495
        %v6497 = vlaneseq
        %v6498 = vshrl.u32 %v6497, 7
        %v6499 = vsub.s32 0, %v6498
        %v6500 = vrot.slane %v6436, %v6499
        %v6501 = vlaneseq
        %v6502 = vshrl.u32 %v6501, 7
        %v6503 = vsub.s32 0, %v6502
        %v6504 = vrot.slane %v6438, %v6503
        %v6505 = vlaneseq
        %v6506 = vshrl.u32 %v6505, 7
        %v6507 = vsub.s32 0, %v6506
        %v6508 = vrot.slane %v6421, %v6507
        %v6509 = vlaneseq
        %v6510 = vshrl.u32 %v6509, 7
        %v6511 = vsub.s32 0, %v6510
        %v6512 = vrot.slane %v6435, %v6511
        %v6513 = vlaneseq
        %v6514 = vshrl.u32 %v6513, 7
        %v6515 = vsub.s32 0, %v6514
        %v6516 = vrot.slane %v6437, %v6515
        %v6517 = vlaneseq
        %v6518 = vshrl.u32 %v6517, 7
        %v6519 = vsub.s32 0, %v6518
        %v6520 = vrot.slane %v6439, %v6519
        %v6521 = vlaneseq
        %v6522 = vshrl.u32 %v6521, 7
        %v6523 = vsub.s32 0, %v6522
        %v6524 = vrot.slane %v6463, %v6523
        %v6525 = vlaneseq
        %v6526 = vshrl.u32 %v6525, 7
        %v6527 = vsub.s32 0, %v6526
        %v6528 = vrot.slane %v6477, %v6527
        %v6529 = vlaneseq
        %v6530 = vshrl.u32 %v6529, 7
        %v6531 = vsub.s32 0, %v6530
        %v6532 = vrot.slane %v6485, %v6531
        %v6533 = vlaneseq
        %v6534 = vshrl.u32 %v6533, 7
        %v6535 = vsub.s32 0, %v6534
        %v6536 = vrot.slane %v6487, %v6535
        %v6537 = vlaneseq
        %v6538 = vshrl.u32 %v6537, 7
        %v6539 = vsub.s32 0, %v6538
        %v6540 = vrot.slane %v6470, %v6539
        %v6541 = vlaneseq
        %v6542 = vshrl.u32 %v6541, 7
        %v6543 = vsub.s32 0, %v6542
        %v6544 = vrot.slane %v6484, %v6543
        %v6545 = vlaneseq
        %v6546 = vshrl.u32 %v6545, 7
        %v6547 = vsub.s32 0, %v6546
        %v6548 = vrot.slane %v6486, %v6547
        %v6549 = vlaneseq
        %v6550 = vshrl.u32 %v6549, 7
        %v6551 = vsub.s32 0, %v6550
        %v6552 = vrot.slane %v6488, %v6551
        %v6569 = vmul.f32 %v6492, %v230
        %v6570 = vmul.f32 %v6496, %v230
        %v6571 = vmul.f32 %v6500, %v230
        %v6572 = vmul.f32 %v6504, %v230
        %v6573 = vmul.f32 %v6508, %v230
        %v6574 = vmul.f32 %v6512, %v230
        %v6575 = vmul.f32 %v6516, %v230
        %v6576 = vmul.f32 %v6520, %v230
        %v6577 = vmul.f32 %v6524, %v230
        %v6578 = vmul.f32 %v6528, %v230
        %v6579 = vmul.f32 %v6532, %v230
        %v6580 = vmul.f32 %v6536, %v230
        %v6581 = vmul.f32 %v6540, %v230
        %v6582 = vmul.f32 %v6544, %v230
        %v6583 = vmul.f32 %v6548, %v230
        %v6584 = vmul.f32 %v6552, %v230
        %v6585 = vadd.f32 %v6367, %v6569
        %v6586 = vadd.f32 %v6368, %v6570
        %v6587 = vadd.f32 %v6369, %v6571
        %v6588 = vadd.f32 %v6370, %v6572
        %v6589 = vadd.f32 %v6371, %v6573
        %v6590 = vadd.f32 %v6372, %v6574
        %v6591 = vadd.f32 %v6373, %v6575
        %v6592 = vadd.f32 %v6374, %v6576
        %v6593 = vadd.f32 %v6375, %v6577
        %v6594 = vadd.f32 %v6376, %v6578
        %v6595 = vadd.f32 %v6377, %v6579
        %v6596 = vadd.f32 %v6378, %v6580
        %v6597 = vadd.f32 %v6379, %v6581
        %v6598 = vadd.f32 %v6380, %v6582
        %v6599 = vadd.f32 %v6381, %v6583
        %v6600 = vadd.f32 %v6382, %v6584
        %v6601 = vmul.f32 %v231, %v231
        %v6602 = vadd.f32 %v6384, %v6601
        %v6603 = vmul.f32 %v292, %v292
        %v6604 = vmul.f32 %v293, %v293
        %v6605 = vadd.f32 %v6387, %v6603
        %v6606 = vadd.f32 %v6388, %v6604
        %v6609 = vcombine.high %v292, %v292
        %v6611 = vunpack.c.l.s4 1966171168
        %v6612 = vunpack.c.0.s8 %v6611
        %v6613 = vlaneseq
        %v6614 = vshrl.u32 %v6613, 7
        %v6615 = vsub.s32 %v6612, %v6614
        %v6616 = vrot.slane %v292, %v6615
        %v6618 = vunpack.c.l.s4 1966171168
        %v6619 = vunpack.c.0.s8 %v6618
        %v6620 = vlaneseq
        %v6621 = vshrl.u32 %v6620, 7
        %v6622 = vsub.s32 %v6619, %v6621
        %v6623 = vrot.slane %v6609, %v6622
        %v6624 = vcombine.high %v6616, %v6616
        %v6625 = vcombine.high %v6623, %v6623
        %v6627 = vunpack.c.l.s4 1966171168
        %v6628 = vunpack.c.0.s8 %v6627
        %v6629 = vlaneseq
        %v6630 = vshrl.u32 %v6629, 7
        %v6631 = vsub.s32 %v6628, %v6630
        %v6632 = vrot.slane %v6616, %v6631
        %v6634 = vunpack.c.l.s4 1966171168
        %v6635 = vunpack.c.0.s8 %v6634
        %v6636 = vlaneseq
        %v6637 = vshrl.u32 %v6636, 7
        %v6638 = vsub.s32 %v6635, %v6637
        %v6639 = vrot.slane %v6623, %v6638
        %v6641 = vunpack.c.l.s4 1966171168
        %v6642 = vunpack.c.0.s8 %v6641
        %v6643 = vlaneseq
        %v6644 = vshrl.u32 %v6643, 7
        %v6645 = vsub.s32 %v6642, %v6644
        %v6646 = vrot.slane %v6624, %v6645
        %v6648 = vunpack.c.l.s4 1966171168
        %v6649 = vunpack.c.0.s8 %v6648
        %v6650 = vlaneseq
        %v6651 = vshrl.u32 %v6650, 7
        %v6652 = vsub.s32 %v6649, %v6651
        %v6653 = vrot.slane %v6625, %v6652
        %v6654 = vcombine.high %v6632, %v6632
        %v6655 = vcombine.high %v6639, %v6639
        %v6656 = vcombine.high %v6646, %v6646
        %v6657 = vcombine.high %v6653, %v6653
        %v6658 = vcombine.high %v293, %v293
        %v6660 = vunpack.c.l.s4 1966171168
        %v6661 = vunpack.c.0.s8 %v6660
        %v6662 = vlaneseq
        %v6663 = vshrl.u32 %v6662, 7
        %v6664 = vsub.s32 %v6661, %v6663
        %v6665 = vrot.slane %v293, %v6664
        %v6667 = vunpack.c.l.s4 1966171168
        %v6668 = vunpack.c.0.s8 %v6667
        %v6669 = vlaneseq
        %v6670 = vshrl.u32 %v6669, 7
        %v6671 = vsub.s32 %v6668, %v6670
        %v6672 = vrot.slane %v6658, %v6671
        %v6673 = vcombine.high %v6665, %v6665
        %v6674 = vcombine.high %v6672, %v6672
        %v6676 = vunpack.c.l.s4 1966171168
        %v6677 = vunpack.c.0.s8 %v6676
        %v6678 = vlaneseq
        %v6679 = vshrl.u32 %v6678, 7
        %v6680 = vsub.s32 %v6677, %v6679
        %v6681 = vrot.slane %v6665, %v6680
        %v6683 = vunpack.c.l.s4 1966171168
        %v6684 = vunpack.c.0.s8 %v6683
        %v6685 = vlaneseq
        %v6686 = vshrl.u32 %v6685, 7
        %v6687 = vsub.s32 %v6684, %v6686
        %v6688 = vrot.slane %v6672, %v6687
        %v6690 = vunpack.c.l.s4 1966171168
        %v6691 = vunpack.c.0.s8 %v6690
        %v6692 = vlaneseq
        %v6693 = vshrl.u32 %v6692, 7
        %v6694 = vsub.s32 %v6691, %v6693
        %v6695 = vrot.slane %v6673, %v6694
        %v6697 = vunpack.c.l.s4 1966171168
        %v6698 = vunpack.c.0.s8 %v6697
        %v6699 = vlaneseq
        %v6700 = vshrl.u32 %v6699, 7
        %v6701 = vsub.s32 %v6698, %v6700
        %v6702 = vrot.slane %v6674, %v6701
        %v6703 = vcombine.high %v6681, %v6681
        %v6704 = vcombine.high %v6688, %v6688
        %v6705 = vcombine.high %v6695, %v6695
        %v6706 = vcombine.high %v6702, %v6702
        %v6707 = vlaneseq
        %v6708 = vshrl.u32 %v6707, 7
        %v6709 = vsub.s32 0, %v6708
        %v6710 = vrot.slane %v6632, %v6709
        %v6711 = vlaneseq
        %v6712 = vshrl.u32 %v6711, 7
        %v6713 = vsub.s32 0, %v6712
        %v6714 = vrot.slane %v6646, %v6713
        %v6715 = vlaneseq
        %v6716 = vshrl.u32 %v6715, 7
        %v6717 = vsub.s32 0, %v6716
        %v6718 = vrot.slane %v6654, %v6717
        %v6719 = vlaneseq
        %v6720 = vshrl.u32 %v6719, 7
        %v6721 = vsub.s32 0, %v6720
        %v6722 = vrot.slane %v6656, %v6721
        %v6723 = vlaneseq
        %v6724 = vshrl.u32 %v6723, 7
        %v6725 = vsub.s32 0, %v6724
        %v6726 = vrot.slane %v6639, %v6725
        %v6727 = vlaneseq
        %v6728 = vshrl.u32 %v6727, 7
        %v6729 = vsub.s32 0, %v6728
        %v6730 = vrot.slane %v6653, %v6729
        %v6731 = vlaneseq
        %v6732 = vshrl.u32 %v6731, 7
        %v6733 = vsub.s32 0, %v6732
        %v6734 = vrot.slane %v6655, %v6733
        %v6735 = vlaneseq
        %v6736 = vshrl.u32 %v6735, 7
        %v6737 = vsub.s32 0, %v6736
        %v6738 = vrot.slane %v6657, %v6737
        %v6739 = vlaneseq
        %v6740 = vshrl.u32 %v6739, 7
        %v6741 = vsub.s32 0, %v6740
        %v6742 = vrot.slane %v6681, %v6741
        %v6743 = vlaneseq
        %v6744 = vshrl.u32 %v6743, 7
        %v6745 = vsub.s32 0, %v6744
        %v6746 = vrot.slane %v6695, %v6745
        %v6747 = vlaneseq
        %v6748 = vshrl.u32 %v6747, 7
        %v6749 = vsub.s32 0, %v6748
        %v6750 = vrot.slane %v6703, %v6749
        %v6751 = vlaneseq
        %v6752 = vshrl.u32 %v6751, 7
        %v6753 = vsub.s32 0, %v6752
        %v6754 = vrot.slane %v6705, %v6753
        %v6755 = vlaneseq
        %v6756 = vshrl.u32 %v6755, 7
        %v6757 = vsub.s32 0, %v6756
        %v6758 = vrot.slane %v6688, %v6757
        %v6759 = vlaneseq
        %v6760 = vshrl.u32 %v6759, 7
        %v6761 = vsub.s32 0, %v6760
        %v6762 = vrot.slane %v6702, %v6761
        %v6763 = vlaneseq
        %v6764 = vshrl.u32 %v6763, 7
        %v6765 = vsub.s32 0, %v6764
        %v6766 = vrot.slane %v6704, %v6765
        %v6767 = vlaneseq
        %v6768 = vshrl.u32 %v6767, 7
        %v6769 = vsub.s32 0, %v6768
        %v6770 = vrot.slane %v6706, %v6769
        %v6787 = vmul.f32 %v6710, %v231
        %v6788 = vmul.f32 %v6714, %v231
        %v6789 = vmul.f32 %v6718, %v231
        %v6790 = vmul.f32 %v6722, %v231
        %v6791 = vmul.f32 %v6726, %v231
        %v6792 = vmul.f32 %v6730, %v231
        %v6793 = vmul.f32 %v6734, %v231
        %v6794 = vmul.f32 %v6738, %v231
        %v6795 = vmul.f32 %v6742, %v231
        %v6796 = vmul.f32 %v6746, %v231
        %v6797 = vmul.f32 %v6750, %v231
        %v6798 = vmul.f32 %v6754, %v231
        %v6799 = vmul.f32 %v6758, %v231
        %v6800 = vmul.f32 %v6762, %v231
        %v6801 = vmul.f32 %v6766, %v231
        %v6802 = vmul.f32 %v6770, %v231
        %v6803 = vadd.f32 %v6585, %v6787
        %v6804 = vadd.f32 %v6586, %v6788
        %v6805 = vadd.f32 %v6587, %v6789
        %v6806 = vadd.f32 %v6588, %v6790
        %v6807 = vadd.f32 %v6589, %v6791
        %v6808 = vadd.f32 %v6590, %v6792
        %v6809 = vadd.f32 %v6591, %v6793
        %v6810 = vadd.f32 %v6592, %v6794
        %v6811 = vadd.f32 %v6593, %v6795
        %v6812 = vadd.f32 %v6594, %v6796
        %v6813 = vadd.f32 %v6595, %v6797
        %v6814 = vadd.f32 %v6596, %v6798
        %v6815 = vadd.f32 %v6597, %v6799
        %v6816 = vadd.f32 %v6598, %v6800
        %v6817 = vadd.f32 %v6599, %v6801
        %v6818 = vadd.f32 %v6600, %v6802
        %v6819 = vmul.f32 %v232, %v232
        %v6820 = vadd.f32 %v6602, %v6819
        %v6821 = vmul.f32 %v294, %v294
        %v6822 = vmul.f32 %v295, %v295
        %v6823 = vadd.f32 %v6605, %v6821
        %v6824 = vadd.f32 %v6606, %v6822
        %v6827 = vcombine.high %v294, %v294
        %v6829 = vunpack.c.l.s4 1966171168
        %v6830 = vunpack.c.0.s8 %v6829
        %v6831 = vlaneseq
        %v6832 = vshrl.u32 %v6831, 7
        %v6833 = vsub.s32 %v6830, %v6832
        %v6834 = vrot.slane %v294, %v6833
        %v6836 = vunpack.c.l.s4 1966171168
        %v6837 = vunpack.c.0.s8 %v6836
        %v6838 = vlaneseq
        %v6839 = vshrl.u32 %v6838, 7
        %v6840 = vsub.s32 %v6837, %v6839
        %v6841 = vrot.slane %v6827, %v6840
        %v6842 = vcombine.high %v6834, %v6834
        %v6843 = vcombine.high %v6841, %v6841
        %v6845 = vunpack.c.l.s4 1966171168
        %v6846 = vunpack.c.0.s8 %v6845
        %v6847 = vlaneseq
        %v6848 = vshrl.u32 %v6847, 7
        %v6849 = vsub.s32 %v6846, %v6848
        %v6850 = vrot.slane %v6834, %v6849
        %v6852 = vunpack.c.l.s4 1966171168
        %v6853 = vunpack.c.0.s8 %v6852
        %v6854 = vlaneseq
        %v6855 = vshrl.u32 %v6854, 7
        %v6856 = vsub.s32 %v6853, %v6855
        %v6857 = vrot.slane %v6841, %v6856
        %v6859 = vunpack.c.l.s4 1966171168
        %v6860 = vunpack.c.0.s8 %v6859
        %v6861 = vlaneseq
        %v6862 = vshrl.u32 %v6861, 7
        %v6863 = vsub.s32 %v6860, %v6862
        %v6864 = vrot.slane %v6842, %v6863
        %v6866 = vunpack.c.l.s4 1966171168
        %v6867 = vunpack.c.0.s8 %v6866
        %v6868 = vlaneseq
        %v6869 = vshrl.u32 %v6868, 7
        %v6870 = vsub.s32 %v6867, %v6869
        %v6871 = vrot.slane %v6843, %v6870
        %v6872 = vcombine.high %v6850, %v6850
        %v6873 = vcombine.high %v6857, %v6857
        %v6874 = vcombine.high %v6864, %v6864
        %v6875 = vcombine.high %v6871, %v6871
        %v6876 = vcombine.high %v295, %v295
        %v6878 = vunpack.c.l.s4 1966171168
        %v6879 = vunpack.c.0.s8 %v6878
        %v6880 = vlaneseq
        %v6881 = vshrl.u32 %v6880, 7
        %v6882 = vsub.s32 %v6879, %v6881
        %v6883 = vrot.slane %v295, %v6882
        %v6885 = vunpack.c.l.s4 1966171168
        %v6886 = vunpack.c.0.s8 %v6885
        %v6887 = vlaneseq
        %v6888 = vshrl.u32 %v6887, 7
        %v6889 = vsub.s32 %v6886, %v6888
        %v6890 = vrot.slane %v6876, %v6889
        %v6891 = vcombine.high %v6883, %v6883
        %v6892 = vcombine.high %v6890, %v6890
        %v6894 = vunpack.c.l.s4 1966171168
        %v6895 = vunpack.c.0.s8 %v6894
        %v6896 = vlaneseq
        %v6897 = vshrl.u32 %v6896, 7
        %v6898 = vsub.s32 %v6895, %v6897
        %v6899 = vrot.slane %v6883, %v6898
        %v6901 = vunpack.c.l.s4 1966171168
        %v6902 = vunpack.c.0.s8 %v6901
        %v6903 = vlaneseq
        %v6904 = vshrl.u32 %v6903, 7
        %v6905 = vsub.s32 %v6902, %v6904
        %v6906 = vrot.slane %v6890, %v6905
        %v6908 = vunpack.c.l.s4 1966171168
        %v6909 = vunpack.c.0.s8 %v6908
        %v6910 = vlaneseq
        %v6911 = vshrl.u32 %v6910, 7
        %v6912 = vsub.s32 %v6909, %v6911
        %v6913 = vrot.slane %v6891, %v6912
        %v6915 = vunpack.c.l.s4 1966171168
        %v6916 = vunpack.c.0.s8 %v6915
        %v6917 = vlaneseq
        %v6918 = vshrl.u32 %v6917, 7
        %v6919 = vsub.s32 %v6916, %v6918
        %v6920 = vrot.slane %v6892, %v6919
        %v6921 = vcombine.high %v6899, %v6899
        %v6922 = vcombine.high %v6906, %v6906
        %v6923 = vcombine.high %v6913, %v6913
        %v6924 = vcombine.high %v6920, %v6920
        %v6925 = vlaneseq
        %v6926 = vshrl.u32 %v6925, 7
        %v6927 = vsub.s32 0, %v6926
        %v6928 = vrot.slane %v6850, %v6927
        %v6929 = vlaneseq
        %v6930 = vshrl.u32 %v6929, 7
        %v6931 = vsub.s32 0, %v6930
        %v6932 = vrot.slane %v6864, %v6931
        %v6933 = vlaneseq
        %v6934 = vshrl.u32 %v6933, 7
        %v6935 = vsub.s32 0, %v6934
        %v6936 = vrot.slane %v6872, %v6935
        %v6937 = vlaneseq
        %v6938 = vshrl.u32 %v6937, 7
        %v6939 = vsub.s32 0, %v6938
        %v6940 = vrot.slane %v6874, %v6939
        %v6941 = vlaneseq
        %v6942 = vshrl.u32 %v6941, 7
        %v6943 = vsub.s32 0, %v6942
        %v6944 = vrot.slane %v6857, %v6943
        %v6945 = vlaneseq
        %v6946 = vshrl.u32 %v6945, 7
        %v6947 = vsub.s32 0, %v6946
        %v6948 = vrot.slane %v6871, %v6947
        %v6949 = vlaneseq
        %v6950 = vshrl.u32 %v6949, 7
        %v6951 = vsub.s32 0, %v6950
        %v6952 = vrot.slane %v6873, %v6951
        %v6953 = vlaneseq
        %v6954 = vshrl.u32 %v6953, 7
        %v6955 = vsub.s32 0, %v6954
        %v6956 = vrot.slane %v6875, %v6955
        %v6957 = vlaneseq
        %v6958 = vshrl.u32 %v6957, 7
        %v6959 = vsub.s32 0, %v6958
        %v6960 = vrot.slane %v6899, %v6959
        %v6961 = vlaneseq
        %v6962 = vshrl.u32 %v6961, 7
        %v6963 = vsub.s32 0, %v6962
        %v6964 = vrot.slane %v6913, %v6963
        %v6965 = vlaneseq
        %v6966 = vshrl.u32 %v6965, 7
        %v6967 = vsub.s32 0, %v6966
        %v6968 = vrot.slane %v6921, %v6967
        %v6969 = vlaneseq
        %v6970 = vshrl.u32 %v6969, 7
        %v6971 = vsub.s32 0, %v6970
        %v6972 = vrot.slane %v6923, %v6971
        %v6973 = vlaneseq
        %v6974 = vshrl.u32 %v6973, 7
        %v6975 = vsub.s32 0, %v6974
        %v6976 = vrot.slane %v6906, %v6975
        %v6977 = vlaneseq
        %v6978 = vshrl.u32 %v6977, 7
        %v6979 = vsub.s32 0, %v6978
        %v6980 = vrot.slane %v6920, %v6979
        %v6981 = vlaneseq
        %v6982 = vshrl.u32 %v6981, 7
        %v6983 = vsub.s32 0, %v6982
        %v6984 = vrot.slane %v6922, %v6983
        %v6985 = vlaneseq
        %v6986 = vshrl.u32 %v6985, 7
        %v6987 = vsub.s32 0, %v6986
        %v6988 = vrot.slane %v6924, %v6987
        %v7005 = vmul.f32 %v6928, %v232
        %v7006 = vmul.f32 %v6932, %v232
        %v7007 = vmul.f32 %v6936, %v232
        %v7008 = vmul.f32 %v6940, %v232
        %v7009 = vmul.f32 %v6944, %v232
        %v7010 = vmul.f32 %v6948, %v232
        %v7011 = vmul.f32 %v6952, %v232
        %v7012 = vmul.f32 %v6956, %v232
        %v7013 = vmul.f32 %v6960, %v232
        %v7014 = vmul.f32 %v6964, %v232
        %v7015 = vmul.f32 %v6968, %v232
        %v7016 = vmul.f32 %v6972, %v232
        %v7017 = vmul.f32 %v6976, %v232
        %v7018 = vmul.f32 %v6980, %v232
        %v7019 = vmul.f32 %v6984, %v232
        %v7020 = vmul.f32 %v6988, %v232
        %v7021 = vadd.f32 %v6803, %v7005
        %v7022 = vadd.f32 %v6804, %v7006
        %v7023 = vadd.f32 %v6805, %v7007
        %v7024 = vadd.f32 %v6806, %v7008
        %v7025 = vadd.f32 %v6807, %v7009
        %v7026 = vadd.f32 %v6808, %v7010
        %v7027 = vadd.f32 %v6809, %v7011
        %v7028 = vadd.f32 %v6810, %v7012
        %v7029 = vadd.f32 %v6811, %v7013
        %v7030 = vadd.f32 %v6812, %v7014
        %v7031 = vadd.f32 %v6813, %v7015
        %v7032 = vadd.f32 %v6814, %v7016
        %v7033 = vadd.f32 %v6815, %v7017
        %v7034 = vadd.f32 %v6816, %v7018
        %v7035 = vadd.f32 %v6817, %v7019
        %v7036 = vadd.f32 %v6818, %v7020
        %v7037 = vmul.f32 %v233, %v233
        %v7038 = vadd.f32 %v6820, %v7037
        %v7039 = vmul.f32 %v296, %v296
        %v7040 = vmul.f32 %v297, %v297
        %v7041 = vadd.f32 %v6823, %v7039
        %v7042 = vadd.f32 %v6824, %v7040
        %v7045 = vcombine.high %v296, %v296
        %v7047 = vunpack.c.l.s4 1966171168
        %v7048 = vunpack.c.0.s8 %v7047
        %v7049 = vlaneseq
        %v7050 = vshrl.u32 %v7049, 7
        %v7051 = vsub.s32 %v7048, %v7050
        %v7052 = vrot.slane %v296, %v7051
        %v7054 = vunpack.c.l.s4 1966171168
        %v7055 = vunpack.c.0.s8 %v7054
        %v7056 = vlaneseq
        %v7057 = vshrl.u32 %v7056, 7
        %v7058 = vsub.s32 %v7055, %v7057
        %v7059 = vrot.slane %v7045, %v7058
        %v7060 = vcombine.high %v7052, %v7052
        %v7061 = vcombine.high %v7059, %v7059
        %v7063 = vunpack.c.l.s4 1966171168
        %v7064 = vunpack.c.0.s8 %v7063
        %v7065 = vlaneseq
        %v7066 = vshrl.u32 %v7065, 7
        %v7067 = vsub.s32 %v7064, %v7066
        %v7068 = vrot.slane %v7052, %v7067
        %v7070 = vunpack.c.l.s4 1966171168
        %v7071 = vunpack.c.0.s8 %v7070
        %v7072 = vlaneseq
        %v7073 = vshrl.u32 %v7072, 7
        %v7074 = vsub.s32 %v7071, %v7073
        %v7075 = vrot.slane %v7059, %v7074
        %v7077 = vunpack.c.l.s4 1966171168
        %v7078 = vunpack.c.0.s8 %v7077
        %v7079 = vlaneseq
        %v7080 = vshrl.u32 %v7079, 7
        %v7081 = vsub.s32 %v7078, %v7080
        %v7082 = vrot.slane %v7060, %v7081
        %v7084 = vunpack.c.l.s4 1966171168
        %v7085 = vunpack.c.0.s8 %v7084
        %v7086 = vlaneseq
        %v7087 = vshrl.u32 %v7086, 7
        %v7088 = vsub.s32 %v7085, %v7087
        %v7089 = vrot.slane %v7061, %v7088
        %v7090 = vcombine.high %v7068, %v7068
        %v7091 = vcombine.high %v7075, %v7075
        %v7092 = vcombine.high %v7082, %v7082
        %v7093 = vcombine.high %v7089, %v7089
        %v7094 = vcombine.high %v297, %v297
        %v7096 = vunpack.c.l.s4 1966171168
        %v7097 = vunpack.c.0.s8 %v7096
        %v7098 = vlaneseq
        %v7099 = vshrl.u32 %v7098, 7
        %v7100 = vsub.s32 %v7097, %v7099
        %v7101 = vrot.slane %v297, %v7100
        %v7103 = vunpack.c.l.s4 1966171168
        %v7104 = vunpack.c.0.s8 %v7103
        %v7105 = vlaneseq
        %v7106 = vshrl.u32 %v7105, 7
        %v7107 = vsub.s32 %v7104, %v7106
        %v7108 = vrot.slane %v7094, %v7107
        %v7109 = vcombine.high %v7101, %v7101
        %v7110 = vcombine.high %v7108, %v7108
        %v7112 = vunpack.c.l.s4 1966171168
        %v7113 = vunpack.c.0.s8 %v7112
        %v7114 = vlaneseq
        %v7115 = vshrl.u32 %v7114, 7
        %v7116 = vsub.s32 %v7113, %v7115
        %v7117 = vrot.slane %v7101, %v7116
        %v7119 = vunpack.c.l.s4 1966171168
        %v7120 = vunpack.c.0.s8 %v7119
        %v7121 = vlaneseq
        %v7122 = vshrl.u32 %v7121, 7
        %v7123 = vsub.s32 %v7120, %v7122
        %v7124 = vrot.slane %v7108, %v7123
        %v7126 = vunpack.c.l.s4 1966171168
        %v7127 = vunpack.c.0.s8 %v7126
        %v7128 = vlaneseq
        %v7129 = vshrl.u32 %v7128, 7
        %v7130 = vsub.s32 %v7127, %v7129
        %v7131 = vrot.slane %v7109, %v7130
        %v7133 = vunpack.c.l.s4 1966171168
        %v7134 = vunpack.c.0.s8 %v7133
        %v7135 = vlaneseq
        %v7136 = vshrl.u32 %v7135, 7
        %v7137 = vsub.s32 %v7134, %v7136
        %v7138 = vrot.slane %v7110, %v7137
        %v7139 = vcombine.high %v7117, %v7117
        %v7140 = vcombine.high %v7124, %v7124
        %v7141 = vcombine.high %v7131, %v7131
        %v7142 = vcombine.high %v7138, %v7138
        %v7143 = vlaneseq
        %v7144 = vshrl.u32 %v7143, 7
        %v7145 = vsub.s32 0, %v7144
        %v7146 = vrot.slane %v7068, %v7145
        %v7147 = vlaneseq
        %v7148 = vshrl.u32 %v7147, 7
        %v7149 = vsub.s32 0, %v7148
        %v7150 = vrot.slane %v7082, %v7149
        %v7151 = vlaneseq
        %v7152 = vshrl.u32 %v7151, 7
        %v7153 = vsub.s32 0, %v7152
        %v7154 = vrot.slane %v7090, %v7153
        %v7155 = vlaneseq
        %v7156 = vshrl.u32 %v7155, 7
        %v7157 = vsub.s32 0, %v7156
        %v7158 = vrot.slane %v7092, %v7157
        %v7159 = vlaneseq
        %v7160 = vshrl.u32 %v7159, 7
        %v7161 = vsub.s32 0, %v7160
        %v7162 = vrot.slane %v7075, %v7161
        %v7163 = vlaneseq
        %v7164 = vshrl.u32 %v7163, 7
        %v7165 = vsub.s32 0, %v7164
        %v7166 = vrot.slane %v7089, %v7165
        %v7167 = vlaneseq
        %v7168 = vshrl.u32 %v7167, 7
        %v7169 = vsub.s32 0, %v7168
        %v7170 = vrot.slane %v7091, %v7169
        %v7171 = vlaneseq
        %v7172 = vshrl.u32 %v7171, 7
        %v7173 = vsub.s32 0, %v7172
        %v7174 = vrot.slane %v7093, %v7173
        %v7175 = vlaneseq
        %v7176 = vshrl.u32 %v7175, 7
        %v7177 = vsub.s32 0, %v7176
        %v7178 = vrot.slane %v7117, %v7177
        %v7179 = vlaneseq
        %v7180 = vshrl.u32 %v7179, 7
        %v7181 = vsub.s32 0, %v7180
        %v7182 = vrot.slane %v7131, %v7181
        %v7183 = vlaneseq
        %v7184 = vshrl.u32 %v7183, 7
        %v7185 = vsub.s32 0, %v7184
        %v7186 = vrot.slane %v7139, %v7185
        %v7187 = vlaneseq
        %v7188 = vshrl.u32 %v7187, 7
        %v7189 = vsub.s32 0, %v7188
        %v7190 = vrot.slane %v7141, %v7189
        %v7191 = vlaneseq
        %v7192 = vshrl.u32 %v7191, 7
        %v7193 = vsub.s32 0, %v7192
        %v7194 = vrot.slane %v7124, %v7193
        %v7195 = vlaneseq
        %v7196 = vshrl.u32 %v7195, 7
        %v7197 = vsub.s32 0, %v7196
        %v7198 = vrot.slane %v7138, %v7197
        %v7199 = vlaneseq
        %v7200 = vshrl.u32 %v7199, 7
        %v7201 = vsub.s32 0, %v7200
        %v7202 = vrot.slane %v7140, %v7201
        %v7203 = vlaneseq
        %v7204 = vshrl.u32 %v7203, 7
        %v7205 = vsub.s32 0, %v7204
        %v7206 = vrot.slane %v7142, %v7205
        %v7223 = vmul.f32 %v7146, %v233
        %v7224 = vmul.f32 %v7150, %v233
        %v7225 = vmul.f32 %v7154, %v233
        %v7226 = vmul.f32 %v7158, %v233
        %v7227 = vmul.f32 %v7162, %v233
        %v7228 = vmul.f32 %v7166, %v233
        %v7229 = vmul.f32 %v7170, %v233
        %v7230 = vmul.f32 %v7174, %v233
        %v7231 = vmul.f32 %v7178, %v233
        %v7232 = vmul.f32 %v7182, %v233
        %v7233 = vmul.f32 %v7186, %v233
        %v7234 = vmul.f32 %v7190, %v233
        %v7235 = vmul.f32 %v7194, %v233
        %v7236 = vmul.f32 %v7198, %v233
        %v7237 = vmul.f32 %v7202, %v233
        %v7238 = vmul.f32 %v7206, %v233
        %v7239 = vadd.f32 %v7021, %v7223
        %v7240 = vadd.f32 %v7022, %v7224
        %v7241 = vadd.f32 %v7023, %v7225
        %v7242 = vadd.f32 %v7024, %v7226
        %v7243 = vadd.f32 %v7025, %v7227
        %v7244 = vadd.f32 %v7026, %v7228
        %v7245 = vadd.f32 %v7027, %v7229
        %v7246 = vadd.f32 %v7028, %v7230
        %v7247 = vadd.f32 %v7029, %v7231
        %v7248 = vadd.f32 %v7030, %v7232
        %v7249 = vadd.f32 %v7031, %v7233
        %v7250 = vadd.f32 %v7032, %v7234
        %v7251 = vadd.f32 %v7033, %v7235
        %v7252 = vadd.f32 %v7034, %v7236
        %v7253 = vadd.f32 %v7035, %v7237
        %v7254 = vadd.f32 %v7036, %v7238
        %v7255 = vmax.f32 %v7038, 1e-24
        %v7256 = vrsqrt.pop %v7255
        %v7257 = vmax.f32 %v7041, 1e-24
        %v7258 = vmax.f32 %v7042, 1e-24
        %v7259 = vrsqrt.pop %v7257
        %v7260 = vrsqrt.pop %v7258
        %v7263 = vcombine.high %v7259, %v7259
        %v7265 = vunpack.c.l.s4 1966171168
        %v7266 = vunpack.c.0.s8 %v7265
        %v7267 = vlaneseq
        %v7268 = vshrl.u32 %v7267, 7
        %v7269 = vsub.s32 %v7266, %v7268
        %v7270 = vrot.slane %v7259, %v7269
        %v7272 = vunpack.c.l.s4 1966171168
        %v7273 = vunpack.c.0.s8 %v7272
        %v7274 = vlaneseq
        %v7275 = vshrl.u32 %v7274, 7
        %v7276 = vsub.s32 %v7273, %v7275
        %v7277 = vrot.slane %v7263, %v7276
        %v7278 = vcombine.high %v7270, %v7270
        %v7279 = vcombine.high %v7277, %v7277
        %v7281 = vunpack.c.l.s4 1966171168
        %v7282 = vunpack.c.0.s8 %v7281
        %v7283 = vlaneseq
        %v7284 = vshrl.u32 %v7283, 7
        %v7285 = vsub.s32 %v7282, %v7284
        %v7286 = vrot.slane %v7270, %v7285
        %v7288 = vunpack.c.l.s4 1966171168
        %v7289 = vunpack.c.0.s8 %v7288
        %v7290 = vlaneseq
        %v7291 = vshrl.u32 %v7290, 7
        %v7292 = vsub.s32 %v7289, %v7291
        %v7293 = vrot.slane %v7277, %v7292
        %v7295 = vunpack.c.l.s4 1966171168
        %v7296 = vunpack.c.0.s8 %v7295
        %v7297 = vlaneseq
        %v7298 = vshrl.u32 %v7297, 7
        %v7299 = vsub.s32 %v7296, %v7298
        %v7300 = vrot.slane %v7278, %v7299
        %v7302 = vunpack.c.l.s4 1966171168
        %v7303 = vunpack.c.0.s8 %v7302
        %v7304 = vlaneseq
        %v7305 = vshrl.u32 %v7304, 7
        %v7306 = vsub.s32 %v7303, %v7305
        %v7307 = vrot.slane %v7279, %v7306
        %v7308 = vcombine.high %v7286, %v7286
        %v7309 = vcombine.high %v7293, %v7293
        %v7310 = vcombine.high %v7300, %v7300
        %v7311 = vcombine.high %v7307, %v7307
        %v7312 = vcombine.high %v7260, %v7260
        %v7314 = vunpack.c.l.s4 1966171168
        %v7315 = vunpack.c.0.s8 %v7314
        %v7316 = vlaneseq
        %v7317 = vshrl.u32 %v7316, 7
        %v7318 = vsub.s32 %v7315, %v7317
        %v7319 = vrot.slane %v7260, %v7318
        %v7321 = vunpack.c.l.s4 1966171168
        %v7322 = vunpack.c.0.s8 %v7321
        %v7323 = vlaneseq
        %v7324 = vshrl.u32 %v7323, 7
        %v7325 = vsub.s32 %v7322, %v7324
        %v7326 = vrot.slane %v7312, %v7325
        %v7327 = vcombine.high %v7319, %v7319
        %v7328 = vcombine.high %v7326, %v7326
        %v7330 = vunpack.c.l.s4 1966171168
        %v7331 = vunpack.c.0.s8 %v7330
        %v7332 = vlaneseq
        %v7333 = vshrl.u32 %v7332, 7
        %v7334 = vsub.s32 %v7331, %v7333
        %v7335 = vrot.slane %v7319, %v7334
        %v7337 = vunpack.c.l.s4 1966171168
        %v7338 = vunpack.c.0.s8 %v7337
        %v7339 = vlaneseq
        %v7340 = vshrl.u32 %v7339, 7
        %v7341 = vsub.s32 %v7338, %v7340
        %v7342 = vrot.slane %v7326, %v7341
        %v7344 = vunpack.c.l.s4 1966171168
        %v7345 = vunpack.c.0.s8 %v7344
        %v7346 = vlaneseq
        %v7347 = vshrl.u32 %v7346, 7
        %v7348 = vsub.s32 %v7345, %v7347
        %v7349 = vrot.slane %v7327, %v7348
        %v7351 = vunpack.c.l.s4 1966171168
        %v7352 = vunpack.c.0.s8 %v7351
        %v7353 = vlaneseq
        %v7354 = vshrl.u32 %v7353, 7
        %v7355 = vsub.s32 %v7352, %v7354
        %v7356 = vrot.slane %v7328, %v7355
        %v7357 = vcombine.high %v7335, %v7335
        %v7358 = vcombine.high %v7342, %v7342
        %v7359 = vcombine.high %v7349, %v7349
        %v7360 = vcombine.high %v7356, %v7356
        %v7361 = vlaneseq
        %v7362 = vshrl.u32 %v7361, 7
        %v7363 = vsub.s32 0, %v7362
        %v7364 = vrot.slane %v7286, %v7363
        %v7365 = vlaneseq
        %v7366 = vshrl.u32 %v7365, 7
        %v7367 = vsub.s32 0, %v7366
        %v7368 = vrot.slane %v7300, %v7367
        %v7369 = vlaneseq
        %v7370 = vshrl.u32 %v7369, 7
        %v7371 = vsub.s32 0, %v7370
        %v7372 = vrot.slane %v7308, %v7371
        %v7373 = vlaneseq
        %v7374 = vshrl.u32 %v7373, 7
        %v7375 = vsub.s32 0, %v7374
        %v7376 = vrot.slane %v7310, %v7375
        %v7377 = vlaneseq
        %v7378 = vshrl.u32 %v7377, 7
        %v7379 = vsub.s32 0, %v7378
        %v7380 = vrot.slane %v7293, %v7379
        %v7381 = vlaneseq
        %v7382 = vshrl.u32 %v7381, 7
        %v7383 = vsub.s32 0, %v7382
        %v7384 = vrot.slane %v7307, %v7383
        %v7385 = vlaneseq
        %v7386 = vshrl.u32 %v7385, 7
        %v7387 = vsub.s32 0, %v7386
        %v7388 = vrot.slane %v7309, %v7387
        %v7389 = vlaneseq
        %v7390 = vshrl.u32 %v7389, 7
        %v7391 = vsub.s32 0, %v7390
        %v7392 = vrot.slane %v7311, %v7391
        %v7393 = vlaneseq
        %v7394 = vshrl.u32 %v7393, 7
        %v7395 = vsub.s32 0, %v7394
        %v7396 = vrot.slane %v7335, %v7395
        %v7397 = vlaneseq
        %v7398 = vshrl.u32 %v7397, 7
        %v7399 = vsub.s32 0, %v7398
        %v7400 = vrot.slane %v7349, %v7399
        %v7401 = vlaneseq
        %v7402 = vshrl.u32 %v7401, 7
        %v7403 = vsub.s32 0, %v7402
        %v7404 = vrot.slane %v7357, %v7403
        %v7405 = vlaneseq
        %v7406 = vshrl.u32 %v7405, 7
        %v7407 = vsub.s32 0, %v7406
        %v7408 = vrot.slane %v7359, %v7407
        %v7409 = vlaneseq
        %v7410 = vshrl.u32 %v7409, 7
        %v7411 = vsub.s32 0, %v7410
        %v7412 = vrot.slane %v7342, %v7411
        %v7413 = vlaneseq
        %v7414 = vshrl.u32 %v7413, 7
        %v7415 = vsub.s32 0, %v7414
        %v7416 = vrot.slane %v7356, %v7415
        %v7417 = vlaneseq
        %v7418 = vshrl.u32 %v7417, 7
        %v7419 = vsub.s32 0, %v7418
        %v7420 = vrot.slane %v7358, %v7419
        %v7421 = vlaneseq
        %v7422 = vshrl.u32 %v7421, 7
        %v7423 = vsub.s32 0, %v7422
        %v7424 = vrot.slane %v7360, %v7423
        %v7441 = vmul.f32 %v7239, %v7364
        %v7442 = vmul.f32 %v7240, %v7368
        %v7443 = vmul.f32 %v7241, %v7372
        %v7444 = vmul.f32 %v7242, %v7376
        %v7445 = vmul.f32 %v7243, %v7380
        %v7446 = vmul.f32 %v7244, %v7384
        %v7447 = vmul.f32 %v7245, %v7388
        %v7448 = vmul.f32 %v7246, %v7392
        %v7449 = vmul.f32 %v7247, %v7396
        %v7450 = vmul.f32 %v7248, %v7400
        %v7451 = vmul.f32 %v7249, %v7404
        %v7452 = vmul.f32 %v7250, %v7408
        %v7453 = vmul.f32 %v7251, %v7412
        %v7454 = vmul.f32 %v7252, %v7416
        %v7455 = vmul.f32 %v7253, %v7420
        %v7456 = vmul.f32 %v7254, %v7424
        %v7457 = vmul.f32 %v7441, %v7256
        %v7458 = vmul.f32 %v7442, %v7256
        %v7459 = vmul.f32 %v7443, %v7256
        %v7460 = vmul.f32 %v7444, %v7256
        %v7461 = vmul.f32 %v7445, %v7256
        %v7462 = vmul.f32 %v7446, %v7256
        %v7463 = vmul.f32 %v7447, %v7256
        %v7464 = vmul.f32 %v7448, %v7256
        %v7465 = vmul.f32 %v7449, %v7256
        %v7466 = vmul.f32 %v7450, %v7256
        %v7467 = vmul.f32 %v7451, %v7256
        %v7468 = vmul.f32 %v7452, %v7256
        %v7469 = vmul.f32 %v7453, %v7256
        %v7470 = vmul.f32 %v7454, %v7256
        %v7471 = vmul.f32 %v7455, %v7256
        %v7472 = vmul.f32 %v7456, %v7256
        %v7473 = vsub.f32 %v7457, -0.95
        %v7474 = vsub.f32 %v7458, -0.95
        %v7475 = vsub.f32 %v7459, -0.95
        %v7476 = vsub.f32 %v7460, -0.95
        %v7477 = vsub.f32 %v7461, -0.95
        %v7478 = vsub.f32 %v7462, -0.95
        %v7479 = vsub.f32 %v7463, -0.95
        %v7480 = vsub.f32 %v7464, -0.95
        %v7481 = vsub.f32 %v7465, -0.95
        %v7482 = vsub.f32 %v7466, -0.95
        %v7483 = vsub.f32 %v7467, -0.95
        %v7484 = vsub.f32 %v7468, -0.95
        %v7485 = vsub.f32 %v7469, -0.95
        %v7486 = vsub.f32 %v7470, -0.95
        %v7487 = vsub.f32 %v7471, -0.95
        %v7488 = vsub.f32 %v7472, -0.95
        %v7489 = vmul.f32 %v7473, %v7473
        %v7490 = vmul.f32 %v7474, %v7474
        %v7491 = vmul.f32 %v7475, %v7475
        %v7492 = vmul.f32 %v7476, %v7476
        %v7493 = vmul.f32 %v7477, %v7477
        %v7494 = vmul.f32 %v7478, %v7478
        %v7495 = vmul.f32 %v7479, %v7479
        %v7496 = vmul.f32 %v7480, %v7480
        %v7497 = vmul.f32 %v7481, %v7481
        %v7498 = vmul.f32 %v7482, %v7482
        %v7499 = vmul.f32 %v7483, %v7483
        %v7500 = vmul.f32 %v7484, %v7484
        %v7501 = vmul.f32 %v7485, %v7485
        %v7502 = vmul.f32 %v7486, %v7486
        %v7503 = vmul.f32 %v7487, %v7487
        %v7504 = vmul.f32 %v7488, %v7488
        %v7505 = vmul.f32 %v7489, -50.0
        %v7506 = vmul.f32 %v7490, -50.0
        %v7507 = vmul.f32 %v7491, -50.0
        %v7508 = vmul.f32 %v7492, -50.0
        %v7509 = vmul.f32 %v7493, -50.0
        %v7510 = vmul.f32 %v7494, -50.0
        %v7511 = vmul.f32 %v7495, -50.0
        %v7512 = vmul.f32 %v7496, -50.0
        %v7513 = vmul.f32 %v7497, -50.0
        %v7514 = vmul.f32 %v7498, -50.0
        %v7515 = vmul.f32 %v7499, -50.0
        %v7516 = vmul.f32 %v7500, -50.0
        %v7517 = vmul.f32 %v7501, -50.0
        %v7518 = vmul.f32 %v7502, -50.0
        %v7519 = vmul.f32 %v7503, -50.0
        %v7520 = vmul.f32 %v7504, -50.0
        %v7521 = vmul.f32 %v7505, 1.442695
        %v7522 = vpow.pop %v7521
        %v7523 = vmul.f32 %v7506, 1.442695
        %v7524 = vpow.pop %v7523
        %v7525 = vmul.f32 %v7507, 1.442695
        %v7526 = vpow.pop %v7525
        %v7527 = vmul.f32 %v7508, 1.442695
        %v7528 = vpow.pop %v7527
        %v7529 = vmul.f32 %v7509, 1.442695
        %v7530 = vpow.pop %v7529
        %v7531 = vmul.f32 %v7510, 1.442695
        %v7532 = vpow.pop %v7531
        %v7533 = vmul.f32 %v7511, 1.442695
        %v7534 = vpow.pop %v7533
        %v7535 = vmul.f32 %v7512, 1.442695
        %v7536 = vpow.pop %v7535
        %v7537 = vmul.f32 %v7513, 1.442695
        %v7538 = vpow.pop %v7537
        %v7539 = vmul.f32 %v7514, 1.442695
        %v7540 = vpow.pop %v7539
        %v7541 = vmul.f32 %v7515, 1.442695
        %v7542 = vpow.pop %v7541
        %v7543 = vmul.f32 %v7516, 1.442695
        %v7544 = vpow.pop %v7543
        %v7545 = vmul.f32 %v7517, 1.442695
        %v7546 = vpow.pop %v7545
        %v7547 = vmul.f32 %v7518, 1.442695
        %v7548 = vpow.pop %v7547
        %v7549 = vmul.f32 %v7519, 1.442695
        %v7550 = vpow.pop %v7549
        %v7551 = vmul.f32 %v7520, 1.442695
        %v7552 = vpow.pop %v7551
        %vm7553 = vcmask 64512
        %v7554 = vsel %vm7553, %v7522, 0.0
        %v7555 = vsel %vm7553, %v7524, 0.0
        %v7556 = vadd.f32 %v7554, %v7555
        %v7557 = vsel %vm7553, %v7526, 0.0
        %v7558 = vadd.f32 %v7556, %v7557
        %v7559 = vsel %vm7553, %v7528, 0.0
        %v7560 = vadd.f32 %v7558, %v7559
        %v7561 = vsel %vm7553, %v7530, 0.0
        %v7562 = vadd.f32 %v7560, %v7561
        %v7563 = vsel %vm7553, %v7532, 0.0
        %v7564 = vadd.f32 %v7562, %v7563
        %v7565 = vsel %vm7553, %v7534, 0.0
        %v7566 = vadd.f32 %v7564, %v7565
        %v7567 = vsel %vm7553, %v7536, 0.0
        %v7568 = vadd.f32 %v7566, %v7567
        %v7569 = vsel %vm7553, %v7538, 0.0
        %v7570 = vadd.f32 %v7568, %v7569
        %v7571 = vsel %vm7553, %v7540, 0.0
        %v7572 = vadd.f32 %v7570, %v7571
        %v7573 = vsel %vm7553, %v7542, 0.0
        %v7574 = vadd.f32 %v7572, %v7573
        %v7575 = vsel %vm7553, %v7544, 0.0
        %v7576 = vadd.f32 %v7574, %v7575
        %v7577 = vsel %vm7553, %v7546, 0.0
        %v7578 = vadd.f32 %v7576, %v7577
        %v7579 = vsel %vm7553, %v7548, 0.0
        %v7580 = vadd.f32 %v7578, %v7579
        %v7581 = vsel %vm7553, %v7550, 0.0
        %v7582 = vadd.f32 %v7580, %v7581
        %v7583 = vsel %vm7553, %v7552, 0.0
        %v7584 = vadd.f32 %v7582, %v7583
        %v7585 = vadd.f32 %v7584, 1.0
        %v7586 = vlog2.pop %v7585
        %v7587 = vmul.f32 %v7586, 0.6931472
        %v7588 = vsel %vm7553, %v7587, 0.0
        %v7589 = vrot.slane %v7588, 4
        %v7590 = vadd.f32 %v7588, %v7589
        %v7591 = vrot.slane %v7590, 2
        %v7592 = vadd.f32 %v7590, %v7591
        %v7593 = vrot.slane %v7592, 1
        %v7594 = vadd.f32 %v7592, %v7593
        %s7595 = sld [smem:[#allocation2]]
        %v7596 = vstv %s7595
        %v7597 = vmul.f32 %v7594, %v7596
        %v7598 = vadd.f32 %v7597, 0.0
        %v7599 = vsub.f32 %v7457, -0.85
        %v7600 = vsub.f32 %v7458, -0.85
        %v7601 = vsub.f32 %v7459, -0.85
        %v7602 = vsub.f32 %v7460, -0.85
        %v7603 = vsub.f32 %v7461, -0.85
        %v7604 = vsub.f32 %v7462, -0.85
        %v7605 = vsub.f32 %v7463, -0.85
        %v7606 = vsub.f32 %v7464, -0.85
        %v7607 = vsub.f32 %v7465, -0.85
        %v7608 = vsub.f32 %v7466, -0.85
        %v7609 = vsub.f32 %v7467, -0.85
        %v7610 = vsub.f32 %v7468, -0.85
        %v7611 = vsub.f32 %v7469, -0.85
        %v7612 = vsub.f32 %v7470, -0.85
        %v7613 = vsub.f32 %v7471, -0.85
        %v7614 = vsub.f32 %v7472, -0.85
        %v7615 = vmul.f32 %v7599, %v7599
        %v7616 = vmul.f32 %v7600, %v7600
        %v7617 = vmul.f32 %v7601, %v7601
        %v7618 = vmul.f32 %v7602, %v7602
        %v7619 = vmul.f32 %v7603, %v7603
        %v7620 = vmul.f32 %v7604, %v7604
        %v7621 = vmul.f32 %v7605, %v7605
        %v7622 = vmul.f32 %v7606, %v7606
        %v7623 = vmul.f32 %v7607, %v7607
        %v7624 = vmul.f32 %v7608, %v7608
        %v7625 = vmul.f32 %v7609, %v7609
        %v7626 = vmul.f32 %v7610, %v7610
        %v7627 = vmul.f32 %v7611, %v7611
        %v7628 = vmul.f32 %v7612, %v7612
        %v7629 = vmul.f32 %v7613, %v7613
        %v7630 = vmul.f32 %v7614, %v7614
        %v7631 = vmul.f32 %v7615, -50.0
        %v7632 = vmul.f32 %v7616, -50.0
        %v7633 = vmul.f32 %v7617, -50.0
        %v7634 = vmul.f32 %v7618, -50.0
        %v7635 = vmul.f32 %v7619, -50.0
        %v7636 = vmul.f32 %v7620, -50.0
        %v7637 = vmul.f32 %v7621, -50.0
        %v7638 = vmul.f32 %v7622, -50.0
        %v7639 = vmul.f32 %v7623, -50.0
        %v7640 = vmul.f32 %v7624, -50.0
        %v7641 = vmul.f32 %v7625, -50.0
        %v7642 = vmul.f32 %v7626, -50.0
        %v7643 = vmul.f32 %v7627, -50.0
        %v7644 = vmul.f32 %v7628, -50.0
        %v7645 = vmul.f32 %v7629, -50.0
        %v7646 = vmul.f32 %v7630, -50.0
        %v7647 = vmul.f32 %v7631, 1.442695
        %v7648 = vpow.pop %v7647
        %v7649 = vmul.f32 %v7632, 1.442695
        %v7650 = vpow.pop %v7649
        %v7651 = vmul.f32 %v7633, 1.442695
        %v7652 = vpow.pop %v7651
        %v7653 = vmul.f32 %v7634, 1.442695
        %v7654 = vpow.pop %v7653
        %v7655 = vmul.f32 %v7635, 1.442695
        %v7656 = vpow.pop %v7655
        %v7657 = vmul.f32 %v7636, 1.442695
        %v7658 = vpow.pop %v7657
        %v7659 = vmul.f32 %v7637, 1.442695
        %v7660 = vpow.pop %v7659
        %v7661 = vmul.f32 %v7638, 1.442695
        %v7662 = vpow.pop %v7661
        %v7663 = vmul.f32 %v7639, 1.442695
        %v7664 = vpow.pop %v7663
        %v7665 = vmul.f32 %v7640, 1.442695
        %v7666 = vpow.pop %v7665
        %v7667 = vmul.f32 %v7641, 1.442695
        %v7668 = vpow.pop %v7667
        %v7669 = vmul.f32 %v7642, 1.442695
        %v7670 = vpow.pop %v7669
        %v7671 = vmul.f32 %v7643, 1.442695
        %v7672 = vpow.pop %v7671
        %v7673 = vmul.f32 %v7644, 1.442695
        %v7674 = vpow.pop %v7673
        %v7675 = vmul.f32 %v7645, 1.442695
        %v7676 = vpow.pop %v7675
        %v7677 = vmul.f32 %v7646, 1.442695
        %v7678 = vpow.pop %v7677
        %v7679 = vsel %vm7553, %v7648, 0.0
        %v7680 = vsel %vm7553, %v7650, 0.0
        %v7681 = vadd.f32 %v7679, %v7680
        %v7682 = vsel %vm7553, %v7652, 0.0
        %v7683 = vadd.f32 %v7681, %v7682
        %v7684 = vsel %vm7553, %v7654, 0.0
        %v7685 = vadd.f32 %v7683, %v7684
        %v7686 = vsel %vm7553, %v7656, 0.0
        %v7687 = vadd.f32 %v7685, %v7686
        %v7688 = vsel %vm7553, %v7658, 0.0
        %v7689 = vadd.f32 %v7687, %v7688
        %v7690 = vsel %vm7553, %v7660, 0.0
        %v7691 = vadd.f32 %v7689, %v7690
        %v7692 = vsel %vm7553, %v7662, 0.0
        %v7693 = vadd.f32 %v7691, %v7692
        %v7694 = vsel %vm7553, %v7664, 0.0
        %v7695 = vadd.f32 %v7693, %v7694
        %v7696 = vsel %vm7553, %v7666, 0.0
        %v7697 = vadd.f32 %v7695, %v7696
        %v7698 = vsel %vm7553, %v7668, 0.0
        %v7699 = vadd.f32 %v7697, %v7698
        %v7700 = vsel %vm7553, %v7670, 0.0
        %v7701 = vadd.f32 %v7699, %v7700
        %v7702 = vsel %vm7553, %v7672, 0.0
        %v7703 = vadd.f32 %v7701, %v7702
        %v7704 = vsel %vm7553, %v7674, 0.0
        %v7705 = vadd.f32 %v7703, %v7704
        %v7706 = vsel %vm7553, %v7676, 0.0
        %v7707 = vadd.f32 %v7705, %v7706
        %v7708 = vsel %vm7553, %v7678, 0.0
        %v7709 = vadd.f32 %v7707, %v7708
        %v7710 = vadd.f32 %v7709, 1.0
        %v7711 = vlog2.pop %v7710
        %v7712 = vmul.f32 %v7711, 0.6931472
        %v7713 = vsel %vm7553, %v7712, 0.0
        %v7714 = vrot.slane %v7713, 4
        %v7715 = vadd.f32 %v7713, %v7714
        %v7716 = vrot.slane %v7715, 2
        %v7717 = vadd.f32 %v7715, %v7716
        %v7718 = vrot.slane %v7717, 1
        %v7719 = vadd.f32 %v7717, %v7718
        %s7720 = sld [smem:[#allocation2 + $0x1]]
        %v7721 = vstv %s7720
        %v7722 = vmul.f32 %v7719, %v7721
        %v7723 = vadd.f32 %v7598, %v7722
        %v7724 = vsub.f32 %v7457, -0.75
        %v7725 = vsub.f32 %v7458, -0.75
        %v7726 = vsub.f32 %v7459, -0.75
        %v7727 = vsub.f32 %v7460, -0.75
        %v7728 = vsub.f32 %v7461, -0.75
        %v7729 = vsub.f32 %v7462, -0.75
        %v7730 = vsub.f32 %v7463, -0.75
        %v7731 = vsub.f32 %v7464, -0.75
        %v7732 = vsub.f32 %v7465, -0.75
        %v7733 = vsub.f32 %v7466, -0.75
        %v7734 = vsub.f32 %v7467, -0.75
        %v7735 = vsub.f32 %v7468, -0.75
        %v7736 = vsub.f32 %v7469, -0.75
        %v7737 = vsub.f32 %v7470, -0.75
        %v7738 = vsub.f32 %v7471, -0.75
        %v7739 = vsub.f32 %v7472, -0.75
        %v7740 = vmul.f32 %v7724, %v7724
        %v7741 = vmul.f32 %v7725, %v7725
        %v7742 = vmul.f32 %v7726, %v7726
        %v7743 = vmul.f32 %v7727, %v7727
        %v7744 = vmul.f32 %v7728, %v7728
        %v7745 = vmul.f32 %v7729, %v7729
        %v7746 = vmul.f32 %v7730, %v7730
        %v7747 = vmul.f32 %v7731, %v7731
        %v7748 = vmul.f32 %v7732, %v7732
        %v7749 = vmul.f32 %v7733, %v7733
        %v7750 = vmul.f32 %v7734, %v7734
        %v7751 = vmul.f32 %v7735, %v7735
        %v7752 = vmul.f32 %v7736, %v7736
        %v7753 = vmul.f32 %v7737, %v7737
        %v7754 = vmul.f32 %v7738, %v7738
        %v7755 = vmul.f32 %v7739, %v7739
        %v7756 = vmul.f32 %v7740, -50.0
        %v7757 = vmul.f32 %v7741, -50.0
        %v7758 = vmul.f32 %v7742, -50.0
        %v7759 = vmul.f32 %v7743, -50.0
        %v7760 = vmul.f32 %v7744, -50.0
        %v7761 = vmul.f32 %v7745, -50.0
        %v7762 = vmul.f32 %v7746, -50.0
        %v7763 = vmul.f32 %v7747, -50.0
        %v7764 = vmul.f32 %v7748, -50.0
        %v7765 = vmul.f32 %v7749, -50.0
        %v7766 = vmul.f32 %v7750, -50.0
        %v7767 = vmul.f32 %v7751, -50.0
        %v7768 = vmul.f32 %v7752, -50.0
        %v7769 = vmul.f32 %v7753, -50.0
        %v7770 = vmul.f32 %v7754, -50.0
        %v7771 = vmul.f32 %v7755, -50.0
        %v7772 = vmul.f32 %v7756, 1.442695
        %v7773 = vpow.pop %v7772
        %v7774 = vmul.f32 %v7757, 1.442695
        %v7775 = vpow.pop %v7774
        %v7776 = vmul.f32 %v7758, 1.442695
        %v7777 = vpow.pop %v7776
        %v7778 = vmul.f32 %v7759, 1.442695
        %v7779 = vpow.pop %v7778
        %v7780 = vmul.f32 %v7760, 1.442695
        %v7781 = vpow.pop %v7780
        %v7782 = vmul.f32 %v7761, 1.442695
        %v7783 = vpow.pop %v7782
        %v7784 = vmul.f32 %v7762, 1.442695
        %v7785 = vpow.pop %v7784
        %v7786 = vmul.f32 %v7763, 1.442695
        %v7787 = vpow.pop %v7786
        %v7788 = vmul.f32 %v7764, 1.442695
        %v7789 = vpow.pop %v7788
        %v7790 = vmul.f32 %v7765, 1.442695
        %v7791 = vpow.pop %v7790
        %v7792 = vmul.f32 %v7766, 1.442695
        %v7793 = vpow.pop %v7792
        %v7794 = vmul.f32 %v7767, 1.442695
        %v7795 = vpow.pop %v7794
        %v7796 = vmul.f32 %v7768, 1.442695
        %v7797 = vpow.pop %v7796
        %v7798 = vmul.f32 %v7769, 1.442695
        %v7799 = vpow.pop %v7798
        %v7800 = vmul.f32 %v7770, 1.442695
        %v7801 = vpow.pop %v7800
        %v7802 = vmul.f32 %v7771, 1.442695
        %v7803 = vpow.pop %v7802
        %v7804 = vsel %vm7553, %v7773, 0.0
        %v7805 = vsel %vm7553, %v7775, 0.0
        %v7806 = vadd.f32 %v7804, %v7805
        %v7807 = vsel %vm7553, %v7777, 0.0
        %v7808 = vadd.f32 %v7806, %v7807
        %v7809 = vsel %vm7553, %v7779, 0.0
        %v7810 = vadd.f32 %v7808, %v7809
        %v7811 = vsel %vm7553, %v7781, 0.0
        %v7812 = vadd.f32 %v7810, %v7811
        %v7813 = vsel %vm7553, %v7783, 0.0
        %v7814 = vadd.f32 %v7812, %v7813
        %v7815 = vsel %vm7553, %v7785, 0.0
        %v7816 = vadd.f32 %v7814, %v7815
        %v7817 = vsel %vm7553, %v7787, 0.0
        %v7818 = vadd.f32 %v7816, %v7817
        %v7819 = vsel %vm7553, %v7789, 0.0
        %v7820 = vadd.f32 %v7818, %v7819
        %v7821 = vsel %vm7553, %v7791, 0.0
        %v7822 = vadd.f32 %v7820, %v7821
        %v7823 = vsel %vm7553, %v7793, 0.0
        %v7824 = vadd.f32 %v7822, %v7823
        %v7825 = vsel %vm7553, %v7795, 0.0
        %v7826 = vadd.f32 %v7824, %v7825
        %v7827 = vsel %vm7553, %v7797, 0.0
        %v7828 = vadd.f32 %v7826, %v7827
        %v7829 = vsel %vm7553, %v7799, 0.0
        %v7830 = vadd.f32 %v7828, %v7829
        %v7831 = vsel %vm7553, %v7801, 0.0
        %v7832 = vadd.f32 %v7830, %v7831
        %v7833 = vsel %vm7553, %v7803, 0.0
        %v7834 = vadd.f32 %v7832, %v7833
        %v7835 = vadd.f32 %v7834, 1.0
        %v7836 = vlog2.pop %v7835
        %v7837 = vmul.f32 %v7836, 0.6931472
        %v7838 = vsel %vm7553, %v7837, 0.0
        %v7839 = vrot.slane %v7838, 4
        %v7840 = vadd.f32 %v7838, %v7839
        %v7841 = vrot.slane %v7840, 2
        %v7842 = vadd.f32 %v7840, %v7841
        %v7843 = vrot.slane %v7842, 1
        %v7844 = vadd.f32 %v7842, %v7843
        %s7845 = sld [smem:[#allocation2 + $0x2]]
        %v7846 = vstv %s7845
        %v7847 = vmul.f32 %v7844, %v7846
        %v7848 = vadd.f32 %v7723, %v7847
        %v7849 = vsub.f32 %v7457, -0.65
        %v7850 = vsub.f32 %v7458, -0.65
        %v7851 = vsub.f32 %v7459, -0.65
        %v7852 = vsub.f32 %v7460, -0.65
        %v7853 = vsub.f32 %v7461, -0.65
        %v7854 = vsub.f32 %v7462, -0.65
        %v7855 = vsub.f32 %v7463, -0.65
        %v7856 = vsub.f32 %v7464, -0.65
        %v7857 = vsub.f32 %v7465, -0.65
        %v7858 = vsub.f32 %v7466, -0.65
        %v7859 = vsub.f32 %v7467, -0.65
        %v7860 = vsub.f32 %v7468, -0.65
        %v7861 = vsub.f32 %v7469, -0.65
        %v7862 = vsub.f32 %v7470, -0.65
        %v7863 = vsub.f32 %v7471, -0.65
        %v7864 = vsub.f32 %v7472, -0.65
        %v7865 = vmul.f32 %v7849, %v7849
        %v7866 = vmul.f32 %v7850, %v7850
        %v7867 = vmul.f32 %v7851, %v7851
        %v7868 = vmul.f32 %v7852, %v7852
        %v7869 = vmul.f32 %v7853, %v7853
        %v7870 = vmul.f32 %v7854, %v7854
        %v7871 = vmul.f32 %v7855, %v7855
        %v7872 = vmul.f32 %v7856, %v7856
        %v7873 = vmul.f32 %v7857, %v7857
        %v7874 = vmul.f32 %v7858, %v7858
        %v7875 = vmul.f32 %v7859, %v7859
        %v7876 = vmul.f32 %v7860, %v7860
        %v7877 = vmul.f32 %v7861, %v7861
        %v7878 = vmul.f32 %v7862, %v7862
        %v7879 = vmul.f32 %v7863, %v7863
        %v7880 = vmul.f32 %v7864, %v7864
        %v7881 = vmul.f32 %v7865, -50.0
        %v7882 = vmul.f32 %v7866, -50.0
        %v7883 = vmul.f32 %v7867, -50.0
        %v7884 = vmul.f32 %v7868, -50.0
        %v7885 = vmul.f32 %v7869, -50.0
        %v7886 = vmul.f32 %v7870, -50.0
        %v7887 = vmul.f32 %v7871, -50.0
        %v7888 = vmul.f32 %v7872, -50.0
        %v7889 = vmul.f32 %v7873, -50.0
        %v7890 = vmul.f32 %v7874, -50.0
        %v7891 = vmul.f32 %v7875, -50.0
        %v7892 = vmul.f32 %v7876, -50.0
        %v7893 = vmul.f32 %v7877, -50.0
        %v7894 = vmul.f32 %v7878, -50.0
        %v7895 = vmul.f32 %v7879, -50.0
        %v7896 = vmul.f32 %v7880, -50.0
        %v7897 = vmul.f32 %v7881, 1.442695
        %v7898 = vpow.pop %v7897
        %v7899 = vmul.f32 %v7882, 1.442695
        %v7900 = vpow.pop %v7899
        %v7901 = vmul.f32 %v7883, 1.442695
        %v7902 = vpow.pop %v7901
        %v7903 = vmul.f32 %v7884, 1.442695
        %v7904 = vpow.pop %v7903
        %v7905 = vmul.f32 %v7885, 1.442695
        %v7906 = vpow.pop %v7905
        %v7907 = vmul.f32 %v7886, 1.442695
        %v7908 = vpow.pop %v7907
        %v7909 = vmul.f32 %v7887, 1.442695
        %v7910 = vpow.pop %v7909
        %v7911 = vmul.f32 %v7888, 1.442695
        %v7912 = vpow.pop %v7911
        %v7913 = vmul.f32 %v7889, 1.442695
        %v7914 = vpow.pop %v7913
        %v7915 = vmul.f32 %v7890, 1.442695
        %v7916 = vpow.pop %v7915
        %v7917 = vmul.f32 %v7891, 1.442695
        %v7918 = vpow.pop %v7917
        %v7919 = vmul.f32 %v7892, 1.442695
        %v7920 = vpow.pop %v7919
        %v7921 = vmul.f32 %v7893, 1.442695
        %v7922 = vpow.pop %v7921
        %v7923 = vmul.f32 %v7894, 1.442695
        %v7924 = vpow.pop %v7923
        %v7925 = vmul.f32 %v7895, 1.442695
        %v7926 = vpow.pop %v7925
        %v7927 = vmul.f32 %v7896, 1.442695
        %v7928 = vpow.pop %v7927
        %v7929 = vsel %vm7553, %v7898, 0.0
        %v7930 = vsel %vm7553, %v7900, 0.0
        %v7931 = vadd.f32 %v7929, %v7930
        %v7932 = vsel %vm7553, %v7902, 0.0
        %v7933 = vadd.f32 %v7931, %v7932
        %v7934 = vsel %vm7553, %v7904, 0.0
        %v7935 = vadd.f32 %v7933, %v7934
        %v7936 = vsel %vm7553, %v7906, 0.0
        %v7937 = vadd.f32 %v7935, %v7936
        %v7938 = vsel %vm7553, %v7908, 0.0
        %v7939 = vadd.f32 %v7937, %v7938
        %v7940 = vsel %vm7553, %v7910, 0.0
        %v7941 = vadd.f32 %v7939, %v7940
        %v7942 = vsel %vm7553, %v7912, 0.0
        %v7943 = vadd.f32 %v7941, %v7942
        %v7944 = vsel %vm7553, %v7914, 0.0
        %v7945 = vadd.f32 %v7943, %v7944
        %v7946 = vsel %vm7553, %v7916, 0.0
        %v7947 = vadd.f32 %v7945, %v7946
        %v7948 = vsel %vm7553, %v7918, 0.0
        %v7949 = vadd.f32 %v7947, %v7948
        %v7950 = vsel %vm7553, %v7920, 0.0
        %v7951 = vadd.f32 %v7949, %v7950
        %v7952 = vsel %vm7553, %v7922, 0.0
        %v7953 = vadd.f32 %v7951, %v7952
        %v7954 = vsel %vm7553, %v7924, 0.0
        %v7955 = vadd.f32 %v7953, %v7954
        %v7956 = vsel %vm7553, %v7926, 0.0
        %v7957 = vadd.f32 %v7955, %v7956
        %v7958 = vsel %vm7553, %v7928, 0.0
        %v7959 = vadd.f32 %v7957, %v7958
        %v7960 = vadd.f32 %v7959, 1.0
        %v7961 = vlog2.pop %v7960
        %v7962 = vmul.f32 %v7961, 0.6931472
        %v7963 = vsel %vm7553, %v7962, 0.0
        %v7964 = vrot.slane %v7963, 4
        %v7965 = vadd.f32 %v7963, %v7964
        %v7966 = vrot.slane %v7965, 2
        %v7967 = vadd.f32 %v7965, %v7966
        %v7968 = vrot.slane %v7967, 1
        %v7969 = vadd.f32 %v7967, %v7968
        %s7970 = sld [smem:[#allocation2 + $0x3]]
        %v7971 = vstv %s7970
        %v7972 = vmul.f32 %v7969, %v7971
        %v7973 = vadd.f32 %v7848, %v7972
        %v7974 = vsub.f32 %v7457, -0.55
        %v7975 = vsub.f32 %v7458, -0.55
        %v7976 = vsub.f32 %v7459, -0.55
        %v7977 = vsub.f32 %v7460, -0.55
        %v7978 = vsub.f32 %v7461, -0.55
        %v7979 = vsub.f32 %v7462, -0.55
        %v7980 = vsub.f32 %v7463, -0.55
        %v7981 = vsub.f32 %v7464, -0.55
        %v7982 = vsub.f32 %v7465, -0.55
        %v7983 = vsub.f32 %v7466, -0.55
        %v7984 = vsub.f32 %v7467, -0.55
        %v7985 = vsub.f32 %v7468, -0.55
        %v7986 = vsub.f32 %v7469, -0.55
        %v7987 = vsub.f32 %v7470, -0.55
        %v7988 = vsub.f32 %v7471, -0.55
        %v7989 = vsub.f32 %v7472, -0.55
        %v7990 = vmul.f32 %v7974, %v7974
        %v7991 = vmul.f32 %v7975, %v7975
        %v7992 = vmul.f32 %v7976, %v7976
        %v7993 = vmul.f32 %v7977, %v7977
        %v7994 = vmul.f32 %v7978, %v7978
        %v7995 = vmul.f32 %v7979, %v7979
        %v7996 = vmul.f32 %v7980, %v7980
        %v7997 = vmul.f32 %v7981, %v7981
        %v7998 = vmul.f32 %v7982, %v7982
        %v7999 = vmul.f32 %v7983, %v7983
        %v8000 = vmul.f32 %v7984, %v7984
        %v8001 = vmul.f32 %v7985, %v7985
        %v8002 = vmul.f32 %v7986, %v7986
        %v8003 = vmul.f32 %v7987, %v7987
        %v8004 = vmul.f32 %v7988, %v7988
        %v8005 = vmul.f32 %v7989, %v7989
        %v8006 = vmul.f32 %v7990, -50.0
        %v8007 = vmul.f32 %v7991, -50.0
        %v8008 = vmul.f32 %v7992, -50.0
        %v8009 = vmul.f32 %v7993, -50.0
        %v8010 = vmul.f32 %v7994, -50.0
        %v8011 = vmul.f32 %v7995, -50.0
        %v8012 = vmul.f32 %v7996, -50.0
        %v8013 = vmul.f32 %v7997, -50.0
        %v8014 = vmul.f32 %v7998, -50.0
        %v8015 = vmul.f32 %v7999, -50.0
        %v8016 = vmul.f32 %v8000, -50.0
        %v8017 = vmul.f32 %v8001, -50.0
        %v8018 = vmul.f32 %v8002, -50.0
        %v8019 = vmul.f32 %v8003, -50.0
        %v8020 = vmul.f32 %v8004, -50.0
        %v8021 = vmul.f32 %v8005, -50.0
        %v8022 = vmul.f32 %v8006, 1.442695
        %v8023 = vpow.pop %v8022
        %v8024 = vmul.f32 %v8007, 1.442695
        %v8025 = vpow.pop %v8024
        %v8026 = vmul.f32 %v8008, 1.442695
        %v8027 = vpow.pop %v8026
        %v8028 = vmul.f32 %v8009, 1.442695
        %v8029 = vpow.pop %v8028
        %v8030 = vmul.f32 %v8010, 1.442695
        %v8031 = vpow.pop %v8030
        %v8032 = vmul.f32 %v8011, 1.442695
        %v8033 = vpow.pop %v8032
        %v8034 = vmul.f32 %v8012, 1.442695
        %v8035 = vpow.pop %v8034
        %v8036 = vmul.f32 %v8013, 1.442695
        %v8037 = vpow.pop %v8036
        %v8038 = vmul.f32 %v8014, 1.442695
        %v8039 = vpow.pop %v8038
        %v8040 = vmul.f32 %v8015, 1.442695
        %v8041 = vpow.pop %v8040
        %v8042 = vmul.f32 %v8016, 1.442695
        %v8043 = vpow.pop %v8042
        %v8044 = vmul.f32 %v8017, 1.442695
        %v8045 = vpow.pop %v8044
        %v8046 = vmul.f32 %v8018, 1.442695
        %v8047 = vpow.pop %v8046
        %v8048 = vmul.f32 %v8019, 1.442695
        %v8049 = vpow.pop %v8048
        %v8050 = vmul.f32 %v8020, 1.442695
        %v8051 = vpow.pop %v8050
        %v8052 = vmul.f32 %v8021, 1.442695
        %v8053 = vpow.pop %v8052
        %v8054 = vsel %vm7553, %v8023, 0.0
        %v8055 = vsel %vm7553, %v8025, 0.0
        %v8056 = vadd.f32 %v8054, %v8055
        %v8057 = vsel %vm7553, %v8027, 0.0
        %v8058 = vadd.f32 %v8056, %v8057
        %v8059 = vsel %vm7553, %v8029, 0.0
        %v8060 = vadd.f32 %v8058, %v8059
        %v8061 = vsel %vm7553, %v8031, 0.0
        %v8062 = vadd.f32 %v8060, %v8061
        %v8063 = vsel %vm7553, %v8033, 0.0
        %v8064 = vadd.f32 %v8062, %v8063
        %v8065 = vsel %vm7553, %v8035, 0.0
        %v8066 = vadd.f32 %v8064, %v8065
        %v8067 = vsel %vm7553, %v8037, 0.0
        %v8068 = vadd.f32 %v8066, %v8067
        %v8069 = vsel %vm7553, %v8039, 0.0
        %v8070 = vadd.f32 %v8068, %v8069
        %v8071 = vsel %vm7553, %v8041, 0.0
        %v8072 = vadd.f32 %v8070, %v8071
        %v8073 = vsel %vm7553, %v8043, 0.0
        %v8074 = vadd.f32 %v8072, %v8073
        %v8075 = vsel %vm7553, %v8045, 0.0
        %v8076 = vadd.f32 %v8074, %v8075
        %v8077 = vsel %vm7553, %v8047, 0.0
        %v8078 = vadd.f32 %v8076, %v8077
        %v8079 = vsel %vm7553, %v8049, 0.0
        %v8080 = vadd.f32 %v8078, %v8079
        %v8081 = vsel %vm7553, %v8051, 0.0
        %v8082 = vadd.f32 %v8080, %v8081
        %v8083 = vsel %vm7553, %v8053, 0.0
        %v8084 = vadd.f32 %v8082, %v8083
        %v8085 = vadd.f32 %v8084, 1.0
        %v8086 = vlog2.pop %v8085
        %v8087 = vmul.f32 %v8086, 0.6931472
        %v8088 = vsel %vm7553, %v8087, 0.0
        %v8089 = vrot.slane %v8088, 4
        %v8090 = vadd.f32 %v8088, %v8089
        %v8091 = vrot.slane %v8090, 2
        %v8092 = vadd.f32 %v8090, %v8091
        %v8093 = vrot.slane %v8092, 1
        %v8094 = vadd.f32 %v8092, %v8093
        %s8095 = sld [smem:[#allocation2 + $0x4]]
        %v8096 = vstv %s8095
        %v8097 = vmul.f32 %v8094, %v8096
        %v8098 = vadd.f32 %v7973, %v8097
        %v8099 = vsub.f32 %v7457, -0.45
        %v8100 = vsub.f32 %v7458, -0.45
        %v8101 = vsub.f32 %v7459, -0.45
        %v8102 = vsub.f32 %v7460, -0.45
        %v8103 = vsub.f32 %v7461, -0.45
        %v8104 = vsub.f32 %v7462, -0.45
        %v8105 = vsub.f32 %v7463, -0.45
        %v8106 = vsub.f32 %v7464, -0.45
        %v8107 = vsub.f32 %v7465, -0.45
        %v8108 = vsub.f32 %v7466, -0.45
        %v8109 = vsub.f32 %v7467, -0.45
        %v8110 = vsub.f32 %v7468, -0.45
        %v8111 = vsub.f32 %v7469, -0.45
        %v8112 = vsub.f32 %v7470, -0.45
        %v8113 = vsub.f32 %v7471, -0.45
        %v8114 = vsub.f32 %v7472, -0.45
        %v8115 = vmul.f32 %v8099, %v8099
        %v8116 = vmul.f32 %v8100, %v8100
        %v8117 = vmul.f32 %v8101, %v8101
        %v8118 = vmul.f32 %v8102, %v8102
        %v8119 = vmul.f32 %v8103, %v8103
        %v8120 = vmul.f32 %v8104, %v8104
        %v8121 = vmul.f32 %v8105, %v8105
        %v8122 = vmul.f32 %v8106, %v8106
        %v8123 = vmul.f32 %v8107, %v8107
        %v8124 = vmul.f32 %v8108, %v8108
        %v8125 = vmul.f32 %v8109, %v8109
        %v8126 = vmul.f32 %v8110, %v8110
        %v8127 = vmul.f32 %v8111, %v8111
        %v8128 = vmul.f32 %v8112, %v8112
        %v8129 = vmul.f32 %v8113, %v8113
        %v8130 = vmul.f32 %v8114, %v8114
        %v8131 = vmul.f32 %v8115, -50.0
        %v8132 = vmul.f32 %v8116, -50.0
        %v8133 = vmul.f32 %v8117, -50.0
        %v8134 = vmul.f32 %v8118, -50.0
        %v8135 = vmul.f32 %v8119, -50.0
        %v8136 = vmul.f32 %v8120, -50.0
        %v8137 = vmul.f32 %v8121, -50.0
        %v8138 = vmul.f32 %v8122, -50.0
        %v8139 = vmul.f32 %v8123, -50.0
        %v8140 = vmul.f32 %v8124, -50.0
        %v8141 = vmul.f32 %v8125, -50.0
        %v8142 = vmul.f32 %v8126, -50.0
        %v8143 = vmul.f32 %v8127, -50.0
        %v8144 = vmul.f32 %v8128, -50.0
        %v8145 = vmul.f32 %v8129, -50.0
        %v8146 = vmul.f32 %v8130, -50.0
        %v8147 = vmul.f32 %v8131, 1.442695
        %v8148 = vpow.pop %v8147
        %v8149 = vmul.f32 %v8132, 1.442695
        %v8150 = vpow.pop %v8149
        %v8151 = vmul.f32 %v8133, 1.442695
        %v8152 = vpow.pop %v8151
        %v8153 = vmul.f32 %v8134, 1.442695
        %v8154 = vpow.pop %v8153
        %v8155 = vmul.f32 %v8135, 1.442695
        %v8156 = vpow.pop %v8155
        %v8157 = vmul.f32 %v8136, 1.442695
        %v8158 = vpow.pop %v8157
        %v8159 = vmul.f32 %v8137, 1.442695
        %v8160 = vpow.pop %v8159
        %v8161 = vmul.f32 %v8138, 1.442695
        %v8162 = vpow.pop %v8161
        %v8163 = vmul.f32 %v8139, 1.442695
        %v8164 = vpow.pop %v8163
        %v8165 = vmul.f32 %v8140, 1.442695
        %v8166 = vpow.pop %v8165
        %v8167 = vmul.f32 %v8141, 1.442695
        %v8168 = vpow.pop %v8167
        %v8169 = vmul.f32 %v8142, 1.442695
        %v8170 = vpow.pop %v8169
        %v8171 = vmul.f32 %v8143, 1.442695
        %v8172 = vpow.pop %v8171
        %v8173 = vmul.f32 %v8144, 1.442695
        %v8174 = vpow.pop %v8173
        %v8175 = vmul.f32 %v8145, 1.442695
        %v8176 = vpow.pop %v8175
        %v8177 = vmul.f32 %v8146, 1.442695
        %v8178 = vpow.pop %v8177
        %v8179 = vsel %vm7553, %v8148, 0.0
        %v8180 = vsel %vm7553, %v8150, 0.0
        %v8181 = vadd.f32 %v8179, %v8180
        %v8182 = vsel %vm7553, %v8152, 0.0
        %v8183 = vadd.f32 %v8181, %v8182
        %v8184 = vsel %vm7553, %v8154, 0.0
        %v8185 = vadd.f32 %v8183, %v8184
        %v8186 = vsel %vm7553, %v8156, 0.0
        %v8187 = vadd.f32 %v8185, %v8186
        %v8188 = vsel %vm7553, %v8158, 0.0
        %v8189 = vadd.f32 %v8187, %v8188
        %v8190 = vsel %vm7553, %v8160, 0.0
        %v8191 = vadd.f32 %v8189, %v8190
        %v8192 = vsel %vm7553, %v8162, 0.0
        %v8193 = vadd.f32 %v8191, %v8192
        %v8194 = vsel %vm7553, %v8164, 0.0
        %v8195 = vadd.f32 %v8193, %v8194
        %v8196 = vsel %vm7553, %v8166, 0.0
        %v8197 = vadd.f32 %v8195, %v8196
        %v8198 = vsel %vm7553, %v8168, 0.0
        %v8199 = vadd.f32 %v8197, %v8198
        %v8200 = vsel %vm7553, %v8170, 0.0
        %v8201 = vadd.f32 %v8199, %v8200
        %v8202 = vsel %vm7553, %v8172, 0.0
        %v8203 = vadd.f32 %v8201, %v8202
        %v8204 = vsel %vm7553, %v8174, 0.0
        %v8205 = vadd.f32 %v8203, %v8204
        %v8206 = vsel %vm7553, %v8176, 0.0
        %v8207 = vadd.f32 %v8205, %v8206
        %v8208 = vsel %vm7553, %v8178, 0.0
        %v8209 = vadd.f32 %v8207, %v8208
        %v8210 = vadd.f32 %v8209, 1.0
        %v8211 = vlog2.pop %v8210
        %v8212 = vmul.f32 %v8211, 0.6931472
        %v8213 = vsel %vm7553, %v8212, 0.0
        %v8214 = vrot.slane %v8213, 4
        %v8215 = vadd.f32 %v8213, %v8214
        %v8216 = vrot.slane %v8215, 2
        %v8217 = vadd.f32 %v8215, %v8216
        %v8218 = vrot.slane %v8217, 1
        %v8219 = vadd.f32 %v8217, %v8218
        %s8220 = sld [smem:[#allocation2 + $0x5]]
        %v8221 = vstv %s8220
        %v8222 = vmul.f32 %v8219, %v8221
        %v8223 = vadd.f32 %v8098, %v8222
        %v8224 = vsub.f32 %v7457, -0.35
        %v8225 = vsub.f32 %v7458, -0.35
        %v8226 = vsub.f32 %v7459, -0.35
        %v8227 = vsub.f32 %v7460, -0.35
        %v8228 = vsub.f32 %v7461, -0.35
        %v8229 = vsub.f32 %v7462, -0.35
        %v8230 = vsub.f32 %v7463, -0.35
        %v8231 = vsub.f32 %v7464, -0.35
        %v8232 = vsub.f32 %v7465, -0.35
        %v8233 = vsub.f32 %v7466, -0.35
        %v8234 = vsub.f32 %v7467, -0.35
        %v8235 = vsub.f32 %v7468, -0.35
        %v8236 = vsub.f32 %v7469, -0.35
        %v8237 = vsub.f32 %v7470, -0.35
        %v8238 = vsub.f32 %v7471, -0.35
        %v8239 = vsub.f32 %v7472, -0.35
        %v8240 = vmul.f32 %v8224, %v8224
        %v8241 = vmul.f32 %v8225, %v8225
        %v8242 = vmul.f32 %v8226, %v8226
        %v8243 = vmul.f32 %v8227, %v8227
        %v8244 = vmul.f32 %v8228, %v8228
        %v8245 = vmul.f32 %v8229, %v8229
        %v8246 = vmul.f32 %v8230, %v8230
        %v8247 = vmul.f32 %v8231, %v8231
        %v8248 = vmul.f32 %v8232, %v8232
        %v8249 = vmul.f32 %v8233, %v8233
        %v8250 = vmul.f32 %v8234, %v8234
        %v8251 = vmul.f32 %v8235, %v8235
        %v8252 = vmul.f32 %v8236, %v8236
        %v8253 = vmul.f32 %v8237, %v8237
        %v8254 = vmul.f32 %v8238, %v8238
        %v8255 = vmul.f32 %v8239, %v8239
        %v8256 = vmul.f32 %v8240, -50.0
        %v8257 = vmul.f32 %v8241, -50.0
        %v8258 = vmul.f32 %v8242, -50.0
        %v8259 = vmul.f32 %v8243, -50.0
        %v8260 = vmul.f32 %v8244, -50.0
        %v8261 = vmul.f32 %v8245, -50.0
        %v8262 = vmul.f32 %v8246, -50.0
        %v8263 = vmul.f32 %v8247, -50.0
        %v8264 = vmul.f32 %v8248, -50.0
        %v8265 = vmul.f32 %v8249, -50.0
        %v8266 = vmul.f32 %v8250, -50.0
        %v8267 = vmul.f32 %v8251, -50.0
        %v8268 = vmul.f32 %v8252, -50.0
        %v8269 = vmul.f32 %v8253, -50.0
        %v8270 = vmul.f32 %v8254, -50.0
        %v8271 = vmul.f32 %v8255, -50.0
        %v8272 = vmul.f32 %v8256, 1.442695
        %v8273 = vpow.pop %v8272
        %v8274 = vmul.f32 %v8257, 1.442695
        %v8275 = vpow.pop %v8274
        %v8276 = vmul.f32 %v8258, 1.442695
        %v8277 = vpow.pop %v8276
        %v8278 = vmul.f32 %v8259, 1.442695
        %v8279 = vpow.pop %v8278
        %v8280 = vmul.f32 %v8260, 1.442695
        %v8281 = vpow.pop %v8280
        %v8282 = vmul.f32 %v8261, 1.442695
        %v8283 = vpow.pop %v8282
        %v8284 = vmul.f32 %v8262, 1.442695
        %v8285 = vpow.pop %v8284
        %v8286 = vmul.f32 %v8263, 1.442695
        %v8287 = vpow.pop %v8286
        %v8288 = vmul.f32 %v8264, 1.442695
        %v8289 = vpow.pop %v8288
        %v8290 = vmul.f32 %v8265, 1.442695
        %v8291 = vpow.pop %v8290
        %v8292 = vmul.f32 %v8266, 1.442695
        %v8293 = vpow.pop %v8292
        %v8294 = vmul.f32 %v8267, 1.442695
        %v8295 = vpow.pop %v8294
        %v8296 = vmul.f32 %v8268, 1.442695
        %v8297 = vpow.pop %v8296
        %v8298 = vmul.f32 %v8269, 1.442695
        %v8299 = vpow.pop %v8298
        %v8300 = vmul.f32 %v8270, 1.442695
        %v8301 = vpow.pop %v8300
        %v8302 = vmul.f32 %v8271, 1.442695
        %v8303 = vpow.pop %v8302
        %v8304 = vsel %vm7553, %v8273, 0.0
        %v8305 = vsel %vm7553, %v8275, 0.0
        %v8306 = vadd.f32 %v8304, %v8305
        %v8307 = vsel %vm7553, %v8277, 0.0
        %v8308 = vadd.f32 %v8306, %v8307
        %v8309 = vsel %vm7553, %v8279, 0.0
        %v8310 = vadd.f32 %v8308, %v8309
        %v8311 = vsel %vm7553, %v8281, 0.0
        %v8312 = vadd.f32 %v8310, %v8311
        %v8313 = vsel %vm7553, %v8283, 0.0
        %v8314 = vadd.f32 %v8312, %v8313
        %v8315 = vsel %vm7553, %v8285, 0.0
        %v8316 = vadd.f32 %v8314, %v8315
        %v8317 = vsel %vm7553, %v8287, 0.0
        %v8318 = vadd.f32 %v8316, %v8317
        %v8319 = vsel %vm7553, %v8289, 0.0
        %v8320 = vadd.f32 %v8318, %v8319
        %v8321 = vsel %vm7553, %v8291, 0.0
        %v8322 = vadd.f32 %v8320, %v8321
        %v8323 = vsel %vm7553, %v8293, 0.0
        %v8324 = vadd.f32 %v8322, %v8323
        %v8325 = vsel %vm7553, %v8295, 0.0
        %v8326 = vadd.f32 %v8324, %v8325
        %v8327 = vsel %vm7553, %v8297, 0.0
        %v8328 = vadd.f32 %v8326, %v8327
        %v8329 = vsel %vm7553, %v8299, 0.0
        %v8330 = vadd.f32 %v8328, %v8329
        %v8331 = vsel %vm7553, %v8301, 0.0
        %v8332 = vadd.f32 %v8330, %v8331
        %v8333 = vsel %vm7553, %v8303, 0.0
        %v8334 = vadd.f32 %v8332, %v8333
        %v8335 = vadd.f32 %v8334, 1.0
        %v8336 = vlog2.pop %v8335
        %v8337 = vmul.f32 %v8336, 0.6931472
        %v8338 = vsel %vm7553, %v8337, 0.0
        %v8339 = vrot.slane %v8338, 4
        %v8340 = vadd.f32 %v8338, %v8339
        %v8341 = vrot.slane %v8340, 2
        %v8342 = vadd.f32 %v8340, %v8341
        %v8343 = vrot.slane %v8342, 1
        %v8344 = vadd.f32 %v8342, %v8343
        %s8345 = sld [smem:[#allocation2 + $0x6]]
        %v8346 = vstv %s8345
        %v8347 = vmul.f32 %v8344, %v8346
        %v8348 = vadd.f32 %v8223, %v8347
        %v8349 = vsub.f32 %v7457, -0.25
        %v8350 = vsub.f32 %v7458, -0.25
        %v8351 = vsub.f32 %v7459, -0.25
        %v8352 = vsub.f32 %v7460, -0.25
        %v8353 = vsub.f32 %v7461, -0.25
        %v8354 = vsub.f32 %v7462, -0.25
        %v8355 = vsub.f32 %v7463, -0.25
        %v8356 = vsub.f32 %v7464, -0.25
        %v8357 = vsub.f32 %v7465, -0.25
        %v8358 = vsub.f32 %v7466, -0.25
        %v8359 = vsub.f32 %v7467, -0.25
        %v8360 = vsub.f32 %v7468, -0.25
        %v8361 = vsub.f32 %v7469, -0.25
        %v8362 = vsub.f32 %v7470, -0.25
        %v8363 = vsub.f32 %v7471, -0.25
        %v8364 = vsub.f32 %v7472, -0.25
        %v8365 = vmul.f32 %v8349, %v8349
        %v8366 = vmul.f32 %v8350, %v8350
        %v8367 = vmul.f32 %v8351, %v8351
        %v8368 = vmul.f32 %v8352, %v8352
        %v8369 = vmul.f32 %v8353, %v8353
        %v8370 = vmul.f32 %v8354, %v8354
        %v8371 = vmul.f32 %v8355, %v8355
        %v8372 = vmul.f32 %v8356, %v8356
        %v8373 = vmul.f32 %v8357, %v8357
        %v8374 = vmul.f32 %v8358, %v8358
        %v8375 = vmul.f32 %v8359, %v8359
        %v8376 = vmul.f32 %v8360, %v8360
        %v8377 = vmul.f32 %v8361, %v8361
        %v8378 = vmul.f32 %v8362, %v8362
        %v8379 = vmul.f32 %v8363, %v8363
        %v8380 = vmul.f32 %v8364, %v8364
        %v8381 = vmul.f32 %v8365, -50.0
        %v8382 = vmul.f32 %v8366, -50.0
        %v8383 = vmul.f32 %v8367, -50.0
        %v8384 = vmul.f32 %v8368, -50.0
        %v8385 = vmul.f32 %v8369, -50.0
        %v8386 = vmul.f32 %v8370, -50.0
        %v8387 = vmul.f32 %v8371, -50.0
        %v8388 = vmul.f32 %v8372, -50.0
        %v8389 = vmul.f32 %v8373, -50.0
        %v8390 = vmul.f32 %v8374, -50.0
        %v8391 = vmul.f32 %v8375, -50.0
        %v8392 = vmul.f32 %v8376, -50.0
        %v8393 = vmul.f32 %v8377, -50.0
        %v8394 = vmul.f32 %v8378, -50.0
        %v8395 = vmul.f32 %v8379, -50.0
        %v8396 = vmul.f32 %v8380, -50.0
        %v8397 = vmul.f32 %v8381, 1.442695
        %v8398 = vpow.pop %v8397
        %v8399 = vmul.f32 %v8382, 1.442695
        %v8400 = vpow.pop %v8399
        %v8401 = vmul.f32 %v8383, 1.442695
        %v8402 = vpow.pop %v8401
        %v8403 = vmul.f32 %v8384, 1.442695
        %v8404 = vpow.pop %v8403
        %v8405 = vmul.f32 %v8385, 1.442695
        %v8406 = vpow.pop %v8405
        %v8407 = vmul.f32 %v8386, 1.442695
        %v8408 = vpow.pop %v8407
        %v8409 = vmul.f32 %v8387, 1.442695
        %v8410 = vpow.pop %v8409
        %v8411 = vmul.f32 %v8388, 1.442695
        %v8412 = vpow.pop %v8411
        %v8413 = vmul.f32 %v8389, 1.442695
        %v8414 = vpow.pop %v8413
        %v8415 = vmul.f32 %v8390, 1.442695
        %v8416 = vpow.pop %v8415
        %v8417 = vmul.f32 %v8391, 1.442695
        %v8418 = vpow.pop %v8417
        %v8419 = vmul.f32 %v8392, 1.442695
        %v8420 = vpow.pop %v8419
        %v8421 = vmul.f32 %v8393, 1.442695
        %v8422 = vpow.pop %v8421
        %v8423 = vmul.f32 %v8394, 1.442695
        %v8424 = vpow.pop %v8423
        %v8425 = vmul.f32 %v8395, 1.442695
        %v8426 = vpow.pop %v8425
        %v8427 = vmul.f32 %v8396, 1.442695
        %v8428 = vpow.pop %v8427
        %v8429 = vsel %vm7553, %v8398, 0.0
        %v8430 = vsel %vm7553, %v8400, 0.0
        %v8431 = vadd.f32 %v8429, %v8430
        %v8432 = vsel %vm7553, %v8402, 0.0
        %v8433 = vadd.f32 %v8431, %v8432
        %v8434 = vsel %vm7553, %v8404, 0.0
        %v8435 = vadd.f32 %v8433, %v8434
        %v8436 = vsel %vm7553, %v8406, 0.0
        %v8437 = vadd.f32 %v8435, %v8436
        %v8438 = vsel %vm7553, %v8408, 0.0
        %v8439 = vadd.f32 %v8437, %v8438
        %v8440 = vsel %vm7553, %v8410, 0.0
        %v8441 = vadd.f32 %v8439, %v8440
        %v8442 = vsel %vm7553, %v8412, 0.0
        %v8443 = vadd.f32 %v8441, %v8442
        %v8444 = vsel %vm7553, %v8414, 0.0
        %v8445 = vadd.f32 %v8443, %v8444
        %v8446 = vsel %vm7553, %v8416, 0.0
        %v8447 = vadd.f32 %v8445, %v8446
        %v8448 = vsel %vm7553, %v8418, 0.0
        %v8449 = vadd.f32 %v8447, %v8448
        %v8450 = vsel %vm7553, %v8420, 0.0
        %v8451 = vadd.f32 %v8449, %v8450
        %v8452 = vsel %vm7553, %v8422, 0.0
        %v8453 = vadd.f32 %v8451, %v8452
        %v8454 = vsel %vm7553, %v8424, 0.0
        %v8455 = vadd.f32 %v8453, %v8454
        %v8456 = vsel %vm7553, %v8426, 0.0
        %v8457 = vadd.f32 %v8455, %v8456
        %v8458 = vsel %vm7553, %v8428, 0.0
        %v8459 = vadd.f32 %v8457, %v8458
        %v8460 = vadd.f32 %v8459, 1.0
        %v8461 = vlog2.pop %v8460
        %v8462 = vmul.f32 %v8461, 0.6931472
        %v8463 = vsel %vm7553, %v8462, 0.0
        %v8464 = vrot.slane %v8463, 4
        %v8465 = vadd.f32 %v8463, %v8464
        %v8466 = vrot.slane %v8465, 2
        %v8467 = vadd.f32 %v8465, %v8466
        %v8468 = vrot.slane %v8467, 1
        %v8469 = vadd.f32 %v8467, %v8468
        %s8470 = sld [smem:[#allocation2 + $0x7]]
        %v8471 = vstv %s8470
        %v8472 = vmul.f32 %v8469, %v8471
        %v8473 = vadd.f32 %v8348, %v8472
        %v8474 = vsub.f32 %v7457, -0.15
        %v8475 = vsub.f32 %v7458, -0.15
        %v8476 = vsub.f32 %v7459, -0.15
        %v8477 = vsub.f32 %v7460, -0.15
        %v8478 = vsub.f32 %v7461, -0.15
        %v8479 = vsub.f32 %v7462, -0.15
        %v8480 = vsub.f32 %v7463, -0.15
        %v8481 = vsub.f32 %v7464, -0.15
        %v8482 = vsub.f32 %v7465, -0.15
        %v8483 = vsub.f32 %v7466, -0.15
        %v8484 = vsub.f32 %v7467, -0.15
        %v8485 = vsub.f32 %v7468, -0.15
        %v8486 = vsub.f32 %v7469, -0.15
        %v8487 = vsub.f32 %v7470, -0.15
        %v8488 = vsub.f32 %v7471, -0.15
        %v8489 = vsub.f32 %v7472, -0.15
        %v8490 = vmul.f32 %v8474, %v8474
        %v8491 = vmul.f32 %v8475, %v8475
        %v8492 = vmul.f32 %v8476, %v8476
        %v8493 = vmul.f32 %v8477, %v8477
        %v8494 = vmul.f32 %v8478, %v8478
        %v8495 = vmul.f32 %v8479, %v8479
        %v8496 = vmul.f32 %v8480, %v8480
        %v8497 = vmul.f32 %v8481, %v8481
        %v8498 = vmul.f32 %v8482, %v8482
        %v8499 = vmul.f32 %v8483, %v8483
        %v8500 = vmul.f32 %v8484, %v8484
        %v8501 = vmul.f32 %v8485, %v8485
        %v8502 = vmul.f32 %v8486, %v8486
        %v8503 = vmul.f32 %v8487, %v8487
        %v8504 = vmul.f32 %v8488, %v8488
        %v8505 = vmul.f32 %v8489, %v8489
        %v8506 = vmul.f32 %v8490, -50.0
        %v8507 = vmul.f32 %v8491, -50.0
        %v8508 = vmul.f32 %v8492, -50.0
        %v8509 = vmul.f32 %v8493, -50.0
        %v8510 = vmul.f32 %v8494, -50.0
        %v8511 = vmul.f32 %v8495, -50.0
        %v8512 = vmul.f32 %v8496, -50.0
        %v8513 = vmul.f32 %v8497, -50.0
        %v8514 = vmul.f32 %v8498, -50.0
        %v8515 = vmul.f32 %v8499, -50.0
        %v8516 = vmul.f32 %v8500, -50.0
        %v8517 = vmul.f32 %v8501, -50.0
        %v8518 = vmul.f32 %v8502, -50.0
        %v8519 = vmul.f32 %v8503, -50.0
        %v8520 = vmul.f32 %v8504, -50.0
        %v8521 = vmul.f32 %v8505, -50.0
        %v8522 = vmul.f32 %v8506, 1.442695
        %v8523 = vpow.pop %v8522
        %v8524 = vmul.f32 %v8507, 1.442695
        %v8525 = vpow.pop %v8524
        %v8526 = vmul.f32 %v8508, 1.442695
        %v8527 = vpow.pop %v8526
        %v8528 = vmul.f32 %v8509, 1.442695
        %v8529 = vpow.pop %v8528
        %v8530 = vmul.f32 %v8510, 1.442695
        %v8531 = vpow.pop %v8530
        %v8532 = vmul.f32 %v8511, 1.442695
        %v8533 = vpow.pop %v8532
        %v8534 = vmul.f32 %v8512, 1.442695
        %v8535 = vpow.pop %v8534
        %v8536 = vmul.f32 %v8513, 1.442695
        %v8537 = vpow.pop %v8536
        %v8538 = vmul.f32 %v8514, 1.442695
        %v8539 = vpow.pop %v8538
        %v8540 = vmul.f32 %v8515, 1.442695
        %v8541 = vpow.pop %v8540
        %v8542 = vmul.f32 %v8516, 1.442695
        %v8543 = vpow.pop %v8542
        %v8544 = vmul.f32 %v8517, 1.442695
        %v8545 = vpow.pop %v8544
        %v8546 = vmul.f32 %v8518, 1.442695
        %v8547 = vpow.pop %v8546
        %v8548 = vmul.f32 %v8519, 1.442695
        %v8549 = vpow.pop %v8548
        %v8550 = vmul.f32 %v8520, 1.442695
        %v8551 = vpow.pop %v8550
        %v8552 = vmul.f32 %v8521, 1.442695
        %v8553 = vpow.pop %v8552
        %v8554 = vsel %vm7553, %v8523, 0.0
        %v8555 = vsel %vm7553, %v8525, 0.0
        %v8556 = vadd.f32 %v8554, %v8555
        %v8557 = vsel %vm7553, %v8527, 0.0
        %v8558 = vadd.f32 %v8556, %v8557
        %v8559 = vsel %vm7553, %v8529, 0.0
        %v8560 = vadd.f32 %v8558, %v8559
        %v8561 = vsel %vm7553, %v8531, 0.0
        %v8562 = vadd.f32 %v8560, %v8561
        %v8563 = vsel %vm7553, %v8533, 0.0
        %v8564 = vadd.f32 %v8562, %v8563
        %v8565 = vsel %vm7553, %v8535, 0.0
        %v8566 = vadd.f32 %v8564, %v8565
        %v8567 = vsel %vm7553, %v8537, 0.0
        %v8568 = vadd.f32 %v8566, %v8567
        %v8569 = vsel %vm7553, %v8539, 0.0
        %v8570 = vadd.f32 %v8568, %v8569
        %v8571 = vsel %vm7553, %v8541, 0.0
        %v8572 = vadd.f32 %v8570, %v8571
        %v8573 = vsel %vm7553, %v8543, 0.0
        %v8574 = vadd.f32 %v8572, %v8573
        %v8575 = vsel %vm7553, %v8545, 0.0
        %v8576 = vadd.f32 %v8574, %v8575
        %v8577 = vsel %vm7553, %v8547, 0.0
        %v8578 = vadd.f32 %v8576, %v8577
        %v8579 = vsel %vm7553, %v8549, 0.0
        %v8580 = vadd.f32 %v8578, %v8579
        %v8581 = vsel %vm7553, %v8551, 0.0
        %v8582 = vadd.f32 %v8580, %v8581
        %v8583 = vsel %vm7553, %v8553, 0.0
        %v8584 = vadd.f32 %v8582, %v8583
        %v8585 = vadd.f32 %v8584, 1.0
        %v8586 = vlog2.pop %v8585
        %v8587 = vmul.f32 %v8586, 0.6931472
        %v8588 = vsel %vm7553, %v8587, 0.0
        %v8589 = vrot.slane %v8588, 4
        %v8590 = vadd.f32 %v8588, %v8589
        %v8591 = vrot.slane %v8590, 2
        %v8592 = vadd.f32 %v8590, %v8591
        %v8593 = vrot.slane %v8592, 1
        %v8594 = vadd.f32 %v8592, %v8593
        %s8595 = sld [smem:[#allocation2 + $0x8]]
        %v8596 = vstv %s8595
        %v8597 = vmul.f32 %v8594, %v8596
        %v8598 = vadd.f32 %v8473, %v8597
        %v8599 = vsub.f32 %v7457, -0.05
        %v8600 = vsub.f32 %v7458, -0.05
        %v8601 = vsub.f32 %v7459, -0.05
        %v8602 = vsub.f32 %v7460, -0.05
        %v8603 = vsub.f32 %v7461, -0.05
        %v8604 = vsub.f32 %v7462, -0.05
        %v8605 = vsub.f32 %v7463, -0.05
        %v8606 = vsub.f32 %v7464, -0.05
        %v8607 = vsub.f32 %v7465, -0.05
        %v8608 = vsub.f32 %v7466, -0.05
        %v8609 = vsub.f32 %v7467, -0.05
        %v8610 = vsub.f32 %v7468, -0.05
        %v8611 = vsub.f32 %v7469, -0.05
        %v8612 = vsub.f32 %v7470, -0.05
        %v8613 = vsub.f32 %v7471, -0.05
        %v8614 = vsub.f32 %v7472, -0.05
        %v8615 = vmul.f32 %v8599, %v8599
        %v8616 = vmul.f32 %v8600, %v8600
        %v8617 = vmul.f32 %v8601, %v8601
        %v8618 = vmul.f32 %v8602, %v8602
        %v8619 = vmul.f32 %v8603, %v8603
        %v8620 = vmul.f32 %v8604, %v8604
        %v8621 = vmul.f32 %v8605, %v8605
        %v8622 = vmul.f32 %v8606, %v8606
        %v8623 = vmul.f32 %v8607, %v8607
        %v8624 = vmul.f32 %v8608, %v8608
        %v8625 = vmul.f32 %v8609, %v8609
        %v8626 = vmul.f32 %v8610, %v8610
        %v8627 = vmul.f32 %v8611, %v8611
        %v8628 = vmul.f32 %v8612, %v8612
        %v8629 = vmul.f32 %v8613, %v8613
        %v8630 = vmul.f32 %v8614, %v8614
        %v8631 = vmul.f32 %v8615, -50.0
        %v8632 = vmul.f32 %v8616, -50.0
        %v8633 = vmul.f32 %v8617, -50.0
        %v8634 = vmul.f32 %v8618, -50.0
        %v8635 = vmul.f32 %v8619, -50.0
        %v8636 = vmul.f32 %v8620, -50.0
        %v8637 = vmul.f32 %v8621, -50.0
        %v8638 = vmul.f32 %v8622, -50.0
        %v8639 = vmul.f32 %v8623, -50.0
        %v8640 = vmul.f32 %v8624, -50.0
        %v8641 = vmul.f32 %v8625, -50.0
        %v8642 = vmul.f32 %v8626, -50.0
        %v8643 = vmul.f32 %v8627, -50.0
        %v8644 = vmul.f32 %v8628, -50.0
        %v8645 = vmul.f32 %v8629, -50.0
        %v8646 = vmul.f32 %v8630, -50.0
        %v8647 = vmul.f32 %v8631, 1.442695
        %v8648 = vpow.pop %v8647
        %v8649 = vmul.f32 %v8632, 1.442695
        %v8650 = vpow.pop %v8649
        %v8651 = vmul.f32 %v8633, 1.442695
        %v8652 = vpow.pop %v8651
        %v8653 = vmul.f32 %v8634, 1.442695
        %v8654 = vpow.pop %v8653
        %v8655 = vmul.f32 %v8635, 1.442695
        %v8656 = vpow.pop %v8655
        %v8657 = vmul.f32 %v8636, 1.442695
        %v8658 = vpow.pop %v8657
        %v8659 = vmul.f32 %v8637, 1.442695
        %v8660 = vpow.pop %v8659
        %v8661 = vmul.f32 %v8638, 1.442695
        %v8662 = vpow.pop %v8661
        %v8663 = vmul.f32 %v8639, 1.442695
        %v8664 = vpow.pop %v8663
        %v8665 = vmul.f32 %v8640, 1.442695
        %v8666 = vpow.pop %v8665
        %v8667 = vmul.f32 %v8641, 1.442695
        %v8668 = vpow.pop %v8667
        %v8669 = vmul.f32 %v8642, 1.442695
        %v8670 = vpow.pop %v8669
        %v8671 = vmul.f32 %v8643, 1.442695
        %v8672 = vpow.pop %v8671
        %v8673 = vmul.f32 %v8644, 1.442695
        %v8674 = vpow.pop %v8673
        %v8675 = vmul.f32 %v8645, 1.442695
        %v8676 = vpow.pop %v8675
        %v8677 = vmul.f32 %v8646, 1.442695
        %v8678 = vpow.pop %v8677
        %v8679 = vsel %vm7553, %v8648, 0.0
        %v8680 = vsel %vm7553, %v8650, 0.0
        %v8681 = vadd.f32 %v8679, %v8680
        %v8682 = vsel %vm7553, %v8652, 0.0
        %v8683 = vadd.f32 %v8681, %v8682
        %v8684 = vsel %vm7553, %v8654, 0.0
        %v8685 = vadd.f32 %v8683, %v8684
        %v8686 = vsel %vm7553, %v8656, 0.0
        %v8687 = vadd.f32 %v8685, %v8686
        %v8688 = vsel %vm7553, %v8658, 0.0
        %v8689 = vadd.f32 %v8687, %v8688
        %v8690 = vsel %vm7553, %v8660, 0.0
        %v8691 = vadd.f32 %v8689, %v8690
        %v8692 = vsel %vm7553, %v8662, 0.0
        %v8693 = vadd.f32 %v8691, %v8692
        %v8694 = vsel %vm7553, %v8664, 0.0
        %v8695 = vadd.f32 %v8693, %v8694
        %v8696 = vsel %vm7553, %v8666, 0.0
        %v8697 = vadd.f32 %v8695, %v8696
        %v8698 = vsel %vm7553, %v8668, 0.0
        %v8699 = vadd.f32 %v8697, %v8698
        %v8700 = vsel %vm7553, %v8670, 0.0
        %v8701 = vadd.f32 %v8699, %v8700
        %v8702 = vsel %vm7553, %v8672, 0.0
        %v8703 = vadd.f32 %v8701, %v8702
        %v8704 = vsel %vm7553, %v8674, 0.0
        %v8705 = vadd.f32 %v8703, %v8704
        %v8706 = vsel %vm7553, %v8676, 0.0
        %v8707 = vadd.f32 %v8705, %v8706
        %v8708 = vsel %vm7553, %v8678, 0.0
        %v8709 = vadd.f32 %v8707, %v8708
        %v8710 = vadd.f32 %v8709, 1.0
        %v8711 = vlog2.pop %v8710
        %v8712 = vmul.f32 %v8711, 0.6931472
        %v8713 = vsel %vm7553, %v8712, 0.0
        %v8714 = vrot.slane %v8713, 4
        %v8715 = vadd.f32 %v8713, %v8714
        %v8716 = vrot.slane %v8715, 2
        %v8717 = vadd.f32 %v8715, %v8716
        %v8718 = vrot.slane %v8717, 1
        %v8719 = vadd.f32 %v8717, %v8718
        %s8720 = sld [smem:[#allocation2 + $0x9]]
        %v8721 = vstv %s8720
        %v8722 = vmul.f32 %v8719, %v8721
        %v8723 = vadd.f32 %v8598, %v8722
        %v8724 = vsub.f32 %v7457, 0.05
        %v8725 = vsub.f32 %v7458, 0.05
        %v8726 = vsub.f32 %v7459, 0.05
        %v8727 = vsub.f32 %v7460, 0.05
        %v8728 = vsub.f32 %v7461, 0.05
        %v8729 = vsub.f32 %v7462, 0.05
        %v8730 = vsub.f32 %v7463, 0.05
        %v8731 = vsub.f32 %v7464, 0.05
        %v8732 = vsub.f32 %v7465, 0.05
        %v8733 = vsub.f32 %v7466, 0.05
        %v8734 = vsub.f32 %v7467, 0.05
        %v8735 = vsub.f32 %v7468, 0.05
        %v8736 = vsub.f32 %v7469, 0.05
        %v8737 = vsub.f32 %v7470, 0.05
        %v8738 = vsub.f32 %v7471, 0.05
        %v8739 = vsub.f32 %v7472, 0.05
        %v8740 = vmul.f32 %v8724, %v8724
        %v8741 = vmul.f32 %v8725, %v8725
        %v8742 = vmul.f32 %v8726, %v8726
        %v8743 = vmul.f32 %v8727, %v8727
        %v8744 = vmul.f32 %v8728, %v8728
        %v8745 = vmul.f32 %v8729, %v8729
        %v8746 = vmul.f32 %v8730, %v8730
        %v8747 = vmul.f32 %v8731, %v8731
        %v8748 = vmul.f32 %v8732, %v8732
        %v8749 = vmul.f32 %v8733, %v8733
        %v8750 = vmul.f32 %v8734, %v8734
        %v8751 = vmul.f32 %v8735, %v8735
        %v8752 = vmul.f32 %v8736, %v8736
        %v8753 = vmul.f32 %v8737, %v8737
        %v8754 = vmul.f32 %v8738, %v8738
        %v8755 = vmul.f32 %v8739, %v8739
        %v8756 = vmul.f32 %v8740, -50.0
        %v8757 = vmul.f32 %v8741, -50.0
        %v8758 = vmul.f32 %v8742, -50.0
        %v8759 = vmul.f32 %v8743, -50.0
        %v8760 = vmul.f32 %v8744, -50.0
        %v8761 = vmul.f32 %v8745, -50.0
        %v8762 = vmul.f32 %v8746, -50.0
        %v8763 = vmul.f32 %v8747, -50.0
        %v8764 = vmul.f32 %v8748, -50.0
        %v8765 = vmul.f32 %v8749, -50.0
        %v8766 = vmul.f32 %v8750, -50.0
        %v8767 = vmul.f32 %v8751, -50.0
        %v8768 = vmul.f32 %v8752, -50.0
        %v8769 = vmul.f32 %v8753, -50.0
        %v8770 = vmul.f32 %v8754, -50.0
        %v8771 = vmul.f32 %v8755, -50.0
        %v8772 = vmul.f32 %v8756, 1.442695
        %v8773 = vpow.pop %v8772
        %v8774 = vmul.f32 %v8757, 1.442695
        %v8775 = vpow.pop %v8774
        %v8776 = vmul.f32 %v8758, 1.442695
        %v8777 = vpow.pop %v8776
        %v8778 = vmul.f32 %v8759, 1.442695
        %v8779 = vpow.pop %v8778
        %v8780 = vmul.f32 %v8760, 1.442695
        %v8781 = vpow.pop %v8780
        %v8782 = vmul.f32 %v8761, 1.442695
        %v8783 = vpow.pop %v8782
        %v8784 = vmul.f32 %v8762, 1.442695
        %v8785 = vpow.pop %v8784
        %v8786 = vmul.f32 %v8763, 1.442695
        %v8787 = vpow.pop %v8786
        %v8788 = vmul.f32 %v8764, 1.442695
        %v8789 = vpow.pop %v8788
        %v8790 = vmul.f32 %v8765, 1.442695
        %v8791 = vpow.pop %v8790
        %v8792 = vmul.f32 %v8766, 1.442695
        %v8793 = vpow.pop %v8792
        %v8794 = vmul.f32 %v8767, 1.442695
        %v8795 = vpow.pop %v8794
        %v8796 = vmul.f32 %v8768, 1.442695
        %v8797 = vpow.pop %v8796
        %v8798 = vmul.f32 %v8769, 1.442695
        %v8799 = vpow.pop %v8798
        %v8800 = vmul.f32 %v8770, 1.442695
        %v8801 = vpow.pop %v8800
        %v8802 = vmul.f32 %v8771, 1.442695
        %v8803 = vpow.pop %v8802
        %v8804 = vsel %vm7553, %v8773, 0.0
        %v8805 = vsel %vm7553, %v8775, 0.0
        %v8806 = vadd.f32 %v8804, %v8805
        %v8807 = vsel %vm7553, %v8777, 0.0
        %v8808 = vadd.f32 %v8806, %v8807
        %v8809 = vsel %vm7553, %v8779, 0.0
        %v8810 = vadd.f32 %v8808, %v8809
        %v8811 = vsel %vm7553, %v8781, 0.0
        %v8812 = vadd.f32 %v8810, %v8811
        %v8813 = vsel %vm7553, %v8783, 0.0
        %v8814 = vadd.f32 %v8812, %v8813
        %v8815 = vsel %vm7553, %v8785, 0.0
        %v8816 = vadd.f32 %v8814, %v8815
        %v8817 = vsel %vm7553, %v8787, 0.0
        %v8818 = vadd.f32 %v8816, %v8817
        %v8819 = vsel %vm7553, %v8789, 0.0
        %v8820 = vadd.f32 %v8818, %v8819
        %v8821 = vsel %vm7553, %v8791, 0.0
        %v8822 = vadd.f32 %v8820, %v8821
        %v8823 = vsel %vm7553, %v8793, 0.0
        %v8824 = vadd.f32 %v8822, %v8823
        %v8825 = vsel %vm7553, %v8795, 0.0
        %v8826 = vadd.f32 %v8824, %v8825
        %v8827 = vsel %vm7553, %v8797, 0.0
        %v8828 = vadd.f32 %v8826, %v8827
        %v8829 = vsel %vm7553, %v8799, 0.0
        %v8830 = vadd.f32 %v8828, %v8829
        %v8831 = vsel %vm7553, %v8801, 0.0
        %v8832 = vadd.f32 %v8830, %v8831
        %v8833 = vsel %vm7553, %v8803, 0.0
        %v8834 = vadd.f32 %v8832, %v8833
        %v8835 = vadd.f32 %v8834, 1.0
        %v8836 = vlog2.pop %v8835
        %v8837 = vmul.f32 %v8836, 0.6931472
        %v8838 = vsel %vm7553, %v8837, 0.0
        %v8839 = vrot.slane %v8838, 4
        %v8840 = vadd.f32 %v8838, %v8839
        %v8841 = vrot.slane %v8840, 2
        %v8842 = vadd.f32 %v8840, %v8841
        %v8843 = vrot.slane %v8842, 1
        %v8844 = vadd.f32 %v8842, %v8843
        %s8845 = sld [smem:[#allocation2 + $0xa]]
        %v8846 = vstv %s8845
        %v8847 = vmul.f32 %v8844, %v8846
        %v8848 = vadd.f32 %v8723, %v8847
        %v8849 = vsub.f32 %v7457, 0.15
        %v8850 = vsub.f32 %v7458, 0.15
        %v8851 = vsub.f32 %v7459, 0.15
        %v8852 = vsub.f32 %v7460, 0.15
        %v8853 = vsub.f32 %v7461, 0.15
        %v8854 = vsub.f32 %v7462, 0.15
        %v8855 = vsub.f32 %v7463, 0.15
        %v8856 = vsub.f32 %v7464, 0.15
        %v8857 = vsub.f32 %v7465, 0.15
        %v8858 = vsub.f32 %v7466, 0.15
        %v8859 = vsub.f32 %v7467, 0.15
        %v8860 = vsub.f32 %v7468, 0.15
        %v8861 = vsub.f32 %v7469, 0.15
        %v8862 = vsub.f32 %v7470, 0.15
        %v8863 = vsub.f32 %v7471, 0.15
        %v8864 = vsub.f32 %v7472, 0.15
        %v8865 = vmul.f32 %v8849, %v8849
        %v8866 = vmul.f32 %v8850, %v8850
        %v8867 = vmul.f32 %v8851, %v8851
        %v8868 = vmul.f32 %v8852, %v8852
        %v8869 = vmul.f32 %v8853, %v8853
        %v8870 = vmul.f32 %v8854, %v8854
        %v8871 = vmul.f32 %v8855, %v8855
        %v8872 = vmul.f32 %v8856, %v8856
        %v8873 = vmul.f32 %v8857, %v8857
        %v8874 = vmul.f32 %v8858, %v8858
        %v8875 = vmul.f32 %v8859, %v8859
        %v8876 = vmul.f32 %v8860, %v8860
        %v8877 = vmul.f32 %v8861, %v8861
        %v8878 = vmul.f32 %v8862, %v8862
        %v8879 = vmul.f32 %v8863, %v8863
        %v8880 = vmul.f32 %v8864, %v8864
        %v8881 = vmul.f32 %v8865, -50.0
        %v8882 = vmul.f32 %v8866, -50.0
        %v8883 = vmul.f32 %v8867, -50.0
        %v8884 = vmul.f32 %v8868, -50.0
        %v8885 = vmul.f32 %v8869, -50.0
        %v8886 = vmul.f32 %v8870, -50.0
        %v8887 = vmul.f32 %v8871, -50.0
        %v8888 = vmul.f32 %v8872, -50.0
        %v8889 = vmul.f32 %v8873, -50.0
        %v8890 = vmul.f32 %v8874, -50.0
        %v8891 = vmul.f32 %v8875, -50.0
        %v8892 = vmul.f32 %v8876, -50.0
        %v8893 = vmul.f32 %v8877, -50.0
        %v8894 = vmul.f32 %v8878, -50.0
        %v8895 = vmul.f32 %v8879, -50.0
        %v8896 = vmul.f32 %v8880, -50.0
        %v8897 = vmul.f32 %v8881, 1.442695
        %v8898 = vpow.pop %v8897
        %v8899 = vmul.f32 %v8882, 1.442695
        %v8900 = vpow.pop %v8899
        %v8901 = vmul.f32 %v8883, 1.442695
        %v8902 = vpow.pop %v8901
        %v8903 = vmul.f32 %v8884, 1.442695
        %v8904 = vpow.pop %v8903
        %v8905 = vmul.f32 %v8885, 1.442695
        %v8906 = vpow.pop %v8905
        %v8907 = vmul.f32 %v8886, 1.442695
        %v8908 = vpow.pop %v8907
        %v8909 = vmul.f32 %v8887, 1.442695
        %v8910 = vpow.pop %v8909
        %v8911 = vmul.f32 %v8888, 1.442695
        %v8912 = vpow.pop %v8911
        %v8913 = vmul.f32 %v8889, 1.442695
        %v8914 = vpow.pop %v8913
        %v8915 = vmul.f32 %v8890, 1.442695
        %v8916 = vpow.pop %v8915
        %v8917 = vmul.f32 %v8891, 1.442695
        %v8918 = vpow.pop %v8917
        %v8919 = vmul.f32 %v8892, 1.442695
        %v8920 = vpow.pop %v8919
        %v8921 = vmul.f32 %v8893, 1.442695
        %v8922 = vpow.pop %v8921
        %v8923 = vmul.f32 %v8894, 1.442695
        %v8924 = vpow.pop %v8923
        %v8925 = vmul.f32 %v8895, 1.442695
        %v8926 = vpow.pop %v8925
        %v8927 = vmul.f32 %v8896, 1.442695
        %v8928 = vpow.pop %v8927
        %v8929 = vsel %vm7553, %v8898, 0.0
        %v8930 = vsel %vm7553, %v8900, 0.0
        %v8931 = vadd.f32 %v8929, %v8930
        %v8932 = vsel %vm7553, %v8902, 0.0
        %v8933 = vadd.f32 %v8931, %v8932
        %v8934 = vsel %vm7553, %v8904, 0.0
        %v8935 = vadd.f32 %v8933, %v8934
        %v8936 = vsel %vm7553, %v8906, 0.0
        %v8937 = vadd.f32 %v8935, %v8936
        %v8938 = vsel %vm7553, %v8908, 0.0
        %v8939 = vadd.f32 %v8937, %v8938
        %v8940 = vsel %vm7553, %v8910, 0.0
        %v8941 = vadd.f32 %v8939, %v8940
        %v8942 = vsel %vm7553, %v8912, 0.0
        %v8943 = vadd.f32 %v8941, %v8942
        %v8944 = vsel %vm7553, %v8914, 0.0
        %v8945 = vadd.f32 %v8943, %v8944
        %v8946 = vsel %vm7553, %v8916, 0.0
        %v8947 = vadd.f32 %v8945, %v8946
        %v8948 = vsel %vm7553, %v8918, 0.0
        %v8949 = vadd.f32 %v8947, %v8948
        %v8950 = vsel %vm7553, %v8920, 0.0
        %v8951 = vadd.f32 %v8949, %v8950
        %v8952 = vsel %vm7553, %v8922, 0.0
        %v8953 = vadd.f32 %v8951, %v8952
        %v8954 = vsel %vm7553, %v8924, 0.0
        %v8955 = vadd.f32 %v8953, %v8954
        %v8956 = vsel %vm7553, %v8926, 0.0
        %v8957 = vadd.f32 %v8955, %v8956
        %v8958 = vsel %vm7553, %v8928, 0.0
        %v8959 = vadd.f32 %v8957, %v8958
        %v8960 = vadd.f32 %v8959, 1.0
        %v8961 = vlog2.pop %v8960
        %v8962 = vmul.f32 %v8961, 0.6931472
        %v8963 = vsel %vm7553, %v8962, 0.0
        %v8964 = vrot.slane %v8963, 4
        %v8965 = vadd.f32 %v8963, %v8964
        %v8966 = vrot.slane %v8965, 2
        %v8967 = vadd.f32 %v8965, %v8966
        %v8968 = vrot.slane %v8967, 1
        %v8969 = vadd.f32 %v8967, %v8968
        %s8970 = sld [smem:[#allocation2 + $0xb]]
        %v8971 = vstv %s8970
        %v8972 = vmul.f32 %v8969, %v8971
        %v8973 = vadd.f32 %v8848, %v8972
        %v8974 = vsub.f32 %v7457, 0.25
        %v8975 = vsub.f32 %v7458, 0.25
        %v8976 = vsub.f32 %v7459, 0.25
        %v8977 = vsub.f32 %v7460, 0.25
        %v8978 = vsub.f32 %v7461, 0.25
        %v8979 = vsub.f32 %v7462, 0.25
        %v8980 = vsub.f32 %v7463, 0.25
        %v8981 = vsub.f32 %v7464, 0.25
        %v8982 = vsub.f32 %v7465, 0.25
        %v8983 = vsub.f32 %v7466, 0.25
        %v8984 = vsub.f32 %v7467, 0.25
        %v8985 = vsub.f32 %v7468, 0.25
        %v8986 = vsub.f32 %v7469, 0.25
        %v8987 = vsub.f32 %v7470, 0.25
        %v8988 = vsub.f32 %v7471, 0.25
        %v8989 = vsub.f32 %v7472, 0.25
        %v8990 = vmul.f32 %v8974, %v8974
        %v8991 = vmul.f32 %v8975, %v8975
        %v8992 = vmul.f32 %v8976, %v8976
        %v8993 = vmul.f32 %v8977, %v8977
        %v8994 = vmul.f32 %v8978, %v8978
        %v8995 = vmul.f32 %v8979, %v8979
        %v8996 = vmul.f32 %v8980, %v8980
        %v8997 = vmul.f32 %v8981, %v8981
        %v8998 = vmul.f32 %v8982, %v8982
        %v8999 = vmul.f32 %v8983, %v8983
        %v9000 = vmul.f32 %v8984, %v8984
        %v9001 = vmul.f32 %v8985, %v8985
        %v9002 = vmul.f32 %v8986, %v8986
        %v9003 = vmul.f32 %v8987, %v8987
        %v9004 = vmul.f32 %v8988, %v8988
        %v9005 = vmul.f32 %v8989, %v8989
        %v9006 = vmul.f32 %v8990, -50.0
        %v9007 = vmul.f32 %v8991, -50.0
        %v9008 = vmul.f32 %v8992, -50.0
        %v9009 = vmul.f32 %v8993, -50.0
        %v9010 = vmul.f32 %v8994, -50.0
        %v9011 = vmul.f32 %v8995, -50.0
        %v9012 = vmul.f32 %v8996, -50.0
        %v9013 = vmul.f32 %v8997, -50.0
        %v9014 = vmul.f32 %v8998, -50.0
        %v9015 = vmul.f32 %v8999, -50.0
        %v9016 = vmul.f32 %v9000, -50.0
        %v9017 = vmul.f32 %v9001, -50.0
        %v9018 = vmul.f32 %v9002, -50.0
        %v9019 = vmul.f32 %v9003, -50.0
        %v9020 = vmul.f32 %v9004, -50.0
        %v9021 = vmul.f32 %v9005, -50.0
        %v9022 = vmul.f32 %v9006, 1.442695
        %v9023 = vpow.pop %v9022
        %v9024 = vmul.f32 %v9007, 1.442695
        %v9025 = vpow.pop %v9024
        %v9026 = vmul.f32 %v9008, 1.442695
        %v9027 = vpow.pop %v9026
        %v9028 = vmul.f32 %v9009, 1.442695
        %v9029 = vpow.pop %v9028
        %v9030 = vmul.f32 %v9010, 1.442695
        %v9031 = vpow.pop %v9030
        %v9032 = vmul.f32 %v9011, 1.442695
        %v9033 = vpow.pop %v9032
        %v9034 = vmul.f32 %v9012, 1.442695
        %v9035 = vpow.pop %v9034
        %v9036 = vmul.f32 %v9013, 1.442695
        %v9037 = vpow.pop %v9036
        %v9038 = vmul.f32 %v9014, 1.442695
        %v9039 = vpow.pop %v9038
        %v9040 = vmul.f32 %v9015, 1.442695
        %v9041 = vpow.pop %v9040
        %v9042 = vmul.f32 %v9016, 1.442695
        %v9043 = vpow.pop %v9042
        %v9044 = vmul.f32 %v9017, 1.442695
        %v9045 = vpow.pop %v9044
        %v9046 = vmul.f32 %v9018, 1.442695
        %v9047 = vpow.pop %v9046
        %v9048 = vmul.f32 %v9019, 1.442695
        %v9049 = vpow.pop %v9048
        %v9050 = vmul.f32 %v9020, 1.442695
        %v9051 = vpow.pop %v9050
        %v9052 = vmul.f32 %v9021, 1.442695
        %v9053 = vpow.pop %v9052
        %v9054 = vsel %vm7553, %v9023, 0.0
        %v9055 = vsel %vm7553, %v9025, 0.0
        %v9056 = vadd.f32 %v9054, %v9055
        %v9057 = vsel %vm7553, %v9027, 0.0
        %v9058 = vadd.f32 %v9056, %v9057
        %v9059 = vsel %vm7553, %v9029, 0.0
        %v9060 = vadd.f32 %v9058, %v9059
        %v9061 = vsel %vm7553, %v9031, 0.0
        %v9062 = vadd.f32 %v9060, %v9061
        %v9063 = vsel %vm7553, %v9033, 0.0
        %v9064 = vadd.f32 %v9062, %v9063
        %v9065 = vsel %vm7553, %v9035, 0.0
        %v9066 = vadd.f32 %v9064, %v9065
        %v9067 = vsel %vm7553, %v9037, 0.0
        %v9068 = vadd.f32 %v9066, %v9067
        %v9069 = vsel %vm7553, %v9039, 0.0
        %v9070 = vadd.f32 %v9068, %v9069
        %v9071 = vsel %vm7553, %v9041, 0.0
        %v9072 = vadd.f32 %v9070, %v9071
        %v9073 = vsel %vm7553, %v9043, 0.0
        %v9074 = vadd.f32 %v9072, %v9073
        %v9075 = vsel %vm7553, %v9045, 0.0
        %v9076 = vadd.f32 %v9074, %v9075
        %v9077 = vsel %vm7553, %v9047, 0.0
        %v9078 = vadd.f32 %v9076, %v9077
        %v9079 = vsel %vm7553, %v9049, 0.0
        %v9080 = vadd.f32 %v9078, %v9079
        %v9081 = vsel %vm7553, %v9051, 0.0
        %v9082 = vadd.f32 %v9080, %v9081
        %v9083 = vsel %vm7553, %v9053, 0.0
        %v9084 = vadd.f32 %v9082, %v9083
        %v9085 = vadd.f32 %v9084, 1.0
        %v9086 = vlog2.pop %v9085
        %v9087 = vmul.f32 %v9086, 0.6931472
        %v9088 = vsel %vm7553, %v9087, 0.0
        %v9089 = vrot.slane %v9088, 4
        %v9090 = vadd.f32 %v9088, %v9089
        %v9091 = vrot.slane %v9090, 2
        %v9092 = vadd.f32 %v9090, %v9091
        %v9093 = vrot.slane %v9092, 1
        %v9094 = vadd.f32 %v9092, %v9093
        %s9095 = sld [smem:[#allocation2 + $0xc]]
        %v9096 = vstv %s9095
        %v9097 = vmul.f32 %v9094, %v9096
        %v9098 = vadd.f32 %v8973, %v9097
        %v9099 = vsub.f32 %v7457, 0.35
        %v9100 = vsub.f32 %v7458, 0.35
        %v9101 = vsub.f32 %v7459, 0.35
        %v9102 = vsub.f32 %v7460, 0.35
        %v9103 = vsub.f32 %v7461, 0.35
        %v9104 = vsub.f32 %v7462, 0.35
        %v9105 = vsub.f32 %v7463, 0.35
        %v9106 = vsub.f32 %v7464, 0.35
        %v9107 = vsub.f32 %v7465, 0.35
        %v9108 = vsub.f32 %v7466, 0.35
        %v9109 = vsub.f32 %v7467, 0.35
        %v9110 = vsub.f32 %v7468, 0.35
        %v9111 = vsub.f32 %v7469, 0.35
        %v9112 = vsub.f32 %v7470, 0.35
        %v9113 = vsub.f32 %v7471, 0.35
        %v9114 = vsub.f32 %v7472, 0.35
        %v9115 = vmul.f32 %v9099, %v9099
        %v9116 = vmul.f32 %v9100, %v9100
        %v9117 = vmul.f32 %v9101, %v9101
        %v9118 = vmul.f32 %v9102, %v9102
        %v9119 = vmul.f32 %v9103, %v9103
        %v9120 = vmul.f32 %v9104, %v9104
        %v9121 = vmul.f32 %v9105, %v9105
        %v9122 = vmul.f32 %v9106, %v9106
        %v9123 = vmul.f32 %v9107, %v9107
        %v9124 = vmul.f32 %v9108, %v9108
        %v9125 = vmul.f32 %v9109, %v9109
        %v9126 = vmul.f32 %v9110, %v9110
        %v9127 = vmul.f32 %v9111, %v9111
        %v9128 = vmul.f32 %v9112, %v9112
        %v9129 = vmul.f32 %v9113, %v9113
        %v9130 = vmul.f32 %v9114, %v9114
        %v9131 = vmul.f32 %v9115, -50.0
        %v9132 = vmul.f32 %v9116, -50.0
        %v9133 = vmul.f32 %v9117, -50.0
        %v9134 = vmul.f32 %v9118, -50.0
        %v9135 = vmul.f32 %v9119, -50.0
        %v9136 = vmul.f32 %v9120, -50.0
        %v9137 = vmul.f32 %v9121, -50.0
        %v9138 = vmul.f32 %v9122, -50.0
        %v9139 = vmul.f32 %v9123, -50.0
        %v9140 = vmul.f32 %v9124, -50.0
        %v9141 = vmul.f32 %v9125, -50.0
        %v9142 = vmul.f32 %v9126, -50.0
        %v9143 = vmul.f32 %v9127, -50.0
        %v9144 = vmul.f32 %v9128, -50.0
        %v9145 = vmul.f32 %v9129, -50.0
        %v9146 = vmul.f32 %v9130, -50.0
        %v9147 = vmul.f32 %v9131, 1.442695
        %v9148 = vpow.pop %v9147
        %v9149 = vmul.f32 %v9132, 1.442695
        %v9150 = vpow.pop %v9149
        %v9151 = vmul.f32 %v9133, 1.442695
        %v9152 = vpow.pop %v9151
        %v9153 = vmul.f32 %v9134, 1.442695
        %v9154 = vpow.pop %v9153
        %v9155 = vmul.f32 %v9135, 1.442695
        %v9156 = vpow.pop %v9155
        %v9157 = vmul.f32 %v9136, 1.442695
        %v9158 = vpow.pop %v9157
        %v9159 = vmul.f32 %v9137, 1.442695
        %v9160 = vpow.pop %v9159
        %v9161 = vmul.f32 %v9138, 1.442695
        %v9162 = vpow.pop %v9161
        %v9163 = vmul.f32 %v9139, 1.442695
        %v9164 = vpow.pop %v9163
        %v9165 = vmul.f32 %v9140, 1.442695
        %v9166 = vpow.pop %v9165
        %v9167 = vmul.f32 %v9141, 1.442695
        %v9168 = vpow.pop %v9167
        %v9169 = vmul.f32 %v9142, 1.442695
        %v9170 = vpow.pop %v9169
        %v9171 = vmul.f32 %v9143, 1.442695
        %v9172 = vpow.pop %v9171
        %v9173 = vmul.f32 %v9144, 1.442695
        %v9174 = vpow.pop %v9173
        %v9175 = vmul.f32 %v9145, 1.442695
        %v9176 = vpow.pop %v9175
        %v9177 = vmul.f32 %v9146, 1.442695
        %v9178 = vpow.pop %v9177
        %v9179 = vsel %vm7553, %v9148, 0.0
        %v9180 = vsel %vm7553, %v9150, 0.0
        %v9181 = vadd.f32 %v9179, %v9180
        %v9182 = vsel %vm7553, %v9152, 0.0
        %v9183 = vadd.f32 %v9181, %v9182
        %v9184 = vsel %vm7553, %v9154, 0.0
        %v9185 = vadd.f32 %v9183, %v9184
        %v9186 = vsel %vm7553, %v9156, 0.0
        %v9187 = vadd.f32 %v9185, %v9186
        %v9188 = vsel %vm7553, %v9158, 0.0
        %v9189 = vadd.f32 %v9187, %v9188
        %v9190 = vsel %vm7553, %v9160, 0.0
        %v9191 = vadd.f32 %v9189, %v9190
        %v9192 = vsel %vm7553, %v9162, 0.0
        %v9193 = vadd.f32 %v9191, %v9192
        %v9194 = vsel %vm7553, %v9164, 0.0
        %v9195 = vadd.f32 %v9193, %v9194
        %v9196 = vsel %vm7553, %v9166, 0.0
        %v9197 = vadd.f32 %v9195, %v9196
        %v9198 = vsel %vm7553, %v9168, 0.0
        %v9199 = vadd.f32 %v9197, %v9198
        %v9200 = vsel %vm7553, %v9170, 0.0
        %v9201 = vadd.f32 %v9199, %v9200
        %v9202 = vsel %vm7553, %v9172, 0.0
        %v9203 = vadd.f32 %v9201, %v9202
        %v9204 = vsel %vm7553, %v9174, 0.0
        %v9205 = vadd.f32 %v9203, %v9204
        %v9206 = vsel %vm7553, %v9176, 0.0
        %v9207 = vadd.f32 %v9205, %v9206
        %v9208 = vsel %vm7553, %v9178, 0.0
        %v9209 = vadd.f32 %v9207, %v9208
        %v9210 = vadd.f32 %v9209, 1.0
        %v9211 = vlog2.pop %v9210
        %v9212 = vmul.f32 %v9211, 0.6931472
        %v9213 = vsel %vm7553, %v9212, 0.0
        %v9214 = vrot.slane %v9213, 4
        %v9215 = vadd.f32 %v9213, %v9214
        %v9216 = vrot.slane %v9215, 2
        %v9217 = vadd.f32 %v9215, %v9216
        %v9218 = vrot.slane %v9217, 1
        %v9219 = vadd.f32 %v9217, %v9218
        %s9220 = sld [smem:[#allocation2 + $0xd]]
        %v9221 = vstv %s9220
        %v9222 = vmul.f32 %v9219, %v9221
        %v9223 = vadd.f32 %v9098, %v9222
        %v9224 = vsub.f32 %v7457, 0.45
        %v9225 = vsub.f32 %v7458, 0.45
        %v9226 = vsub.f32 %v7459, 0.45
        %v9227 = vsub.f32 %v7460, 0.45
        %v9228 = vsub.f32 %v7461, 0.45
        %v9229 = vsub.f32 %v7462, 0.45
        %v9230 = vsub.f32 %v7463, 0.45
        %v9231 = vsub.f32 %v7464, 0.45
        %v9232 = vsub.f32 %v7465, 0.45
        %v9233 = vsub.f32 %v7466, 0.45
        %v9234 = vsub.f32 %v7467, 0.45
        %v9235 = vsub.f32 %v7468, 0.45
        %v9236 = vsub.f32 %v7469, 0.45
        %v9237 = vsub.f32 %v7470, 0.45
        %v9238 = vsub.f32 %v7471, 0.45
        %v9239 = vsub.f32 %v7472, 0.45
        %v9240 = vmul.f32 %v9224, %v9224
        %v9241 = vmul.f32 %v9225, %v9225
        %v9242 = vmul.f32 %v9226, %v9226
        %v9243 = vmul.f32 %v9227, %v9227
        %v9244 = vmul.f32 %v9228, %v9228
        %v9245 = vmul.f32 %v9229, %v9229
        %v9246 = vmul.f32 %v9230, %v9230
        %v9247 = vmul.f32 %v9231, %v9231
        %v9248 = vmul.f32 %v9232, %v9232
        %v9249 = vmul.f32 %v9233, %v9233
        %v9250 = vmul.f32 %v9234, %v9234
        %v9251 = vmul.f32 %v9235, %v9235
        %v9252 = vmul.f32 %v9236, %v9236
        %v9253 = vmul.f32 %v9237, %v9237
        %v9254 = vmul.f32 %v9238, %v9238
        %v9255 = vmul.f32 %v9239, %v9239
        %v9256 = vmul.f32 %v9240, -50.0
        %v9257 = vmul.f32 %v9241, -50.0
        %v9258 = vmul.f32 %v9242, -50.0
        %v9259 = vmul.f32 %v9243, -50.0
        %v9260 = vmul.f32 %v9244, -50.0
        %v9261 = vmul.f32 %v9245, -50.0
        %v9262 = vmul.f32 %v9246, -50.0
        %v9263 = vmul.f32 %v9247, -50.0
        %v9264 = vmul.f32 %v9248, -50.0
        %v9265 = vmul.f32 %v9249, -50.0
        %v9266 = vmul.f32 %v9250, -50.0
        %v9267 = vmul.f32 %v9251, -50.0
        %v9268 = vmul.f32 %v9252, -50.0
        %v9269 = vmul.f32 %v9253, -50.0
        %v9270 = vmul.f32 %v9254, -50.0
        %v9271 = vmul.f32 %v9255, -50.0
        %v9272 = vmul.f32 %v9256, 1.442695
        %v9273 = vpow.pop %v9272
        %v9274 = vmul.f32 %v9257, 1.442695
        %v9275 = vpow.pop %v9274
        %v9276 = vmul.f32 %v9258, 1.442695
        %v9277 = vpow.pop %v9276
        %v9278 = vmul.f32 %v9259, 1.442695
        %v9279 = vpow.pop %v9278
        %v9280 = vmul.f32 %v9260, 1.442695
        %v9281 = vpow.pop %v9280
        %v9282 = vmul.f32 %v9261, 1.442695
        %v9283 = vpow.pop %v9282
        %v9284 = vmul.f32 %v9262, 1.442695
        %v9285 = vpow.pop %v9284
        %v9286 = vmul.f32 %v9263, 1.442695
        %v9287 = vpow.pop %v9286
        %v9288 = vmul.f32 %v9264, 1.442695
        %v9289 = vpow.pop %v9288
        %v9290 = vmul.f32 %v9265, 1.442695
        %v9291 = vpow.pop %v9290
        %v9292 = vmul.f32 %v9266, 1.442695
        %v9293 = vpow.pop %v9292
        %v9294 = vmul.f32 %v9267, 1.442695
        %v9295 = vpow.pop %v9294
        %v9296 = vmul.f32 %v9268, 1.442695
        %v9297 = vpow.pop %v9296
        %v9298 = vmul.f32 %v9269, 1.442695
        %v9299 = vpow.pop %v9298
        %v9300 = vmul.f32 %v9270, 1.442695
        %v9301 = vpow.pop %v9300
        %v9302 = vmul.f32 %v9271, 1.442695
        %v9303 = vpow.pop %v9302
        %v9304 = vsel %vm7553, %v9273, 0.0
        %v9305 = vsel %vm7553, %v9275, 0.0
        %v9306 = vadd.f32 %v9304, %v9305
        %v9307 = vsel %vm7553, %v9277, 0.0
        %v9308 = vadd.f32 %v9306, %v9307
        %v9309 = vsel %vm7553, %v9279, 0.0
        %v9310 = vadd.f32 %v9308, %v9309
        %v9311 = vsel %vm7553, %v9281, 0.0
        %v9312 = vadd.f32 %v9310, %v9311
        %v9313 = vsel %vm7553, %v9283, 0.0
        %v9314 = vadd.f32 %v9312, %v9313
        %v9315 = vsel %vm7553, %v9285, 0.0
        %v9316 = vadd.f32 %v9314, %v9315
        %v9317 = vsel %vm7553, %v9287, 0.0
        %v9318 = vadd.f32 %v9316, %v9317
        %v9319 = vsel %vm7553, %v9289, 0.0
        %v9320 = vadd.f32 %v9318, %v9319
        %v9321 = vsel %vm7553, %v9291, 0.0
        %v9322 = vadd.f32 %v9320, %v9321
        %v9323 = vsel %vm7553, %v9293, 0.0
        %v9324 = vadd.f32 %v9322, %v9323
        %v9325 = vsel %vm7553, %v9295, 0.0
        %v9326 = vadd.f32 %v9324, %v9325
        %v9327 = vsel %vm7553, %v9297, 0.0
        %v9328 = vadd.f32 %v9326, %v9327
        %v9329 = vsel %vm7553, %v9299, 0.0
        %v9330 = vadd.f32 %v9328, %v9329
        %v9331 = vsel %vm7553, %v9301, 0.0
        %v9332 = vadd.f32 %v9330, %v9331
        %v9333 = vsel %vm7553, %v9303, 0.0
        %v9334 = vadd.f32 %v9332, %v9333
        %v9335 = vadd.f32 %v9334, 1.0
        %v9336 = vlog2.pop %v9335
        %v9337 = vmul.f32 %v9336, 0.6931472
        %v9338 = vsel %vm7553, %v9337, 0.0
        %v9339 = vrot.slane %v9338, 4
        %v9340 = vadd.f32 %v9338, %v9339
        %v9341 = vrot.slane %v9340, 2
        %v9342 = vadd.f32 %v9340, %v9341
        %v9343 = vrot.slane %v9342, 1
        %v9344 = vadd.f32 %v9342, %v9343
        %s9345 = sld [smem:[#allocation2 + $0xe]]
        %v9346 = vstv %s9345
        %v9347 = vmul.f32 %v9344, %v9346
        %v9348 = vadd.f32 %v9223, %v9347
        %v9349 = vsub.f32 %v7457, 0.55
        %v9350 = vsub.f32 %v7458, 0.55
        %v9351 = vsub.f32 %v7459, 0.55
        %v9352 = vsub.f32 %v7460, 0.55
        %v9353 = vsub.f32 %v7461, 0.55
        %v9354 = vsub.f32 %v7462, 0.55
        %v9355 = vsub.f32 %v7463, 0.55
        %v9356 = vsub.f32 %v7464, 0.55
        %v9357 = vsub.f32 %v7465, 0.55
        %v9358 = vsub.f32 %v7466, 0.55
        %v9359 = vsub.f32 %v7467, 0.55
        %v9360 = vsub.f32 %v7468, 0.55
        %v9361 = vsub.f32 %v7469, 0.55
        %v9362 = vsub.f32 %v7470, 0.55
        %v9363 = vsub.f32 %v7471, 0.55
        %v9364 = vsub.f32 %v7472, 0.55
        %v9365 = vmul.f32 %v9349, %v9349
        %v9366 = vmul.f32 %v9350, %v9350
        %v9367 = vmul.f32 %v9351, %v9351
        %v9368 = vmul.f32 %v9352, %v9352
        %v9369 = vmul.f32 %v9353, %v9353
        %v9370 = vmul.f32 %v9354, %v9354
        %v9371 = vmul.f32 %v9355, %v9355
        %v9372 = vmul.f32 %v9356, %v9356
        %v9373 = vmul.f32 %v9357, %v9357
        %v9374 = vmul.f32 %v9358, %v9358
        %v9375 = vmul.f32 %v9359, %v9359
        %v9376 = vmul.f32 %v9360, %v9360
        %v9377 = vmul.f32 %v9361, %v9361
        %v9378 = vmul.f32 %v9362, %v9362
        %v9379 = vmul.f32 %v9363, %v9363
        %v9380 = vmul.f32 %v9364, %v9364
        %v9381 = vmul.f32 %v9365, -50.0
        %v9382 = vmul.f32 %v9366, -50.0
        %v9383 = vmul.f32 %v9367, -50.0
        %v9384 = vmul.f32 %v9368, -50.0
        %v9385 = vmul.f32 %v9369, -50.0
        %v9386 = vmul.f32 %v9370, -50.0
        %v9387 = vmul.f32 %v9371, -50.0
        %v9388 = vmul.f32 %v9372, -50.0
        %v9389 = vmul.f32 %v9373, -50.0
        %v9390 = vmul.f32 %v9374, -50.0
        %v9391 = vmul.f32 %v9375, -50.0
        %v9392 = vmul.f32 %v9376, -50.0
        %v9393 = vmul.f32 %v9377, -50.0
        %v9394 = vmul.f32 %v9378, -50.0
        %v9395 = vmul.f32 %v9379, -50.0
        %v9396 = vmul.f32 %v9380, -50.0
        %v9397 = vmul.f32 %v9381, 1.442695
        %v9398 = vpow.pop %v9397
        %v9399 = vmul.f32 %v9382, 1.442695
        %v9400 = vpow.pop %v9399
        %v9401 = vmul.f32 %v9383, 1.442695
        %v9402 = vpow.pop %v9401
        %v9403 = vmul.f32 %v9384, 1.442695
        %v9404 = vpow.pop %v9403
        %v9405 = vmul.f32 %v9385, 1.442695
        %v9406 = vpow.pop %v9405
        %v9407 = vmul.f32 %v9386, 1.442695
        %v9408 = vpow.pop %v9407
        %v9409 = vmul.f32 %v9387, 1.442695
        %v9410 = vpow.pop %v9409
        %v9411 = vmul.f32 %v9388, 1.442695
        %v9412 = vpow.pop %v9411
        %v9413 = vmul.f32 %v9389, 1.442695
        %v9414 = vpow.pop %v9413
        %v9415 = vmul.f32 %v9390, 1.442695
        %v9416 = vpow.pop %v9415
        %v9417 = vmul.f32 %v9391, 1.442695
        %v9418 = vpow.pop %v9417
        %v9419 = vmul.f32 %v9392, 1.442695
        %v9420 = vpow.pop %v9419
        %v9421 = vmul.f32 %v9393, 1.442695
        %v9422 = vpow.pop %v9421
        %v9423 = vmul.f32 %v9394, 1.442695
        %v9424 = vpow.pop %v9423
        %v9425 = vmul.f32 %v9395, 1.442695
        %v9426 = vpow.pop %v9425
        %v9427 = vmul.f32 %v9396, 1.442695
        %v9428 = vpow.pop %v9427
        %v9429 = vsel %vm7553, %v9398, 0.0
        %v9430 = vsel %vm7553, %v9400, 0.0
        %v9431 = vadd.f32 %v9429, %v9430
        %v9432 = vsel %vm7553, %v9402, 0.0
        %v9433 = vadd.f32 %v9431, %v9432
        %v9434 = vsel %vm7553, %v9404, 0.0
        %v9435 = vadd.f32 %v9433, %v9434
        %v9436 = vsel %vm7553, %v9406, 0.0
        %v9437 = vadd.f32 %v9435, %v9436
        %v9438 = vsel %vm7553, %v9408, 0.0
        %v9439 = vadd.f32 %v9437, %v9438
        %v9440 = vsel %vm7553, %v9410, 0.0
        %v9441 = vadd.f32 %v9439, %v9440
        %v9442 = vsel %vm7553, %v9412, 0.0
        %v9443 = vadd.f32 %v9441, %v9442
        %v9444 = vsel %vm7553, %v9414, 0.0
        %v9445 = vadd.f32 %v9443, %v9444
        %v9446 = vsel %vm7553, %v9416, 0.0
        %v9447 = vadd.f32 %v9445, %v9446
        %v9448 = vsel %vm7553, %v9418, 0.0
        %v9449 = vadd.f32 %v9447, %v9448
        %v9450 = vsel %vm7553, %v9420, 0.0
        %v9451 = vadd.f32 %v9449, %v9450
        %v9452 = vsel %vm7553, %v9422, 0.0
        %v9453 = vadd.f32 %v9451, %v9452
        %v9454 = vsel %vm7553, %v9424, 0.0
        %v9455 = vadd.f32 %v9453, %v9454
        %v9456 = vsel %vm7553, %v9426, 0.0
        %v9457 = vadd.f32 %v9455, %v9456
        %v9458 = vsel %vm7553, %v9428, 0.0
        %v9459 = vadd.f32 %v9457, %v9458
        %v9460 = vadd.f32 %v9459, 1.0
        %v9461 = vlog2.pop %v9460
        %v9462 = vmul.f32 %v9461, 0.6931472
        %v9463 = vsel %vm7553, %v9462, 0.0
        %v9464 = vrot.slane %v9463, 4
        %v9465 = vadd.f32 %v9463, %v9464
        %v9466 = vrot.slane %v9465, 2
        %v9467 = vadd.f32 %v9465, %v9466
        %v9468 = vrot.slane %v9467, 1
        %v9469 = vadd.f32 %v9467, %v9468
        %s9470 = sld [smem:[#allocation2 + $0xf]]
        %v9471 = vstv %s9470
        %v9472 = vmul.f32 %v9469, %v9471
        %v9473 = vadd.f32 %v9348, %v9472
        %v9474 = vsub.f32 %v7457, 0.65
        %v9475 = vsub.f32 %v7458, 0.65
        %v9476 = vsub.f32 %v7459, 0.65
        %v9477 = vsub.f32 %v7460, 0.65
        %v9478 = vsub.f32 %v7461, 0.65
        %v9479 = vsub.f32 %v7462, 0.65
        %v9480 = vsub.f32 %v7463, 0.65
        %v9481 = vsub.f32 %v7464, 0.65
        %v9482 = vsub.f32 %v7465, 0.65
        %v9483 = vsub.f32 %v7466, 0.65
        %v9484 = vsub.f32 %v7467, 0.65
        %v9485 = vsub.f32 %v7468, 0.65
        %v9486 = vsub.f32 %v7469, 0.65
        %v9487 = vsub.f32 %v7470, 0.65
        %v9488 = vsub.f32 %v7471, 0.65
        %v9489 = vsub.f32 %v7472, 0.65
        %v9490 = vmul.f32 %v9474, %v9474
        %v9491 = vmul.f32 %v9475, %v9475
        %v9492 = vmul.f32 %v9476, %v9476
        %v9493 = vmul.f32 %v9477, %v9477
        %v9494 = vmul.f32 %v9478, %v9478
        %v9495 = vmul.f32 %v9479, %v9479
        %v9496 = vmul.f32 %v9480, %v9480
        %v9497 = vmul.f32 %v9481, %v9481
        %v9498 = vmul.f32 %v9482, %v9482
        %v9499 = vmul.f32 %v9483, %v9483
        %v9500 = vmul.f32 %v9484, %v9484
        %v9501 = vmul.f32 %v9485, %v9485
        %v9502 = vmul.f32 %v9486, %v9486
        %v9503 = vmul.f32 %v9487, %v9487
        %v9504 = vmul.f32 %v9488, %v9488
        %v9505 = vmul.f32 %v9489, %v9489
        %v9506 = vmul.f32 %v9490, -50.0
        %v9507 = vmul.f32 %v9491, -50.0
        %v9508 = vmul.f32 %v9492, -50.0
        %v9509 = vmul.f32 %v9493, -50.0
        %v9510 = vmul.f32 %v9494, -50.0
        %v9511 = vmul.f32 %v9495, -50.0
        %v9512 = vmul.f32 %v9496, -50.0
        %v9513 = vmul.f32 %v9497, -50.0
        %v9514 = vmul.f32 %v9498, -50.0
        %v9515 = vmul.f32 %v9499, -50.0
        %v9516 = vmul.f32 %v9500, -50.0
        %v9517 = vmul.f32 %v9501, -50.0
        %v9518 = vmul.f32 %v9502, -50.0
        %v9519 = vmul.f32 %v9503, -50.0
        %v9520 = vmul.f32 %v9504, -50.0
        %v9521 = vmul.f32 %v9505, -50.0
        %v9522 = vmul.f32 %v9506, 1.442695
        %v9523 = vpow.pop %v9522
        %v9524 = vmul.f32 %v9507, 1.442695
        %v9525 = vpow.pop %v9524
        %v9526 = vmul.f32 %v9508, 1.442695
        %v9527 = vpow.pop %v9526
        %v9528 = vmul.f32 %v9509, 1.442695
        %v9529 = vpow.pop %v9528
        %v9530 = vmul.f32 %v9510, 1.442695
        %v9531 = vpow.pop %v9530
        %v9532 = vmul.f32 %v9511, 1.442695
        %v9533 = vpow.pop %v9532
        %v9534 = vmul.f32 %v9512, 1.442695
        %v9535 = vpow.pop %v9534
        %v9536 = vmul.f32 %v9513, 1.442695
        %v9537 = vpow.pop %v9536
        %v9538 = vmul.f32 %v9514, 1.442695
        %v9539 = vpow.pop %v9538
        %v9540 = vmul.f32 %v9515, 1.442695
        %v9541 = vpow.pop %v9540
        %v9542 = vmul.f32 %v9516, 1.442695
        %v9543 = vpow.pop %v9542
        %v9544 = vmul.f32 %v9517, 1.442695
        %v9545 = vpow.pop %v9544
        %v9546 = vmul.f32 %v9518, 1.442695
        %v9547 = vpow.pop %v9546
        %v9548 = vmul.f32 %v9519, 1.442695
        %v9549 = vpow.pop %v9548
        %v9550 = vmul.f32 %v9520, 1.442695
        %v9551 = vpow.pop %v9550
        %v9552 = vmul.f32 %v9521, 1.442695
        %v9553 = vpow.pop %v9552
        %v9554 = vsel %vm7553, %v9523, 0.0
        %v9555 = vsel %vm7553, %v9525, 0.0
        %v9556 = vadd.f32 %v9554, %v9555
        %v9557 = vsel %vm7553, %v9527, 0.0
        %v9558 = vadd.f32 %v9556, %v9557
        %v9559 = vsel %vm7553, %v9529, 0.0
        %v9560 = vadd.f32 %v9558, %v9559
        %v9561 = vsel %vm7553, %v9531, 0.0
        %v9562 = vadd.f32 %v9560, %v9561
        %v9563 = vsel %vm7553, %v9533, 0.0
        %v9564 = vadd.f32 %v9562, %v9563
        %v9565 = vsel %vm7553, %v9535, 0.0
        %v9566 = vadd.f32 %v9564, %v9565
        %v9567 = vsel %vm7553, %v9537, 0.0
        %v9568 = vadd.f32 %v9566, %v9567
        %v9569 = vsel %vm7553, %v9539, 0.0
        %v9570 = vadd.f32 %v9568, %v9569
        %v9571 = vsel %vm7553, %v9541, 0.0
        %v9572 = vadd.f32 %v9570, %v9571
        %v9573 = vsel %vm7553, %v9543, 0.0
        %v9574 = vadd.f32 %v9572, %v9573
        %v9575 = vsel %vm7553, %v9545, 0.0
        %v9576 = vadd.f32 %v9574, %v9575
        %v9577 = vsel %vm7553, %v9547, 0.0
        %v9578 = vadd.f32 %v9576, %v9577
        %v9579 = vsel %vm7553, %v9549, 0.0
        %v9580 = vadd.f32 %v9578, %v9579
        %v9581 = vsel %vm7553, %v9551, 0.0
        %v9582 = vadd.f32 %v9580, %v9581
        %v9583 = vsel %vm7553, %v9553, 0.0
        %v9584 = vadd.f32 %v9582, %v9583
        %v9585 = vadd.f32 %v9584, 1.0
        %v9586 = vlog2.pop %v9585
        %v9587 = vmul.f32 %v9586, 0.6931472
        %v9588 = vsel %vm7553, %v9587, 0.0
        %v9589 = vrot.slane %v9588, 4
        %v9590 = vadd.f32 %v9588, %v9589
        %v9591 = vrot.slane %v9590, 2
        %v9592 = vadd.f32 %v9590, %v9591
        %v9593 = vrot.slane %v9592, 1
        %v9594 = vadd.f32 %v9592, %v9593
        %s9595 = sld [smem:[#allocation2 + $0x10]]
        %v9596 = vstv %s9595
        %v9597 = vmul.f32 %v9594, %v9596
        %v9598 = vadd.f32 %v9473, %v9597
        %v9599 = vsub.f32 %v7457, 0.75
        %v9600 = vsub.f32 %v7458, 0.75
        %v9601 = vsub.f32 %v7459, 0.75
        %v9602 = vsub.f32 %v7460, 0.75
        %v9603 = vsub.f32 %v7461, 0.75
        %v9604 = vsub.f32 %v7462, 0.75
        %v9605 = vsub.f32 %v7463, 0.75
        %v9606 = vsub.f32 %v7464, 0.75
        %v9607 = vsub.f32 %v7465, 0.75
        %v9608 = vsub.f32 %v7466, 0.75
        %v9609 = vsub.f32 %v7467, 0.75
        %v9610 = vsub.f32 %v7468, 0.75
        %v9611 = vsub.f32 %v7469, 0.75
        %v9612 = vsub.f32 %v7470, 0.75
        %v9613 = vsub.f32 %v7471, 0.75
        %v9614 = vsub.f32 %v7472, 0.75
        %v9615 = vmul.f32 %v9599, %v9599
        %v9616 = vmul.f32 %v9600, %v9600
        %v9617 = vmul.f32 %v9601, %v9601
        %v9618 = vmul.f32 %v9602, %v9602
        %v9619 = vmul.f32 %v9603, %v9603
        %v9620 = vmul.f32 %v9604, %v9604
        %v9621 = vmul.f32 %v9605, %v9605
        %v9622 = vmul.f32 %v9606, %v9606
        %v9623 = vmul.f32 %v9607, %v9607
        %v9624 = vmul.f32 %v9608, %v9608
        %v9625 = vmul.f32 %v9609, %v9609
        %v9626 = vmul.f32 %v9610, %v9610
        %v9627 = vmul.f32 %v9611, %v9611
        %v9628 = vmul.f32 %v9612, %v9612
        %v9629 = vmul.f32 %v9613, %v9613
        %v9630 = vmul.f32 %v9614, %v9614
        %v9631 = vmul.f32 %v9615, -50.0
        %v9632 = vmul.f32 %v9616, -50.0
        %v9633 = vmul.f32 %v9617, -50.0
        %v9634 = vmul.f32 %v9618, -50.0
        %v9635 = vmul.f32 %v9619, -50.0
        %v9636 = vmul.f32 %v9620, -50.0
        %v9637 = vmul.f32 %v9621, -50.0
        %v9638 = vmul.f32 %v9622, -50.0
        %v9639 = vmul.f32 %v9623, -50.0
        %v9640 = vmul.f32 %v9624, -50.0
        %v9641 = vmul.f32 %v9625, -50.0
        %v9642 = vmul.f32 %v9626, -50.0
        %v9643 = vmul.f32 %v9627, -50.0
        %v9644 = vmul.f32 %v9628, -50.0
        %v9645 = vmul.f32 %v9629, -50.0
        %v9646 = vmul.f32 %v9630, -50.0
        %v9647 = vmul.f32 %v9631, 1.442695
        %v9648 = vpow.pop %v9647
        %v9649 = vmul.f32 %v9632, 1.442695
        %v9650 = vpow.pop %v9649
        %v9651 = vmul.f32 %v9633, 1.442695
        %v9652 = vpow.pop %v9651
        %v9653 = vmul.f32 %v9634, 1.442695
        %v9654 = vpow.pop %v9653
        %v9655 = vmul.f32 %v9635, 1.442695
        %v9656 = vpow.pop %v9655
        %v9657 = vmul.f32 %v9636, 1.442695
        %v9658 = vpow.pop %v9657
        %v9659 = vmul.f32 %v9637, 1.442695
        %v9660 = vpow.pop %v9659
        %v9661 = vmul.f32 %v9638, 1.442695
        %v9662 = vpow.pop %v9661
        %v9663 = vmul.f32 %v9639, 1.442695
        %v9664 = vpow.pop %v9663
        %v9665 = vmul.f32 %v9640, 1.442695
        %v9666 = vpow.pop %v9665
        %v9667 = vmul.f32 %v9641, 1.442695
        %v9668 = vpow.pop %v9667
        %v9669 = vmul.f32 %v9642, 1.442695
        %v9670 = vpow.pop %v9669
        %v9671 = vmul.f32 %v9643, 1.442695
        %v9672 = vpow.pop %v9671
        %v9673 = vmul.f32 %v9644, 1.442695
        %v9674 = vpow.pop %v9673
        %v9675 = vmul.f32 %v9645, 1.442695
        %v9676 = vpow.pop %v9675
        %v9677 = vmul.f32 %v9646, 1.442695
        %v9678 = vpow.pop %v9677
        %v9679 = vsel %vm7553, %v9648, 0.0
        %v9680 = vsel %vm7553, %v9650, 0.0
        %v9681 = vadd.f32 %v9679, %v9680
        %v9682 = vsel %vm7553, %v9652, 0.0
        %v9683 = vadd.f32 %v9681, %v9682
        %v9684 = vsel %vm7553, %v9654, 0.0
        %v9685 = vadd.f32 %v9683, %v9684
        %v9686 = vsel %vm7553, %v9656, 0.0
        %v9687 = vadd.f32 %v9685, %v9686
        %v9688 = vsel %vm7553, %v9658, 0.0
        %v9689 = vadd.f32 %v9687, %v9688
        %v9690 = vsel %vm7553, %v9660, 0.0
        %v9691 = vadd.f32 %v9689, %v9690
        %v9692 = vsel %vm7553, %v9662, 0.0
        %v9693 = vadd.f32 %v9691, %v9692
        %v9694 = vsel %vm7553, %v9664, 0.0
        %v9695 = vadd.f32 %v9693, %v9694
        %v9696 = vsel %vm7553, %v9666, 0.0
        %v9697 = vadd.f32 %v9695, %v9696
        %v9698 = vsel %vm7553, %v9668, 0.0
        %v9699 = vadd.f32 %v9697, %v9698
        %v9700 = vsel %vm7553, %v9670, 0.0
        %v9701 = vadd.f32 %v9699, %v9700
        %v9702 = vsel %vm7553, %v9672, 0.0
        %v9703 = vadd.f32 %v9701, %v9702
        %v9704 = vsel %vm7553, %v9674, 0.0
        %v9705 = vadd.f32 %v9703, %v9704
        %v9706 = vsel %vm7553, %v9676, 0.0
        %v9707 = vadd.f32 %v9705, %v9706
        %v9708 = vsel %vm7553, %v9678, 0.0
        %v9709 = vadd.f32 %v9707, %v9708
        %v9710 = vadd.f32 %v9709, 1.0
        %v9711 = vlog2.pop %v9710
        %v9712 = vmul.f32 %v9711, 0.6931472
        %v9713 = vsel %vm7553, %v9712, 0.0
        %v9714 = vrot.slane %v9713, 4
        %v9715 = vadd.f32 %v9713, %v9714
        %v9716 = vrot.slane %v9715, 2
        %v9717 = vadd.f32 %v9715, %v9716
        %v9718 = vrot.slane %v9717, 1
        %v9719 = vadd.f32 %v9717, %v9718
        %s9720 = sld [smem:[#allocation2 + $0x11]]
        %v9721 = vstv %s9720
        %v9722 = vmul.f32 %v9719, %v9721
        %v9723 = vadd.f32 %v9598, %v9722
        %v9724 = vsub.f32 %v7457, 0.85
        %v9725 = vsub.f32 %v7458, 0.85
        %v9726 = vsub.f32 %v7459, 0.85
        %v9727 = vsub.f32 %v7460, 0.85
        %v9728 = vsub.f32 %v7461, 0.85
        %v9729 = vsub.f32 %v7462, 0.85
        %v9730 = vsub.f32 %v7463, 0.85
        %v9731 = vsub.f32 %v7464, 0.85
        %v9732 = vsub.f32 %v7465, 0.85
        %v9733 = vsub.f32 %v7466, 0.85
        %v9734 = vsub.f32 %v7467, 0.85
        %v9735 = vsub.f32 %v7468, 0.85
        %v9736 = vsub.f32 %v7469, 0.85
        %v9737 = vsub.f32 %v7470, 0.85
        %v9738 = vsub.f32 %v7471, 0.85
        %v9739 = vsub.f32 %v7472, 0.85
        %v9740 = vmul.f32 %v9724, %v9724
        %v9741 = vmul.f32 %v9725, %v9725
        %v9742 = vmul.f32 %v9726, %v9726
        %v9743 = vmul.f32 %v9727, %v9727
        %v9744 = vmul.f32 %v9728, %v9728
        %v9745 = vmul.f32 %v9729, %v9729
        %v9746 = vmul.f32 %v9730, %v9730
        %v9747 = vmul.f32 %v9731, %v9731
        %v9748 = vmul.f32 %v9732, %v9732
        %v9749 = vmul.f32 %v9733, %v9733
        %v9750 = vmul.f32 %v9734, %v9734
        %v9751 = vmul.f32 %v9735, %v9735
        %v9752 = vmul.f32 %v9736, %v9736
        %v9753 = vmul.f32 %v9737, %v9737
        %v9754 = vmul.f32 %v9738, %v9738
        %v9755 = vmul.f32 %v9739, %v9739
        %v9756 = vmul.f32 %v9740, -50.0
        %v9757 = vmul.f32 %v9741, -50.0
        %v9758 = vmul.f32 %v9742, -50.0
        %v9759 = vmul.f32 %v9743, -50.0
        %v9760 = vmul.f32 %v9744, -50.0
        %v9761 = vmul.f32 %v9745, -50.0
        %v9762 = vmul.f32 %v9746, -50.0
        %v9763 = vmul.f32 %v9747, -50.0
        %v9764 = vmul.f32 %v9748, -50.0
        %v9765 = vmul.f32 %v9749, -50.0
        %v9766 = vmul.f32 %v9750, -50.0
        %v9767 = vmul.f32 %v9751, -50.0
        %v9768 = vmul.f32 %v9752, -50.0
        %v9769 = vmul.f32 %v9753, -50.0
        %v9770 = vmul.f32 %v9754, -50.0
        %v9771 = vmul.f32 %v9755, -50.0
        %v9772 = vmul.f32 %v9756, 1.442695
        %v9773 = vpow.pop %v9772
        %v9774 = vmul.f32 %v9757, 1.442695
        %v9775 = vpow.pop %v9774
        %v9776 = vmul.f32 %v9758, 1.442695
        %v9777 = vpow.pop %v9776
        %v9778 = vmul.f32 %v9759, 1.442695
        %v9779 = vpow.pop %v9778
        %v9780 = vmul.f32 %v9760, 1.442695
        %v9781 = vpow.pop %v9780
        %v9782 = vmul.f32 %v9761, 1.442695
        %v9783 = vpow.pop %v9782
        %v9784 = vmul.f32 %v9762, 1.442695
        %v9785 = vpow.pop %v9784
        %v9786 = vmul.f32 %v9763, 1.442695
        %v9787 = vpow.pop %v9786
        %v9788 = vmul.f32 %v9764, 1.442695
        %v9789 = vpow.pop %v9788
        %v9790 = vmul.f32 %v9765, 1.442695
        %v9791 = vpow.pop %v9790
        %v9792 = vmul.f32 %v9766, 1.442695
        %v9793 = vpow.pop %v9792
        %v9794 = vmul.f32 %v9767, 1.442695
        %v9795 = vpow.pop %v9794
        %v9796 = vmul.f32 %v9768, 1.442695
        %v9797 = vpow.pop %v9796
        %v9798 = vmul.f32 %v9769, 1.442695
        %v9799 = vpow.pop %v9798
        %v9800 = vmul.f32 %v9770, 1.442695
        %v9801 = vpow.pop %v9800
        %v9802 = vmul.f32 %v9771, 1.442695
        %v9803 = vpow.pop %v9802
        %v9804 = vsel %vm7553, %v9773, 0.0
        %v9805 = vsel %vm7553, %v9775, 0.0
        %v9806 = vadd.f32 %v9804, %v9805
        %v9807 = vsel %vm7553, %v9777, 0.0
        %v9808 = vadd.f32 %v9806, %v9807
        %v9809 = vsel %vm7553, %v9779, 0.0
        %v9810 = vadd.f32 %v9808, %v9809
        %v9811 = vsel %vm7553, %v9781, 0.0
        %v9812 = vadd.f32 %v9810, %v9811
        %v9813 = vsel %vm7553, %v9783, 0.0
        %v9814 = vadd.f32 %v9812, %v9813
        %v9815 = vsel %vm7553, %v9785, 0.0
        %v9816 = vadd.f32 %v9814, %v9815
        %v9817 = vsel %vm7553, %v9787, 0.0
        %v9818 = vadd.f32 %v9816, %v9817
        %v9819 = vsel %vm7553, %v9789, 0.0
        %v9820 = vadd.f32 %v9818, %v9819
        %v9821 = vsel %vm7553, %v9791, 0.0
        %v9822 = vadd.f32 %v9820, %v9821
        %v9823 = vsel %vm7553, %v9793, 0.0
        %v9824 = vadd.f32 %v9822, %v9823
        %v9825 = vsel %vm7553, %v9795, 0.0
        %v9826 = vadd.f32 %v9824, %v9825
        %v9827 = vsel %vm7553, %v9797, 0.0
        %v9828 = vadd.f32 %v9826, %v9827
        %v9829 = vsel %vm7553, %v9799, 0.0
        %v9830 = vadd.f32 %v9828, %v9829
        %v9831 = vsel %vm7553, %v9801, 0.0
        %v9832 = vadd.f32 %v9830, %v9831
        %v9833 = vsel %vm7553, %v9803, 0.0
        %v9834 = vadd.f32 %v9832, %v9833
        %v9835 = vadd.f32 %v9834, 1.0
        %v9836 = vlog2.pop %v9835
        %v9837 = vmul.f32 %v9836, 0.6931472
        %v9838 = vsel %vm7553, %v9837, 0.0
        %v9839 = vrot.slane %v9838, 4
        %v9840 = vadd.f32 %v9838, %v9839
        %v9841 = vrot.slane %v9840, 2
        %v9842 = vadd.f32 %v9840, %v9841
        %v9843 = vrot.slane %v9842, 1
        %v9844 = vadd.f32 %v9842, %v9843
        %s9845 = sld [smem:[#allocation2 + $0x12]]
        %v9846 = vstv %s9845
        %v9847 = vmul.f32 %v9844, %v9846
        %v9848 = vadd.f32 %v9723, %v9847
        %v9849 = vsub.f32 %v7457, 0.95
        %v9850 = vsub.f32 %v7458, 0.95
        %v9851 = vsub.f32 %v7459, 0.95
        %v9852 = vsub.f32 %v7460, 0.95
        %v9853 = vsub.f32 %v7461, 0.95
        %v9854 = vsub.f32 %v7462, 0.95
        %v9855 = vsub.f32 %v7463, 0.95
        %v9856 = vsub.f32 %v7464, 0.95
        %v9857 = vsub.f32 %v7465, 0.95
        %v9858 = vsub.f32 %v7466, 0.95
        %v9859 = vsub.f32 %v7467, 0.95
        %v9860 = vsub.f32 %v7468, 0.95
        %v9861 = vsub.f32 %v7469, 0.95
        %v9862 = vsub.f32 %v7470, 0.95
        %v9863 = vsub.f32 %v7471, 0.95
        %v9864 = vsub.f32 %v7472, 0.95
        %v9865 = vmul.f32 %v9849, %v9849
        %v9866 = vmul.f32 %v9850, %v9850
        %v9867 = vmul.f32 %v9851, %v9851
        %v9868 = vmul.f32 %v9852, %v9852
        %v9869 = vmul.f32 %v9853, %v9853
        %v9870 = vmul.f32 %v9854, %v9854
        %v9871 = vmul.f32 %v9855, %v9855
        %v9872 = vmul.f32 %v9856, %v9856
        %v9873 = vmul.f32 %v9857, %v9857
        %v9874 = vmul.f32 %v9858, %v9858
        %v9875 = vmul.f32 %v9859, %v9859
        %v9876 = vmul.f32 %v9860, %v9860
        %v9877 = vmul.f32 %v9861, %v9861
        %v9878 = vmul.f32 %v9862, %v9862
        %v9879 = vmul.f32 %v9863, %v9863
        %v9880 = vmul.f32 %v9864, %v9864
        %v9881 = vmul.f32 %v9865, -50.0
        %v9882 = vmul.f32 %v9866, -50.0
        %v9883 = vmul.f32 %v9867, -50.0
        %v9884 = vmul.f32 %v9868, -50.0
        %v9885 = vmul.f32 %v9869, -50.0
        %v9886 = vmul.f32 %v9870, -50.0
        %v9887 = vmul.f32 %v9871, -50.0
        %v9888 = vmul.f32 %v9872, -50.0
        %v9889 = vmul.f32 %v9873, -50.0
        %v9890 = vmul.f32 %v9874, -50.0
        %v9891 = vmul.f32 %v9875, -50.0
        %v9892 = vmul.f32 %v9876, -50.0
        %v9893 = vmul.f32 %v9877, -50.0
        %v9894 = vmul.f32 %v9878, -50.0
        %v9895 = vmul.f32 %v9879, -50.0
        %v9896 = vmul.f32 %v9880, -50.0
        %v9897 = vmul.f32 %v9881, 1.442695
        %v9898 = vpow.pop %v9897
        %v9899 = vmul.f32 %v9882, 1.442695
        %v9900 = vpow.pop %v9899
        %v9901 = vmul.f32 %v9883, 1.442695
        %v9902 = vpow.pop %v9901
        %v9903 = vmul.f32 %v9884, 1.442695
        %v9904 = vpow.pop %v9903
        %v9905 = vmul.f32 %v9885, 1.442695
        %v9906 = vpow.pop %v9905
        %v9907 = vmul.f32 %v9886, 1.442695
        %v9908 = vpow.pop %v9907
        %v9909 = vmul.f32 %v9887, 1.442695
        %v9910 = vpow.pop %v9909
        %v9911 = vmul.f32 %v9888, 1.442695
        %v9912 = vpow.pop %v9911
        %v9913 = vmul.f32 %v9889, 1.442695
        %v9914 = vpow.pop %v9913
        %v9915 = vmul.f32 %v9890, 1.442695
        %v9916 = vpow.pop %v9915
        %v9917 = vmul.f32 %v9891, 1.442695
        %v9918 = vpow.pop %v9917
        %v9919 = vmul.f32 %v9892, 1.442695
        %v9920 = vpow.pop %v9919
        %v9921 = vmul.f32 %v9893, 1.442695
        %v9922 = vpow.pop %v9921
        %v9923 = vmul.f32 %v9894, 1.442695
        %v9924 = vpow.pop %v9923
        %v9925 = vmul.f32 %v9895, 1.442695
        %v9926 = vpow.pop %v9925
        %v9927 = vmul.f32 %v9896, 1.442695
        %v9928 = vpow.pop %v9927
        %v9929 = vsel %vm7553, %v9898, 0.0
        %v9930 = vsel %vm7553, %v9900, 0.0
        %v9931 = vadd.f32 %v9929, %v9930
        %v9932 = vsel %vm7553, %v9902, 0.0
        %v9933 = vadd.f32 %v9931, %v9932
        %v9934 = vsel %vm7553, %v9904, 0.0
        %v9935 = vadd.f32 %v9933, %v9934
        %v9936 = vsel %vm7553, %v9906, 0.0
        %v9937 = vadd.f32 %v9935, %v9936
        %v9938 = vsel %vm7553, %v9908, 0.0
        %v9939 = vadd.f32 %v9937, %v9938
        %v9940 = vsel %vm7553, %v9910, 0.0
        %v9941 = vadd.f32 %v9939, %v9940
        %v9942 = vsel %vm7553, %v9912, 0.0
        %v9943 = vadd.f32 %v9941, %v9942
        %v9944 = vsel %vm7553, %v9914, 0.0
        %v9945 = vadd.f32 %v9943, %v9944
        %v9946 = vsel %vm7553, %v9916, 0.0
        %v9947 = vadd.f32 %v9945, %v9946
        %v9948 = vsel %vm7553, %v9918, 0.0
        %v9949 = vadd.f32 %v9947, %v9948
        %v9950 = vsel %vm7553, %v9920, 0.0
        %v9951 = vadd.f32 %v9949, %v9950
        %v9952 = vsel %vm7553, %v9922, 0.0
        %v9953 = vadd.f32 %v9951, %v9952
        %v9954 = vsel %vm7553, %v9924, 0.0
        %v9955 = vadd.f32 %v9953, %v9954
        %v9956 = vsel %vm7553, %v9926, 0.0
        %v9957 = vadd.f32 %v9955, %v9956
        %v9958 = vsel %vm7553, %v9928, 0.0
        %v9959 = vadd.f32 %v9957, %v9958
        %v9960 = vadd.f32 %v9959, 1.0
        %v9961 = vlog2.pop %v9960
        %v9962 = vmul.f32 %v9961, 0.6931472
        %v9963 = vsel %vm7553, %v9962, 0.0
        %v9964 = vrot.slane %v9963, 4
        %v9965 = vadd.f32 %v9963, %v9964
        %v9966 = vrot.slane %v9965, 2
        %v9967 = vadd.f32 %v9965, %v9966
        %v9968 = vrot.slane %v9967, 1
        %v9969 = vadd.f32 %v9967, %v9968
        %s9970 = sld [smem:[#allocation2 + $0x13]]
        %v9971 = vstv %s9970
        %v9972 = vmul.f32 %v9969, %v9971
        %v9973 = vadd.f32 %v9848, %v9972
        %v9974 = vsub.f32 %v7457, 1.0
        %v9975 = vsub.f32 %v7458, 1.0
        %v9976 = vsub.f32 %v7459, 1.0
        %v9977 = vsub.f32 %v7460, 1.0
        %v9978 = vsub.f32 %v7461, 1.0
        %v9979 = vsub.f32 %v7462, 1.0
        %v9980 = vsub.f32 %v7463, 1.0
        %v9981 = vsub.f32 %v7464, 1.0
        %v9982 = vsub.f32 %v7465, 1.0
        %v9983 = vsub.f32 %v7466, 1.0
        %v9984 = vsub.f32 %v7467, 1.0
        %v9985 = vsub.f32 %v7468, 1.0
        %v9986 = vsub.f32 %v7469, 1.0
        %v9987 = vsub.f32 %v7470, 1.0
        %v9988 = vsub.f32 %v7471, 1.0
        %v9989 = vsub.f32 %v7472, 1.0
        %v9990 = vmul.f32 %v9974, %v9974
        %v9991 = vmul.f32 %v9975, %v9975
        %v9992 = vmul.f32 %v9976, %v9976
        %v9993 = vmul.f32 %v9977, %v9977
        %v9994 = vmul.f32 %v9978, %v9978
        %v9995 = vmul.f32 %v9979, %v9979
        %v9996 = vmul.f32 %v9980, %v9980
        %v9997 = vmul.f32 %v9981, %v9981
        %v9998 = vmul.f32 %v9982, %v9982
        %v9999 = vmul.f32 %v9983, %v9983
        %v10000 = vmul.f32 %v9984, %v9984
        %v10001 = vmul.f32 %v9985, %v9985
        %v10002 = vmul.f32 %v9986, %v9986
        %v10003 = vmul.f32 %v9987, %v9987
        %v10004 = vmul.f32 %v9988, %v9988
        %v10005 = vmul.f32 %v9989, %v9989
        %v10006 = vmul.f32 %v9990, -500000.0
        %v10007 = vmul.f32 %v9991, -500000.0
        %v10008 = vmul.f32 %v9992, -500000.0
        %v10009 = vmul.f32 %v9993, -500000.0
        %v10010 = vmul.f32 %v9994, -500000.0
        %v10011 = vmul.f32 %v9995, -500000.0
        %v10012 = vmul.f32 %v9996, -500000.0
        %v10013 = vmul.f32 %v9997, -500000.0
        %v10014 = vmul.f32 %v9998, -500000.0
        %v10015 = vmul.f32 %v9999, -500000.0
        %v10016 = vmul.f32 %v10000, -500000.0
        %v10017 = vmul.f32 %v10001, -500000.0
        %v10018 = vmul.f32 %v10002, -500000.0
        %v10019 = vmul.f32 %v10003, -500000.0
        %v10020 = vmul.f32 %v10004, -500000.0
        %v10021 = vmul.f32 %v10005, -500000.0
        %v10022 = vmul.f32 %v10006, 1.442695
        %v10023 = vpow.pop %v10022
        %v10024 = vmul.f32 %v10007, 1.442695
        %v10025 = vpow.pop %v10024
        %v10026 = vmul.f32 %v10008, 1.442695
        %v10027 = vpow.pop %v10026
        %v10028 = vmul.f32 %v10009, 1.442695
        %v10029 = vpow.pop %v10028
        %v10030 = vmul.f32 %v10010, 1.442695
        %v10031 = vpow.pop %v10030
        %v10032 = vmul.f32 %v10011, 1.442695
        %v10033 = vpow.pop %v10032
        %v10034 = vmul.f32 %v10012, 1.442695
        %v10035 = vpow.pop %v10034
        %v10036 = vmul.f32 %v10013, 1.442695
        %v10037 = vpow.pop %v10036
        %v10038 = vmul.f32 %v10014, 1.442695
        %v10039 = vpow.pop %v10038
        %v10040 = vmul.f32 %v10015, 1.442695
        %v10041 = vpow.pop %v10040
        %v10042 = vmul.f32 %v10016, 1.442695
        %v10043 = vpow.pop %v10042
        %v10044 = vmul.f32 %v10017, 1.442695
        %v10045 = vpow.pop %v10044
        %v10046 = vmul.f32 %v10018, 1.442695
        %v10047 = vpow.pop %v10046
        %v10048 = vmul.f32 %v10019, 1.442695
        %v10049 = vpow.pop %v10048
        %v10050 = vmul.f32 %v10020, 1.442695
        %v10051 = vpow.pop %v10050
        %v10052 = vmul.f32 %v10021, 1.442695
        %v10053 = vpow.pop %v10052
        %v10054 = vsel %vm7553, %v10023, 0.0
        %v10055 = vsel %vm7553, %v10025, 0.0
        %v10056 = vadd.f32 %v10054, %v10055
        %v10057 = vsel %vm7553, %v10027, 0.0
        %v10058 = vadd.f32 %v10056, %v10057
        %v10059 = vsel %vm7553, %v10029, 0.0
        %v10060 = vadd.f32 %v10058, %v10059
        %v10061 = vsel %vm7553, %v10031, 0.0
        %v10062 = vadd.f32 %v10060, %v10061
        %v10063 = vsel %vm7553, %v10033, 0.0
        %v10064 = vadd.f32 %v10062, %v10063
        %v10065 = vsel %vm7553, %v10035, 0.0
        %v10066 = vadd.f32 %v10064, %v10065
        %v10067 = vsel %vm7553, %v10037, 0.0
        %v10068 = vadd.f32 %v10066, %v10067
        %v10069 = vsel %vm7553, %v10039, 0.0
        %v10070 = vadd.f32 %v10068, %v10069
        %v10071 = vsel %vm7553, %v10041, 0.0
        %v10072 = vadd.f32 %v10070, %v10071
        %v10073 = vsel %vm7553, %v10043, 0.0
        %v10074 = vadd.f32 %v10072, %v10073
        %v10075 = vsel %vm7553, %v10045, 0.0
        %v10076 = vadd.f32 %v10074, %v10075
        %v10077 = vsel %vm7553, %v10047, 0.0
        %v10078 = vadd.f32 %v10076, %v10077
        %v10079 = vsel %vm7553, %v10049, 0.0
        %v10080 = vadd.f32 %v10078, %v10079
        %v10081 = vsel %vm7553, %v10051, 0.0
        %v10082 = vadd.f32 %v10080, %v10081
        %v10083 = vsel %vm7553, %v10053, 0.0
        %v10084 = vadd.f32 %v10082, %v10083
        %v10085 = vadd.f32 %v10084, 1.0
        %v10086 = vlog2.pop %v10085
        %v10087 = vmul.f32 %v10086, 0.6931472
        %v10088 = vsel %vm7553, %v10087, 0.0
        %v10089 = vrot.slane %v10088, 4
        %v10090 = vadd.f32 %v10088, %v10089
        %v10091 = vrot.slane %v10090, 2
        %v10092 = vadd.f32 %v10090, %v10091
        %v10093 = vrot.slane %v10092, 1
        %v10094 = vadd.f32 %v10092, %v10093
        %s10095 = sld [smem:[#allocation2 + $0x14]]
        %v10096 = vstv %s10095
        %v10097 = vmul.f32 %v10094, %v10096
        %v10098 = vadd.f32 %v9973, %v10097
        %vm10099 = vcmask 57344
        %10100 = vst.msk [vmem:[%s191] sm:$0x1] %vm10099, %v10098
        %s10101 = sand.u32 %s99, 1
        %s10102 = scalar_lea.sflag [#allocation3], %s10101
        %s10103 = sand.u32 %s99, 1
        %s10104 = scalar_lea.vmem [#allocation5], %s10103
        // Predicated region
        $region37: #{tpu_custom_call.1} parent=31 // pred_check
          %p10105 = pneg %p109
        $region38: #{tpu_custom_call.1} parent=31 // pred_check_branch
          %10107 = sbr.rel (%p10105) target = $region40
        $region39: #{tpu_custom_call.1} parent=31 // pred_region
          %s10109 = ssub.s32 16, 16
          %10110 = vsyncadd %s10102, %s10109
          %s10111 = smul.addr %s18, 16
          %s10112 = scalar_lea.hbm %s3, %s10111
          %s10114 = sshll.u32 %s10104, 4
          %s10115 = int_to_ptr.vmem [resolvable:$true] %s10114
          %10117 = dma.vmem_to_hbm [thread:$0]  %s10115, 16, %s10112, %s10102
        $region40: #{tpu_custom_call.1} parent=31 // pred_fallthru
          _
      $region32: #{tpu_custom_call.1} parent=5 // pred_fallthru
        _
      %p10118 = scmp.le.s32.totalorder 2, %s13
      // Predicated region
      $region41: #{tpu_custom_call.1} parent=5 // pred_check
        %p10119 = pneg %p10118
      $region42: #{tpu_custom_call.1} parent=5 // pred_check_branch
        %10121 = sbr.rel (%p10119) target = $region44
      $region43: #{tpu_custom_call.1} parent=5 // pred_region
        %s10122 = ssub.s32 %s13, 2
        // Predicated region
        $region45: #{tpu_custom_call.1} parent=43 // pred_check
          %p10123 = pneg %p115
        $region46: #{tpu_custom_call.1} parent=43 // pred_check_branch
          %10125 = sbr.rel (%p10123) target = $region48
        $region47: #{tpu_custom_call.1} parent=43 // pred_region
          %s10126 = sand.u32 %s100, 1
          %s10127 = scalar_lea.sflag [#allocation3], %s10126
          %s10128 = sand.u32 %s100, 1
          %s10129 = scalar_lea.vmem [#allocation5], %s10128
          %10130 = dma.done %s10127, 16
        $region48: #{tpu_custom_call.1} parent=43 // pred_fallthru
          _
      $region44: #{tpu_custom_call.1} parent=5 // pred_fallthru
        _
    $region6: #{tpu_custom_call.1} parent=1 // loop_footer
      %s17 = sadd.s32 1, %s13
    $region7: #{tpu_custom_call.1} parent=1 // loop_footer_branch
      %12 = sbr.rel target = $region3
    $region8: #{tpu_custom_call.1} parent=1 // loop_exit
      _
    %10131 = vsyncpa [#allocation3], 1
    %s10132 = scalar_lea.sflag [#allocation3], 1
    %10133 = vsyncpa %s10132, 1
    %10134 = vsyncpa [#allocation4], 1
    %s10135 = scalar_lea.sflag [#allocation4], 1
    %10136 = vsyncpa %s10135, 1

</llo_original>
